<compile_context>
chip_gen: v5e
topology: v5e:2x2
jax: 0.10.0
libtpu: 0.0.40
codegen_flags: <defaults>
</compile_context>

<pallas_src>
import numpy as np

import jax
import jax.numpy as jnp
from jax.experimental import pallas as pl
from jax.experimental.pallas import tpu as pltpu

NUM_CLASSES = 10
IN_CHANNELS = 3
IN_SIZE = 16
OUTPUT_LAYERS = (0.33, 0.66)   # fractional tap positions, as in the PyTorch module
POOL_HW = 8                    # AdaptiveAvgPool2d((8, 8))
LANE = 128                     # lane-dense per-head output segment width

# featureList config: ("stem", cin, cout, act) = full 3x3 conv
#                     ("dwsep", cin, cout, act) = depthwise 3x3 + pointwise 1x1
FEATURE_LIST = (
    ("stem",  IN_CHANNELS, 16, "hswish"),
    ("dwsep", 16, 16, "relu"),
    ("dwsep", 16, 24, "relu"),
    ("dwsep", 24, 24, "hswish"),
    ("dwsep", 24, 40, "hswish"),
    ("dwsep", 40, 48, "hswish"),
)

H = W = IN_SIZE
HW = H * W                        # 256 lanes: whole image on the lane axis
Q = POOL_HW * POOL_HW             # 64 pooled positions
PAD_OFF = 128                     # lane-tile aligned offset of the image interior
PAD_LANES = PAD_OFF + HW + 128    # 512: [zero halo | image | zero halo]
MAX_CIN = max(cfg[1] for cfg in FEATURE_LIST[1:])   # 40


# ----------------------------- static config -----------------------------

def selected_layer_indices():
    n_branches = len(FEATURE_LIST)
    # Mirrors: np.round(np.array(output_layers) * n_branches).astype(int)
    idx = {int(round(f * n_branches)) for f in OUTPUT_LAYERS}
    # Guard against a fraction rounding to n_branches.
    return sorted(i for i in idx if 0 <= i < n_branches)


_SELECTED = selected_layer_indices()
_N_DWSEP = len(FEATURE_LIST) - 1
_N_HEADS = len(_SELECTED) + 1           # branches + final classifier
_N_INPUTS = 5 + 4 * _N_DWSEP + 2 * _N_HEADS


def _pool_matrix():
    """(64, 256): maps flattened (h, w) to 2x2-mean pooled (oh, ow)."""
    p = np.zeros((Q, HW), np.float32)
    for oh in range(POOL_HW):
        for ow in range(POOL_HW):
            for dh in range(2):
                for dw in range(2):
                    p[oh * POOL_HW + ow, (2 * oh + dh) * W + (2 * ow + dw)] = 0.25
    return p


def _w_boundary_masks():
    """(2, 256): row 0 kills w==0 (dw=0 taps), row 1 kills w==W-1 (dw=2 taps)."""
    w = np.arange(HW) % W
    m0 = (w != 0).astype(np.float32)
    m2 = (w != W - 1).astype(np.float32)
    return np.stack([m0, m2], axis=0)


_P1 = _pool_matrix()          # (64, 256)
_P1T = _P1.T.copy()           # (256, 64)
_W_MASKS = _w_boundary_masks()  # (2, 256)


def _act(x, act):
    if act == "relu":
        return jnp.maximum(x, 0.0)
    if act == "hswish":
        return x * jnp.clip(x + 3.0, 0.0, 6.0) * (1.0 / 6.0)
    return x


# ----------------------------- fused Pallas kernel -----------------------------

def fused_forward_kernel(*refs):
    """One batch element per grid step; all intermediates stay in VMEM/vregs.

    Activation layout: channels on sublanes, flattened H*W (=256) on lanes.
    """
    it = iter(refs[:_N_INPUTS])
    patches_ref = next(it)      # (27, 256) stem im2col block for this batch element
    masks_ref = next(it)        # (2, 256)  w-boundary masks
    p1t_ref = next(it)          # (256, 64) pooling matrix (transposed)
    stem_w_ref = next(it)       # (16, 27)
    stem_b_ref = next(it)       # (16, 1)
    dw_refs = [(next(it), next(it), next(it), next(it)) for _ in range(_N_DWSEP)]
    head_refs = [(next(it), next(it)) for _ in range(_N_HEADS)]

    out_ref = refs[_N_INPUTS]           # (1, 1, _N_HEADS * LANE)
    pad_ref = refs[_N_INPUTS + 1]       # (MAX_CIN, PAD_LANES) shared pad scratch
    flat_ref = refs[_N_INPUTS + 2]      # (1, C_last * 64) NCHW-flatten staging

    # Zero only the halo lanes of the shared pad scratch (interior is fully
    # overwritten by every layer before it is read).
    zeros_halo = jnp.zeros((MAX_CIN, PAD_OFF), jnp.float32)
    pad_ref[:, 0:PAD_OFF] = zeros_halo
    pad_ref[:, PAD_OFF + HW:PAD_LANES] = zeros_halo

    # ---- stem: single im2col matmul on the MXU (K = 9*Cin = 27) ----
    x = jnp.dot(stem_w_ref[...], patches_ref[...],
                preferred_element_type=jnp.float32) + stem_b_ref[...]
    x = _act(x, FEATURE_LIST[0][3])                       # (16, 256)

    taps = {}
    if 0 in _SELECTED:
        taps[0] = x

    # ---- depthwise-separable blocks, fully fused ----
    for li in range(1, len(FEATURE_LIST)):
        _, cin, cout, act = FEATURE_LIST[li]
        dw_w_ref, dw_b_ref, pw_w_ref, pw_b_ref = dw_refs[li - 1]

        # place the image interior into the zero-haloed flat pad buffer
        pad_ref[0:cin, PAD_OFF:PAD_OFF + HW] = x

        # depthwise 3x3: 9 shifted window reads (h-boundary handled by the zero
        # halo, w-boundary by 2 lane masks), accumulated on the VPU
        acc = jnp.zeros((cin, HW), jnp.float32)
        for dh in range(3):
            for dw in range(3):
                t = dh * 3 + dw
                s = (dh - 1) * W + (dw - 1)
                win = pad_ref[0:cin, PAD_OFF + s:PAD_OFF + s + HW]   # (cin, 256)
                term = win * dw_w_ref[:, t:t + 1]
                if dw == 0:
                    term = term * masks_ref[0:1, :]
                elif dw == 2:
                    term = term * masks_ref[1:2, :]
                acc = acc + term
        acc = _act(acc + dw_b_ref[...], act)

        # pointwise 1x1 conv: one (Cout, Cin) @ (Cin, 256) MXU matmul
        y = jnp.dot(pw_w_ref[...], acc,
                    preferred_element_type=jnp.float32) + pw_b_ref[...]
        x = _act(y, act)                                   # (cout, 256)

        if li in _SELECTED:
            taps[li] = x

    # ---- heads: branches (AvgPool 8x8 + NCHW flatten + Linear) and the final
    #      classifier (GAP + Linear, folded into the same pooled-flat form) ----
    head_inputs = [taps[li] for li in _SELECTED] + [x]
    for hi, tap in enumerate(head_inputs):
        w_ref, b_ref = head_refs[hi]
        c = tap.shape[0]
        pooled = jnp.dot(tap, p1t_ref[...],
                         preferred_element_type=jnp.float32)        # (c, 64)
        # NCHW-flatten (c-major, q-minor) via the staging row in VMEM
        for ci in range(c):
            flat_ref[0:1, ci * Q:(ci + 1) * Q] = pooled[ci:ci + 1, :]
        flat = flat_ref[0:1, 0:c * Q]                                # (1, c*64)
        logits = jnp.dot(flat, w_ref[...],
                         preferred_element_type=jnp.float32) + b_ref[...]   # (1,128)
        out_ref[0, :, hi * LANE:(hi + 1) * LANE] = logits


# ----------------------------- parameters -----------------------------

def init_params(key):
    params = {}
    keys = iter(jax.random.split(key, 64))

    def nrm(shape, scale):
        return scale * jax.random.normal(next(keys), shape, jnp.float32)

    for i, (kind, cin, cout, _) in enumerate(FEATURE_LIST):
        if kind == "stem":
            params[f"fl{i}_w"] = nrm((9, cin, cout), 0.1)
            params[f"fl{i}_b"] = jnp.zeros((1, cout), jnp.float32)
        else:
            params[f"fl{i}_dw_w"] = nrm((9, cin), 0.1)
            params[f"fl{i}_dw_b"] = jnp.zeros((1, cin), jnp.float32)
            params[f"fl{i}_pw_w"] = nrm((cin, cout), 0.1)
            params[f"fl{i}_pw_b"] = jnp.zeros((1, cout), jnp.float32)

    for bi, li in enumerate(_SELECTED):
        c = FEATURE_LIST[li][2]
        params[f"br{bi}_w"] = nrm((c * Q, NUM_CLASSES), 0.02)
        params[f"br{bi}_b"] = jnp.zeros((1, NUM_CLASSES), jnp.float32)

    c_last = FEATURE_LIST[-1][2]
    params["head_w"] = nrm((c_last, NUM_CLASSES), 0.1)
    params["head_b"] = jnp.zeros((1, NUM_CLASSES), jnp.float32)
    return params


def _pad_lanes(w):
    pad = LANE - w.shape[-1]
    return jnp.pad(w, [(0, 0)] * (w.ndim - 1) + [(0, pad)])


def prepare_kernel_params(params):
    kp = {
        # (9, Cin, Cout) -> (Cout, 9*Cin) for the im2col stem matmul
        "stem_w": params["fl0_w"].reshape(9 * IN_CHANNELS, FEATURE_LIST[0][2]).T,
        "stem_b": params["fl0_b"].reshape(FEATURE_LIST[0][2], 1),
    }
    for li in range(1, len(FEATURE_LIST)):
        kp[f"dw{li}_w"] = params[f"fl{li}_dw_w"].T                  # (cin, 9)
        kp[f"dw{li}_b"] = params[f"fl{li}_dw_b"].reshape(-1, 1)     # (cin, 1)
        kp[f"pw{li}_w"] = params[f"fl{li}_pw_w"].T                  # (cout, cin)
        kp[f"pw{li}_b"] = params[f"fl{li}_pw_b"].reshape(-1, 1)     # (cout, 1)
    # branch weights are already in torch NCHW-flatten row order (c*64 + q)
    for bi in range(len(_SELECTED)):
        kp[f"head{bi}_w"] = _pad_lanes(params[f"br{bi}_w"])         # (C*64, 128)
        kp[f"head{bi}_b"] = _pad_lanes(params[f"br{bi}_b"])         # (1, 128)
    # final classifier: GAP + Linear folded into the same pooled-flat form
    wf = jnp.repeat(params["head_w"], Q, axis=0) * (1.0 / float(Q))  # (C_last*64, 10)
    kp[f"head{len(_SELECTED)}_w"] = _pad_lanes(wf)
    kp[f"head{len(_SELECTED)}_b"] = _pad_lanes(params["head_b"])
    return kp


# ----------------------------- forward wrapper -----------------------------

def _full_spec(shape):
    nd = len(shape)
    return pl.BlockSpec(tuple(shape), lambda b, _nd=nd: (0,) * _nd)


def _stem_patches(x_nchw):
    """im2col of the raw input -> (27, n*256): rows = tap*Cin + c, cols = b*HW + hw."""
    n = x_nchw.shape[0]
    xp = jnp.pad(x_nchw, ((0, 0), (0, 0), (1, 1), (1, 1)))
    rows = []
    for dh in range(3):
        for dw in range(3):
            blk = xp[:, :, dh:dh + H, dw:dw + W].reshape(n, IN_CHANNELS, HW)
            rows.append(jnp.transpose(blk, (1, 0, 2)).reshape(IN_CHANNELS, n * HW))
    return jnp.concatenate(rows, axis=0)


def _fused_flops(n):
    per_batch = 2 * FEATURE_LIST[0][2] * (9 * IN_CHANNELS) * HW
    for _, cin, cout, _a in FEATURE_LIST[1:]:
        per_batch += 9 * 3 * cin * HW          # depthwise taps
        per_batch += 2 * cout * cin * HW       # pointwise matmul
    head_channels = [FEATURE_LIST[li][2] for li in _SELECTED] + [FEATURE_LIST[-1][2]]
    for c in head_channels:
        per_batch += 2 * c * HW * Q            # pooling matmul
        per_batch += 2 * c * Q * LANE          # head matmul
    return n * per_batch


def branched_mobilenet_forward(params, x_nchw):
    """Returns [[branch_0_logits, ..., final_logits]] like the torch module."""
    n = x_nchw.shape[0]
    x32 = x_nchw.astype(jnp.float32)
    patches = _stem_patches(x32)
    kp = prepare_kernel_params(params)

    inputs = [patches, jnp.asarray(_W_MASKS), jnp.asarray(_P1T),
              kp["stem_w"], kp["stem_b"]]
    in_specs = [
        pl.BlockSpec((9 * IN_CHANNELS, HW), lambda b: (0, b)),
        _full_spec(_W_MASKS.shape),
        _full_spec(_P1T.shape),
        _full_spec(kp["stem_w"].shape),
        _full_spec(kp["stem_b"].shape),
    ]
    for li in range(1, len(FEATURE_LIST)):
        for key in (f"dw{li}_w", f"dw{li}_b", f"pw{li}_w", f"pw{li}_b"):
            inputs.append(kp[key])
            in_specs.append(_full_spec(kp[key].shape))
    for hi in range(_N_HEADS):
        for key in (f"head{hi}_w", f"head{hi}_b"):
            inputs.append(kp[key])
            in_specs.append(_full_spec(kp[key].shape))
    assert len(inputs) == _N_INPUTS

    scratch = [
        pltpu.VMEM((MAX_CIN, PAD_LANES), jnp.float32),              # shared pad buffer
        pltpu.VMEM((1, FEATURE_LIST[-1][2] * Q), jnp.float32),      # flatten staging
    ]

    const_bytes = sum(int(np.prod(a.shape)) * 4 for a in inputs)
    scratch_bytes = (MAX_CIN * PAD_LANES + FEATURE_LIST[-1][2] * Q) * 4
    out_bytes = n * _N_HEADS * LANE * 4
    vmem_limit = int(2 * (const_bytes + scratch_bytes + out_bytes) + (8 << 20))

    out = pl.pallas_call(
        fused_forward_kernel,
        out_shape=jax.ShapeDtypeStruct((n, 1, _N_HEADS * LANE), jnp.float32),
        grid=(n,),
        in_specs=in_specs,
        out_specs=pl.BlockSpec((1, 1, _N_HEADS * LANE), lambda b: (b, 0, 0)),
        scratch_shapes=scratch,
        compiler_params=pltpu.CompilerParams(
            dimension_semantics=("parallel",),
            vmem_limit_bytes=vmem_limit),
        cost_estimate=pl.CostEstimate(
            flops=int(_fused_flops(n)),
            transcendentals=0,
            bytes_accessed=int(const_bytes + out_bytes)),
    )(*inputs)

    logits = [out[:, 0, h * LANE:h * LANE + NUM_CLASSES] for h in range(_N_HEADS)]
    return [logits]


# ----------------------------- pure-JAX reference (for self-check) -----------------------------

def _reference_forward(params, x_nchw):
    x = jnp.transpose(x_nchw, (0, 2, 3, 1)).astype(jnp.float32)   # NCHW -> NHWC
    taps = []
    for i, (kind, cin, cout, act) in enumerate(FEATURE_LIST):
        xp = jnp.pad(x, ((0, 0), (1, 1), (1, 1), (0, 0)))
        if kind == "stem":
            acc = jnp.zeros(x.shape[:3] + (cout,), jnp.float32)
            for dh in range(3):
                for dw in range(3):
                    acc = acc + jnp.einsum("nhwc,co->nhwo",
                                           xp[:, dh:dh + H, dw:dw + W, :],
                                           params[f"fl{i}_w"][dh * 3 + dw],
                                           precision="highest")
            x = _act(acc + params[f"fl{i}_b"], act)
        else:
            acc = jnp.zeros_like(x)
            for dh in range(3):
                for dw in range(3):
                    acc = acc + xp[:, dh:dh + H, dw:dw + W, :] * params[f"fl{i}_dw_w"][dh * 3 + dw]
            h = _act(acc + params[f"fl{i}_dw_b"][0], act)
            y = jnp.einsum("nhwc,co->nhwo", h, params[f"fl{i}_pw_w"],
                           precision="highest") + params[f"fl{i}_pw_b"]
            x = _act(y, act)
        if i in _SELECTED:
            taps.append(x)

    outs = []
    for bi, t in enumerate(taps):
        n, _, _, c = t.shape
        pooled = t.reshape(n, POOL_HW, 2, POOL_HW, 2, c).mean(axis=(2, 4))
        flat = jnp.transpose(pooled, (0, 3, 1, 2)).reshape(n, -1)   # torch Flatten (NCHW)
        outs.append(jnp.dot(flat, params[f"br{bi}_w"], precision="highest")
                    + params[f"br{bi}_b"])
    gap = x.mean(axis=(1, 2))
    outs.append(jnp.dot(gap, params["head_w"], precision="highest") + params["head_b"])
    return outs


# ----------------------------- main -----------------------------

if __name__ == "__main__":
    key = jax.random.PRNGKey(0)
    pkey, xkey = jax.random.split(key)
    params = init_params(pkey)
    x = jax.random.normal(xkey, (2, IN_CHANNELS, IN_SIZE, IN_SIZE), jnp.float32)

    fwd = jax.jit(branched_mobilenet_forward)
    out = fwd(params, x)
    jax.block_until_ready(out)

    assert isinstance(out, list) and len(out) == 1
    inner = out[0]
    assert len(inner) == len(_SELECTED) + 1
    for o in inner:
        assert o.shape == (2, NUM_CLASSES)

    # Numerical self-check against a pure-JAX reference of the same forward pass.
    ref = _reference_forward(params, x)
    for got, want in zip(inner, ref):
        np.testing.assert_allclose(np.asarray(got), np.asarray(want),
                                   rtol=5e-2, atol=5e-3)

    print("KERNEL_OK")
</pallas_src>

<mosaic_0001>
module attributes {stable_mosaic.version = 11 : i64} {
  func.func @fused_forward_kernel(%arg0: i32, %arg1: memref<27x256xf32, #tpu.memory_space<vmem>>, %arg2: memref<2x256xf32, #tpu.memory_space<vmem>>, %arg3: memref<256x64xf32, #tpu.memory_space<vmem>>, %arg4: memref<16x27xf32, #tpu.memory_space<vmem>>, %arg5: memref<16x1xf32, #tpu.memory_space<vmem>>, %arg6: memref<16x9xf32, #tpu.memory_space<vmem>>, %arg7: memref<16x1xf32, #tpu.memory_space<vmem>>, %arg8: memref<16x16xf32, #tpu.memory_space<vmem>>, %arg9: memref<16x1xf32, #tpu.memory_space<vmem>>, %arg10: memref<16x9xf32, #tpu.memory_space<vmem>>, %arg11: memref<16x1xf32, #tpu.memory_space<vmem>>, %arg12: memref<24x16xf32, #tpu.memory_space<vmem>>, %arg13: memref<24x1xf32, #tpu.memory_space<vmem>>, %arg14: memref<24x9xf32, #tpu.memory_space<vmem>>, %arg15: memref<24x1xf32, #tpu.memory_space<vmem>>, %arg16: memref<24x24xf32, #tpu.memory_space<vmem>>, %arg17: memref<24x1xf32, #tpu.memory_space<vmem>>, %arg18: memref<24x9xf32, #tpu.memory_space<vmem>>, %arg19: memref<24x1xf32, #tpu.memory_space<vmem>>, %arg20: memref<40x24xf32, #tpu.memory_space<vmem>>, %arg21: memref<40x1xf32, #tpu.memory_space<vmem>>, %arg22: memref<40x9xf32, #tpu.memory_space<vmem>>, %arg23: memref<40x1xf32, #tpu.memory_space<vmem>>, %arg24: memref<48x40xf32, #tpu.memory_space<vmem>>, %arg25: memref<48x1xf32, #tpu.memory_space<vmem>>, %arg26: memref<1536x128xf32, #tpu.memory_space<vmem>>, %arg27: memref<1x128xf32, #tpu.memory_space<vmem>>, %arg28: memref<2560x128xf32, #tpu.memory_space<vmem>>, %arg29: memref<1x128xf32, #tpu.memory_space<vmem>>, %arg30: memref<3072x128xf32, #tpu.memory_space<vmem>>, %arg31: memref<1x128xf32, #tpu.memory_space<vmem>>, %arg32: memref<1x1x384xf32, #tpu.memory_space<vmem>>, %arg33: memref<40x512xf32, #tpu.memory_space<vmem>>, %arg34: memref<1x3072xf32, #tpu.memory_space<vmem>>) attributes {dimension_semantics = [#tpu.dimension_semantics<parallel>], iteration_bounds = array<i64: 2>, scalar_prefetch = 0 : i64, scratch_operands = 2 : i64, tpu.core_type = #tpu.core_type<tc>, window_params = [{transform_indices = @transform_0, window_bounds = array<i64: 27, 256>}, {pipeline_mode = #tpu.pipeline_mode<synchronous>, transform_indices = @transform_1, window_bounds = array<i64: 2, 256>}, {pipeline_mode = #tpu.pipeline_mode<synchronous>, transform_indices = @transform_2, window_bounds = array<i64: 256, 64>}, {pipeline_mode = #tpu.pipeline_mode<synchronous>, transform_indices = @transform_3, window_bounds = array<i64: 16, 27>}, {pipeline_mode = #tpu.pipeline_mode<synchronous>, transform_indices = @transform_4, window_bounds = array<i64: 16, 1>}, {pipeline_mode = #tpu.pipeline_mode<synchronous>, transform_indices = @transform_5, window_bounds = array<i64: 16, 9>}, {pipeline_mode = #tpu.pipeline_mode<synchronous>, transform_indices = @transform_6, window_bounds = array<i64: 16, 1>}, {pipeline_mode = #tpu.pipeline_mode<synchronous>, transform_indices = @transform_7, window_bounds = array<i64: 16, 16>}, {pipeline_mode = #tpu.pipeline_mode<synchronous>, transform_indices = @transform_8, window_bounds = array<i64: 16, 1>}, {pipeline_mode = #tpu.pipeline_mode<synchronous>, transform_indices = @transform_9, window_bounds = array<i64: 16, 9>}, {pipeline_mode = #tpu.pipeline_mode<synchronous>, transform_indices = @transform_10, window_bounds = array<i64: 16, 1>}, {pipeline_mode = #tpu.pipeline_mode<synchronous>, transform_indices = @transform_11, window_bounds = array<i64: 24, 16>}, {pipeline_mode = #tpu.pipeline_mode<synchronous>, transform_indices = @transform_12, window_bounds = array<i64: 24, 1>}, {pipeline_mode = #tpu.pipeline_mode<synchronous>, transform_indices = @transform_13, window_bounds = array<i64: 24, 9>}, {pipeline_mode = #tpu.pipeline_mode<synchronous>, transform_indices = @transform_14, window_bounds = array<i64: 24, 1>}, {pipeline_mode = #tpu.pipeline_mode<synchronous>, transform_indices = @transform_15, window_bounds = array<i64: 24, 24>}, {pipeline_mode = #tpu.pipeline_mode<synchronous>, transform_indices = @transform_16, window_bounds = array<i64: 24, 1>}, {pipeline_mode = #tpu.pipeline_mode<synchronous>, transform_indices = @transform_17, window_bounds = array<i64: 24, 9>}, {pipeline_mode = #tpu.pipeline_mode<synchronous>, transform_indices = @transform_18, window_bounds = array<i64: 24, 1>}, {pipeline_mode = #tpu.pipeline_mode<synchronous>, transform_indices = @transform_19, window_bounds = array<i64: 40, 24>}, {pipeline_mode = #tpu.pipeline_mode<synchronous>, transform_indices = @transform_20, window_bounds = array<i64: 40, 1>}, {pipeline_mode = #tpu.pipeline_mode<synchronous>, transform_indices = @transform_21, window_bounds = array<i64: 40, 9>}, {pipeline_mode = #tpu.pipeline_mode<synchronous>, transform_indices = @transform_22, window_bounds = array<i64: 40, 1>}, {pipeline_mode = #tpu.pipeline_mode<synchronous>, transform_indices = @transform_23, window_bounds = array<i64: 48, 40>}, {pipeline_mode = #tpu.pipeline_mode<synchronous>, transform_indices = @transform_24, window_bounds = array<i64: 48, 1>}, {pipeline_mode = #tpu.pipeline_mode<synchronous>, transform_indices = @transform_25, window_bounds = array<i64: 1536, 128>}, {pipeline_mode = #tpu.pipeline_mode<synchronous>, transform_indices = @transform_26, window_bounds = array<i64: 1, 128>}, {pipeline_mode = #tpu.pipeline_mode<synchronous>, transform_indices = @transform_27, window_bounds = array<i64: 2560, 128>}, {pipeline_mode = #tpu.pipeline_mode<synchronous>, transform_indices = @transform_28, window_bounds = array<i64: 1, 128>}, {pipeline_mode = #tpu.pipeline_mode<synchronous>, transform_indices = @transform_29, window_bounds = array<i64: 3072, 128>}, {pipeline_mode = #tpu.pipeline_mode<synchronous>, transform_indices = @transform_30, window_bounds = array<i64: 1, 128>}, {transform_indices = @transform_31, window_bounds = array<i64: 1, 1, 384>}]} {
    %cst = arith.constant 0.000000e+00 : f32
    %0 = vector.broadcast %cst : f32 to vector<40x128xf32>
    %c0 = arith.constant 0 : index
    %c0_0 = arith.constant 0 : index
    %1 = vector.load %arg33[%c0, %c0_0] : memref<40x512xf32, #tpu.memory_space<vmem>>, vector<40x128xf32>
    tpu.vector_store %arg33[%c0, %c0_0], %0 {strides = array<i32>} : memref<40x512xf32, #tpu.memory_space<vmem>>, vector<40x128xf32>,
    %c0_1 = arith.constant 0 : index
    %c384 = arith.constant 384 : index
    %2 = vector.load %arg33[%c0_1, %c384] : memref<40x512xf32, #tpu.memory_space<vmem>>, vector<40x128xf32>
    tpu.vector_store %arg33[%c0_1, %c384], %0 {strides = array<i32>} : memref<40x512xf32, #tpu.memory_space<vmem>>, vector<40x128xf32>,
    %c0_2 = arith.constant 0 : index
    %c0_3 = arith.constant 0 : index
    %3 = vector.load %arg4[%c0_2, %c0_3] : memref<16x27xf32, #tpu.memory_space<vmem>>, vector<16x27xf32>
    %c0_4 = arith.constant 0 : index
    %c0_5 = arith.constant 0 : index
    %4 = vector.load %arg1[%c0_4, %c0_5] : memref<27x256xf32, #tpu.memory_space<vmem>>, vector<27x256xf32>
    %cst_6 = arith.constant dense<0.000000e+00> : vector<16x256xf32>
    %5 = tpu.matmul %3, %4, %cst_6 {dimension_numbers = #tpu.dot_dimension_numbers<[1], [0], [0], [1], [0, 0, 1, 1], [], []>} : vector<16x27xf32>, vector<27x256xf32>, vector<16x256xf32> -> vector<16x256xf32>
    %c0_7 = arith.constant 0 : index
    %c0_8 = arith.constant 0 : index
    %6 = vector.load %arg5[%c0_7, %c0_8] : memref<16x1xf32, #tpu.memory_space<vmem>>, vector<16x1xf32>
    %7 = vector.broadcast %6 : vector<16x1xf32> to vector<16x256xf32>
    %8 = arith.addf %5, %7 : vector<16x256xf32>
    %cst_9 = arith.constant 3.000000e+00 : f32
    %9 = vector.broadcast %cst_9 : f32 to vector<16x256xf32>
    %10 = arith.addf %8, %9 : vector<16x256xf32>
    %cst_10 = arith.constant 0.000000e+00 : f32
    %cst_11 = arith.constant 6.000000e+00 : f32
    %11 = vector.broadcast %cst_10 : f32 to vector<16x256xf32>
    %12 = arith.maximumf %11, %10 : vector<16x256xf32>
    %13 = vector.broadcast %cst_11 : f32 to vector<16x256xf32>
    %14 = arith.minimumf %13, %12 : vector<16x256xf32>
    %15 = arith.mulf %8, %14 : vector<16x256xf32>
    %cst_12 = arith.constant 0.166666672 : f32
    %16 = vector.broadcast %cst_12 : f32 to vector<16x256xf32>
    %17 = arith.mulf %15, %16 : vector<16x256xf32>
    %c0_13 = arith.constant 0 : index
    %c128 = arith.constant 128 : index
    %18 = vector.load %arg33[%c0_13, %c128] : memref<40x512xf32, #tpu.memory_space<vmem>>, vector<16x256xf32>
    tpu.vector_store %arg33[%c0_13, %c128], %17 {strides = array<i32>} : memref<40x512xf32, #tpu.memory_space<vmem>>, vector<16x256xf32>,
    %cst_14 = arith.constant 0.000000e+00 : f32
    %19 = vector.broadcast %cst_14 : f32 to vector<16x256xf32>
    %c0_15 = arith.constant 0 : index
    %c111 = arith.constant 111 : index
    %20 = vector.load %arg33[%c0_15, %c111] : memref<40x512xf32, #tpu.memory_space<vmem>>, vector<16x256xf32>
    %c0_16 = arith.constant 0 : index
    %c0_17 = arith.constant 0 : index
    %21 = vector.load %arg6[%c0_16, %c0_17] : memref<16x9xf32, #tpu.memory_space<vmem>>, vector<16x1xf32>
    %22 = vector.broadcast %21 : vector<16x1xf32> to vector<16x256xf32>
    %23 = arith.mulf %20, %22 : vector<16x256xf32>
    %c0_18 = arith.constant 0 : index
    %c0_19 = arith.constant 0 : index
    %24 = vector.load %arg2[%c0_18, %c0_19] : memref<2x256xf32, #tpu.memory_space<vmem>>, vector<1x256xf32>
    %25 = vector.broadcast %24 : vector<1x256xf32> to vector<16x256xf32>
    %26 = arith.mulf %23, %25 : vector<16x256xf32>
    %27 = arith.addf %19, %26 : vector<16x256xf32>
    %c0_20 = arith.constant 0 : index
    %c112 = arith.constant 112 : index
    %28 = vector.load %arg33[%c0_20, %c112] : memref<40x512xf32, #tpu.memory_space<vmem>>, vector<16x256xf32>
    %c0_21 = arith.constant 0 : index
    %c1 = arith.constant 1 : index
    %29 = vector.load %arg6[%c0_21, %c1] : memref<16x9xf32, #tpu.memory_space<vmem>>, vector<16x1xf32>
    %30 = vector.broadcast %29 : vector<16x1xf32> to vector<16x256xf32>
    %31 = arith.mulf %28, %30 : vector<16x256xf32>
    %32 = arith.addf %27, %31 : vector<16x256xf32>
    %c0_22 = arith.constant 0 : index
    %c113 = arith.constant 113 : index
    %33 = vector.load %arg33[%c0_22, %c113] : memref<40x512xf32, #tpu.memory_space<vmem>>, vector<16x256xf32>
    %c0_23 = arith.constant 0 : index
    %c2 = arith.constant 2 : index
    %34 = vector.load %arg6[%c0_23, %c2] : memref<16x9xf32, #tpu.memory_space<vmem>>, vector<16x1xf32>
    %35 = vector.broadcast %34 : vector<16x1xf32> to vector<16x256xf32>
    %36 = arith.mulf %33, %35 : vector<16x256xf32>
    %c1_24 = arith.constant 1 : index
    %c0_25 = arith.constant 0 : index
    %37 = vector.load %arg2[%c1_24, %c0_25] : memref<2x256xf32, #tpu.memory_space<vmem>>, vector<1x256xf32>
    %38 = vector.broadcast %37 : vector<1x256xf32> to vector<16x256xf32>
    %39 = arith.mulf %36, %38 : vector<16x256xf32>
    %40 = arith.addf %32, %39 : vector<16x256xf32>
    %c0_26 = arith.constant 0 : index
    %c127 = arith.constant 127 : index
    %41 = vector.load %arg33[%c0_26, %c127] : memref<40x512xf32, #tpu.memory_space<vmem>>, vector<16x256xf32>
    %c0_27 = arith.constant 0 : index
    %c3 = arith.constant 3 : index
    %42 = vector.load %arg6[%c0_27, %c3] : memref<16x9xf32, #tpu.memory_space<vmem>>, vector<16x1xf32>
    %43 = vector.broadcast %42 : vector<16x1xf32> to vector<16x256xf32>
    %44 = arith.mulf %41, %43 : vector<16x256xf32>
    %c0_28 = arith.constant 0 : index
    %c0_29 = arith.constant 0 : index
    %45 = vector.load %arg2[%c0_28, %c0_29] : memref<2x256xf32, #tpu.memory_space<vmem>>, vector<1x256xf32>
    %46 = vector.broadcast %45 : vector<1x256xf32> to vector<16x256xf32>
    %47 = arith.mulf %44, %46 : vector<16x256xf32>
    %48 = arith.addf %40, %47 : vector<16x256xf32>
    %c0_30 = arith.constant 0 : index
    %c128_31 = arith.constant 128 : index
    %49 = vector.load %arg33[%c0_30, %c128_31] : memref<40x512xf32, #tpu.memory_space<vmem>>, vector<16x256xf32>
    %c0_32 = arith.constant 0 : index
    %c4 = arith.constant 4 : index
    %50 = vector.load %arg6[%c0_32, %c4] : memref<16x9xf32, #tpu.memory_space<vmem>>, vector<16x1xf32>
    %51 = vector.broadcast %50 : vector<16x1xf32> to vector<16x256xf32>
    %52 = arith.mulf %49, %51 : vector<16x256xf32>
    %53 = arith.addf %48, %52 : vector<16x256xf32>
    %c0_33 = arith.constant 0 : index
    %c129 = arith.constant 129 : index
    %54 = vector.load %arg33[%c0_33, %c129] : memref<40x512xf32, #tpu.memory_space<vmem>>, vector<16x256xf32>
    %c0_34 = arith.constant 0 : index
    %c5 = arith.constant 5 : index
    %55 = vector.load %arg6[%c0_34, %c5] : memref<16x9xf32, #tpu.memory_space<vmem>>, vector<16x1xf32>
    %56 = vector.broadcast %55 : vector<16x1xf32> to vector<16x256xf32>
    %57 = arith.mulf %54, %56 : vector<16x256xf32>
    %c1_35 = arith.constant 1 : index
    %c0_36 = arith.constant 0 : index
    %58 = vector.load %arg2[%c1_35, %c0_36] : memref<2x256xf32, #tpu.memory_space<vmem>>, vector<1x256xf32>
    %59 = vector.broadcast %58 : vector<1x256xf32> to vector<16x256xf32>
    %60 = arith.mulf %57, %59 : vector<16x256xf32>
    %61 = arith.addf %53, %60 : vector<16x256xf32>
    %c0_37 = arith.constant 0 : index
    %c143 = arith.constant 143 : index
    %62 = vector.load %arg33[%c0_37, %c143] : memref<40x512xf32, #tpu.memory_space<vmem>>, vector<16x256xf32>
    %c0_38 = arith.constant 0 : index
    %c6 = arith.constant 6 : index
    %63 = vector.load %arg6[%c0_38, %c6] : memref<16x9xf32, #tpu.memory_space<vmem>>, vector<16x1xf32>
    %64 = vector.broadcast %63 : vector<16x1xf32> to vector<16x256xf32>
    %65 = arith.mulf %62, %64 : vector<16x256xf32>
    %c0_39 = arith.constant 0 : index
    %c0_40 = arith.constant 0 : index
    %66 = vector.load %arg2[%c0_39, %c0_40] : memref<2x256xf32, #tpu.memory_space<vmem>>, vector<1x256xf32>
    %67 = vector.broadcast %66 : vector<1x256xf32> to vector<16x256xf32>
    %68 = arith.mulf %65, %67 : vector<16x256xf32>
    %69 = arith.addf %61, %68 : vector<16x256xf32>
    %c0_41 = arith.constant 0 : index
    %c144 = arith.constant 144 : index
    %70 = vector.load %arg33[%c0_41, %c144] : memref<40x512xf32, #tpu.memory_space<vmem>>, vector<16x256xf32>
    %c0_42 = arith.constant 0 : index
    %c7 = arith.constant 7 : index
    %71 = vector.load %arg6[%c0_42, %c7] : memref<16x9xf32, #tpu.memory_space<vmem>>, vector<16x1xf32>
    %72 = vector.broadcast %71 : vector<16x1xf32> to vector<16x256xf32>
    %73 = arith.mulf %70, %72 : vector<16x256xf32>
    %74 = arith.addf %69, %73 : vector<16x256xf32>
    %c0_43 = arith.constant 0 : index
    %c145 = arith.constant 145 : index
    %75 = vector.load %arg33[%c0_43, %c145] : memref<40x512xf32, #tpu.memory_space<vmem>>, vector<16x256xf32>
    %c0_44 = arith.constant 0 : index
    %c8 = arith.constant 8 : index
    %76 = vector.load %arg6[%c0_44, %c8] : memref<16x9xf32, #tpu.memory_space<vmem>>, vector<16x1xf32>
    %77 = vector.broadcast %76 : vector<16x1xf32> to vector<16x256xf32>
    %78 = arith.mulf %75, %77 : vector<16x256xf32>
    %c1_45 = arith.constant 1 : index
    %c0_46 = arith.constant 0 : index
    %79 = vector.load %arg2[%c1_45, %c0_46] : memref<2x256xf32, #tpu.memory_space<vmem>>, vector<1x256xf32>
    %80 = vector.broadcast %79 : vector<1x256xf32> to vector<16x256xf32>
    %81 = arith.mulf %78, %80 : vector<16x256xf32>
    %82 = arith.addf %74, %81 : vector<16x256xf32>
    %c0_47 = arith.constant 0 : index
    %c0_48 = arith.constant 0 : index
    %83 = vector.load %arg7[%c0_47, %c0_48] : memref<16x1xf32, #tpu.memory_space<vmem>>, vector<16x1xf32>
    %84 = vector.broadcast %83 : vector<16x1xf32> to vector<16x256xf32>
    %85 = arith.addf %82, %84 : vector<16x256xf32>
    %cst_49 = arith.constant 0.000000e+00 : f32
    %86 = vector.broadcast %cst_49 : f32 to vector<16x256xf32>
    %87 = arith.maximumf %85, %86 : vector<16x256xf32>
    %c0_50 = arith.constant 0 : index
    %c0_51 = arith.constant 0 : index
    %88 = vector.load %arg8[%c0_50, %c0_51] : memref<16x16xf32, #tpu.memory_space<vmem>>, vector<16x16xf32>
    %cst_52 = arith.constant dense<0.000000e+00> : vector<16x256xf32>
    %89 = tpu.matmul %88, %87, %cst_52 {dimension_numbers = #tpu.dot_dimension_numbers<[1], [0], [0], [1], [0, 0, 1, 1], [], []>} : vector<16x16xf32>, vector<16x256xf32>, vector<16x256xf32> -> vector<16x256xf32>
    %c0_53 = arith.constant 0 : index
    %c0_54 = arith.constant 0 : index
    %90 = vector.load %arg9[%c0_53, %c0_54] : memref<16x1xf32, #tpu.memory_space<vmem>>, vector<16x1xf32>
    %91 = vector.broadcast %90 : vector<16x1xf32> to vector<16x256xf32>
    %92 = arith.addf %89, %91 : vector<16x256xf32>
    %cst_55 = arith.constant 0.000000e+00 : f32
    %93 = vector.broadcast %cst_55 : f32 to vector<16x256xf32>
    %94 = arith.maximumf %92, %93 : vector<16x256xf32>
    %c0_56 = arith.constant 0 : index
    %c128_57 = arith.constant 128 : index
    %95 = vector.load %arg33[%c0_56, %c128_57] : memref<40x512xf32, #tpu.memory_space<vmem>>, vector<16x256xf32>
    tpu.vector_store %arg33[%c0_56, %c128_57], %94 {strides = array<i32>} : memref<40x512xf32, #tpu.memory_space<vmem>>, vector<16x256xf32>,
    %cst_58 = arith.constant 0.000000e+00 : f32
    %96 = vector.broadcast %cst_58 : f32 to vector<16x256xf32>
    %c0_59 = arith.constant 0 : index
    %c111_60 = arith.constant 111 : index
    %97 = vector.load %arg33[%c0_59, %c111_60] : memref<40x512xf32, #tpu.memory_space<vmem>>, vector<16x256xf32>
    %c0_61 = arith.constant 0 : index
    %c0_62 = arith.constant 0 : index
    %98 = vector.load %arg10[%c0_61, %c0_62] : memref<16x9xf32, #tpu.memory_space<vmem>>, vector<16x1xf32>
    %99 = vector.broadcast %98 : vector<16x1xf32> to vector<16x256xf32>
    %100 = arith.mulf %97, %99 : vector<16x256xf32>
    %c0_63 = arith.constant 0 : index
    %c0_64 = arith.constant 0 : index
    %101 = vector.load %arg2[%c0_63, %c0_64] : memref<2x256xf32, #tpu.memory_space<vmem>>, vector<1x256xf32>
    %102 = vector.broadcast %101 : vector<1x256xf32> to vector<16x256xf32>
    %103 = arith.mulf %100, %102 : vector<16x256xf32>
    %104 = arith.addf %96, %103 : vector<16x256xf32>
    %c0_65 = arith.constant 0 : index
    %c112_66 = arith.constant 112 : index
    %105 = vector.load %arg33[%c0_65, %c112_66] : memref<40x512xf32, #tpu.memory_space<vmem>>, vector<16x256xf32>
    %c0_67 = arith.constant 0 : index
    %c1_68 = arith.constant 1 : index
    %106 = vector.load %arg10[%c0_67, %c1_68] : memref<16x9xf32, #tpu.memory_space<vmem>>, vector<16x1xf32>
    %107 = vector.broadcast %106 : vector<16x1xf32> to vector<16x256xf32>
    %108 = arith.mulf %105, %107 : vector<16x256xf32>
    %109 = arith.addf %104, %108 : vector<16x256xf32>
    %c0_69 = arith.constant 0 : index
    %c113_70 = arith.constant 113 : index
    %110 = vector.load %arg33[%c0_69, %c113_70] : memref<40x512xf32, #tpu.memory_space<vmem>>, vector<16x256xf32>
    %c0_71 = arith.constant 0 : index
    %c2_72 = arith.constant 2 : index
    %111 = vector.load %arg10[%c0_71, %c2_72] : memref<16x9xf32, #tpu.memory_space<vmem>>, vector<16x1xf32>
    %112 = vector.broadcast %111 : vector<16x1xf32> to vector<16x256xf32>
    %113 = arith.mulf %110, %112 : vector<16x256xf32>
    %c1_73 = arith.constant 1 : index
    %c0_74 = arith.constant 0 : index
    %114 = vector.load %arg2[%c1_73, %c0_74] : memref<2x256xf32, #tpu.memory_space<vmem>>, vector<1x256xf32>
    %115 = vector.broadcast %114 : vector<1x256xf32> to vector<16x256xf32>
    %116 = arith.mulf %113, %115 : vector<16x256xf32>
    %117 = arith.addf %109, %116 : vector<16x256xf32>
    %c0_75 = arith.constant 0 : index
    %c127_76 = arith.constant 127 : index
    %118 = vector.load %arg33[%c0_75, %c127_76] : memref<40x512xf32, #tpu.memory_space<vmem>>, vector<16x256xf32>
    %c0_77 = arith.constant 0 : index
    %c3_78 = arith.constant 3 : index
    %119 = vector.load %arg10[%c0_77, %c3_78] : memref<16x9xf32, #tpu.memory_space<vmem>>, vector<16x1xf32>
    %120 = vector.broadcast %119 : vector<16x1xf32> to vector<16x256xf32>
    %121 = arith.mulf %118, %120 : vector<16x256xf32>
    %c0_79 = arith.constant 0 : index
    %c0_80 = arith.constant 0 : index
    %122 = vector.load %arg2[%c0_79, %c0_80] : memref<2x256xf32, #tpu.memory_space<vmem>>, vector<1x256xf32>
    %123 = vector.broadcast %122 : vector<1x256xf32> to vector<16x256xf32>
    %124 = arith.mulf %121, %123 : vector<16x256xf32>
    %125 = arith.addf %117, %124 : vector<16x256xf32>
    %c0_81 = arith.constant 0 : index
    %c128_82 = arith.constant 128 : index
    %126 = vector.load %arg33[%c0_81, %c128_82] : memref<40x512xf32, #tpu.memory_space<vmem>>, vector<16x256xf32>
    %c0_83 = arith.constant 0 : index
    %c4_84 = arith.constant 4 : index
    %127 = vector.load %arg10[%c0_83, %c4_84] : memref<16x9xf32, #tpu.memory_space<vmem>>, vector<16x1xf32>
    %128 = vector.broadcast %127 : vector<16x1xf32> to vector<16x256xf32>
    %129 = arith.mulf %126, %128 : vector<16x256xf32>
    %130 = arith.addf %125, %129 : vector<16x256xf32>
    %c0_85 = arith.constant 0 : index
    %c129_86 = arith.constant 129 : index
    %131 = vector.load %arg33[%c0_85, %c129_86] : memref<40x512xf32, #tpu.memory_space<vmem>>, vector<16x256xf32>
    %c0_87 = arith.constant 0 : index
    %c5_88 = arith.constant 5 : index
    %132 = vector.load %arg10[%c0_87, %c5_88] : memref<16x9xf32, #tpu.memory_space<vmem>>, vector<16x1xf32>
    %133 = vector.broadcast %132 : vector<16x1xf32> to vector<16x256xf32>
    %134 = arith.mulf %131, %133 : vector<16x256xf32>
    %c1_89 = arith.constant 1 : index
    %c0_90 = arith.constant 0 : index
    %135 = vector.load %arg2[%c1_89, %c0_90] : memref<2x256xf32, #tpu.memory_space<vmem>>, vector<1x256xf32>
    %136 = vector.broadcast %135 : vector<1x256xf32> to vector<16x256xf32>
    %137 = arith.mulf %134, %136 : vector<16x256xf32>
    %138 = arith.addf %130, %137 : vector<16x256xf32>
    %c0_91 = arith.constant 0 : index
    %c143_92 = arith.constant 143 : index
    %139 = vector.load %arg33[%c0_91, %c143_92] : memref<40x512xf32, #tpu.memory_space<vmem>>, vector<16x256xf32>
    %c0_93 = arith.constant 0 : index
    %c6_94 = arith.constant 6 : index
    %140 = vector.load %arg10[%c0_93, %c6_94] : memref<16x9xf32, #tpu.memory_space<vmem>>, vector<16x1xf32>
    %141 = vector.broadcast %140 : vector<16x1xf32> to vector<16x256xf32>
    %142 = arith.mulf %139, %141 : vector<16x256xf32>
    %c0_95 = arith.constant 0 : index
    %c0_96 = arith.constant 0 : index
    %143 = vector.load %arg2[%c0_95, %c0_96] : memref<2x256xf32, #tpu.memory_space<vmem>>, vector<1x256xf32>
    %144 = vector.broadcast %143 : vector<1x256xf32> to vector<16x256xf32>
    %145 = arith.mulf %142, %144 : vector<16x256xf32>
    %146 = arith.addf %138, %145 : vector<16x256xf32>
    %c0_97 = arith.constant 0 : index
    %c144_98 = arith.constant 144 : index
    %147 = vector.load %arg33[%c0_97, %c144_98] : memref<40x512xf32, #tpu.memory_space<vmem>>, vector<16x256xf32>
    %c0_99 = arith.constant 0 : index
    %c7_100 = arith.constant 7 : index
    %148 = vector.load %arg10[%c0_99, %c7_100] : memref<16x9xf32, #tpu.memory_space<vmem>>, vector<16x1xf32>
    %149 = vector.broadcast %148 : vector<16x1xf32> to vector<16x256xf32>
    %150 = arith.mulf %147, %149 : vector<16x256xf32>
    %151 = arith.addf %146, %150 : vector<16x256xf32>
    %c0_101 = arith.constant 0 : index
    %c145_102 = arith.constant 145 : index
    %152 = vector.load %arg33[%c0_101, %c145_102] : memref<40x512xf32, #tpu.memory_space<vmem>>, vector<16x256xf32>
    %c0_103 = arith.constant 0 : index
    %c8_104 = arith.constant 8 : index
    %153 = vector.load %arg10[%c0_103, %c8_104] : memref<16x9xf32, #tpu.memory_space<vmem>>, vector<16x1xf32>
    %154 = vector.broadcast %153 : vector<16x1xf32> to vector<16x256xf32>
    %155 = arith.mulf %152, %154 : vector<16x256xf32>
    %c1_105 = arith.constant 1 : index
    %c0_106 = arith.constant 0 : index
    %156 = vector.load %arg2[%c1_105, %c0_106] : memref<2x256xf32, #tpu.memory_space<vmem>>, vector<1x256xf32>
    %157 = vector.broadcast %156 : vector<1x256xf32> to vector<16x256xf32>
    %158 = arith.mulf %155, %157 : vector<16x256xf32>
    %159 = arith.addf %151, %158 : vector<16x256xf32>
    %c0_107 = arith.constant 0 : index
    %c0_108 = arith.constant 0 : index
    %160 = vector.load %arg11[%c0_107, %c0_108] : memref<16x1xf32, #tpu.memory_space<vmem>>, vector<16x1xf32>
    %161 = vector.broadcast %160 : vector<16x1xf32> to vector<16x256xf32>
    %162 = arith.addf %159, %161 : vector<16x256xf32>
    %cst_109 = arith.constant 0.000000e+00 : f32
    %163 = vector.broadcast %cst_109 : f32 to vector<16x256xf32>
    %164 = arith.maximumf %162, %163 : vector<16x256xf32>
    %c0_110 = arith.constant 0 : index
    %c0_111 = arith.constant 0 : index
    %165 = vector.load %arg12[%c0_110, %c0_111] : memref<24x16xf32, #tpu.memory_space<vmem>>, vector<24x16xf32>
    %cst_112 = arith.constant dense<0.000000e+00> : vector<24x256xf32>
    %166 = tpu.matmul %165, %164, %cst_112 {dimension_numbers = #tpu.dot_dimension_numbers<[1], [0], [0], [1], [0, 0, 1, 1], [], []>} : vector<24x16xf32>, vector<16x256xf32>, vector<24x256xf32> -> vector<24x256xf32>
    %c0_113 = arith.constant 0 : index
    %c0_114 = arith.constant 0 : index
    %167 = vector.load %arg13[%c0_113, %c0_114] : memref<24x1xf32, #tpu.memory_space<vmem>>, vector<24x1xf32>
    %168 = vector.broadcast %167 : vector<24x1xf32> to vector<24x256xf32>
    %169 = arith.addf %166, %168 : vector<24x256xf32>
    %cst_115 = arith.constant 0.000000e+00 : f32
    %170 = vector.broadcast %cst_115 : f32 to vector<24x256xf32>
    %171 = arith.maximumf %169, %170 : vector<24x256xf32>
    %c0_116 = arith.constant 0 : index
    %c128_117 = arith.constant 128 : index
    %172 = vector.load %arg33[%c0_116, %c128_117] : memref<40x512xf32, #tpu.memory_space<vmem>>, vector<24x256xf32>
    tpu.vector_store %arg33[%c0_116, %c128_117], %171 {strides = array<i32>} : memref<40x512xf32, #tpu.memory_space<vmem>>, vector<24x256xf32>,
    %cst_118 = arith.constant 0.000000e+00 : f32
    %173 = vector.broadcast %cst_118 : f32 to vector<24x256xf32>
    %c0_119 = arith.constant 0 : index
    %c111_120 = arith.constant 111 : index
    %174 = vector.load %arg33[%c0_119, %c111_120] : memref<40x512xf32, #tpu.memory_space<vmem>>, vector<24x256xf32>
    %c0_121 = arith.constant 0 : index
    %c0_122 = arith.constant 0 : index
    %175 = vector.load %arg14[%c0_121, %c0_122] : memref<24x9xf32, #tpu.memory_space<vmem>>, vector<24x1xf32>
    %176 = vector.broadcast %175 : vector<24x1xf32> to vector<24x256xf32>
    %177 = arith.mulf %174, %176 : vector<24x256xf32>
    %c0_123 = arith.constant 0 : index
    %c0_124 = arith.constant 0 : index
    %178 = vector.load %arg2[%c0_123, %c0_124] : memref<2x256xf32, #tpu.memory_space<vmem>>, vector<1x256xf32>
    %179 = vector.broadcast %178 : vector<1x256xf32> to vector<24x256xf32>
    %180 = arith.mulf %177, %179 : vector<24x256xf32>
    %181 = arith.addf %173, %180 : vector<24x256xf32>
    %c0_125 = arith.constant 0 : index
    %c112_126 = arith.constant 112 : index
    %182 = vector.load %arg33[%c0_125, %c112_126] : memref<40x512xf32, #tpu.memory_space<vmem>>, vector<24x256xf32>
    %c0_127 = arith.constant 0 : index
    %c1_128 = arith.constant 1 : index
    %183 = vector.load %arg14[%c0_127, %c1_128] : memref<24x9xf32, #tpu.memory_space<vmem>>, vector<24x1xf32>
    %184 = vector.broadcast %183 : vector<24x1xf32> to vector<24x256xf32>
    %185 = arith.mulf %182, %184 : vector<24x256xf32>
    %186 = arith.addf %181, %185 : vector<24x256xf32>
    %c0_129 = arith.constant 0 : index
    %c113_130 = arith.constant 113 : index
    %187 = vector.load %arg33[%c0_129, %c113_130] : memref<40x512xf32, #tpu.memory_space<vmem>>, vector<24x256xf32>
    %c0_131 = arith.constant 0 : index
    %c2_132 = arith.constant 2 : index
    %188 = vector.load %arg14[%c0_131, %c2_132] : memref<24x9xf32, #tpu.memory_space<vmem>>, vector<24x1xf32>
    %189 = vector.broadcast %188 : vector<24x1xf32> to vector<24x256xf32>
    %190 = arith.mulf %187, %189 : vector<24x256xf32>
    %c1_133 = arith.constant 1 : index
    %c0_134 = arith.constant 0 : index
    %191 = vector.load %arg2[%c1_133, %c0_134] : memref<2x256xf32, #tpu.memory_space<vmem>>, vector<1x256xf32>
    %192 = vector.broadcast %191 : vector<1x256xf32> to vector<24x256xf32>
    %193 = arith.mulf %190, %192 : vector<24x256xf32>
    %194 = arith.addf %186, %193 : vector<24x256xf32>
    %c0_135 = arith.constant 0 : index
    %c127_136 = arith.constant 127 : index
    %195 = vector.load %arg33[%c0_135, %c127_136] : memref<40x512xf32, #tpu.memory_space<vmem>>, vector<24x256xf32>
    %c0_137 = arith.constant 0 : index
    %c3_138 = arith.constant 3 : index
    %196 = vector.load %arg14[%c0_137, %c3_138] : memref<24x9xf32, #tpu.memory_space<vmem>>, vector<24x1xf32>
    %197 = vector.broadcast %196 : vector<24x1xf32> to vector<24x256xf32>
    %198 = arith.mulf %195, %197 : vector<24x256xf32>
    %c0_139 = arith.constant 0 : index
    %c0_140 = arith.constant 0 : index
    %199 = vector.load %arg2[%c0_139, %c0_140] : memref<2x256xf32, #tpu.memory_space<vmem>>, vector<1x256xf32>
    %200 = vector.broadcast %199 : vector<1x256xf32> to vector<24x256xf32>
    %201 = arith.mulf %198, %200 : vector<24x256xf32>
    %202 = arith.addf %194, %201 : vector<24x256xf32>
    %c0_141 = arith.constant 0 : index
    %c128_142 = arith.constant 128 : index
    %203 = vector.load %arg33[%c0_141, %c128_142] : memref<40x512xf32, #tpu.memory_space<vmem>>, vector<24x256xf32>
    %c0_143 = arith.constant 0 : index
    %c4_144 = arith.constant 4 : index
    %204 = vector.load %arg14[%c0_143, %c4_144] : memref<24x9xf32, #tpu.memory_space<vmem>>, vector<24x1xf32>
    %205 = vector.broadcast %204 : vector<24x1xf32> to vector<24x256xf32>
    %206 = arith.mulf %203, %205 : vector<24x256xf32>
    %207 = arith.addf %202, %206 : vector<24x256xf32>
    %c0_145 = arith.constant 0 : index
    %c129_146 = arith.constant 129 : index
    %208 = vector.load %arg33[%c0_145, %c129_146] : memref<40x512xf32, #tpu.memory_space<vmem>>, vector<24x256xf32>
    %c0_147 = arith.constant 0 : index
    %c5_148 = arith.constant 5 : index
    %209 = vector.load %arg14[%c0_147, %c5_148] : memref<24x9xf32, #tpu.memory_space<vmem>>, vector<24x1xf32>
    %210 = vector.broadcast %209 : vector<24x1xf32> to vector<24x256xf32>
    %211 = arith.mulf %208, %210 : vector<24x256xf32>
    %c1_149 = arith.constant 1 : index
    %c0_150 = arith.constant 0 : index
    %212 = vector.load %arg2[%c1_149, %c0_150] : memref<2x256xf32, #tpu.memory_space<vmem>>, vector<1x256xf32>
    %213 = vector.broadcast %212 : vector<1x256xf32> to vector<24x256xf32>
    %214 = arith.mulf %211, %213 : vector<24x256xf32>
    %215 = arith.addf %207, %214 : vector<24x256xf32>
    %c0_151 = arith.constant 0 : index
    %c143_152 = arith.constant 143 : index
    %216 = vector.load %arg33[%c0_151, %c143_152] : memref<40x512xf32, #tpu.memory_space<vmem>>, vector<24x256xf32>
    %c0_153 = arith.constant 0 : index
    %c6_154 = arith.constant 6 : index
    %217 = vector.load %arg14[%c0_153, %c6_154] : memref<24x9xf32, #tpu.memory_space<vmem>>, vector<24x1xf32>
    %218 = vector.broadcast %217 : vector<24x1xf32> to vector<24x256xf32>
    %219 = arith.mulf %216, %218 : vector<24x256xf32>
    %c0_155 = arith.constant 0 : index
    %c0_156 = arith.constant 0 : index
    %220 = vector.load %arg2[%c0_155, %c0_156] : memref<2x256xf32, #tpu.memory_space<vmem>>, vector<1x256xf32>
    %221 = vector.broadcast %220 : vector<1x256xf32> to vector<24x256xf32>
    %222 = arith.mulf %219, %221 : vector<24x256xf32>
    %223 = arith.addf %215, %222 : vector<24x256xf32>
    %c0_157 = arith.constant 0 : index
    %c144_158 = arith.constant 144 : index
    %224 = vector.load %arg33[%c0_157, %c144_158] : memref<40x512xf32, #tpu.memory_space<vmem>>, vector<24x256xf32>
    %c0_159 = arith.constant 0 : index
    %c7_160 = arith.constant 7 : index
    %225 = vector.load %arg14[%c0_159, %c7_160] : memref<24x9xf32, #tpu.memory_space<vmem>>, vector<24x1xf32>
    %226 = vector.broadcast %225 : vector<24x1xf32> to vector<24x256xf32>
    %227 = arith.mulf %224, %226 : vector<24x256xf32>
    %228 = arith.addf %223, %227 : vector<24x256xf32>
    %c0_161 = arith.constant 0 : index
    %c145_162 = arith.constant 145 : index
    %229 = vector.load %arg33[%c0_161, %c145_162] : memref<40x512xf32, #tpu.memory_space<vmem>>, vector<24x256xf32>
    %c0_163 = arith.constant 0 : index
    %c8_164 = arith.constant 8 : index
    %230 = vector.load %arg14[%c0_163, %c8_164] : memref<24x9xf32, #tpu.memory_space<vmem>>, vector<24x1xf32>
    %231 = vector.broadcast %230 : vector<24x1xf32> to vector<24x256xf32>
    %232 = arith.mulf %229, %231 : vector<24x256xf32>
    %c1_165 = arith.constant 1 : index
    %c0_166 = arith.constant 0 : index
    %233 = vector.load %arg2[%c1_165, %c0_166] : memref<2x256xf32, #tpu.memory_space<vmem>>, vector<1x256xf32>
    %234 = vector.broadcast %233 : vector<1x256xf32> to vector<24x256xf32>
    %235 = arith.mulf %232, %234 : vector<24x256xf32>
    %236 = arith.addf %228, %235 : vector<24x256xf32>
    %c0_167 = arith.constant 0 : index
    %c0_168 = arith.constant 0 : index
    %237 = vector.load %arg15[%c0_167, %c0_168] : memref<24x1xf32, #tpu.memory_space<vmem>>, vector<24x1xf32>
    %238 = vector.broadcast %237 : vector<24x1xf32> to vector<24x256xf32>
    %239 = arith.addf %236, %238 : vector<24x256xf32>
    %cst_169 = arith.constant 3.000000e+00 : f32
    %240 = vector.broadcast %cst_169 : f32 to vector<24x256xf32>
    %241 = arith.addf %239, %240 : vector<24x256xf32>
    %cst_170 = arith.constant 0.000000e+00 : f32
    %cst_171 = arith.constant 6.000000e+00 : f32
    %242 = vector.broadcast %cst_170 : f32 to vector<24x256xf32>
    %243 = arith.maximumf %242, %241 : vector<24x256xf32>
    %244 = vector.broadcast %cst_171 : f32 to vector<24x256xf32>
    %245 = arith.minimumf %244, %243 : vector<24x256xf32>
    %246 = arith.mulf %239, %245 : vector<24x256xf32>
    %cst_172 = arith.constant 0.166666672 : f32
    %247 = vector.broadcast %cst_172 : f32 to vector<24x256xf32>
    %248 = arith.mulf %246, %247 : vector<24x256xf32>
    %c0_173 = arith.constant 0 : index
    %c0_174 = arith.constant 0 : index
    %249 = vector.load %arg16[%c0_173, %c0_174] : memref<24x24xf32, #tpu.memory_space<vmem>>, vector<24x24xf32>
    %cst_175 = arith.constant dense<0.000000e+00> : vector<24x256xf32>
    %250 = tpu.matmul %249, %248, %cst_175 {dimension_numbers = #tpu.dot_dimension_numbers<[1], [0], [0], [1], [0, 0, 1, 1], [], []>} : vector<24x24xf32>, vector<24x256xf32>, vector<24x256xf32> -> vector<24x256xf32>
    %c0_176 = arith.constant 0 : index
    %c0_177 = arith.constant 0 : index
    %251 = vector.load %arg17[%c0_176, %c0_177] : memref<24x1xf32, #tpu.memory_space<vmem>>, vector<24x1xf32>
    %252 = vector.broadcast %251 : vector<24x1xf32> to vector<24x256xf32>
    %253 = arith.addf %250, %252 : vector<24x256xf32>
    %cst_178 = arith.constant 3.000000e+00 : f32
    %254 = vector.broadcast %cst_178 : f32 to vector<24x256xf32>
    %255 = arith.addf %253, %254 : vector<24x256xf32>
    %cst_179 = arith.constant 0.000000e+00 : f32
    %cst_180 = arith.constant 6.000000e+00 : f32
    %256 = vector.broadcast %cst_179 : f32 to vector<24x256xf32>
    %257 = arith.maximumf %256, %255 : vector<24x256xf32>
    %258 = vector.broadcast %cst_180 : f32 to vector<24x256xf32>
    %259 = arith.minimumf %258, %257 : vector<24x256xf32>
    %260 = arith.mulf %253, %259 : vector<24x256xf32>
    %cst_181 = arith.constant 0.166666672 : f32
    %261 = vector.broadcast %cst_181 : f32 to vector<24x256xf32>
    %262 = arith.mulf %260, %261 : vector<24x256xf32>
    %c0_182 = arith.constant 0 : index
    %c128_183 = arith.constant 128 : index
    %263 = vector.load %arg33[%c0_182, %c128_183] : memref<40x512xf32, #tpu.memory_space<vmem>>, vector<24x256xf32>
    tpu.vector_store %arg33[%c0_182, %c128_183], %262 {strides = array<i32>} : memref<40x512xf32, #tpu.memory_space<vmem>>, vector<24x256xf32>,
    %cst_184 = arith.constant 0.000000e+00 : f32
    %264 = vector.broadcast %cst_184 : f32 to vector<24x256xf32>
    %c0_185 = arith.constant 0 : index
    %c111_186 = arith.constant 111 : index
    %265 = vector.load %arg33[%c0_185, %c111_186] : memref<40x512xf32, #tpu.memory_space<vmem>>, vector<24x256xf32>
    %c0_187 = arith.constant 0 : index
    %c0_188 = arith.constant 0 : index
    %266 = vector.load %arg18[%c0_187, %c0_188] : memref<24x9xf32, #tpu.memory_space<vmem>>, vector<24x1xf32>
    %267 = vector.broadcast %266 : vector<24x1xf32> to vector<24x256xf32>
    %268 = arith.mulf %265, %267 : vector<24x256xf32>
    %c0_189 = arith.constant 0 : index
    %c0_190 = arith.constant 0 : index
    %269 = vector.load %arg2[%c0_189, %c0_190] : memref<2x256xf32, #tpu.memory_space<vmem>>, vector<1x256xf32>
    %270 = vector.broadcast %269 : vector<1x256xf32> to vector<24x256xf32>
    %271 = arith.mulf %268, %270 : vector<24x256xf32>
    %272 = arith.addf %264, %271 : vector<24x256xf32>
    %c0_191 = arith.constant 0 : index
    %c112_192 = arith.constant 112 : index
    %273 = vector.load %arg33[%c0_191, %c112_192] : memref<40x512xf32, #tpu.memory_space<vmem>>, vector<24x256xf32>
    %c0_193 = arith.constant 0 : index
    %c1_194 = arith.constant 1 : index
    %274 = vector.load %arg18[%c0_193, %c1_194] : memref<24x9xf32, #tpu.memory_space<vmem>>, vector<24x1xf32>
    %275 = vector.broadcast %274 : vector<24x1xf32> to vector<24x256xf32>
    %276 = arith.mulf %273, %275 : vector<24x256xf32>
    %277 = arith.addf %272, %276 : vector<24x256xf32>
    %c0_195 = arith.constant 0 : index
    %c113_196 = arith.constant 113 : index
    %278 = vector.load %arg33[%c0_195, %c113_196] : memref<40x512xf32, #tpu.memory_space<vmem>>, vector<24x256xf32>
    %c0_197 = arith.constant 0 : index
    %c2_198 = arith.constant 2 : index
    %279 = vector.load %arg18[%c0_197, %c2_198] : memref<24x9xf32, #tpu.memory_space<vmem>>, vector<24x1xf32>
    %280 = vector.broadcast %279 : vector<24x1xf32> to vector<24x256xf32>
    %281 = arith.mulf %278, %280 : vector<24x256xf32>
    %c1_199 = arith.constant 1 : index
    %c0_200 = arith.constant 0 : index
    %282 = vector.load %arg2[%c1_199, %c0_200] : memref<2x256xf32, #tpu.memory_space<vmem>>, vector<1x256xf32>
    %283 = vector.broadcast %282 : vector<1x256xf32> to vector<24x256xf32>
    %284 = arith.mulf %281, %283 : vector<24x256xf32>
    %285 = arith.addf %277, %284 : vector<24x256xf32>
    %c0_201 = arith.constant 0 : index
    %c127_202 = arith.constant 127 : index
    %286 = vector.load %arg33[%c0_201, %c127_202] : memref<40x512xf32, #tpu.memory_space<vmem>>, vector<24x256xf32>
    %c0_203 = arith.constant 0 : index
    %c3_204 = arith.constant 3 : index
    %287 = vector.load %arg18[%c0_203, %c3_204] : memref<24x9xf32, #tpu.memory_space<vmem>>, vector<24x1xf32>
    %288 = vector.broadcast %287 : vector<24x1xf32> to vector<24x256xf32>
    %289 = arith.mulf %286, %288 : vector<24x256xf32>
    %c0_205 = arith.constant 0 : index
    %c0_206 = arith.constant 0 : index
    %290 = vector.load %arg2[%c0_205, %c0_206] : memref<2x256xf32, #tpu.memory_space<vmem>>, vector<1x256xf32>
    %291 = vector.broadcast %290 : vector<1x256xf32> to vector<24x256xf32>
    %292 = arith.mulf %289, %291 : vector<24x256xf32>
    %293 = arith.addf %285, %292 : vector<24x256xf32>
    %c0_207 = arith.constant 0 : index
    %c128_208 = arith.constant 128 : index
    %294 = vector.load %arg33[%c0_207, %c128_208] : memref<40x512xf32, #tpu.memory_space<vmem>>, vector<24x256xf32>
    %c0_209 = arith.constant 0 : index
    %c4_210 = arith.constant 4 : index
    %295 = vector.load %arg18[%c0_209, %c4_210] : memref<24x9xf32, #tpu.memory_space<vmem>>, vector<24x1xf32>
    %296 = vector.broadcast %295 : vector<24x1xf32> to vector<24x256xf32>
    %297 = arith.mulf %294, %296 : vector<24x256xf32>
    %298 = arith.addf %293, %297 : vector<24x256xf32>
    %c0_211 = arith.constant 0 : index
    %c129_212 = arith.constant 129 : index
    %299 = vector.load %arg33[%c0_211, %c129_212] : memref<40x512xf32, #tpu.memory_space<vmem>>, vector<24x256xf32>
    %c0_213 = arith.constant 0 : index
    %c5_214 = arith.constant 5 : index
    %300 = vector.load %arg18[%c0_213, %c5_214] : memref<24x9xf32, #tpu.memory_space<vmem>>, vector<24x1xf32>
    %301 = vector.broadcast %300 : vector<24x1xf32> to vector<24x256xf32>
    %302 = arith.mulf %299, %301 : vector<24x256xf32>
    %c1_215 = arith.constant 1 : index
    %c0_216 = arith.constant 0 : index
    %303 = vector.load %arg2[%c1_215, %c0_216] : memref<2x256xf32, #tpu.memory_space<vmem>>, vector<1x256xf32>
    %304 = vector.broadcast %303 : vector<1x256xf32> to vector<24x256xf32>
    %305 = arith.mulf %302, %304 : vector<24x256xf32>
    %306 = arith.addf %298, %305 : vector<24x256xf32>
    %c0_217 = arith.constant 0 : index
    %c143_218 = arith.constant 143 : index
    %307 = vector.load %arg33[%c0_217, %c143_218] : memref<40x512xf32, #tpu.memory_space<vmem>>, vector<24x256xf32>
    %c0_219 = arith.constant 0 : index
    %c6_220 = arith.constant 6 : index
    %308 = vector.load %arg18[%c0_219, %c6_220] : memref<24x9xf32, #tpu.memory_space<vmem>>, vector<24x1xf32>
    %309 = vector.broadcast %308 : vector<24x1xf32> to vector<24x256xf32>
    %310 = arith.mulf %307, %309 : vector<24x256xf32>
    %c0_221 = arith.constant 0 : index
    %c0_222 = arith.constant 0 : index
    %311 = vector.load %arg2[%c0_221, %c0_222] : memref<2x256xf32, #tpu.memory_space<vmem>>, vector<1x256xf32>
    %312 = vector.broadcast %311 : vector<1x256xf32> to vector<24x256xf32>
    %313 = arith.mulf %310, %312 : vector<24x256xf32>
    %314 = arith.addf %306, %313 : vector<24x256xf32>
    %c0_223 = arith.constant 0 : index
    %c144_224 = arith.constant 144 : index
    %315 = vector.load %arg33[%c0_223, %c144_224] : memref<40x512xf32, #tpu.memory_space<vmem>>, vector<24x256xf32>
    %c0_225 = arith.constant 0 : index
    %c7_226 = arith.constant 7 : index
    %316 = vector.load %arg18[%c0_225, %c7_226] : memref<24x9xf32, #tpu.memory_space<vmem>>, vector<24x1xf32>
    %317 = vector.broadcast %316 : vector<24x1xf32> to vector<24x256xf32>
    %318 = arith.mulf %315, %317 : vector<24x256xf32>
    %319 = arith.addf %314, %318 : vector<24x256xf32>
    %c0_227 = arith.constant 0 : index
    %c145_228 = arith.constant 145 : index
    %320 = vector.load %arg33[%c0_227, %c145_228] : memref<40x512xf32, #tpu.memory_space<vmem>>, vector<24x256xf32>
    %c0_229 = arith.constant 0 : index
    %c8_230 = arith.constant 8 : index
    %321 = vector.load %arg18[%c0_229, %c8_230] : memref<24x9xf32, #tpu.memory_space<vmem>>, vector<24x1xf32>
    %322 = vector.broadcast %321 : vector<24x1xf32> to vector<24x256xf32>
    %323 = arith.mulf %320, %322 : vector<24x256xf32>
    %c1_231 = arith.constant 1 : index
    %c0_232 = arith.constant 0 : index
    %324 = vector.load %arg2[%c1_231, %c0_232] : memref<2x256xf32, #tpu.memory_space<vmem>>, vector<1x256xf32>
    %325 = vector.broadcast %324 : vector<1x256xf32> to vector<24x256xf32>
    %326 = arith.mulf %323, %325 : vector<24x256xf32>
    %327 = arith.addf %319, %326 : vector<24x256xf32>
    %c0_233 = arith.constant 0 : index
    %c0_234 = arith.constant 0 : index
    %328 = vector.load %arg19[%c0_233, %c0_234] : memref<24x1xf32, #tpu.memory_space<vmem>>, vector<24x1xf32>
    %329 = vector.broadcast %328 : vector<24x1xf32> to vector<24x256xf32>
    %330 = arith.addf %327, %329 : vector<24x256xf32>
    %cst_235 = arith.constant 3.000000e+00 : f32
    %331 = vector.broadcast %cst_235 : f32 to vector<24x256xf32>
    %332 = arith.addf %330, %331 : vector<24x256xf32>
    %cst_236 = arith.constant 0.000000e+00 : f32
    %cst_237 = arith.constant 6.000000e+00 : f32
    %333 = vector.broadcast %cst_236 : f32 to vector<24x256xf32>
    %334 = arith.maximumf %333, %332 : vector<24x256xf32>
    %335 = vector.broadcast %cst_237 : f32 to vector<24x256xf32>
    %336 = arith.minimumf %335, %334 : vector<24x256xf32>
    %337 = arith.mulf %330, %336 : vector<24x256xf32>
    %cst_238 = arith.constant 0.166666672 : f32
    %338 = vector.broadcast %cst_238 : f32 to vector<24x256xf32>
    %339 = arith.mulf %337, %338 : vector<24x256xf32>
    %c0_239 = arith.constant 0 : index
    %c0_240 = arith.constant 0 : index
    %340 = vector.load %arg20[%c0_239, %c0_240] : memref<40x24xf32, #tpu.memory_space<vmem>>, vector<40x24xf32>
    %cst_241 = arith.constant dense<0.000000e+00> : vector<40x256xf32>
    %341 = tpu.matmul %340, %339, %cst_241 {dimension_numbers = #tpu.dot_dimension_numbers<[1], [0], [0], [1], [0, 0, 1, 1], [], []>} : vector<40x24xf32>, vector<24x256xf32>, vector<40x256xf32> -> vector<40x256xf32>
    %c0_242 = arith.constant 0 : index
    %c0_243 = arith.constant 0 : index
    %342 = vector.load %arg21[%c0_242, %c0_243] : memref<40x1xf32, #tpu.memory_space<vmem>>, vector<40x1xf32>
    %343 = vector.broadcast %342 : vector<40x1xf32> to vector<40x256xf32>
    %344 = arith.addf %341, %343 : vector<40x256xf32>
    %cst_244 = arith.constant 3.000000e+00 : f32
    %345 = vector.broadcast %cst_244 : f32 to vector<40x256xf32>
    %346 = arith.addf %344, %345 : vector<40x256xf32>
    %cst_245 = arith.constant 0.000000e+00 : f32
    %cst_246 = arith.constant 6.000000e+00 : f32
    %347 = vector.broadcast %cst_245 : f32 to vector<40x256xf32>
    %348 = arith.maximumf %347, %346 : vector<40x256xf32>
    %349 = vector.broadcast %cst_246 : f32 to vector<40x256xf32>
    %350 = arith.minimumf %349, %348 : vector<40x256xf32>
    %351 = arith.mulf %344, %350 : vector<40x256xf32>
    %cst_247 = arith.constant 0.166666672 : f32
    %352 = vector.broadcast %cst_247 : f32 to vector<40x256xf32>
    %353 = arith.mulf %351, %352 : vector<40x256xf32>
    %c0_248 = arith.constant 0 : index
    %c128_249 = arith.constant 128 : index
    %354 = vector.load %arg33[%c0_248, %c128_249] : memref<40x512xf32, #tpu.memory_space<vmem>>, vector<40x256xf32>
    tpu.vector_store %arg33[%c0_248, %c128_249], %353 {strides = array<i32>} : memref<40x512xf32, #tpu.memory_space<vmem>>, vector<40x256xf32>,
    %cst_250 = arith.constant 0.000000e+00 : f32
    %355 = vector.broadcast %cst_250 : f32 to vector<40x256xf32>
    %c0_251 = arith.constant 0 : index
    %c111_252 = arith.constant 111 : index
    %356 = vector.load %arg33[%c0_251, %c111_252] : memref<40x512xf32, #tpu.memory_space<vmem>>, vector<40x256xf32>
    %c0_253 = arith.constant 0 : index
    %c0_254 = arith.constant 0 : index
    %357 = vector.load %arg22[%c0_253, %c0_254] : memref<40x9xf32, #tpu.memory_space<vmem>>, vector<40x1xf32>
    %358 = vector.broadcast %357 : vector<40x1xf32> to vector<40x256xf32>
    %359 = arith.mulf %356, %358 : vector<40x256xf32>
    %c0_255 = arith.constant 0 : index
    %c0_256 = arith.constant 0 : index
    %360 = vector.load %arg2[%c0_255, %c0_256] : memref<2x256xf32, #tpu.memory_space<vmem>>, vector<1x256xf32>
    %361 = vector.broadcast %360 : vector<1x256xf32> to vector<40x256xf32>
    %362 = arith.mulf %359, %361 : vector<40x256xf32>
    %363 = arith.addf %355, %362 : vector<40x256xf32>
    %c0_257 = arith.constant 0 : index
    %c112_258 = arith.constant 112 : index
    %364 = vector.load %arg33[%c0_257, %c112_258] : memref<40x512xf32, #tpu.memory_space<vmem>>, vector<40x256xf32>
    %c0_259 = arith.constant 0 : index
    %c1_260 = arith.constant 1 : index
    %365 = vector.load %arg22[%c0_259, %c1_260] : memref<40x9xf32, #tpu.memory_space<vmem>>, vector<40x1xf32>
    %366 = vector.broadcast %365 : vector<40x1xf32> to vector<40x256xf32>
    %367 = arith.mulf %364, %366 : vector<40x256xf32>
    %368 = arith.addf %363, %367 : vector<40x256xf32>
    %c0_261 = arith.constant 0 : index
    %c113_262 = arith.constant 113 : index
    %369 = vector.load %arg33[%c0_261, %c113_262] : memref<40x512xf32, #tpu.memory_space<vmem>>, vector<40x256xf32>
    %c0_263 = arith.constant 0 : index
    %c2_264 = arith.constant 2 : index
    %370 = vector.load %arg22[%c0_263, %c2_264] : memref<40x9xf32, #tpu.memory_space<vmem>>, vector<40x1xf32>
    %371 = vector.broadcast %370 : vector<40x1xf32> to vector<40x256xf32>
    %372 = arith.mulf %369, %371 : vector<40x256xf32>
    %c1_265 = arith.constant 1 : index
    %c0_266 = arith.constant 0 : index
    %373 = vector.load %arg2[%c1_265, %c0_266] : memref<2x256xf32, #tpu.memory_space<vmem>>, vector<1x256xf32>
    %374 = vector.broadcast %373 : vector<1x256xf32> to vector<40x256xf32>
    %375 = arith.mulf %372, %374 : vector<40x256xf32>
    %376 = arith.addf %368, %375 : vector<40x256xf32>
    %c0_267 = arith.constant 0 : index
    %c127_268 = arith.constant 127 : index
    %377 = vector.load %arg33[%c0_267, %c127_268] : memref<40x512xf32, #tpu.memory_space<vmem>>, vector<40x256xf32>
    %c0_269 = arith.constant 0 : index
    %c3_270 = arith.constant 3 : index
    %378 = vector.load %arg22[%c0_269, %c3_270] : memref<40x9xf32, #tpu.memory_space<vmem>>, vector<40x1xf32>
    %379 = vector.broadcast %378 : vector<40x1xf32> to vector<40x256xf32>
    %380 = arith.mulf %377, %379 : vector<40x256xf32>
    %c0_271 = arith.constant 0 : index
    %c0_272 = arith.constant 0 : index
    %381 = vector.load %arg2[%c0_271, %c0_272] : memref<2x256xf32, #tpu.memory_space<vmem>>, vector<1x256xf32>
    %382 = vector.broadcast %381 : vector<1x256xf32> to vector<40x256xf32>
    %383 = arith.mulf %380, %382 : vector<40x256xf32>
    %384 = arith.addf %376, %383 : vector<40x256xf32>
    %c0_273 = arith.constant 0 : index
    %c128_274 = arith.constant 128 : index
    %385 = vector.load %arg33[%c0_273, %c128_274] : memref<40x512xf32, #tpu.memory_space<vmem>>, vector<40x256xf32>
    %c0_275 = arith.constant 0 : index
    %c4_276 = arith.constant 4 : index
    %386 = vector.load %arg22[%c0_275, %c4_276] : memref<40x9xf32, #tpu.memory_space<vmem>>, vector<40x1xf32>
    %387 = vector.broadcast %386 : vector<40x1xf32> to vector<40x256xf32>
    %388 = arith.mulf %385, %387 : vector<40x256xf32>
    %389 = arith.addf %384, %388 : vector<40x256xf32>
    %c0_277 = arith.constant 0 : index
    %c129_278 = arith.constant 129 : index
    %390 = vector.load %arg33[%c0_277, %c129_278] : memref<40x512xf32, #tpu.memory_space<vmem>>, vector<40x256xf32>
    %c0_279 = arith.constant 0 : index
    %c5_280 = arith.constant 5 : index
    %391 = vector.load %arg22[%c0_279, %c5_280] : memref<40x9xf32, #tpu.memory_space<vmem>>, vector<40x1xf32>
    %392 = vector.broadcast %391 : vector<40x1xf32> to vector<40x256xf32>
    %393 = arith.mulf %390, %392 : vector<40x256xf32>
    %c1_281 = arith.constant 1 : index
    %c0_282 = arith.constant 0 : index
    %394 = vector.load %arg2[%c1_281, %c0_282] : memref<2x256xf32, #tpu.memory_space<vmem>>, vector<1x256xf32>
    %395 = vector.broadcast %394 : vector<1x256xf32> to vector<40x256xf32>
    %396 = arith.mulf %393, %395 : vector<40x256xf32>
    %397 = arith.addf %389, %396 : vector<40x256xf32>
    %c0_283 = arith.constant 0 : index
    %c143_284 = arith.constant 143 : index
    %398 = vector.load %arg33[%c0_283, %c143_284] : memref<40x512xf32, #tpu.memory_space<vmem>>, vector<40x256xf32>
    %c0_285 = arith.constant 0 : index
    %c6_286 = arith.constant 6 : index
    %399 = vector.load %arg22[%c0_285, %c6_286] : memref<40x9xf32, #tpu.memory_space<vmem>>, vector<40x1xf32>
    %400 = vector.broadcast %399 : vector<40x1xf32> to vector<40x256xf32>
    %401 = arith.mulf %398, %400 : vector<40x256xf32>
    %c0_287 = arith.constant 0 : index
    %c0_288 = arith.constant 0 : index
    %402 = vector.load %arg2[%c0_287, %c0_288] : memref<2x256xf32, #tpu.memory_space<vmem>>, vector<1x256xf32>
    %403 = vector.broadcast %402 : vector<1x256xf32> to vector<40x256xf32>
    %404 = arith.mulf %401, %403 : vector<40x256xf32>
    %405 = arith.addf %397, %404 : vector<40x256xf32>
    %c0_289 = arith.constant 0 : index
    %c144_290 = arith.constant 144 : index
    %406 = vector.load %arg33[%c0_289, %c144_290] : memref<40x512xf32, #tpu.memory_space<vmem>>, vector<40x256xf32>
    %c0_291 = arith.constant 0 : index
    %c7_292 = arith.constant 7 : index
    %407 = vector.load %arg22[%c0_291, %c7_292] : memref<40x9xf32, #tpu.memory_space<vmem>>, vector<40x1xf32>
    %408 = vector.broadcast %407 : vector<40x1xf32> to vector<40x256xf32>
    %409 = arith.mulf %406, %408 : vector<40x256xf32>
    %410 = arith.addf %405, %409 : vector<40x256xf32>
    %c0_293 = arith.constant 0 : index
    %c145_294 = arith.constant 145 : index
    %411 = vector.load %arg33[%c0_293, %c145_294] : memref<40x512xf32, #tpu.memory_space<vmem>>, vector<40x256xf32>
    %c0_295 = arith.constant 0 : index
    %c8_296 = arith.constant 8 : index
    %412 = vector.load %arg22[%c0_295, %c8_296] : memref<40x9xf32, #tpu.memory_space<vmem>>, vector<40x1xf32>
    %413 = vector.broadcast %412 : vector<40x1xf32> to vector<40x256xf32>
    %414 = arith.mulf %411, %413 : vector<40x256xf32>
    %c1_297 = arith.constant 1 : index
    %c0_298 = arith.constant 0 : index
    %415 = vector.load %arg2[%c1_297, %c0_298] : memref<2x256xf32, #tpu.memory_space<vmem>>, vector<1x256xf32>
    %416 = vector.broadcast %415 : vector<1x256xf32> to vector<40x256xf32>
    %417 = arith.mulf %414, %416 : vector<40x256xf32>
    %418 = arith.addf %410, %417 : vector<40x256xf32>
    %c0_299 = arith.constant 0 : index
    %c0_300 = arith.constant 0 : index
    %419 = vector.load %arg23[%c0_299, %c0_300] : memref<40x1xf32, #tpu.memory_space<vmem>>, vector<40x1xf32>
    %420 = vector.broadcast %419 : vector<40x1xf32> to vector<40x256xf32>
    %421 = arith.addf %418, %420 : vector<40x256xf32>
    %cst_301 = arith.constant 3.000000e+00 : f32
    %422 = vector.broadcast %cst_301 : f32 to vector<40x256xf32>
    %423 = arith.addf %421, %422 : vector<40x256xf32>
    %cst_302 = arith.constant 0.000000e+00 : f32
    %cst_303 = arith.constant 6.000000e+00 : f32
    %424 = vector.broadcast %cst_302 : f32 to vector<40x256xf32>
    %425 = arith.maximumf %424, %423 : vector<40x256xf32>
    %426 = vector.broadcast %cst_303 : f32 to vector<40x256xf32>
    %427 = arith.minimumf %426, %425 : vector<40x256xf32>
    %428 = arith.mulf %421, %427 : vector<40x256xf32>
    %cst_304 = arith.constant 0.166666672 : f32
    %429 = vector.broadcast %cst_304 : f32 to vector<40x256xf32>
    %430 = arith.mulf %428, %429 : vector<40x256xf32>
    %c0_305 = arith.constant 0 : index
    %c0_306 = arith.constant 0 : index
    %431 = vector.load %arg24[%c0_305, %c0_306] : memref<48x40xf32, #tpu.memory_space<vmem>>, vector<48x40xf32>
    %cst_307 = arith.constant dense<0.000000e+00> : vector<48x256xf32>
    %432 = tpu.matmul %431, %430, %cst_307 {dimension_numbers = #tpu.dot_dimension_numbers<[1], [0], [0], [1], [0, 0, 1, 1], [], []>} : vector<48x40xf32>, vector<40x256xf32>, vector<48x256xf32> -> vector<48x256xf32>
    %c0_308 = arith.constant 0 : index
    %c0_309 = arith.constant 0 : index
    %433 = vector.load %arg25[%c0_308, %c0_309] : memref<48x1xf32, #tpu.memory_space<vmem>>, vector<48x1xf32>
    %434 = vector.broadcast %433 : vector<48x1xf32> to vector<48x256xf32>
    %435 = arith.addf %432, %434 : vector<48x256xf32>
    %cst_310 = arith.constant 3.000000e+00 : f32
    %436 = vector.broadcast %cst_310 : f32 to vector<48x256xf32>
    %437 = arith.addf %435, %436 : vector<48x256xf32>
    %cst_311 = arith.constant 0.000000e+00 : f32
    %cst_312 = arith.constant 6.000000e+00 : f32
    %438 = vector.broadcast %cst_311 : f32 to vector<48x256xf32>
    %439 = arith.maximumf %438, %437 : vector<48x256xf32>
    %440 = vector.broadcast %cst_312 : f32 to vector<48x256xf32>
    %441 = arith.minimumf %440, %439 : vector<48x256xf32>
    %442 = arith.mulf %435, %441 : vector<48x256xf32>
    %cst_313 = arith.constant 0.166666672 : f32
    %443 = vector.broadcast %cst_313 : f32 to vector<48x256xf32>
    %444 = arith.mulf %442, %443 : vector<48x256xf32>
    %c0_314 = arith.constant 0 : index
    %c0_315 = arith.constant 0 : index
    %445 = vector.load %arg3[%c0_314, %c0_315] : memref<256x64xf32, #tpu.memory_space<vmem>>, vector<256x64xf32>
    %cst_316 = arith.constant dense<0.000000e+00> : vector<24x64xf32>
    %446 = tpu.matmul %171, %445, %cst_316 {dimension_numbers = #tpu.dot_dimension_numbers<[1], [0], [0], [1], [0, 0, 1, 1], [], []>} : vector<24x256xf32>, vector<256x64xf32>, vector<24x64xf32> -> vector<24x64xf32>
    %447 = vector.extract_strided_slice %446 {offsets = [0, 0], sizes = [1, 64], strides = [1, 1]} : vector<24x64xf32> to vector<1x64xf32>
    %c0_317 = arith.constant 0 : index
    %c0_318 = arith.constant 0 : index
    %448 = vector.load %arg34[%c0_317, %c0_318] : memref<1x3072xf32, #tpu.memory_space<vmem>>, vector<1x64xf32>
    tpu.vector_store %arg34[%c0_317, %c0_318], %447 {strides = array<i32>} : memref<1x3072xf32, #tpu.memory_space<vmem>>, vector<1x64xf32>,
    %449 = vector.extract_strided_slice %446 {offsets = [1, 0], sizes = [1, 64], strides = [1, 1]} : vector<24x64xf32> to vector<1x64xf32>
    %c0_319 = arith.constant 0 : index
    %c64 = arith.constant 64 : index
    %450 = vector.load %arg34[%c0_319, %c64] : memref<1x3072xf32, #tpu.memory_space<vmem>>, vector<1x64xf32>
    tpu.vector_store %arg34[%c0_319, %c64], %449 {strides = array<i32>} : memref<1x3072xf32, #tpu.memory_space<vmem>>, vector<1x64xf32>,
    %451 = vector.extract_strided_slice %446 {offsets = [2, 0], sizes = [1, 64], strides = [1, 1]} : vector<24x64xf32> to vector<1x64xf32>
    %c0_320 = arith.constant 0 : index
    %c128_321 = arith.constant 128 : index
    %452 = vector.load %arg34[%c0_320, %c128_321] : memref<1x3072xf32, #tpu.memory_space<vmem>>, vector<1x64xf32>
    tpu.vector_store %arg34[%c0_320, %c128_321], %451 {strides = array<i32>} : memref<1x3072xf32, #tpu.memory_space<vmem>>, vector<1x64xf32>,
    %453 = vector.extract_strided_slice %446 {offsets = [3, 0], sizes = [1, 64], strides = [1, 1]} : vector<24x64xf32> to vector<1x64xf32>
    %c0_322 = arith.constant 0 : index
    %c192 = arith.constant 192 : index
    %454 = vector.load %arg34[%c0_322, %c192] : memref<1x3072xf32, #tpu.memory_space<vmem>>, vector<1x64xf32>
    tpu.vector_store %arg34[%c0_322, %c192], %453 {strides = array<i32>} : memref<1x3072xf32, #tpu.memory_space<vmem>>, vector<1x64xf32>,
    %455 = vector.extract_strided_slice %446 {offsets = [4, 0], sizes = [1, 64], strides = [1, 1]} : vector<24x64xf32> to vector<1x64xf32>
    %c0_323 = arith.constant 0 : index
    %c256 = arith.constant 256 : index
    %456 = vector.load %arg34[%c0_323, %c256] : memref<1x3072xf32, #tpu.memory_space<vmem>>, vector<1x64xf32>
    tpu.vector_store %arg34[%c0_323, %c256], %455 {strides = array<i32>} : memref<1x3072xf32, #tpu.memory_space<vmem>>, vector<1x64xf32>,
    %457 = vector.extract_strided_slice %446 {offsets = [5, 0], sizes = [1, 64], strides = [1, 1]} : vector<24x64xf32> to vector<1x64xf32>
    %c0_324 = arith.constant 0 : index
    %c320 = arith.constant 320 : index
    %458 = vector.load %arg34[%c0_324, %c320] : memref<1x3072xf32, #tpu.memory_space<vmem>>, vector<1x64xf32>
    tpu.vector_store %arg34[%c0_324, %c320], %457 {strides = array<i32>} : memref<1x3072xf32, #tpu.memory_space<vmem>>, vector<1x64xf32>,
    %459 = vector.extract_strided_slice %446 {offsets = [6, 0], sizes = [1, 64], strides = [1, 1]} : vector<24x64xf32> to vector<1x64xf32>
    %c0_325 = arith.constant 0 : index
    %c384_326 = arith.constant 384 : index
    %460 = vector.load %arg34[%c0_325, %c384_326] : memref<1x3072xf32, #tpu.memory_space<vmem>>, vector<1x64xf32>
    tpu.vector_store %arg34[%c0_325, %c384_326], %459 {strides = array<i32>} : memref<1x3072xf32, #tpu.memory_space<vmem>>, vector<1x64xf32>,
    %461 = vector.extract_strided_slice %446 {offsets = [7, 0], sizes = [1, 64], strides = [1, 1]} : vector<24x64xf32> to vector<1x64xf32>
    %c0_327 = arith.constant 0 : index
    %c448 = arith.constant 448 : index
    %462 = vector.load %arg34[%c0_327, %c448] : memref<1x3072xf32, #tpu.memory_space<vmem>>, vector<1x64xf32>
    tpu.vector_store %arg34[%c0_327, %c448], %461 {strides = array<i32>} : memref<1x3072xf32, #tpu.memory_space<vmem>>, vector<1x64xf32>,
    %463 = vector.extract_strided_slice %446 {offsets = [8, 0], sizes = [1, 64], strides = [1, 1]} : vector<24x64xf32> to vector<1x64xf32>
    %c0_328 = arith.constant 0 : index
    %c512 = arith.constant 512 : index
    %464 = vector.load %arg34[%c0_328, %c512] : memref<1x3072xf32, #tpu.memory_space<vmem>>, vector<1x64xf32>
    tpu.vector_store %arg34[%c0_328, %c512], %463 {strides = array<i32>} : memref<1x3072xf32, #tpu.memory_space<vmem>>, vector<1x64xf32>,
    %465 = vector.extract_strided_slice %446 {offsets = [9, 0], sizes = [1, 64], strides = [1, 1]} : vector<24x64xf32> to vector<1x64xf32>
    %c0_329 = arith.constant 0 : index
    %c576 = arith.constant 576 : index
    %466 = vector.load %arg34[%c0_329, %c576] : memref<1x3072xf32, #tpu.memory_space<vmem>>, vector<1x64xf32>
    tpu.vector_store %arg34[%c0_329, %c576], %465 {strides = array<i32>} : memref<1x3072xf32, #tpu.memory_space<vmem>>, vector<1x64xf32>,
    %467 = vector.extract_strided_slice %446 {offsets = [10, 0], sizes = [1, 64], strides = [1, 1]} : vector<24x64xf32> to vector<1x64xf32>
    %c0_330 = arith.constant 0 : index
    %c640 = arith.constant 640 : index
    %468 = vector.load %arg34[%c0_330, %c640] : memref<1x3072xf32, #tpu.memory_space<vmem>>, vector<1x64xf32>
    tpu.vector_store %arg34[%c0_330, %c640], %467 {strides = array<i32>} : memref<1x3072xf32, #tpu.memory_space<vmem>>, vector<1x64xf32>,
    %469 = vector.extract_strided_slice %446 {offsets = [11, 0], sizes = [1, 64], strides = [1, 1]} : vector<24x64xf32> to vector<1x64xf32>
    %c0_331 = arith.constant 0 : index
    %c704 = arith.constant 704 : index
    %470 = vector.load %arg34[%c0_331, %c704] : memref<1x3072xf32, #tpu.memory_space<vmem>>, vector<1x64xf32>
    tpu.vector_store %arg34[%c0_331, %c704], %469 {strides = array<i32>} : memref<1x3072xf32, #tpu.memory_space<vmem>>, vector<1x64xf32>,
    %471 = vector.extract_strided_slice %446 {offsets = [12, 0], sizes = [1, 64], strides = [1, 1]} : vector<24x64xf32> to vector<1x64xf32>
    %c0_332 = arith.constant 0 : index
    %c768 = arith.constant 768 : index
    %472 = vector.load %arg34[%c0_332, %c768] : memref<1x3072xf32, #tpu.memory_space<vmem>>, vector<1x64xf32>
    tpu.vector_store %arg34[%c0_332, %c768], %471 {strides = array<i32>} : memref<1x3072xf32, #tpu.memory_space<vmem>>, vector<1x64xf32>,
    %473 = vector.extract_strided_slice %446 {offsets = [13, 0], sizes = [1, 64], strides = [1, 1]} : vector<24x64xf32> to vector<1x64xf32>
    %c0_333 = arith.constant 0 : index
    %c832 = arith.constant 832 : index
    %474 = vector.load %arg34[%c0_333, %c832] : memref<1x3072xf32, #tpu.memory_space<vmem>>, vector<1x64xf32>
    tpu.vector_store %arg34[%c0_333, %c832], %473 {strides = array<i32>} : memref<1x3072xf32, #tpu.memory_space<vmem>>, vector<1x64xf32>,
    %475 = vector.extract_strided_slice %446 {offsets = [14, 0], sizes = [1, 64], strides = [1, 1]} : vector<24x64xf32> to vector<1x64xf32>
    %c0_334 = arith.constant 0 : index
    %c896 = arith.constant 896 : index
    %476 = vector.load %arg34[%c0_334, %c896] : memref<1x3072xf32, #tpu.memory_space<vmem>>, vector<1x64xf32>
    tpu.vector_store %arg34[%c0_334, %c896], %475 {strides = array<i32>} : memref<1x3072xf32, #tpu.memory_space<vmem>>, vector<1x64xf32>,
    %477 = vector.extract_strided_slice %446 {offsets = [15, 0], sizes = [1, 64], strides = [1, 1]} : vector<24x64xf32> to vector<1x64xf32>
    %c0_335 = arith.constant 0 : index
    %c960 = arith.constant 960 : index
    %478 = vector.load %arg34[%c0_335, %c960] : memref<1x3072xf32, #tpu.memory_space<vmem>>, vector<1x64xf32>
    tpu.vector_store %arg34[%c0_335, %c960], %477 {strides = array<i32>} : memref<1x3072xf32, #tpu.memory_space<vmem>>, vector<1x64xf32>,
    %479 = vector.extract_strided_slice %446 {offsets = [16, 0], sizes = [1, 64], strides = [1, 1]} : vector<24x64xf32> to vector<1x64xf32>
    %c0_336 = arith.constant 0 : index
    %c1024 = arith.constant 1024 : index
    %480 = vector.load %arg34[%c0_336, %c1024] : memref<1x3072xf32, #tpu.memory_space<vmem>>, vector<1x64xf32>
    tpu.vector_store %arg34[%c0_336, %c1024], %479 {strides = array<i32>} : memref<1x3072xf32, #tpu.memory_space<vmem>>, vector<1x64xf32>,
    %481 = vector.extract_strided_slice %446 {offsets = [17, 0], sizes = [1, 64], strides = [1, 1]} : vector<24x64xf32> to vector<1x64xf32>
    %c0_337 = arith.constant 0 : index
    %c1088 = arith.constant 1088 : index
    %482 = vector.load %arg34[%c0_337, %c1088] : memref<1x3072xf32, #tpu.memory_space<vmem>>, vector<1x64xf32>
    tpu.vector_store %arg34[%c0_337, %c1088], %481 {strides = array<i32>} : memref<1x3072xf32, #tpu.memory_space<vmem>>, vector<1x64xf32>,
    %483 = vector.extract_strided_slice %446 {offsets = [18, 0], sizes = [1, 64], strides = [1, 1]} : vector<24x64xf32> to vector<1x64xf32>
    %c0_338 = arith.constant 0 : index
    %c1152 = arith.constant 1152 : index
    %484 = vector.load %arg34[%c0_338, %c1152] : memref<1x3072xf32, #tpu.memory_space<vmem>>, vector<1x64xf32>
    tpu.vector_store %arg34[%c0_338, %c1152], %483 {strides = array<i32>} : memref<1x3072xf32, #tpu.memory_space<vmem>>, vector<1x64xf32>,
    %485 = vector.extract_strided_slice %446 {offsets = [19, 0], sizes = [1, 64], strides = [1, 1]} : vector<24x64xf32> to vector<1x64xf32>
    %c0_339 = arith.constant 0 : index
    %c1216 = arith.constant 1216 : index
    %486 = vector.load %arg34[%c0_339, %c1216] : memref<1x3072xf32, #tpu.memory_space<vmem>>, vector<1x64xf32>
    tpu.vector_store %arg34[%c0_339, %c1216], %485 {strides = array<i32>} : memref<1x3072xf32, #tpu.memory_space<vmem>>, vector<1x64xf32>,
    %487 = vector.extract_strided_slice %446 {offsets = [20, 0], sizes = [1, 64], strides = [1, 1]} : vector<24x64xf32> to vector<1x64xf32>
    %c0_340 = arith.constant 0 : index
    %c1280 = arith.constant 1280 : index
    %488 = vector.load %arg34[%c0_340, %c1280] : memref<1x3072xf32, #tpu.memory_space<vmem>>, vector<1x64xf32>
    tpu.vector_store %arg34[%c0_340, %c1280], %487 {strides = array<i32>} : memref<1x3072xf32, #tpu.memory_space<vmem>>, vector<1x64xf32>,
    %489 = vector.extract_strided_slice %446 {offsets = [21, 0], sizes = [1, 64], strides = [1, 1]} : vector<24x64xf32> to vector<1x64xf32>
    %c0_341 = arith.constant 0 : index
    %c1344 = arith.constant 1344 : index
    %490 = vector.load %arg34[%c0_341, %c1344] : memref<1x3072xf32, #tpu.memory_space<vmem>>, vector<1x64xf32>
    tpu.vector_store %arg34[%c0_341, %c1344], %489 {strides = array<i32>} : memref<1x3072xf32, #tpu.memory_space<vmem>>, vector<1x64xf32>,
    %491 = vector.extract_strided_slice %446 {offsets = [22, 0], sizes = [1, 64], strides = [1, 1]} : vector<24x64xf32> to vector<1x64xf32>
    %c0_342 = arith.constant 0 : index
    %c1408 = arith.constant 1408 : index
    %492 = vector.load %arg34[%c0_342, %c1408] : memref<1x3072xf32, #tpu.memory_space<vmem>>, vector<1x64xf32>
    tpu.vector_store %arg34[%c0_342, %c1408], %491 {strides = array<i32>} : memref<1x3072xf32, #tpu.memory_space<vmem>>, vector<1x64xf32>,
    %493 = vector.extract_strided_slice %446 {offsets = [23, 0], sizes = [1, 64], strides = [1, 1]} : vector<24x64xf32> to vector<1x64xf32>
    %c0_343 = arith.constant 0 : index
    %c1472 = arith.constant 1472 : index
    %494 = vector.load %arg34[%c0_343, %c1472] : memref<1x3072xf32, #tpu.memory_space<vmem>>, vector<1x64xf32>
    tpu.vector_store %arg34[%c0_343, %c1472], %493 {strides = array<i32>} : memref<1x3072xf32, #tpu.memory_space<vmem>>, vector<1x64xf32>,
    %c0_344 = arith.constant 0 : index
    %c0_345 = arith.constant 0 : index
    %495 = vector.load %arg34[%c0_344, %c0_345] : memref<1x3072xf32, #tpu.memory_space<vmem>>, vector<1x1536xf32>
    %c0_346 = arith.constant 0 : index
    %c0_347 = arith.constant 0 : index
    %496 = vector.load %arg26[%c0_346, %c0_347] : memref<1536x128xf32, #tpu.memory_space<vmem>>, vector<1536x128xf32>
    %cst_348 = arith.constant dense<0.000000e+00> : vector<1x128xf32>
    %497 = tpu.matmul %495, %496, %cst_348 {dimension_numbers = #tpu.dot_dimension_numbers<[1], [0], [0], [1], [0, 0, 1, 1], [], []>} : vector<1x1536xf32>, vector<1536x128xf32>, vector<1x128xf32> -> vector<1x128xf32>
    %c0_349 = arith.constant 0 : index
    %c0_350 = arith.constant 0 : index
    %498 = vector.load %arg27[%c0_349, %c0_350] : memref<1x128xf32, #tpu.memory_space<vmem>>, vector<1x128xf32>
    %499 = arith.addf %497, %498 : vector<1x128xf32>
    %c0_351 = arith.constant 0 : index
    %c0_352 = arith.constant 0 : index
    %c0_353 = arith.constant 0 : index
    %500 = vector.load %arg32[%c0_351, %c0_352, %c0_353] : memref<1x1x384xf32, #tpu.memory_space<vmem>>, vector<1x1x128xf32>
    %501 = vector.shape_cast %500 : vector<1x1x128xf32> to vector<1x128xf32>
    %502 = vector.shape_cast %499 : vector<1x128xf32> to vector<1x1x128xf32>
    tpu.vector_store %arg32[%c0_351, %c0_352, %c0_353], %502 {strides = array<i32>} : memref<1x1x384xf32, #tpu.memory_space<vmem>>, vector<1x1x128xf32>,
    %c0_354 = arith.constant 0 : index
    %c0_355 = arith.constant 0 : index
    %503 = vector.load %arg3[%c0_354, %c0_355] : memref<256x64xf32, #tpu.memory_space<vmem>>, vector<256x64xf32>
    %cst_356 = arith.constant dense<0.000000e+00> : vector<40x64xf32>
    %504 = tpu.matmul %353, %503, %cst_356 {dimension_numbers = #tpu.dot_dimension_numbers<[1], [0], [0], [1], [0, 0, 1, 1], [], []>} : vector<40x256xf32>, vector<256x64xf32>, vector<40x64xf32> -> vector<40x64xf32>
    %505 = vector.extract_strided_slice %504 {offsets = [0, 0], sizes = [1, 64], strides = [1, 1]} : vector<40x64xf32> to vector<1x64xf32>
    %c0_357 = arith.constant 0 : index
    %c0_358 = arith.constant 0 : index
    %506 = vector.load %arg34[%c0_357, %c0_358] : memref<1x3072xf32, #tpu.memory_space<vmem>>, vector<1x64xf32>
    tpu.vector_store %arg34[%c0_357, %c0_358], %505 {strides = array<i32>} : memref<1x3072xf32, #tpu.memory_space<vmem>>, vector<1x64xf32>,
    %507 = vector.extract_strided_slice %504 {offsets = [1, 0], sizes = [1, 64], strides = [1, 1]} : vector<40x64xf32> to vector<1x64xf32>
    %c0_359 = arith.constant 0 : index
    %c64_360 = arith.constant 64 : index
    %508 = vector.load %arg34[%c0_359, %c64_360] : memref<1x3072xf32, #tpu.memory_space<vmem>>, vector<1x64xf32>
    tpu.vector_store %arg34[%c0_359, %c64_360], %507 {strides = array<i32>} : memref<1x3072xf32, #tpu.memory_space<vmem>>, vector<1x64xf32>,
    %509 = vector.extract_strided_slice %504 {offsets = [2, 0], sizes = [1, 64], strides = [1, 1]} : vector<40x64xf32> to vector<1x64xf32>
    %c0_361 = arith.constant 0 : index
    %c128_362 = arith.constant 128 : index
    %510 = vector.load %arg34[%c0_361, %c128_362] : memref<1x3072xf32, #tpu.memory_space<vmem>>, vector<1x64xf32>
    tpu.vector_store %arg34[%c0_361, %c128_362], %509 {strides = array<i32>} : memref<1x3072xf32, #tpu.memory_space<vmem>>, vector<1x64xf32>,
    %511 = vector.extract_strided_slice %504 {offsets = [3, 0], sizes = [1, 64], strides = [1, 1]} : vector<40x64xf32> to vector<1x64xf32>
    %c0_363 = arith.constant 0 : index
    %c192_364 = arith.constant 192 : index
    %512 = vector.load %arg34[%c0_363, %c192_364] : memref<1x3072xf32, #tpu.memory_space<vmem>>, vector<1x64xf32>
    tpu.vector_store %arg34[%c0_363, %c192_364], %511 {strides = array<i32>} : memref<1x3072xf32, #tpu.memory_space<vmem>>, vector<1x64xf32>,
    %513 = vector.extract_strided_slice %504 {offsets = [4, 0], sizes = [1, 64], strides = [1, 1]} : vector<40x64xf32> to vector<1x64xf32>
    %c0_365 = arith.constant 0 : index
    %c256_366 = arith.constant 256 : index
    %514 = vector.load %arg34[%c0_365, %c256_366] : memref<1x3072xf32, #tpu.memory_space<vmem>>, vector<1x64xf32>
    tpu.vector_store %arg34[%c0_365, %c256_366], %513 {strides = array<i32>} : memref<1x3072xf32, #tpu.memory_space<vmem>>, vector<1x64xf32>,
    %515 = vector.extract_strided_slice %504 {offsets = [5, 0], sizes = [1, 64], strides = [1, 1]} : vector<40x64xf32> to vector<1x64xf32>
    %c0_367 = arith.constant 0 : index
    %c320_368 = arith.constant 320 : index
    %516 = vector.load %arg34[%c0_367, %c320_368] : memref<1x3072xf32, #tpu.memory_space<vmem>>, vector<1x64xf32>
    tpu.vector_store %arg34[%c0_367, %c320_368], %515 {strides = array<i32>} : memref<1x3072xf32, #tpu.memory_space<vmem>>, vector<1x64xf32>,
    %517 = vector.extract_strided_slice %504 {offsets = [6, 0], sizes = [1, 64], strides = [1, 1]} : vector<40x64xf32> to vector<1x64xf32>
    %c0_369 = arith.constant 0 : index
    %c384_370 = arith.constant 384 : index
    %518 = vector.load %arg34[%c0_369, %c384_370] : memref<1x3072xf32, #tpu.memory_space<vmem>>, vector<1x64xf32>
    tpu.vector_store %arg34[%c0_369, %c384_370], %517 {strides = array<i32>} : memref<1x3072xf32, #tpu.memory_space<vmem>>, vector<1x64xf32>,
    %519 = vector.extract_strided_slice %504 {offsets = [7, 0], sizes = [1, 64], strides = [1, 1]} : vector<40x64xf32> to vector<1x64xf32>
    %c0_371 = arith.constant 0 : index
    %c448_372 = arith.constant 448 : index
    %520 = vector.load %arg34[%c0_371, %c448_372] : memref<1x3072xf32, #tpu.memory_space<vmem>>, vector<1x64xf32>
    tpu.vector_store %arg34[%c0_371, %c448_372], %519 {strides = array<i32>} : memref<1x3072xf32, #tpu.memory_space<vmem>>, vector<1x64xf32>,
    %521 = vector.extract_strided_slice %504 {offsets = [8, 0], sizes = [1, 64], strides = [1, 1]} : vector<40x64xf32> to vector<1x64xf32>
    %c0_373 = arith.constant 0 : index
    %c512_374 = arith.constant 512 : index
    %522 = vector.load %arg34[%c0_373, %c512_374] : memref<1x3072xf32, #tpu.memory_space<vmem>>, vector<1x64xf32>
    tpu.vector_store %arg34[%c0_373, %c512_374], %521 {strides = array<i32>} : memref<1x3072xf32, #tpu.memory_space<vmem>>, vector<1x64xf32>,
    %523 = vector.extract_strided_slice %504 {offsets = [9, 0], sizes = [1, 64], strides = [1, 1]} : vector<40x64xf32> to vector<1x64xf32>
    %c0_375 = arith.constant 0 : index
    %c576_376 = arith.constant 576 : index
    %524 = vector.load %arg34[%c0_375, %c576_376] : memref<1x3072xf32, #tpu.memory_space<vmem>>, vector<1x64xf32>
    tpu.vector_store %arg34[%c0_375, %c576_376], %523 {strides = array<i32>} : memref<1x3072xf32, #tpu.memory_space<vmem>>, vector<1x64xf32>,
    %525 = vector.extract_strided_slice %504 {offsets = [10, 0], sizes = [1, 64], strides = [1, 1]} : vector<40x64xf32> to vector<1x64xf32>
    %c0_377 = arith.constant 0 : index
    %c640_378 = arith.constant 640 : index
    %526 = vector.load %arg34[%c0_377, %c640_378] : memref<1x3072xf32, #tpu.memory_space<vmem>>, vector<1x64xf32>
    tpu.vector_store %arg34[%c0_377, %c640_378], %525 {strides = array<i32>} : memref<1x3072xf32, #tpu.memory_space<vmem>>, vector<1x64xf32>,
    %527 = vector.extract_strided_slice %504 {offsets = [11, 0], sizes = [1, 64], strides = [1, 1]} : vector<40x64xf32> to vector<1x64xf32>
    %c0_379 = arith.constant 0 : index
    %c704_380 = arith.constant 704 : index
    %528 = vector.load %arg34[%c0_379, %c704_380] : memref<1x3072xf32, #tpu.memory_space<vmem>>, vector<1x64xf32>
    tpu.vector_store %arg34[%c0_379, %c704_380], %527 {strides = array<i32>} : memref<1x3072xf32, #tpu.memory_space<vmem>>, vector<1x64xf32>,
    %529 = vector.extract_strided_slice %504 {offsets = [12, 0], sizes = [1, 64], strides = [1, 1]} : vector<40x64xf32> to vector<1x64xf32>
    %c0_381 = arith.constant 0 : index
    %c768_382 = arith.constant 768 : index
    %530 = vector.load %arg34[%c0_381, %c768_382] : memref<1x3072xf32, #tpu.memory_space<vmem>>, vector<1x64xf32>
    tpu.vector_store %arg34[%c0_381, %c768_382], %529 {strides = array<i32>} : memref<1x3072xf32, #tpu.memory_space<vmem>>, vector<1x64xf32>,
    %531 = vector.extract_strided_slice %504 {offsets = [13, 0], sizes = [1, 64], strides = [1, 1]} : vector<40x64xf32> to vector<1x64xf32>
    %c0_383 = arith.constant 0 : index
    %c832_384 = arith.constant 832 : index
    %532 = vector.load %arg34[%c0_383, %c832_384] : memref<1x3072xf32, #tpu.memory_space<vmem>>, vector<1x64xf32>
    tpu.vector_store %arg34[%c0_383, %c832_384], %531 {strides = array<i32>} : memref<1x3072xf32, #tpu.memory_space<vmem>>, vector<1x64xf32>,
    %533 = vector.extract_strided_slice %504 {offsets = [14, 0], sizes = [1, 64], strides = [1, 1]} : vector<40x64xf32> to vector<1x64xf32>
    %c0_385 = arith.constant 0 : index
    %c896_386 = arith.constant 896 : index
    %534 = vector.load %arg34[%c0_385, %c896_386] : memref<1x3072xf32, #tpu.memory_space<vmem>>, vector<1x64xf32>
    tpu.vector_store %arg34[%c0_385, %c896_386], %533 {strides = array<i32>} : memref<1x3072xf32, #tpu.memory_space<vmem>>, vector<1x64xf32>,
    %535 = vector.extract_strided_slice %504 {offsets = [15, 0], sizes = [1, 64], strides = [1, 1]} : vector<40x64xf32> to vector<1x64xf32>
    %c0_387 = arith.constant 0 : index
    %c960_388 = arith.constant 960 : index
    %536 = vector.load %arg34[%c0_387, %c960_388] : memref<1x3072xf32, #tpu.memory_space<vmem>>, vector<1x64xf32>
    tpu.vector_store %arg34[%c0_387, %c960_388], %535 {strides = array<i32>} : memref<1x3072xf32, #tpu.memory_space<vmem>>, vector<1x64xf32>,
    %537 = vector.extract_strided_slice %504 {offsets = [16, 0], sizes = [1, 64], strides = [1, 1]} : vector<40x64xf32> to vector<1x64xf32>
    %c0_389 = arith.constant 0 : index
    %c1024_390 = arith.constant 1024 : index
    %538 = vector.load %arg34[%c0_389, %c1024_390] : memref<1x3072xf32, #tpu.memory_space<vmem>>, vector<1x64xf32>
    tpu.vector_store %arg34[%c0_389, %c1024_390], %537 {strides = array<i32>} : memref<1x3072xf32, #tpu.memory_space<vmem>>, vector<1x64xf32>,
    %539 = vector.extract_strided_slice %504 {offsets = [17, 0], sizes = [1, 64], strides = [1, 1]} : vector<40x64xf32> to vector<1x64xf32>
    %c0_391 = arith.constant 0 : index
    %c1088_392 = arith.constant 1088 : index
    %540 = vector.load %arg34[%c0_391, %c1088_392] : memref<1x3072xf32, #tpu.memory_space<vmem>>, vector<1x64xf32>
    tpu.vector_store %arg34[%c0_391, %c1088_392], %539 {strides = array<i32>} : memref<1x3072xf32, #tpu.memory_space<vmem>>, vector<1x64xf32>,
    %541 = vector.extract_strided_slice %504 {offsets = [18, 0], sizes = [1, 64], strides = [1, 1]} : vector<40x64xf32> to vector<1x64xf32>
    %c0_393 = arith.constant 0 : index
    %c1152_394 = arith.constant 1152 : index
    %542 = vector.load %arg34[%c0_393, %c1152_394] : memref<1x3072xf32, #tpu.memory_space<vmem>>, vector<1x64xf32>
    tpu.vector_store %arg34[%c0_393, %c1152_394], %541 {strides = array<i32>} : memref<1x3072xf32, #tpu.memory_space<vmem>>, vector<1x64xf32>,
    %543 = vector.extract_strided_slice %504 {offsets = [19, 0], sizes = [1, 64], strides = [1, 1]} : vector<40x64xf32> to vector<1x64xf32>
    %c0_395 = arith.constant 0 : index
    %c1216_396 = arith.constant 1216 : index
    %544 = vector.load %arg34[%c0_395, %c1216_396] : memref<1x3072xf32, #tpu.memory_space<vmem>>, vector<1x64xf32>
    tpu.vector_store %arg34[%c0_395, %c1216_396], %543 {strides = array<i32>} : memref<1x3072xf32, #tpu.memory_space<vmem>>, vector<1x64xf32>,
    %545 = vector.extract_strided_slice %504 {offsets = [20, 0], sizes = [1, 64], strides = [1, 1]} : vector<40x64xf32> to vector<1x64xf32>
    %c0_397 = arith.constant 0 : index
    %c1280_398 = arith.constant 1280 : index
    %546 = vector.load %arg34[%c0_397, %c1280_398] : memref<1x3072xf32, #tpu.memory_space<vmem>>, vector<1x64xf32>
    tpu.vector_store %arg34[%c0_397, %c1280_398], %545 {strides = array<i32>} : memref<1x3072xf32, #tpu.memory_space<vmem>>, vector<1x64xf32>,
    %547 = vector.extract_strided_slice %504 {offsets = [21, 0], sizes = [1, 64], strides = [1, 1]} : vector<40x64xf32> to vector<1x64xf32>
    %c0_399 = arith.constant 0 : index
    %c1344_400 = arith.constant 1344 : index
    %548 = vector.load %arg34[%c0_399, %c1344_400] : memref<1x3072xf32, #tpu.memory_space<vmem>>, vector<1x64xf32>
    tpu.vector_store %arg34[%c0_399, %c1344_400], %547 {strides = array<i32>} : memref<1x3072xf32, #tpu.memory_space<vmem>>, vector<1x64xf32>,
    %549 = vector.extract_strided_slice %504 {offsets = [22, 0], sizes = [1, 64], strides = [1, 1]} : vector<40x64xf32> to vector<1x64xf32>
    %c0_401 = arith.constant 0 : index
    %c1408_402 = arith.constant 1408 : index
    %550 = vector.load %arg34[%c0_401, %c1408_402] : memref<1x3072xf32, #tpu.memory_space<vmem>>, vector<1x64xf32>
    tpu.vector_store %arg34[%c0_401, %c1408_402], %549 {strides = array<i32>} : memref<1x3072xf32, #tpu.memory_space<vmem>>, vector<1x64xf32>,
    %551 = vector.extract_strided_slice %504 {offsets = [23, 0], sizes = [1, 64], strides = [1, 1]} : vector<40x64xf32> to vector<1x64xf32>
    %c0_403 = arith.constant 0 : index
    %c1472_404 = arith.constant 1472 : index
    %552 = vector.load %arg34[%c0_403, %c1472_404] : memref<1x3072xf32, #tpu.memory_space<vmem>>, vector<1x64xf32>
    tpu.vector_store %arg34[%c0_403, %c1472_404], %551 {strides = array<i32>} : memref<1x3072xf32, #tpu.memory_space<vmem>>, vector<1x64xf32>,
    %553 = vector.extract_strided_slice %504 {offsets = [24, 0], sizes = [1, 64], strides = [1, 1]} : vector<40x64xf32> to vector<1x64xf32>
    %c0_405 = arith.constant 0 : index
    %c1536 = arith.constant 1536 : index
    %554 = vector.load %arg34[%c0_405, %c1536] : memref<1x3072xf32, #tpu.memory_space<vmem>>, vector<1x64xf32>
    tpu.vector_store %arg34[%c0_405, %c1536], %553 {strides = array<i32>} : memref<1x3072xf32, #tpu.memory_space<vmem>>, vector<1x64xf32>,
    %555 = vector.extract_strided_slice %504 {offsets = [25, 0], sizes = [1, 64], strides = [1, 1]} : vector<40x64xf32> to vector<1x64xf32>
    %c0_406 = arith.constant 0 : index
    %c1600 = arith.constant 1600 : index
    %556 = vector.load %arg34[%c0_406, %c1600] : memref<1x3072xf32, #tpu.memory_space<vmem>>, vector<1x64xf32>
    tpu.vector_store %arg34[%c0_406, %c1600], %555 {strides = array<i32>} : memref<1x3072xf32, #tpu.memory_space<vmem>>, vector<1x64xf32>,
    %557 = vector.extract_strided_slice %504 {offsets = [26, 0], sizes = [1, 64], strides = [1, 1]} : vector<40x64xf32> to vector<1x64xf32>
    %c0_407 = arith.constant 0 : index
    %c1664 = arith.constant 1664 : index
    %558 = vector.load %arg34[%c0_407, %c1664] : memref<1x3072xf32, #tpu.memory_space<vmem>>, vector<1x64xf32>
    tpu.vector_store %arg34[%c0_407, %c1664], %557 {strides = array<i32>} : memref<1x3072xf32, #tpu.memory_space<vmem>>, vector<1x64xf32>,
    %559 = vector.extract_strided_slice %504 {offsets = [27, 0], sizes = [1, 64], strides = [1, 1]} : vector<40x64xf32> to vector<1x64xf32>
    %c0_408 = arith.constant 0 : index
    %c1728 = arith.constant 1728 : index
    %560 = vector.load %arg34[%c0_408, %c1728] : memref<1x3072xf32, #tpu.memory_space<vmem>>, vector<1x64xf32>
    tpu.vector_store %arg34[%c0_408, %c1728], %559 {strides = array<i32>} : memref<1x3072xf32, #tpu.memory_space<vmem>>, vector<1x64xf32>,
    %561 = vector.extract_strided_slice %504 {offsets = [28, 0], sizes = [1, 64], strides = [1, 1]} : vector<40x64xf32> to vector<1x64xf32>
    %c0_409 = arith.constant 0 : index
    %c1792 = arith.constant 1792 : index
    %562 = vector.load %arg34[%c0_409, %c1792] : memref<1x3072xf32, #tpu.memory_space<vmem>>, vector<1x64xf32>
    tpu.vector_store %arg34[%c0_409, %c1792], %561 {strides = array<i32>} : memref<1x3072xf32, #tpu.memory_space<vmem>>, vector<1x64xf32>,
    %563 = vector.extract_strided_slice %504 {offsets = [29, 0], sizes = [1, 64], strides = [1, 1]} : vector<40x64xf32> to vector<1x64xf32>
    %c0_410 = arith.constant 0 : index
    %c1856 = arith.constant 1856 : index
    %564 = vector.load %arg34[%c0_410, %c1856] : memref<1x3072xf32, #tpu.memory_space<vmem>>, vector<1x64xf32>
    tpu.vector_store %arg34[%c0_410, %c1856], %563 {strides = array<i32>} : memref<1x3072xf32, #tpu.memory_space<vmem>>, vector<1x64xf32>,
    %565 = vector.extract_strided_slice %504 {offsets = [30, 0], sizes = [1, 64], strides = [1, 1]} : vector<40x64xf32> to vector<1x64xf32>
    %c0_411 = arith.constant 0 : index
    %c1920 = arith.constant 1920 : index
    %566 = vector.load %arg34[%c0_411, %c1920] : memref<1x3072xf32, #tpu.memory_space<vmem>>, vector<1x64xf32>
    tpu.vector_store %arg34[%c0_411, %c1920], %565 {strides = array<i32>} : memref<1x3072xf32, #tpu.memory_space<vmem>>, vector<1x64xf32>,
    %567 = vector.extract_strided_slice %504 {offsets = [31, 0], sizes = [1, 64], strides = [1, 1]} : vector<40x64xf32> to vector<1x64xf32>
    %c0_412 = arith.constant 0 : index
    %c1984 = arith.constant 1984 : index
    %568 = vector.load %arg34[%c0_412, %c1984] : memref<1x3072xf32, #tpu.memory_space<vmem>>, vector<1x64xf32>
    tpu.vector_store %arg34[%c0_412, %c1984], %567 {strides = array<i32>} : memref<1x3072xf32, #tpu.memory_space<vmem>>, vector<1x64xf32>,
    %569 = vector.extract_strided_slice %504 {offsets = [32, 0], sizes = [1, 64], strides = [1, 1]} : vector<40x64xf32> to vector<1x64xf32>
    %c0_413 = arith.constant 0 : index
    %c2048 = arith.constant 2048 : index
    %570 = vector.load %arg34[%c0_413, %c2048] : memref<1x3072xf32, #tpu.memory_space<vmem>>, vector<1x64xf32>
    tpu.vector_store %arg34[%c0_413, %c2048], %569 {strides = array<i32>} : memref<1x3072xf32, #tpu.memory_space<vmem>>, vector<1x64xf32>,
    %571 = vector.extract_strided_slice %504 {offsets = [33, 0], sizes = [1, 64], strides = [1, 1]} : vector<40x64xf32> to vector<1x64xf32>
    %c0_414 = arith.constant 0 : index
    %c2112 = arith.constant 2112 : index
    %572 = vector.load %arg34[%c0_414, %c2112] : memref<1x3072xf32, #tpu.memory_space<vmem>>, vector<1x64xf32>
    tpu.vector_store %arg34[%c0_414, %c2112], %571 {strides = array<i32>} : memref<1x3072xf32, #tpu.memory_space<vmem>>, vector<1x64xf32>,
    %573 = vector.extract_strided_slice %504 {offsets = [34, 0], sizes = [1, 64], strides = [1, 1]} : vector<40x64xf32> to vector<1x64xf32>
    %c0_415 = arith.constant 0 : index
    %c2176 = arith.constant 2176 : index
    %574 = vector.load %arg34[%c0_415, %c2176] : memref<1x3072xf32, #tpu.memory_space<vmem>>, vector<1x64xf32>
    tpu.vector_store %arg34[%c0_415, %c2176], %573 {strides = array<i32>} : memref<1x3072xf32, #tpu.memory_space<vmem>>, vector<1x64xf32>,
    %575 = vector.extract_strided_slice %504 {offsets = [35, 0], sizes = [1, 64], strides = [1, 1]} : vector<40x64xf32> to vector<1x64xf32>
    %c0_416 = arith.constant 0 : index
    %c2240 = arith.constant 2240 : index
    %576 = vector.load %arg34[%c0_416, %c2240] : memref<1x3072xf32, #tpu.memory_space<vmem>>, vector<1x64xf32>
    tpu.vector_store %arg34[%c0_416, %c2240], %575 {strides = array<i32>} : memref<1x3072xf32, #tpu.memory_space<vmem>>, vector<1x64xf32>,
    %577 = vector.extract_strided_slice %504 {offsets = [36, 0], sizes = [1, 64], strides = [1, 1]} : vector<40x64xf32> to vector<1x64xf32>
    %c0_417 = arith.constant 0 : index
    %c2304 = arith.constant 2304 : index
    %578 = vector.load %arg34[%c0_417, %c2304] : memref<1x3072xf32, #tpu.memory_space<vmem>>, vector<1x64xf32>
    tpu.vector_store %arg34[%c0_417, %c2304], %577 {strides = array<i32>} : memref<1x3072xf32, #tpu.memory_space<vmem>>, vector<1x64xf32>,
    %579 = vector.extract_strided_slice %504 {offsets = [37, 0], sizes = [1, 64], strides = [1, 1]} : vector<40x64xf32> to vector<1x64xf32>
    %c0_418 = arith.constant 0 : index
    %c2368 = arith.constant 2368 : index
    %580 = vector.load %arg34[%c0_418, %c2368] : memref<1x3072xf32, #tpu.memory_space<vmem>>, vector<1x64xf32>
    tpu.vector_store %arg34[%c0_418, %c2368], %579 {strides = array<i32>} : memref<1x3072xf32, #tpu.memory_space<vmem>>, vector<1x64xf32>,
    %581 = vector.extract_strided_slice %504 {offsets = [38, 0], sizes = [1, 64], strides = [1, 1]} : vector<40x64xf32> to vector<1x64xf32>
    %c0_419 = arith.constant 0 : index
    %c2432 = arith.constant 2432 : index
    %582 = vector.load %arg34[%c0_419, %c2432] : memref<1x3072xf32, #tpu.memory_space<vmem>>, vector<1x64xf32>
    tpu.vector_store %arg34[%c0_419, %c2432], %581 {strides = array<i32>} : memref<1x3072xf32, #tpu.memory_space<vmem>>, vector<1x64xf32>,
    %583 = vector.extract_strided_slice %504 {offsets = [39, 0], sizes = [1, 64], strides = [1, 1]} : vector<40x64xf32> to vector<1x64xf32>
    %c0_420 = arith.constant 0 : index
    %c2496 = arith.constant 2496 : index
    %584 = vector.load %arg34[%c0_420, %c2496] : memref<1x3072xf32, #tpu.memory_space<vmem>>, vector<1x64xf32>
    tpu.vector_store %arg34[%c0_420, %c2496], %583 {strides = array<i32>} : memref<1x3072xf32, #tpu.memory_space<vmem>>, vector<1x64xf32>,
    %c0_421 = arith.constant 0 : index
    %c0_422 = arith.constant 0 : index
    %585 = vector.load %arg34[%c0_421, %c0_422] : memref<1x3072xf32, #tpu.memory_space<vmem>>, vector<1x2560xf32>
    %c0_423 = arith.constant 0 : index
    %c0_424 = arith.constant 0 : index
    %586 = vector.load %arg28[%c0_423, %c0_424] : memref<2560x128xf32, #tpu.memory_space<vmem>>, vector<2560x128xf32>
    %cst_425 = arith.constant dense<0.000000e+00> : vector<1x128xf32>
    %587 = tpu.matmul %585, %586, %cst_425 {dimension_numbers = #tpu.dot_dimension_numbers<[1], [0], [0], [1], [0, 0, 1, 1], [], []>} : vector<1x2560xf32>, vector<2560x128xf32>, vector<1x128xf32> -> vector<1x128xf32>
    %c0_426 = arith.constant 0 : index
    %c0_427 = arith.constant 0 : index
    %588 = vector.load %arg29[%c0_426, %c0_427] : memref<1x128xf32, #tpu.memory_space<vmem>>, vector<1x128xf32>
    %589 = arith.addf %587, %588 : vector<1x128xf32>
    %c0_428 = arith.constant 0 : index
    %c0_429 = arith.constant 0 : index
    %c128_430 = arith.constant 128 : index
    %590 = vector.load %arg32[%c0_428, %c0_429, %c128_430] : memref<1x1x384xf32, #tpu.memory_space<vmem>>, vector<1x1x128xf32>
    %591 = vector.shape_cast %590 : vector<1x1x128xf32> to vector<1x128xf32>
    %592 = vector.shape_cast %589 : vector<1x128xf32> to vector<1x1x128xf32>
    tpu.vector_store %arg32[%c0_428, %c0_429, %c128_430], %592 {strides = array<i32>} : memref<1x1x384xf32, #tpu.memory_space<vmem>>, vector<1x1x128xf32>,
    %c0_431 = arith.constant 0 : index
    %c0_432 = arith.constant 0 : index
    %593 = vector.load %arg3[%c0_431, %c0_432] : memref<256x64xf32, #tpu.memory_space<vmem>>, vector<256x64xf32>
    %cst_433 = arith.constant dense<0.000000e+00> : vector<48x64xf32>
    %594 = tpu.matmul %444, %593, %cst_433 {dimension_numbers = #tpu.dot_dimension_numbers<[1], [0], [0], [1], [0, 0, 1, 1], [], []>} : vector<48x256xf32>, vector<256x64xf32>, vector<48x64xf32> -> vector<48x64xf32>
    %595 = vector.extract_strided_slice %594 {offsets = [0, 0], sizes = [1, 64], strides = [1, 1]} : vector<48x64xf32> to vector<1x64xf32>
    %c0_434 = arith.constant 0 : index
    %c0_435 = arith.constant 0 : index
    %596 = vector.load %arg34[%c0_434, %c0_435] : memref<1x3072xf32, #tpu.memory_space<vmem>>, vector<1x64xf32>
    tpu.vector_store %arg34[%c0_434, %c0_435], %595 {strides = array<i32>} : memref<1x3072xf32, #tpu.memory_space<vmem>>, vector<1x64xf32>,
    %597 = vector.extract_strided_slice %594 {offsets = [1, 0], sizes = [1, 64], strides = [1, 1]} : vector<48x64xf32> to vector<1x64xf32>
    %c0_436 = arith.constant 0 : index
    %c64_437 = arith.constant 64 : index
    %598 = vector.load %arg34[%c0_436, %c64_437] : memref<1x3072xf32, #tpu.memory_space<vmem>>, vector<1x64xf32>
    tpu.vector_store %arg34[%c0_436, %c64_437], %597 {strides = array<i32>} : memref<1x3072xf32, #tpu.memory_space<vmem>>, vector<1x64xf32>,
    %599 = vector.extract_strided_slice %594 {offsets = [2, 0], sizes = [1, 64], strides = [1, 1]} : vector<48x64xf32> to vector<1x64xf32>
    %c0_438 = arith.constant 0 : index
    %c128_439 = arith.constant 128 : index
    %600 = vector.load %arg34[%c0_438, %c128_439] : memref<1x3072xf32, #tpu.memory_space<vmem>>, vector<1x64xf32>
    tpu.vector_store %arg34[%c0_438, %c128_439], %599 {strides = array<i32>} : memref<1x3072xf32, #tpu.memory_space<vmem>>, vector<1x64xf32>,
    %601 = vector.extract_strided_slice %594 {offsets = [3, 0], sizes = [1, 64], strides = [1, 1]} : vector<48x64xf32> to vector<1x64xf32>
    %c0_440 = arith.constant 0 : index
    %c192_441 = arith.constant 192 : index
    %602 = vector.load %arg34[%c0_440, %c192_441] : memref<1x3072xf32, #tpu.memory_space<vmem>>, vector<1x64xf32>
    tpu.vector_store %arg34[%c0_440, %c192_441], %601 {strides = array<i32>} : memref<1x3072xf32, #tpu.memory_space<vmem>>, vector<1x64xf32>,
    %603 = vector.extract_strided_slice %594 {offsets = [4, 0], sizes = [1, 64], strides = [1, 1]} : vector<48x64xf32> to vector<1x64xf32>
    %c0_442 = arith.constant 0 : index
    %c256_443 = arith.constant 256 : index
    %604 = vector.load %arg34[%c0_442, %c256_443] : memref<1x3072xf32, #tpu.memory_space<vmem>>, vector<1x64xf32>
    tpu.vector_store %arg34[%c0_442, %c256_443], %603 {strides = array<i32>} : memref<1x3072xf32, #tpu.memory_space<vmem>>, vector<1x64xf32>,
    %605 = vector.extract_strided_slice %594 {offsets = [5, 0], sizes = [1, 64], strides = [1, 1]} : vector<48x64xf32> to vector<1x64xf32>
    %c0_444 = arith.constant 0 : index
    %c320_445 = arith.constant 320 : index
    %606 = vector.load %arg34[%c0_444, %c320_445] : memref<1x3072xf32, #tpu.memory_space<vmem>>, vector<1x64xf32>
    tpu.vector_store %arg34[%c0_444, %c320_445], %605 {strides = array<i32>} : memref<1x3072xf32, #tpu.memory_space<vmem>>, vector<1x64xf32>,
    %607 = vector.extract_strided_slice %594 {offsets = [6, 0], sizes = [1, 64], strides = [1, 1]} : vector<48x64xf32> to vector<1x64xf32>
    %c0_446 = arith.constant 0 : index
    %c384_447 = arith.constant 384 : index
    %608 = vector.load %arg34[%c0_446, %c384_447] : memref<1x3072xf32, #tpu.memory_space<vmem>>, vector<1x64xf32>
    tpu.vector_store %arg34[%c0_446, %c384_447], %607 {strides = array<i32>} : memref<1x3072xf32, #tpu.memory_space<vmem>>, vector<1x64xf32>,
    %609 = vector.extract_strided_slice %594 {offsets = [7, 0], sizes = [1, 64], strides = [1, 1]} : vector<48x64xf32> to vector<1x64xf32>
    %c0_448 = arith.constant 0 : index
    %c448_449 = arith.constant 448 : index
    %610 = vector.load %arg34[%c0_448, %c448_449] : memref<1x3072xf32, #tpu.memory_space<vmem>>, vector<1x64xf32>
    tpu.vector_store %arg34[%c0_448, %c448_449], %609 {strides = array<i32>} : memref<1x3072xf32, #tpu.memory_space<vmem>>, vector<1x64xf32>,
    %611 = vector.extract_strided_slice %594 {offsets = [8, 0], sizes = [1, 64], strides = [1, 1]} : vector<48x64xf32> to vector<1x64xf32>
    %c0_450 = arith.constant 0 : index
    %c512_451 = arith.constant 512 : index
    %612 = vector.load %arg34[%c0_450, %c512_451] : memref<1x3072xf32, #tpu.memory_space<vmem>>, vector<1x64xf32>
    tpu.vector_store %arg34[%c0_450, %c512_451], %611 {strides = array<i32>} : memref<1x3072xf32, #tpu.memory_space<vmem>>, vector<1x64xf32>,
    %613 = vector.extract_strided_slice %594 {offsets = [9, 0], sizes = [1, 64], strides = [1, 1]} : vector<48x64xf32> to vector<1x64xf32>
    %c0_452 = arith.constant 0 : index
    %c576_453 = arith.constant 576 : index
    %614 = vector.load %arg34[%c0_452, %c576_453] : memref<1x3072xf32, #tpu.memory_space<vmem>>, vector<1x64xf32>
    tpu.vector_store %arg34[%c0_452, %c576_453], %613 {strides = array<i32>} : memref<1x3072xf32, #tpu.memory_space<vmem>>, vector<1x64xf32>,
    %615 = vector.extract_strided_slice %594 {offsets = [10, 0], sizes = [1, 64], strides = [1, 1]} : vector<48x64xf32> to vector<1x64xf32>
    %c0_454 = arith.constant 0 : index
    %c640_455 = arith.constant 640 : index
    %616 = vector.load %arg34[%c0_454, %c640_455] : memref<1x3072xf32, #tpu.memory_space<vmem>>, vector<1x64xf32>
    tpu.vector_store %arg34[%c0_454, %c640_455], %615 {strides = array<i32>} : memref<1x3072xf32, #tpu.memory_space<vmem>>, vector<1x64xf32>,
    %617 = vector.extract_strided_slice %594 {offsets = [11, 0], sizes = [1, 64], strides = [1, 1]} : vector<48x64xf32> to vector<1x64xf32>
    %c0_456 = arith.constant 0 : index
    %c704_457 = arith.constant 704 : index
    %618 = vector.load %arg34[%c0_456, %c704_457] : memref<1x3072xf32, #tpu.memory_space<vmem>>, vector<1x64xf32>
    tpu.vector_store %arg34[%c0_456, %c704_457], %617 {strides = array<i32>} : memref<1x3072xf32, #tpu.memory_space<vmem>>, vector<1x64xf32>,
    %619 = vector.extract_strided_slice %594 {offsets = [12, 0], sizes = [1, 64], strides = [1, 1]} : vector<48x64xf32> to vector<1x64xf32>
    %c0_458 = arith.constant 0 : index
    %c768_459 = arith.constant 768 : index
    %620 = vector.load %arg34[%c0_458, %c768_459] : memref<1x3072xf32, #tpu.memory_space<vmem>>, vector<1x64xf32>
    tpu.vector_store %arg34[%c0_458, %c768_459], %619 {strides = array<i32>} : memref<1x3072xf32, #tpu.memory_space<vmem>>, vector<1x64xf32>,
    %621 = vector.extract_strided_slice %594 {offsets = [13, 0], sizes = [1, 64], strides = [1, 1]} : vector<48x64xf32> to vector<1x64xf32>
    %c0_460 = arith.constant 0 : index
    %c832_461 = arith.constant 832 : index
    %622 = vector.load %arg34[%c0_460, %c832_461] : memref<1x3072xf32, #tpu.memory_space<vmem>>, vector<1x64xf32>
    tpu.vector_store %arg34[%c0_460, %c832_461], %621 {strides = array<i32>} : memref<1x3072xf32, #tpu.memory_space<vmem>>, vector<1x64xf32>,
    %623 = vector.extract_strided_slice %594 {offsets = [14, 0], sizes = [1, 64], strides = [1, 1]} : vector<48x64xf32> to vector<1x64xf32>
    %c0_462 = arith.constant 0 : index
    %c896_463 = arith.constant 896 : index
    %624 = vector.load %arg34[%c0_462, %c896_463] : memref<1x3072xf32, #tpu.memory_space<vmem>>, vector<1x64xf32>
    tpu.vector_store %arg34[%c0_462, %c896_463], %623 {strides = array<i32>} : memref<1x3072xf32, #tpu.memory_space<vmem>>, vector<1x64xf32>,
    %625 = vector.extract_strided_slice %594 {offsets = [15, 0], sizes = [1, 64], strides = [1, 1]} : vector<48x64xf32> to vector<1x64xf32>
    %c0_464 = arith.constant 0 : index
    %c960_465 = arith.constant 960 : index
    %626 = vector.load %arg34[%c0_464, %c960_465] : memref<1x3072xf32, #tpu.memory_space<vmem>>, vector<1x64xf32>
    tpu.vector_store %arg34[%c0_464, %c960_465], %625 {strides = array<i32>} : memref<1x3072xf32, #tpu.memory_space<vmem>>, vector<1x64xf32>,
    %627 = vector.extract_strided_slice %594 {offsets = [16, 0], sizes = [1, 64], strides = [1, 1]} : vector<48x64xf32> to vector<1x64xf32>
    %c0_466 = arith.constant 0 : index
    %c1024_467 = arith.constant 1024 : index
    %628 = vector.load %arg34[%c0_466, %c1024_467] : memref<1x3072xf32, #tpu.memory_space<vmem>>, vector<1x64xf32>
    tpu.vector_store %arg34[%c0_466, %c1024_467], %627 {strides = array<i32>} : memref<1x3072xf32, #tpu.memory_space<vmem>>, vector<1x64xf32>,
    %629 = vector.extract_strided_slice %594 {offsets = [17, 0], sizes = [1, 64], strides = [1, 1]} : vector<48x64xf32> to vector<1x64xf32>
    %c0_468 = arith.constant 0 : index
    %c1088_469 = arith.constant 1088 : index
    %630 = vector.load %arg34[%c0_468, %c1088_469] : memref<1x3072xf32, #tpu.memory_space<vmem>>, vector<1x64xf32>
    tpu.vector_store %arg34[%c0_468, %c1088_469], %629 {strides = array<i32>} : memref<1x3072xf32, #tpu.memory_space<vmem>>, vector<1x64xf32>,
    %631 = vector.extract_strided_slice %594 {offsets = [18, 0], sizes = [1, 64], strides = [1, 1]} : vector<48x64xf32> to vector<1x64xf32>
    %c0_470 = arith.constant 0 : index
    %c1152_471 = arith.constant 1152 : index
    %632 = vector.load %arg34[%c0_470, %c1152_471] : memref<1x3072xf32, #tpu.memory_space<vmem>>, vector<1x64xf32>
    tpu.vector_store %arg34[%c0_470, %c1152_471], %631 {strides = array<i32>} : memref<1x3072xf32, #tpu.memory_space<vmem>>, vector<1x64xf32>,
    %633 = vector.extract_strided_slice %594 {offsets = [19, 0], sizes = [1, 64], strides = [1, 1]} : vector<48x64xf32> to vector<1x64xf32>
    %c0_472 = arith.constant 0 : index
    %c1216_473 = arith.constant 1216 : index
    %634 = vector.load %arg34[%c0_472, %c1216_473] : memref<1x3072xf32, #tpu.memory_space<vmem>>, vector<1x64xf32>
    tpu.vector_store %arg34[%c0_472, %c1216_473], %633 {strides = array<i32>} : memref<1x3072xf32, #tpu.memory_space<vmem>>, vector<1x64xf32>,
    %635 = vector.extract_strided_slice %594 {offsets = [20, 0], sizes = [1, 64], strides = [1, 1]} : vector<48x64xf32> to vector<1x64xf32>
    %c0_474 = arith.constant 0 : index
    %c1280_475 = arith.constant 1280 : index
    %636 = vector.load %arg34[%c0_474, %c1280_475] : memref<1x3072xf32, #tpu.memory_space<vmem>>, vector<1x64xf32>
    tpu.vector_store %arg34[%c0_474, %c1280_475], %635 {strides = array<i32>} : memref<1x3072xf32, #tpu.memory_space<vmem>>, vector<1x64xf32>,
    %637 = vector.extract_strided_slice %594 {offsets = [21, 0], sizes = [1, 64], strides = [1, 1]} : vector<48x64xf32> to vector<1x64xf32>
    %c0_476 = arith.constant 0 : index
    %c1344_477 = arith.constant 1344 : index
    %638 = vector.load %arg34[%c0_476, %c1344_477] : memref<1x3072xf32, #tpu.memory_space<vmem>>, vector<1x64xf32>
    tpu.vector_store %arg34[%c0_476, %c1344_477], %637 {strides = array<i32>} : memref<1x3072xf32, #tpu.memory_space<vmem>>, vector<1x64xf32>,
    %639 = vector.extract_strided_slice %594 {offsets = [22, 0], sizes = [1, 64], strides = [1, 1]} : vector<48x64xf32> to vector<1x64xf32>
    %c0_478 = arith.constant 0 : index
    %c1408_479 = arith.constant 1408 : index
    %640 = vector.load %arg34[%c0_478, %c1408_479] : memref<1x3072xf32, #tpu.memory_space<vmem>>, vector<1x64xf32>
    tpu.vector_store %arg34[%c0_478, %c1408_479], %639 {strides = array<i32>} : memref<1x3072xf32, #tpu.memory_space<vmem>>, vector<1x64xf32>,
    %641 = vector.extract_strided_slice %594 {offsets = [23, 0], sizes = [1, 64], strides = [1, 1]} : vector<48x64xf32> to vector<1x64xf32>
    %c0_480 = arith.constant 0 : index
    %c1472_481 = arith.constant 1472 : index
    %642 = vector.load %arg34[%c0_480, %c1472_481] : memref<1x3072xf32, #tpu.memory_space<vmem>>, vector<1x64xf32>
    tpu.vector_store %arg34[%c0_480, %c1472_481], %641 {strides = array<i32>} : memref<1x3072xf32, #tpu.memory_space<vmem>>, vector<1x64xf32>,
    %643 = vector.extract_strided_slice %594 {offsets = [24, 0], sizes = [1, 64], strides = [1, 1]} : vector<48x64xf32> to vector<1x64xf32>
    %c0_482 = arith.constant 0 : index
    %c1536_483 = arith.constant 1536 : index
    %644 = vector.load %arg34[%c0_482, %c1536_483] : memref<1x3072xf32, #tpu.memory_space<vmem>>, vector<1x64xf32>
    tpu.vector_store %arg34[%c0_482, %c1536_483], %643 {strides = array<i32>} : memref<1x3072xf32, #tpu.memory_space<vmem>>, vector<1x64xf32>,
    %645 = vector.extract_strided_slice %594 {offsets = [25, 0], sizes = [1, 64], strides = [1, 1]} : vector<48x64xf32> to vector<1x64xf32>
    %c0_484 = arith.constant 0 : index
    %c1600_485 = arith.constant 1600 : index
    %646 = vector.load %arg34[%c0_484, %c1600_485] : memref<1x3072xf32, #tpu.memory_space<vmem>>, vector<1x64xf32>
    tpu.vector_store %arg34[%c0_484, %c1600_485], %645 {strides = array<i32>} : memref<1x3072xf32, #tpu.memory_space<vmem>>, vector<1x64xf32>,
    %647 = vector.extract_strided_slice %594 {offsets = [26, 0], sizes = [1, 64], strides = [1, 1]} : vector<48x64xf32> to vector<1x64xf32>
    %c0_486 = arith.constant 0 : index
    %c1664_487 = arith.constant 1664 : index
    %648 = vector.load %arg34[%c0_486, %c1664_487] : memref<1x3072xf32, #tpu.memory_space<vmem>>, vector<1x64xf32>
    tpu.vector_store %arg34[%c0_486, %c1664_487], %647 {strides = array<i32>} : memref<1x3072xf32, #tpu.memory_space<vmem>>, vector<1x64xf32>,
    %649 = vector.extract_strided_slice %594 {offsets = [27, 0], sizes = [1, 64], strides = [1, 1]} : vector<48x64xf32> to vector<1x64xf32>
    %c0_488 = arith.constant 0 : index
    %c1728_489 = arith.constant 1728 : index
    %650 = vector.load %arg34[%c0_488, %c1728_489] : memref<1x3072xf32, #tpu.memory_space<vmem>>, vector<1x64xf32>
    tpu.vector_store %arg34[%c0_488, %c1728_489], %649 {strides = array<i32>} : memref<1x3072xf32, #tpu.memory_space<vmem>>, vector<1x64xf32>,
    %651 = vector.extract_strided_slice %594 {offsets = [28, 0], sizes = [1, 64], strides = [1, 1]} : vector<48x64xf32> to vector<1x64xf32>
    %c0_490 = arith.constant 0 : index
    %c1792_491 = arith.constant 1792 : index
    %652 = vector.load %arg34[%c0_490, %c1792_491] : memref<1x3072xf32, #tpu.memory_space<vmem>>, vector<1x64xf32>
    tpu.vector_store %arg34[%c0_490, %c1792_491], %651 {strides = array<i32>} : memref<1x3072xf32, #tpu.memory_space<vmem>>, vector<1x64xf32>,
    %653 = vector.extract_strided_slice %594 {offsets = [29, 0], sizes = [1, 64], strides = [1, 1]} : vector<48x64xf32> to vector<1x64xf32>
    %c0_492 = arith.constant 0 : index
    %c1856_493 = arith.constant 1856 : index
    %654 = vector.load %arg34[%c0_492, %c1856_493] : memref<1x3072xf32, #tpu.memory_space<vmem>>, vector<1x64xf32>
    tpu.vector_store %arg34[%c0_492, %c1856_493], %653 {strides = array<i32>} : memref<1x3072xf32, #tpu.memory_space<vmem>>, vector<1x64xf32>,
    %655 = vector.extract_strided_slice %594 {offsets = [30, 0], sizes = [1, 64], strides = [1, 1]} : vector<48x64xf32> to vector<1x64xf32>
    %c0_494 = arith.constant 0 : index
    %c1920_495 = arith.constant 1920 : index
    %656 = vector.load %arg34[%c0_494, %c1920_495] : memref<1x3072xf32, #tpu.memory_space<vmem>>, vector<1x64xf32>
    tpu.vector_store %arg34[%c0_494, %c1920_495], %655 {strides = array<i32>} : memref<1x3072xf32, #tpu.memory_space<vmem>>, vector<1x64xf32>,
    %657 = vector.extract_strided_slice %594 {offsets = [31, 0], sizes = [1, 64], strides = [1, 1]} : vector<48x64xf32> to vector<1x64xf32>
    %c0_496 = arith.constant 0 : index
    %c1984_497 = arith.constant 1984 : index
    %658 = vector.load %arg34[%c0_496, %c1984_497] : memref<1x3072xf32, #tpu.memory_space<vmem>>, vector<1x64xf32>
    tpu.vector_store %arg34[%c0_496, %c1984_497], %657 {strides = array<i32>} : memref<1x3072xf32, #tpu.memory_space<vmem>>, vector<1x64xf32>,
    %659 = vector.extract_strided_slice %594 {offsets = [32, 0], sizes = [1, 64], strides = [1, 1]} : vector<48x64xf32> to vector<1x64xf32>
    %c0_498 = arith.constant 0 : index
    %c2048_499 = arith.constant 2048 : index
    %660 = vector.load %arg34[%c0_498, %c2048_499] : memref<1x3072xf32, #tpu.memory_space<vmem>>, vector<1x64xf32>
    tpu.vector_store %arg34[%c0_498, %c2048_499], %659 {strides = array<i32>} : memref<1x3072xf32, #tpu.memory_space<vmem>>, vector<1x64xf32>,
    %661 = vector.extract_strided_slice %594 {offsets = [33, 0], sizes = [1, 64], strides = [1, 1]} : vector<48x64xf32> to vector<1x64xf32>
    %c0_500 = arith.constant 0 : index
    %c2112_501 = arith.constant 2112 : index
    %662 = vector.load %arg34[%c0_500, %c2112_501] : memref<1x3072xf32, #tpu.memory_space<vmem>>, vector<1x64xf32>
    tpu.vector_store %arg34[%c0_500, %c2112_501], %661 {strides = array<i32>} : memref<1x3072xf32, #tpu.memory_space<vmem>>, vector<1x64xf32>,
    %663 = vector.extract_strided_slice %594 {offsets = [34, 0], sizes = [1, 64], strides = [1, 1]} : vector<48x64xf32> to vector<1x64xf32>
    %c0_502 = arith.constant 0 : index
    %c2176_503 = arith.constant 2176 : index
    %664 = vector.load %arg34[%c0_502, %c2176_503] : memref<1x3072xf32, #tpu.memory_space<vmem>>, vector<1x64xf32>
    tpu.vector_store %arg34[%c0_502, %c2176_503], %663 {strides = array<i32>} : memref<1x3072xf32, #tpu.memory_space<vmem>>, vector<1x64xf32>,
    %665 = vector.extract_strided_slice %594 {offsets = [35, 0], sizes = [1, 64], strides = [1, 1]} : vector<48x64xf32> to vector<1x64xf32>
    %c0_504 = arith.constant 0 : index
    %c2240_505 = arith.constant 2240 : index
    %666 = vector.load %arg34[%c0_504, %c2240_505] : memref<1x3072xf32, #tpu.memory_space<vmem>>, vector<1x64xf32>
    tpu.vector_store %arg34[%c0_504, %c2240_505], %665 {strides = array<i32>} : memref<1x3072xf32, #tpu.memory_space<vmem>>, vector<1x64xf32>,
    %667 = vector.extract_strided_slice %594 {offsets = [36, 0], sizes = [1, 64], strides = [1, 1]} : vector<48x64xf32> to vector<1x64xf32>
    %c0_506 = arith.constant 0 : index
    %c2304_507 = arith.constant 2304 : index
    %668 = vector.load %arg34[%c0_506, %c2304_507] : memref<1x3072xf32, #tpu.memory_space<vmem>>, vector<1x64xf32>
    tpu.vector_store %arg34[%c0_506, %c2304_507], %667 {strides = array<i32>} : memref<1x3072xf32, #tpu.memory_space<vmem>>, vector<1x64xf32>,
    %669 = vector.extract_strided_slice %594 {offsets = [37, 0], sizes = [1, 64], strides = [1, 1]} : vector<48x64xf32> to vector<1x64xf32>
    %c0_508 = arith.constant 0 : index
    %c2368_509 = arith.constant 2368 : index
    %670 = vector.load %arg34[%c0_508, %c2368_509] : memref<1x3072xf32, #tpu.memory_space<vmem>>, vector<1x64xf32>
    tpu.vector_store %arg34[%c0_508, %c2368_509], %669 {strides = array<i32>} : memref<1x3072xf32, #tpu.memory_space<vmem>>, vector<1x64xf32>,
    %671 = vector.extract_strided_slice %594 {offsets = [38, 0], sizes = [1, 64], strides = [1, 1]} : vector<48x64xf32> to vector<1x64xf32>
    %c0_510 = arith.constant 0 : index
    %c2432_511 = arith.constant 2432 : index
    %672 = vector.load %arg34[%c0_510, %c2432_511] : memref<1x3072xf32, #tpu.memory_space<vmem>>, vector<1x64xf32>
    tpu.vector_store %arg34[%c0_510, %c2432_511], %671 {strides = array<i32>} : memref<1x3072xf32, #tpu.memory_space<vmem>>, vector<1x64xf32>,
    %673 = vector.extract_strided_slice %594 {offsets = [39, 0], sizes = [1, 64], strides = [1, 1]} : vector<48x64xf32> to vector<1x64xf32>
    %c0_512 = arith.constant 0 : index
    %c2496_513 = arith.constant 2496 : index
    %674 = vector.load %arg34[%c0_512, %c2496_513] : memref<1x3072xf32, #tpu.memory_space<vmem>>, vector<1x64xf32>
    tpu.vector_store %arg34[%c0_512, %c2496_513], %673 {strides = array<i32>} : memref<1x3072xf32, #tpu.memory_space<vmem>>, vector<1x64xf32>,
    %675 = vector.extract_strided_slice %594 {offsets = [40, 0], sizes = [1, 64], strides = [1, 1]} : vector<48x64xf32> to vector<1x64xf32>
    %c0_514 = arith.constant 0 : index
    %c2560 = arith.constant 2560 : index
    %676 = vector.load %arg34[%c0_514, %c2560] : memref<1x3072xf32, #tpu.memory_space<vmem>>, vector<1x64xf32>
    tpu.vector_store %arg34[%c0_514, %c2560], %675 {strides = array<i32>} : memref<1x3072xf32, #tpu.memory_space<vmem>>, vector<1x64xf32>,
    %677 = vector.extract_strided_slice %594 {offsets = [41, 0], sizes = [1, 64], strides = [1, 1]} : vector<48x64xf32> to vector<1x64xf32>
    %c0_515 = arith.constant 0 : index
    %c2624 = arith.constant 2624 : index
    %678 = vector.load %arg34[%c0_515, %c2624] : memref<1x3072xf32, #tpu.memory_space<vmem>>, vector<1x64xf32>
    tpu.vector_store %arg34[%c0_515, %c2624], %677 {strides = array<i32>} : memref<1x3072xf32, #tpu.memory_space<vmem>>, vector<1x64xf32>,
    %679 = vector.extract_strided_slice %594 {offsets = [42, 0], sizes = [1, 64], strides = [1, 1]} : vector<48x64xf32> to vector<1x64xf32>
    %c0_516 = arith.constant 0 : index
    %c2688 = arith.constant 2688 : index
    %680 = vector.load %arg34[%c0_516, %c2688] : memref<1x3072xf32, #tpu.memory_space<vmem>>, vector<1x64xf32>
    tpu.vector_store %arg34[%c0_516, %c2688], %679 {strides = array<i32>} : memref<1x3072xf32, #tpu.memory_space<vmem>>, vector<1x64xf32>,
    %681 = vector.extract_strided_slice %594 {offsets = [43, 0], sizes = [1, 64], strides = [1, 1]} : vector<48x64xf32> to vector<1x64xf32>
    %c0_517 = arith.constant 0 : index
    %c2752 = arith.constant 2752 : index
    %682 = vector.load %arg34[%c0_517, %c2752] : memref<1x3072xf32, #tpu.memory_space<vmem>>, vector<1x64xf32>
    tpu.vector_store %arg34[%c0_517, %c2752], %681 {strides = array<i32>} : memref<1x3072xf32, #tpu.memory_space<vmem>>, vector<1x64xf32>,
    %683 = vector.extract_strided_slice %594 {offsets = [44, 0], sizes = [1, 64], strides = [1, 1]} : vector<48x64xf32> to vector<1x64xf32>
    %c0_518 = arith.constant 0 : index
    %c2816 = arith.constant 2816 : index
    %684 = vector.load %arg34[%c0_518, %c2816] : memref<1x3072xf32, #tpu.memory_space<vmem>>, vector<1x64xf32>
    tpu.vector_store %arg34[%c0_518, %c2816], %683 {strides = array<i32>} : memref<1x3072xf32, #tpu.memory_space<vmem>>, vector<1x64xf32>,
    %685 = vector.extract_strided_slice %594 {offsets = [45, 0], sizes = [1, 64], strides = [1, 1]} : vector<48x64xf32> to vector<1x64xf32>
    %c0_519 = arith.constant 0 : index
    %c2880 = arith.constant 2880 : index
    %686 = vector.load %arg34[%c0_519, %c2880] : memref<1x3072xf32, #tpu.memory_space<vmem>>, vector<1x64xf32>
    tpu.vector_store %arg34[%c0_519, %c2880], %685 {strides = array<i32>} : memref<1x3072xf32, #tpu.memory_space<vmem>>, vector<1x64xf32>,
    %687 = vector.extract_strided_slice %594 {offsets = [46, 0], sizes = [1, 64], strides = [1, 1]} : vector<48x64xf32> to vector<1x64xf32>
    %c0_520 = arith.constant 0 : index
    %c2944 = arith.constant 2944 : index
    %688 = vector.load %arg34[%c0_520, %c2944] : memref<1x3072xf32, #tpu.memory_space<vmem>>, vector<1x64xf32>
    tpu.vector_store %arg34[%c0_520, %c2944], %687 {strides = array<i32>} : memref<1x3072xf32, #tpu.memory_space<vmem>>, vector<1x64xf32>,
    %689 = vector.extract_strided_slice %594 {offsets = [47, 0], sizes = [1, 64], strides = [1, 1]} : vector<48x64xf32> to vector<1x64xf32>
    %c0_521 = arith.constant 0 : index
    %c3008 = arith.constant 3008 : index
    %690 = vector.load %arg34[%c0_521, %c3008] : memref<1x3072xf32, #tpu.memory_space<vmem>>, vector<1x64xf32>
    tpu.vector_store %arg34[%c0_521, %c3008], %689 {strides = array<i32>} : memref<1x3072xf32, #tpu.memory_space<vmem>>, vector<1x64xf32>,
    %c0_522 = arith.constant 0 : index
    %c0_523 = arith.constant 0 : index
    %691 = vector.load %arg34[%c0_522, %c0_523] : memref<1x3072xf32, #tpu.memory_space<vmem>>, vector<1x3072xf32>
    %c0_524 = arith.constant 0 : index
    %c0_525 = arith.constant 0 : index
    %692 = vector.load %arg30[%c0_524, %c0_525] : memref<3072x128xf32, #tpu.memory_space<vmem>>, vector<3072x128xf32>
    %cst_526 = arith.constant dense<0.000000e+00> : vector<1x128xf32>
    %693 = tpu.matmul %691, %692, %cst_526 {dimension_numbers = #tpu.dot_dimension_numbers<[1], [0], [0], [1], [0, 0, 1, 1], [], []>} : vector<1x3072xf32>, vector<3072x128xf32>, vector<1x128xf32> -> vector<1x128xf32>
    %c0_527 = arith.constant 0 : index
    %c0_528 = arith.constant 0 : index
    %694 = vector.load %arg31[%c0_527, %c0_528] : memref<1x128xf32, #tpu.memory_space<vmem>>, vector<1x128xf32>
    %695 = arith.addf %693, %694 : vector<1x128xf32>
    %c0_529 = arith.constant 0 : index
    %c0_530 = arith.constant 0 : index
    %c256_531 = arith.constant 256 : index
    %696 = vector.load %arg32[%c0_529, %c0_530, %c256_531] : memref<1x1x384xf32, #tpu.memory_space<vmem>>, vector<1x1x128xf32>
    %697 = vector.shape_cast %696 : vector<1x1x128xf32> to vector<1x128xf32>
    %698 = vector.shape_cast %695 : vector<1x128xf32> to vector<1x1x128xf32>
    tpu.vector_store %arg32[%c0_529, %c0_530, %c256_531], %698 {strides = array<i32>} : memref<1x1x384xf32, #tpu.memory_space<vmem>>, vector<1x1x128xf32>,
    return
  }
  func.func @transform_0(%arg0: i32) -> (i32, i32) {
    %c0_i32 = arith.constant 0 : i32
    %c0_i32_0 = arith.constant 0 : i32
    return %c0_i32, %arg0 : i32, i32
  }
  func.func @transform_1(%arg0: i32) -> (i32, i32) {
    %c0_i32 = arith.constant 0 : i32
    %c0_i32_0 = arith.constant 0 : i32
    %c0_i32_1 = arith.constant 0 : i32
    return %c0_i32, %c0_i32_0 : i32, i32
  }
  func.func @transform_2(%arg0: i32) -> (i32, i32) {
    %c0_i32 = arith.constant 0 : i32
    %c0_i32_0 = arith.constant 0 : i32
    %c0_i32_1 = arith.constant 0 : i32
    return %c0_i32, %c0_i32_0 : i32, i32
  }
  func.func @transform_3(%arg0: i32) -> (i32, i32) {
    %c0_i32 = arith.constant 0 : i32
    %c0_i32_0 = arith.constant 0 : i32
    %c0_i32_1 = arith.constant 0 : i32
    return %c0_i32, %c0_i32_0 : i32, i32
  }
  func.func @transform_4(%arg0: i32) -> (i32, i32) {
    %c0_i32 = arith.constant 0 : i32
    %c0_i32_0 = arith.constant 0 : i32
    %c0_i32_1 = arith.constant 0 : i32
    return %c0_i32, %c0_i32_0 : i32, i32
  }
  func.func @transform_5(%arg0: i32) -> (i32, i32) {
    %c0_i32 = arith.constant 0 : i32
    %c0_i32_0 = arith.constant 0 : i32
    %c0_i32_1 = arith.constant 0 : i32
    return %c0_i32, %c0_i32_0 : i32, i32
  }
  func.func @transform_6(%arg0: i32) -> (i32, i32) {
    %c0_i32 = arith.constant 0 : i32
    %c0_i32_0 = arith.constant 0 : i32
    %c0_i32_1 = arith.constant 0 : i32
    return %c0_i32, %c0_i32_0 : i32, i32
  }
  func.func @transform_7(%arg0: i32) -> (i32, i32) {
    %c0_i32 = arith.constant 0 : i32
    %c0_i32_0 = arith.constant 0 : i32
    %c0_i32_1 = arith.constant 0 : i32
    return %c0_i32, %c0_i32_0 : i32, i32
  }
  func.func @transform_8(%arg0: i32) -> (i32, i32) {
    %c0_i32 = arith.constant 0 : i32
    %c0_i32_0 = arith.constant 0 : i32
    %c0_i32_1 = arith.constant 0 : i32
    return %c0_i32, %c0_i32_0 : i32, i32
  }
  func.func @transform_9(%arg0: i32) -> (i32, i32) {
    %c0_i32 = arith.constant 0 : i32
    %c0_i32_0 = arith.constant 0 : i32
    %c0_i32_1 = arith.constant 0 : i32
    return %c0_i32, %c0_i32_0 : i32, i32
  }
  func.func @transform_10(%arg0: i32) -> (i32, i32) {
    %c0_i32 = arith.constant 0 : i32
    %c0_i32_0 = arith.constant 0 : i32
    %c0_i32_1 = arith.constant 0 : i32
    return %c0_i32, %c0_i32_0 : i32, i32
  }
  func.func @transform_11(%arg0: i32) -> (i32, i32) {
    %c0_i32 = arith.constant 0 : i32
    %c0_i32_0 = arith.constant 0 : i32
    %c0_i32_1 = arith.constant 0 : i32
    return %c0_i32, %c0_i32_0 : i32, i32
  }
  func.func @transform_12(%arg0: i32) -> (i32, i32) {
    %c0_i32 = arith.constant 0 : i32
    %c0_i32_0 = arith.constant 0 : i32
    %c0_i32_1 = arith.constant 0 : i32
    return %c0_i32, %c0_i32_0 : i32, i32
  }
  func.func @transform_13(%arg0: i32) -> (i32, i32) {
    %c0_i32 = arith.constant 0 : i32
    %c0_i32_0 = arith.constant 0 : i32
    %c0_i32_1 = arith.constant 0 : i32
    return %c0_i32, %c0_i32_0 : i32, i32
  }
  func.func @transform_14(%arg0: i32) -> (i32, i32) {
    %c0_i32 = arith.constant 0 : i32
    %c0_i32_0 = arith.constant 0 : i32
    %c0_i32_1 = arith.constant 0 : i32
    return %c0_i32, %c0_i32_0 : i32, i32
  }
  func.func @transform_15(%arg0: i32) -> (i32, i32) {
    %c0_i32 = arith.constant 0 : i32
    %c0_i32_0 = arith.constant 0 : i32
    %c0_i32_1 = arith.constant 0 : i32
    return %c0_i32, %c0_i32_0 : i32, i32
  }
  func.func @transform_16(%arg0: i32) -> (i32, i32) {
    %c0_i32 = arith.constant 0 : i32
    %c0_i32_0 = arith.constant 0 : i32
    %c0_i32_1 = arith.constant 0 : i32
    return %c0_i32, %c0_i32_0 : i32, i32
  }
  func.func @transform_17(%arg0: i32) -> (i32, i32) {
    %c0_i32 = arith.constant 0 : i32
    %c0_i32_0 = arith.constant 0 : i32
    %c0_i32_1 = arith.constant 0 : i32
    return %c0_i32, %c0_i32_0 : i32, i32
  }
  func.func @transform_18(%arg0: i32) -> (i32, i32) {
    %c0_i32 = arith.constant 0 : i32
    %c0_i32_0 = arith.constant 0 : i32
    %c0_i32_1 = arith.constant 0 : i32
    return %c0_i32, %c0_i32_0 : i32, i32
  }
  func.func @transform_19(%arg0: i32) -> (i32, i32) {
    %c0_i32 = arith.constant 0 : i32
    %c0_i32_0 = arith.constant 0 : i32
    %c0_i32_1 = arith.constant 0 : i32
    return %c0_i32, %c0_i32_0 : i32, i32
  }
  func.func @transform_20(%arg0: i32) -> (i32, i32) {
    %c0_i32 = arith.constant 0 : i32
    %c0_i32_0 = arith.constant 0 : i32
    %c0_i32_1 = arith.constant 0 : i32
    return %c0_i32, %c0_i32_0 : i32, i32
  }
  func.func @transform_21(%arg0: i32) -> (i32, i32) {
    %c0_i32 = arith.constant 0 : i32
    %c0_i32_0 = arith.constant 0 : i32
    %c0_i32_1 = arith.constant 0 : i32
    return %c0_i32, %c0_i32_0 : i32, i32
  }
  func.func @transform_22(%arg0: i32) -> (i32, i32) {
    %c0_i32 = arith.constant 0 : i32
    %c0_i32_0 = arith.constant 0 : i32
    %c0_i32_1 = arith.constant 0 : i32
    return %c0_i32, %c0_i32_0 : i32, i32
  }
  func.func @transform_23(%arg0: i32) -> (i32, i32) {
    %c0_i32 = arith.constant 0 : i32
    %c0_i32_0 = arith.constant 0 : i32
    %c0_i32_1 = arith.constant 0 : i32
    return %c0_i32, %c0_i32_0 : i32, i32
  }
  func.func @transform_24(%arg0: i32) -> (i32, i32) {
    %c0_i32 = arith.constant 0 : i32
    %c0_i32_0 = arith.constant 0 : i32
    %c0_i32_1 = arith.constant 0 : i32
    return %c0_i32, %c0_i32_0 : i32, i32
  }
  func.func @transform_25(%arg0: i32) -> (i32, i32) {
    %c0_i32 = arith.constant 0 : i32
    %c0_i32_0 = arith.constant 0 : i32
    %c0_i32_1 = arith.constant 0 : i32
    return %c0_i32, %c0_i32_0 : i32, i32
  }
  func.func @transform_26(%arg0: i32) -> (i32, i32) {
    %c0_i32 = arith.constant 0 : i32
    %c0_i32_0 = arith.constant 0 : i32
    %c0_i32_1 = arith.constant 0 : i32
    return %c0_i32, %c0_i32_0 : i32, i32
  }
  func.func @transform_27(%arg0: i32) -> (i32, i32) {
    %c0_i32 = arith.constant 0 : i32
    %c0_i32_0 = arith.constant 0 : i32
    %c0_i32_1 = arith.constant 0 : i32
    return %c0_i32, %c0_i32_0 : i32, i32
  }
  func.func @transform_28(%arg0: i32) -> (i32, i32) {
    %c0_i32 = arith.constant 0 : i32
    %c0_i32_0 = arith.constant 0 : i32
    %c0_i32_1 = arith.constant 0 : i32
    return %c0_i32, %c0_i32_0 : i32, i32
  }
  func.func @transform_29(%arg0: i32) -> (i32, i32) {
    %c0_i32 = arith.constant 0 : i32
    %c0_i32_0 = arith.constant 0 : i32
    %c0_i32_1 = arith.constant 0 : i32
    return %c0_i32, %c0_i32_0 : i32, i32
  }
  func.func @transform_30(%arg0: i32) -> (i32, i32) {
    %c0_i32 = arith.constant 0 : i32
    %c0_i32_0 = arith.constant 0 : i32
    %c0_i32_1 = arith.constant 0 : i32
    return %c0_i32, %c0_i32_0 : i32, i32
  }
  func.func @transform_31(%arg0: i32) -> (i32, i32, i32) {
    %c0_i32 = arith.constant 0 : i32
    %c0_i32_0 = arith.constant 0 : i32
    %c0_i32_1 = arith.constant 0 : i32
    return %arg0, %c0_i32, %c0_i32_0 : i32, i32, i32
  }
}

</mosaic_0001>

<llo_original>
// kernel: branched_mobilenet_forward.1
$region0: #{branched_mobilenet_forward.1}
  #allocation0 [shape = 'u32[]', space=smem, size = 0x4, offset = 0x4, fixed_abs, tag = 'smem constant byte address 0x4 - core index']
  #allocation1 [shape = 'u32[72,128]{1,0:T(1,128)}', space=vmem, size = 0x9000, scoped, tag = 'internal scratch']
  #allocation2 [shape = 'f32[40,512]{1,0:T(8,128)}', space=vmem, size = 0x14000, scoped, tag = 'scratch operand']
  #allocation3 [shape = 'f32[1,3072]{1,0:T(1,128)}', space=vmem, size = 0x3000, scoped, tag = 'scratch operand']
  %s0 = inlined_call_operand.smem [shape: u32[32], index: -1, kind: input, shape index: {}]
  %s1 = sld [smem:[%s0]]
  %s2 = scalar_lea.smem %s0, 1
  %s3 = sld [smem:[%s2]]
  %s4 = scalar_lea.smem %s0, 2
  %s5 = sld [smem:[%s4]]
  %s6 = scalar_lea.smem %s0, 3
  %s7 = sld [smem:[%s6]]
  %s8 = scalar_lea.smem %s0, 4
  %s9 = sld [smem:[%s8]]
  %s10 = scalar_lea.smem %s0, 5
  %s11 = sld [smem:[%s10]]
  %s12 = scalar_lea.smem %s0, 6
  %s13 = sld [smem:[%s12]]
  %s14 = scalar_lea.smem %s0, 7
  %s15 = sld [smem:[%s14]]
  %s16 = scalar_lea.smem %s0, 8
  %s17 = sld [smem:[%s16]]
  %s18 = scalar_lea.smem %s0, 9
  %s19 = sld [smem:[%s18]]
  %s20 = scalar_lea.smem %s0, 10
  %s21 = sld [smem:[%s20]]
  %s22 = scalar_lea.smem %s0, 11
  %s23 = sld [smem:[%s22]]
  %s24 = scalar_lea.smem %s0, 12
  %s25 = sld [smem:[%s24]]
  %s26 = scalar_lea.smem %s0, 13
  %s27 = sld [smem:[%s26]]
  %s28 = scalar_lea.smem %s0, 14
  %s29 = sld [smem:[%s28]]
  %s30 = scalar_lea.smem %s0, 15
  %s31 = sld [smem:[%s30]]
  %s32 = scalar_lea.smem %s0, 16
  %s33 = sld [smem:[%s32]]
  %s34 = scalar_lea.smem %s0, 17
  %s35 = sld [smem:[%s34]]
  %s36 = scalar_lea.smem %s0, 18
  %s37 = sld [smem:[%s36]]
  %s38 = scalar_lea.smem %s0, 19
  %s39 = sld [smem:[%s38]]
  %s40 = scalar_lea.smem %s0, 20
  %s41 = sld [smem:[%s40]]
  %s42 = scalar_lea.smem %s0, 21
  %s43 = sld [smem:[%s42]]
  %s44 = scalar_lea.smem %s0, 22
  %s45 = sld [smem:[%s44]]
  %s46 = scalar_lea.smem %s0, 23
  %s47 = sld [smem:[%s46]]
  %s48 = scalar_lea.smem %s0, 24
  %s49 = sld [smem:[%s48]]
  %s50 = scalar_lea.smem %s0, 25
  %s51 = sld [smem:[%s50]]
  %s52 = scalar_lea.smem %s0, 26
  %s53 = sld [smem:[%s52]]
  %s54 = scalar_lea.smem %s0, 27
  %s55 = sld [smem:[%s54]]
  %s56 = scalar_lea.smem %s0, 28
  %s57 = sld [smem:[%s56]]
  %s58 = scalar_lea.smem %s0, 29
  %s59 = sld [smem:[%s58]]
  %s60 = scalar_lea.smem %s0, 30
  %s61 = sld [smem:[%s60]]
  %s62 = scalar_lea.smem %s0, 31
  %s63 = sld [smem:[%s62]]
  %s64 = sld [smem:[#allocation0]]
  $region180: #{branched_mobilenet_forward.1} parent=0
    _
  %s66 = ssub.s32 1, %s64
  %s67 = scalar_select 0, %s66, %s64
  $region1: #{branched_mobilenet_forward.1} parent=0
    #allocation4 [shape = 'u8[65536]{0}', space=vmem, size = 0x10000, scoped, tag = 'input window, operand 0']
    loop: start=0, step=1, limit=4
    $region2: #{branched_mobilenet_forward.1} parent=1 // loop_pre_header
      _
    $region3: #{branched_mobilenet_forward.1} parent=1 // loop_header
      %s69 = sphi 0, %s73
      %p70 = scmp.ge.s32.totalorder %s69, 4
      %s79 = sphi 0, %s81
      %s82 = sphi 0, %s79
      %s83 = sphi 0, %s82
      %s99 = sphi 0, %s83
      %s103 = sphi 0, %s103
      %s105 = sphi 0, %s103
      %s106 = sphi 0, %s105
      %s120 = sphi 0, %s106
      %s124 = sphi 0, %s124
      %s126 = sphi 0, %s124
      %s127 = sphi 0, %s126
      %s141 = sphi 0, %s127
      %s145 = sphi 0, %s145
      %s147 = sphi 0, %s145
      %s148 = sphi 0, %s147
      %s162 = sphi 0, %s148
      %s166 = sphi 0, %s166
      %s168 = sphi 0, %s166
      %s169 = sphi 0, %s168
      %s183 = sphi 0, %s169
      %s187 = sphi 0, %s187
      %s189 = sphi 0, %s187
      %s190 = sphi 0, %s189
      %s204 = sphi 0, %s190
      %s208 = sphi 0, %s208
      %s210 = sphi 0, %s208
      %s211 = sphi 0, %s210
      %s225 = sphi 0, %s211
      %s229 = sphi 0, %s229
      %s231 = sphi 0, %s229
      %s232 = sphi 0, %s231
      %s246 = sphi 0, %s232
      %s250 = sphi 0, %s250
      %s252 = sphi 0, %s250
      %s253 = sphi 0, %s252
      %s267 = sphi 0, %s253
      %s271 = sphi 0, %s271
      %s273 = sphi 0, %s271
      %s274 = sphi 0, %s273
      %s288 = sphi 0, %s274
      %s292 = sphi 0, %s292
      %s294 = sphi 0, %s292
      %s295 = sphi 0, %s294
      %s309 = sphi 0, %s295
      %s313 = sphi 0, %s313
      %s315 = sphi 0, %s313
      %s316 = sphi 0, %s315
      %s330 = sphi 0, %s316
      %s334 = sphi 0, %s334
      %s336 = sphi 0, %s334
      %s337 = sphi 0, %s336
      %s351 = sphi 0, %s337
      %s355 = sphi 0, %s355
      %s357 = sphi 0, %s355
      %s358 = sphi 0, %s357
      %s372 = sphi 0, %s358
      %s376 = sphi 0, %s376
      %s378 = sphi 0, %s376
      %s379 = sphi 0, %s378
      %s393 = sphi 0, %s379
      %s397 = sphi 0, %s397
      %s399 = sphi 0, %s397
      %s400 = sphi 0, %s399
      %s414 = sphi 0, %s400
      %s418 = sphi 0, %s418
      %s420 = sphi 0, %s418
      %s421 = sphi 0, %s420
      %s435 = sphi 0, %s421
      %s439 = sphi 0, %s439
      %s441 = sphi 0, %s439
      %s442 = sphi 0, %s441
      %s456 = sphi 0, %s442
      %s460 = sphi 0, %s460
      %s462 = sphi 0, %s460
      %s463 = sphi 0, %s462
      %s477 = sphi 0, %s463
      %s481 = sphi 0, %s481
      %s483 = sphi 0, %s481
      %s484 = sphi 0, %s483
      %s498 = sphi 0, %s484
      %s502 = sphi 0, %s502
      %s504 = sphi 0, %s502
      %s505 = sphi 0, %s504
      %s519 = sphi 0, %s505
      %s523 = sphi 0, %s523
      %s525 = sphi 0, %s523
      %s526 = sphi 0, %s525
      %s540 = sphi 0, %s526
      %s544 = sphi 0, %s544
      %s546 = sphi 0, %s544
      %s547 = sphi 0, %s546
      %s561 = sphi 0, %s547
      %s565 = sphi 0, %s565
      %s567 = sphi 0, %s565
      %s568 = sphi 0, %s567
      %s582 = sphi 0, %s568
      %s586 = sphi 0, %s586
      %s588 = sphi 0, %s586
      %s589 = sphi 0, %s588
      %s603 = sphi 0, %s589
      %s607 = sphi 0, %s607
      %s609 = sphi 0, %s607
      %s610 = sphi 0, %s609
      %s624 = sphi 0, %s610
      %s628 = sphi 0, %s628
      %s630 = sphi 0, %s628
      %s631 = sphi 0, %s630
      %s645 = sphi 0, %s631
      %s649 = sphi 0, %s649
      %s651 = sphi 0, %s649
      %s652 = sphi 0, %s651
      %s666 = sphi 0, %s652
      %s670 = sphi 0, %s670
      %s672 = sphi 0, %s670
      %s673 = sphi 0, %s672
      %s687 = sphi 0, %s673
      %s691 = sphi 0, %s691
      %s693 = sphi 0, %s691
      %s694 = sphi 0, %s693
      %s708 = sphi 0, %s694
      %s712 = sphi 0, %s712
      %s714 = sphi 0, %s712
      %s715 = sphi 0, %s714
      %s729 = sphi 0, %s715
      %s735 = sphi 0, %s737
      %s738 = sphi 0, %s735
      %s739 = sphi 0, %s738
      %s755 = sphi 0, %s739
    $region4: #{branched_mobilenet_forward.1} parent=1 // loop_header_branch
      %72 = sbr.rel (%p70) target = $region8
    $region5: #{branched_mobilenet_forward.1} parent=1 // loop_body
      %s74 = ssub.s32 %s69, 1
      %s75 = ssub.s32 %s69, 2
      %s76 = sadd.s32 %s69, 1
      %s77 = ssub.s32 %s69, %s76
      %p78 = scmp.eq.s32.totalorder %s77, 0
      %s80 = sadd.s32 %s79, 1
      %s81 = scalar_select %p78, %s79, %s80
      %p84 = pneg %p78
      %p85 = scmp.eq.s32.totalorder %s69, 1
      %p86 = por %p84, %p85
      %p87 = scmp.ne.s32.totalorder %s79, %s82
      %p88 = scmp.eq.s32.totalorder %s69, 0
      %p89 = por %p87, %p88
      %p90 = scmp.ne.s32.totalorder %s79, %s82
      %p91 = scmp.eq.s32.totalorder %s74, 1
      %p92 = por %p90, %p91
      %p93 = scmp.ne.s32.totalorder %s82, %s83
      %p94 = scmp.eq.s32.totalorder %s74, 0
      %p95 = por %p93, %p94
      %p96 = scmp.ne.s32.totalorder %s82, %s83
      %p97 = scmp.eq.s32.totalorder %s75, 1
      %p98 = por %p96, %p97
      %p100 = scmp.ne.s32.totalorder %s83, %s99
      %p101 = scmp.eq.s32.totalorder %s75, 0
      %p102 = por %p100, %p101
      %s104 = sadd.s32 %s103, 1
      %p107 = scmp.eq.s32.totalorder %s69, 1
      %p108 = scmp.ne.s32.totalorder %s103, %s105
      %p109 = scmp.eq.s32.totalorder %s69, 0
      %p110 = por %p108, %p109
      %p111 = scmp.ne.s32.totalorder %s103, %s105
      %p112 = scmp.eq.s32.totalorder %s74, 1
      %p113 = por %p111, %p112
      %p114 = scmp.ne.s32.totalorder %s105, %s106
      %p115 = scmp.eq.s32.totalorder %s74, 0
      %p116 = por %p114, %p115
      %p117 = scmp.ne.s32.totalorder %s105, %s106
      %p118 = scmp.eq.s32.totalorder %s75, 1
      %p119 = por %p117, %p118
      %p121 = scmp.ne.s32.totalorder %s106, %s120
      %p122 = scmp.eq.s32.totalorder %s75, 0
      %p123 = por %p121, %p122
      %s125 = sadd.s32 %s124, 1
      %p128 = scmp.eq.s32.totalorder %s69, 1
      %p129 = scmp.ne.s32.totalorder %s124, %s126
      %p130 = scmp.eq.s32.totalorder %s69, 0
      %p131 = por %p129, %p130
      %p132 = scmp.ne.s32.totalorder %s124, %s126
      %p133 = scmp.eq.s32.totalorder %s74, 1
      %p134 = por %p132, %p133
      %p135 = scmp.ne.s32.totalorder %s126, %s127
      %p136 = scmp.eq.s32.totalorder %s74, 0
      %p137 = por %p135, %p136
      %p138 = scmp.ne.s32.totalorder %s126, %s127
      %p139 = scmp.eq.s32.totalorder %s75, 1
      %p140 = por %p138, %p139
      %p142 = scmp.ne.s32.totalorder %s127, %s141
      %p143 = scmp.eq.s32.totalorder %s75, 0
      %p144 = por %p142, %p143
      %s146 = sadd.s32 %s145, 1
      %p149 = scmp.eq.s32.totalorder %s69, 1
      %p150 = scmp.ne.s32.totalorder %s145, %s147
      %p151 = scmp.eq.s32.totalorder %s69, 0
      %p152 = por %p150, %p151
      %p153 = scmp.ne.s32.totalorder %s145, %s147
      %p154 = scmp.eq.s32.totalorder %s74, 1
      %p155 = por %p153, %p154
      %p156 = scmp.ne.s32.totalorder %s147, %s148
      %p157 = scmp.eq.s32.totalorder %s74, 0
      %p158 = por %p156, %p157
      %p159 = scmp.ne.s32.totalorder %s147, %s148
      %p160 = scmp.eq.s32.totalorder %s75, 1
      %p161 = por %p159, %p160
      %p163 = scmp.ne.s32.totalorder %s148, %s162
      %p164 = scmp.eq.s32.totalorder %s75, 0
      %p165 = por %p163, %p164
      %s167 = sadd.s32 %s166, 1
      %p170 = scmp.eq.s32.totalorder %s69, 1
      %p171 = scmp.ne.s32.totalorder %s166, %s168
      %p172 = scmp.eq.s32.totalorder %s69, 0
      %p173 = por %p171, %p172
      %p174 = scmp.ne.s32.totalorder %s166, %s168
      %p175 = scmp.eq.s32.totalorder %s74, 1
      %p176 = por %p174, %p175
      %p177 = scmp.ne.s32.totalorder %s168, %s169
      %p178 = scmp.eq.s32.totalorder %s74, 0
      %p179 = por %p177, %p178
      %p180 = scmp.ne.s32.totalorder %s168, %s169
      %p181 = scmp.eq.s32.totalorder %s75, 1
      %p182 = por %p180, %p181
      %p184 = scmp.ne.s32.totalorder %s169, %s183
      %p185 = scmp.eq.s32.totalorder %s75, 0
      %p186 = por %p184, %p185
      %s188 = sadd.s32 %s187, 1
      %p191 = scmp.eq.s32.totalorder %s69, 1
      %p192 = scmp.ne.s32.totalorder %s187, %s189
      %p193 = scmp.eq.s32.totalorder %s69, 0
      %p194 = por %p192, %p193
      %p195 = scmp.ne.s32.totalorder %s187, %s189
      %p196 = scmp.eq.s32.totalorder %s74, 1
      %p197 = por %p195, %p196
      %p198 = scmp.ne.s32.totalorder %s189, %s190
      %p199 = scmp.eq.s32.totalorder %s74, 0
      %p200 = por %p198, %p199
      %p201 = scmp.ne.s32.totalorder %s189, %s190
      %p202 = scmp.eq.s32.totalorder %s75, 1
      %p203 = por %p201, %p202
      %p205 = scmp.ne.s32.totalorder %s190, %s204
      %p206 = scmp.eq.s32.totalorder %s75, 0
      %p207 = por %p205, %p206
      %s209 = sadd.s32 %s208, 1
      %p212 = scmp.eq.s32.totalorder %s69, 1
      %p213 = scmp.ne.s32.totalorder %s208, %s210
      %p214 = scmp.eq.s32.totalorder %s69, 0
      %p215 = por %p213, %p214
      %p216 = scmp.ne.s32.totalorder %s208, %s210
      %p217 = scmp.eq.s32.totalorder %s74, 1
      %p218 = por %p216, %p217
      %p219 = scmp.ne.s32.totalorder %s210, %s211
      %p220 = scmp.eq.s32.totalorder %s74, 0
      %p221 = por %p219, %p220
      %p222 = scmp.ne.s32.totalorder %s210, %s211
      %p223 = scmp.eq.s32.totalorder %s75, 1
      %p224 = por %p222, %p223
      %p226 = scmp.ne.s32.totalorder %s211, %s225
      %p227 = scmp.eq.s32.totalorder %s75, 0
      %p228 = por %p226, %p227
      %s230 = sadd.s32 %s229, 1
      %p233 = scmp.eq.s32.totalorder %s69, 1
      %p234 = scmp.ne.s32.totalorder %s229, %s231
      %p235 = scmp.eq.s32.totalorder %s69, 0
      %p236 = por %p234, %p235
      %p237 = scmp.ne.s32.totalorder %s229, %s231
      %p238 = scmp.eq.s32.totalorder %s74, 1
      %p239 = por %p237, %p238
      %p240 = scmp.ne.s32.totalorder %s231, %s232
      %p241 = scmp.eq.s32.totalorder %s74, 0
      %p242 = por %p240, %p241
      %p243 = scmp.ne.s32.totalorder %s231, %s232
      %p244 = scmp.eq.s32.totalorder %s75, 1
      %p245 = por %p243, %p244
      %p247 = scmp.ne.s32.totalorder %s232, %s246
      %p248 = scmp.eq.s32.totalorder %s75, 0
      %p249 = por %p247, %p248
      %s251 = sadd.s32 %s250, 1
      %p254 = scmp.eq.s32.totalorder %s69, 1
      %p255 = scmp.ne.s32.totalorder %s250, %s252
      %p256 = scmp.eq.s32.totalorder %s69, 0
      %p257 = por %p255, %p256
      %p258 = scmp.ne.s32.totalorder %s250, %s252
      %p259 = scmp.eq.s32.totalorder %s74, 1
      %p260 = por %p258, %p259
      %p261 = scmp.ne.s32.totalorder %s252, %s253
      %p262 = scmp.eq.s32.totalorder %s74, 0
      %p263 = por %p261, %p262
      %p264 = scmp.ne.s32.totalorder %s252, %s253
      %p265 = scmp.eq.s32.totalorder %s75, 1
      %p266 = por %p264, %p265
      %p268 = scmp.ne.s32.totalorder %s253, %s267
      %p269 = scmp.eq.s32.totalorder %s75, 0
      %p270 = por %p268, %p269
      %s272 = sadd.s32 %s271, 1
      %p275 = scmp.eq.s32.totalorder %s69, 1
      %p276 = scmp.ne.s32.totalorder %s271, %s273
      %p277 = scmp.eq.s32.totalorder %s69, 0
      %p278 = por %p276, %p277
      %p279 = scmp.ne.s32.totalorder %s271, %s273
      %p280 = scmp.eq.s32.totalorder %s74, 1
      %p281 = por %p279, %p280
      %p282 = scmp.ne.s32.totalorder %s273, %s274
      %p283 = scmp.eq.s32.totalorder %s74, 0
      %p284 = por %p282, %p283
      %p285 = scmp.ne.s32.totalorder %s273, %s274
      %p286 = scmp.eq.s32.totalorder %s75, 1
      %p287 = por %p285, %p286
      %p289 = scmp.ne.s32.totalorder %s274, %s288
      %p290 = scmp.eq.s32.totalorder %s75, 0
      %p291 = por %p289, %p290
      %s293 = sadd.s32 %s292, 1
      %p296 = scmp.eq.s32.totalorder %s69, 1
      %p297 = scmp.ne.s32.totalorder %s292, %s294
      %p298 = scmp.eq.s32.totalorder %s69, 0
      %p299 = por %p297, %p298
      %p300 = scmp.ne.s32.totalorder %s292, %s294
      %p301 = scmp.eq.s32.totalorder %s74, 1
      %p302 = por %p300, %p301
      %p303 = scmp.ne.s32.totalorder %s294, %s295
      %p304 = scmp.eq.s32.totalorder %s74, 0
      %p305 = por %p303, %p304
      %p306 = scmp.ne.s32.totalorder %s294, %s295
      %p307 = scmp.eq.s32.totalorder %s75, 1
      %p308 = por %p306, %p307
      %p310 = scmp.ne.s32.totalorder %s295, %s309
      %p311 = scmp.eq.s32.totalorder %s75, 0
      %p312 = por %p310, %p311
      %s314 = sadd.s32 %s313, 1
      %p317 = scmp.eq.s32.totalorder %s69, 1
      %p318 = scmp.ne.s32.totalorder %s313, %s315
      %p319 = scmp.eq.s32.totalorder %s69, 0
      %p320 = por %p318, %p319
      %p321 = scmp.ne.s32.totalorder %s313, %s315
      %p322 = scmp.eq.s32.totalorder %s74, 1
      %p323 = por %p321, %p322
      %p324 = scmp.ne.s32.totalorder %s315, %s316
      %p325 = scmp.eq.s32.totalorder %s74, 0
      %p326 = por %p324, %p325
      %p327 = scmp.ne.s32.totalorder %s315, %s316
      %p328 = scmp.eq.s32.totalorder %s75, 1
      %p329 = por %p327, %p328
      %p331 = scmp.ne.s32.totalorder %s316, %s330
      %p332 = scmp.eq.s32.totalorder %s75, 0
      %p333 = por %p331, %p332
      %s335 = sadd.s32 %s334, 1
      %p338 = scmp.eq.s32.totalorder %s69, 1
      %p339 = scmp.ne.s32.totalorder %s334, %s336
      %p340 = scmp.eq.s32.totalorder %s69, 0
      %p341 = por %p339, %p340
      %p342 = scmp.ne.s32.totalorder %s334, %s336
      %p343 = scmp.eq.s32.totalorder %s74, 1
      %p344 = por %p342, %p343
      %p345 = scmp.ne.s32.totalorder %s336, %s337
      %p346 = scmp.eq.s32.totalorder %s74, 0
      %p347 = por %p345, %p346
      %p348 = scmp.ne.s32.totalorder %s336, %s337
      %p349 = scmp.eq.s32.totalorder %s75, 1
      %p350 = por %p348, %p349
      %p352 = scmp.ne.s32.totalorder %s337, %s351
      %p353 = scmp.eq.s32.totalorder %s75, 0
      %p354 = por %p352, %p353
      %s356 = sadd.s32 %s355, 1
      %p359 = scmp.eq.s32.totalorder %s69, 1
      %p360 = scmp.ne.s32.totalorder %s355, %s357
      %p361 = scmp.eq.s32.totalorder %s69, 0
      %p362 = por %p360, %p361
      %p363 = scmp.ne.s32.totalorder %s355, %s357
      %p364 = scmp.eq.s32.totalorder %s74, 1
      %p365 = por %p363, %p364
      %p366 = scmp.ne.s32.totalorder %s357, %s358
      %p367 = scmp.eq.s32.totalorder %s74, 0
      %p368 = por %p366, %p367
      %p369 = scmp.ne.s32.totalorder %s357, %s358
      %p370 = scmp.eq.s32.totalorder %s75, 1
      %p371 = por %p369, %p370
      %p373 = scmp.ne.s32.totalorder %s358, %s372
      %p374 = scmp.eq.s32.totalorder %s75, 0
      %p375 = por %p373, %p374
      %s377 = sadd.s32 %s376, 1
      %p380 = scmp.eq.s32.totalorder %s69, 1
      %p381 = scmp.ne.s32.totalorder %s376, %s378
      %p382 = scmp.eq.s32.totalorder %s69, 0
      %p383 = por %p381, %p382
      %p384 = scmp.ne.s32.totalorder %s376, %s378
      %p385 = scmp.eq.s32.totalorder %s74, 1
      %p386 = por %p384, %p385
      %p387 = scmp.ne.s32.totalorder %s378, %s379
      %p388 = scmp.eq.s32.totalorder %s74, 0
      %p389 = por %p387, %p388
      %p390 = scmp.ne.s32.totalorder %s378, %s379
      %p391 = scmp.eq.s32.totalorder %s75, 1
      %p392 = por %p390, %p391
      %p394 = scmp.ne.s32.totalorder %s379, %s393
      %p395 = scmp.eq.s32.totalorder %s75, 0
      %p396 = por %p394, %p395
      %s398 = sadd.s32 %s397, 1
      %p401 = scmp.eq.s32.totalorder %s69, 1
      %p402 = scmp.ne.s32.totalorder %s397, %s399
      %p403 = scmp.eq.s32.totalorder %s69, 0
      %p404 = por %p402, %p403
      %p405 = scmp.ne.s32.totalorder %s397, %s399
      %p406 = scmp.eq.s32.totalorder %s74, 1
      %p407 = por %p405, %p406
      %p408 = scmp.ne.s32.totalorder %s399, %s400
      %p409 = scmp.eq.s32.totalorder %s74, 0
      %p410 = por %p408, %p409
      %p411 = scmp.ne.s32.totalorder %s399, %s400
      %p412 = scmp.eq.s32.totalorder %s75, 1
      %p413 = por %p411, %p412
      %p415 = scmp.ne.s32.totalorder %s400, %s414
      %p416 = scmp.eq.s32.totalorder %s75, 0
      %p417 = por %p415, %p416
      %s419 = sadd.s32 %s418, 1
      %p422 = scmp.eq.s32.totalorder %s69, 1
      %p423 = scmp.ne.s32.totalorder %s418, %s420
      %p424 = scmp.eq.s32.totalorder %s69, 0
      %p425 = por %p423, %p424
      %p426 = scmp.ne.s32.totalorder %s418, %s420
      %p427 = scmp.eq.s32.totalorder %s74, 1
      %p428 = por %p426, %p427
      %p429 = scmp.ne.s32.totalorder %s420, %s421
      %p430 = scmp.eq.s32.totalorder %s74, 0
      %p431 = por %p429, %p430
      %p432 = scmp.ne.s32.totalorder %s420, %s421
      %p433 = scmp.eq.s32.totalorder %s75, 1
      %p434 = por %p432, %p433
      %p436 = scmp.ne.s32.totalorder %s421, %s435
      %p437 = scmp.eq.s32.totalorder %s75, 0
      %p438 = por %p436, %p437
      %s440 = sadd.s32 %s439, 1
      %p443 = scmp.eq.s32.totalorder %s69, 1
      %p444 = scmp.ne.s32.totalorder %s439, %s441
      %p445 = scmp.eq.s32.totalorder %s69, 0
      %p446 = por %p444, %p445
      %p447 = scmp.ne.s32.totalorder %s439, %s441
      %p448 = scmp.eq.s32.totalorder %s74, 1
      %p449 = por %p447, %p448
      %p450 = scmp.ne.s32.totalorder %s441, %s442
      %p451 = scmp.eq.s32.totalorder %s74, 0
      %p452 = por %p450, %p451
      %p453 = scmp.ne.s32.totalorder %s441, %s442
      %p454 = scmp.eq.s32.totalorder %s75, 1
      %p455 = por %p453, %p454
      %p457 = scmp.ne.s32.totalorder %s442, %s456
      %p458 = scmp.eq.s32.totalorder %s75, 0
      %p459 = por %p457, %p458
      %s461 = sadd.s32 %s460, 1
      %p464 = scmp.eq.s32.totalorder %s69, 1
      %p465 = scmp.ne.s32.totalorder %s460, %s462
      %p466 = scmp.eq.s32.totalorder %s69, 0
      %p467 = por %p465, %p466
      %p468 = scmp.ne.s32.totalorder %s460, %s462
      %p469 = scmp.eq.s32.totalorder %s74, 1
      %p470 = por %p468, %p469
      %p471 = scmp.ne.s32.totalorder %s462, %s463
      %p472 = scmp.eq.s32.totalorder %s74, 0
      %p473 = por %p471, %p472
      %p474 = scmp.ne.s32.totalorder %s462, %s463
      %p475 = scmp.eq.s32.totalorder %s75, 1
      %p476 = por %p474, %p475
      %p478 = scmp.ne.s32.totalorder %s463, %s477
      %p479 = scmp.eq.s32.totalorder %s75, 0
      %p480 = por %p478, %p479
      %s482 = sadd.s32 %s481, 1
      %p485 = scmp.eq.s32.totalorder %s69, 1
      %p486 = scmp.ne.s32.totalorder %s481, %s483
      %p487 = scmp.eq.s32.totalorder %s69, 0
      %p488 = por %p486, %p487
      %p489 = scmp.ne.s32.totalorder %s481, %s483
      %p490 = scmp.eq.s32.totalorder %s74, 1
      %p491 = por %p489, %p490
      %p492 = scmp.ne.s32.totalorder %s483, %s484
      %p493 = scmp.eq.s32.totalorder %s74, 0
      %p494 = por %p492, %p493
      %p495 = scmp.ne.s32.totalorder %s483, %s484
      %p496 = scmp.eq.s32.totalorder %s75, 1
      %p497 = por %p495, %p496
      %p499 = scmp.ne.s32.totalorder %s484, %s498
      %p500 = scmp.eq.s32.totalorder %s75, 0
      %p501 = por %p499, %p500
      %s503 = sadd.s32 %s502, 1
      %p506 = scmp.eq.s32.totalorder %s69, 1
      %p507 = scmp.ne.s32.totalorder %s502, %s504
      %p508 = scmp.eq.s32.totalorder %s69, 0
      %p509 = por %p507, %p508
      %p510 = scmp.ne.s32.totalorder %s502, %s504
      %p511 = scmp.eq.s32.totalorder %s74, 1
      %p512 = por %p510, %p511
      %p513 = scmp.ne.s32.totalorder %s504, %s505
      %p514 = scmp.eq.s32.totalorder %s74, 0
      %p515 = por %p513, %p514
      %p516 = scmp.ne.s32.totalorder %s504, %s505
      %p517 = scmp.eq.s32.totalorder %s75, 1
      %p518 = por %p516, %p517
      %p520 = scmp.ne.s32.totalorder %s505, %s519
      %p521 = scmp.eq.s32.totalorder %s75, 0
      %p522 = por %p520, %p521
      %s524 = sadd.s32 %s523, 1
      %p527 = scmp.eq.s32.totalorder %s69, 1
      %p528 = scmp.ne.s32.totalorder %s523, %s525
      %p529 = scmp.eq.s32.totalorder %s69, 0
      %p530 = por %p528, %p529
      %p531 = scmp.ne.s32.totalorder %s523, %s525
      %p532 = scmp.eq.s32.totalorder %s74, 1
      %p533 = por %p531, %p532
      %p534 = scmp.ne.s32.totalorder %s525, %s526
      %p535 = scmp.eq.s32.totalorder %s74, 0
      %p536 = por %p534, %p535
      %p537 = scmp.ne.s32.totalorder %s525, %s526
      %p538 = scmp.eq.s32.totalorder %s75, 1
      %p539 = por %p537, %p538
      %p541 = scmp.ne.s32.totalorder %s526, %s540
      %p542 = scmp.eq.s32.totalorder %s75, 0
      %p543 = por %p541, %p542
      %s545 = sadd.s32 %s544, 1
      %p548 = scmp.eq.s32.totalorder %s69, 1
      %p549 = scmp.ne.s32.totalorder %s544, %s546
      %p550 = scmp.eq.s32.totalorder %s69, 0
      %p551 = por %p549, %p550
      %p552 = scmp.ne.s32.totalorder %s544, %s546
      %p553 = scmp.eq.s32.totalorder %s74, 1
      %p554 = por %p552, %p553
      %p555 = scmp.ne.s32.totalorder %s546, %s547
      %p556 = scmp.eq.s32.totalorder %s74, 0
      %p557 = por %p555, %p556
      %p558 = scmp.ne.s32.totalorder %s546, %s547
      %p559 = scmp.eq.s32.totalorder %s75, 1
      %p560 = por %p558, %p559
      %p562 = scmp.ne.s32.totalorder %s547, %s561
      %p563 = scmp.eq.s32.totalorder %s75, 0
      %p564 = por %p562, %p563
      %s566 = sadd.s32 %s565, 1
      %p569 = scmp.eq.s32.totalorder %s69, 1
      %p570 = scmp.ne.s32.totalorder %s565, %s567
      %p571 = scmp.eq.s32.totalorder %s69, 0
      %p572 = por %p570, %p571
      %p573 = scmp.ne.s32.totalorder %s565, %s567
      %p574 = scmp.eq.s32.totalorder %s74, 1
      %p575 = por %p573, %p574
      %p576 = scmp.ne.s32.totalorder %s567, %s568
      %p577 = scmp.eq.s32.totalorder %s74, 0
      %p578 = por %p576, %p577
      %p579 = scmp.ne.s32.totalorder %s567, %s568
      %p580 = scmp.eq.s32.totalorder %s75, 1
      %p581 = por %p579, %p580
      %p583 = scmp.ne.s32.totalorder %s568, %s582
      %p584 = scmp.eq.s32.totalorder %s75, 0
      %p585 = por %p583, %p584
      %s587 = sadd.s32 %s586, 1
      %p590 = scmp.eq.s32.totalorder %s69, 1
      %p591 = scmp.ne.s32.totalorder %s586, %s588
      %p592 = scmp.eq.s32.totalorder %s69, 0
      %p593 = por %p591, %p592
      %p594 = scmp.ne.s32.totalorder %s586, %s588
      %p595 = scmp.eq.s32.totalorder %s74, 1
      %p596 = por %p594, %p595
      %p597 = scmp.ne.s32.totalorder %s588, %s589
      %p598 = scmp.eq.s32.totalorder %s74, 0
      %p599 = por %p597, %p598
      %p600 = scmp.ne.s32.totalorder %s588, %s589
      %p601 = scmp.eq.s32.totalorder %s75, 1
      %p602 = por %p600, %p601
      %p604 = scmp.ne.s32.totalorder %s589, %s603
      %p605 = scmp.eq.s32.totalorder %s75, 0
      %p606 = por %p604, %p605
      %s608 = sadd.s32 %s607, 1
      %p611 = scmp.eq.s32.totalorder %s69, 1
      %p612 = scmp.ne.s32.totalorder %s607, %s609
      %p613 = scmp.eq.s32.totalorder %s69, 0
      %p614 = por %p612, %p613
      %p615 = scmp.ne.s32.totalorder %s607, %s609
      %p616 = scmp.eq.s32.totalorder %s74, 1
      %p617 = por %p615, %p616
      %p618 = scmp.ne.s32.totalorder %s609, %s610
      %p619 = scmp.eq.s32.totalorder %s74, 0
      %p620 = por %p618, %p619
      %p621 = scmp.ne.s32.totalorder %s609, %s610
      %p622 = scmp.eq.s32.totalorder %s75, 1
      %p623 = por %p621, %p622
      %p625 = scmp.ne.s32.totalorder %s610, %s624
      %p626 = scmp.eq.s32.totalorder %s75, 0
      %p627 = por %p625, %p626
      %s629 = sadd.s32 %s628, 1
      %p632 = scmp.eq.s32.totalorder %s69, 1
      %p633 = scmp.ne.s32.totalorder %s628, %s630
      %p634 = scmp.eq.s32.totalorder %s69, 0
      %p635 = por %p633, %p634
      %p636 = scmp.ne.s32.totalorder %s628, %s630
      %p637 = scmp.eq.s32.totalorder %s74, 1
      %p638 = por %p636, %p637
      %p639 = scmp.ne.s32.totalorder %s630, %s631
      %p640 = scmp.eq.s32.totalorder %s74, 0
      %p641 = por %p639, %p640
      %p642 = scmp.ne.s32.totalorder %s630, %s631
      %p643 = scmp.eq.s32.totalorder %s75, 1
      %p644 = por %p642, %p643
      %p646 = scmp.ne.s32.totalorder %s631, %s645
      %p647 = scmp.eq.s32.totalorder %s75, 0
      %p648 = por %p646, %p647
      %s650 = sadd.s32 %s649, 1
      %p653 = scmp.eq.s32.totalorder %s69, 1
      %p654 = scmp.ne.s32.totalorder %s649, %s651
      %p655 = scmp.eq.s32.totalorder %s69, 0
      %p656 = por %p654, %p655
      %p657 = scmp.ne.s32.totalorder %s649, %s651
      %p658 = scmp.eq.s32.totalorder %s74, 1
      %p659 = por %p657, %p658
      %p660 = scmp.ne.s32.totalorder %s651, %s652
      %p661 = scmp.eq.s32.totalorder %s74, 0
      %p662 = por %p660, %p661
      %p663 = scmp.ne.s32.totalorder %s651, %s652
      %p664 = scmp.eq.s32.totalorder %s75, 1
      %p665 = por %p663, %p664
      %p667 = scmp.ne.s32.totalorder %s652, %s666
      %p668 = scmp.eq.s32.totalorder %s75, 0
      %p669 = por %p667, %p668
      %s671 = sadd.s32 %s670, 1
      %p674 = scmp.eq.s32.totalorder %s69, 1
      %p675 = scmp.ne.s32.totalorder %s670, %s672
      %p676 = scmp.eq.s32.totalorder %s69, 0
      %p677 = por %p675, %p676
      %p678 = scmp.ne.s32.totalorder %s670, %s672
      %p679 = scmp.eq.s32.totalorder %s74, 1
      %p680 = por %p678, %p679
      %p681 = scmp.ne.s32.totalorder %s672, %s673
      %p682 = scmp.eq.s32.totalorder %s74, 0
      %p683 = por %p681, %p682
      %p684 = scmp.ne.s32.totalorder %s672, %s673
      %p685 = scmp.eq.s32.totalorder %s75, 1
      %p686 = por %p684, %p685
      %p688 = scmp.ne.s32.totalorder %s673, %s687
      %p689 = scmp.eq.s32.totalorder %s75, 0
      %p690 = por %p688, %p689
      %s692 = sadd.s32 %s691, 1
      %p695 = scmp.eq.s32.totalorder %s69, 1
      %p696 = scmp.ne.s32.totalorder %s691, %s693
      %p697 = scmp.eq.s32.totalorder %s69, 0
      %p698 = por %p696, %p697
      %p699 = scmp.ne.s32.totalorder %s691, %s693
      %p700 = scmp.eq.s32.totalorder %s74, 1
      %p701 = por %p699, %p700
      %p702 = scmp.ne.s32.totalorder %s693, %s694
      %p703 = scmp.eq.s32.totalorder %s74, 0
      %p704 = por %p702, %p703
      %p705 = scmp.ne.s32.totalorder %s693, %s694
      %p706 = scmp.eq.s32.totalorder %s75, 1
      %p707 = por %p705, %p706
      %p709 = scmp.ne.s32.totalorder %s694, %s708
      %p710 = scmp.eq.s32.totalorder %s75, 0
      %p711 = por %p709, %p710
      %s713 = sadd.s32 %s712, 1
      %p716 = scmp.eq.s32.totalorder %s69, 1
      %p717 = scmp.ne.s32.totalorder %s712, %s714
      %p718 = scmp.eq.s32.totalorder %s69, 0
      %p719 = por %p717, %p718
      %p720 = scmp.ne.s32.totalorder %s712, %s714
      %p721 = scmp.eq.s32.totalorder %s74, 1
      %p722 = por %p720, %p721
      %p723 = scmp.ne.s32.totalorder %s714, %s715
      %p724 = scmp.eq.s32.totalorder %s74, 0
      %p725 = por %p723, %p724
      %p726 = scmp.ne.s32.totalorder %s714, %s715
      %p727 = scmp.eq.s32.totalorder %s75, 1
      %p728 = por %p726, %p727
      %p730 = scmp.ne.s32.totalorder %s715, %s729
      %p731 = scmp.eq.s32.totalorder %s75, 0
      %p732 = por %p730, %p731
      %s733 = ssub.s32 %s69, %s76
      %p734 = scmp.eq.s32.totalorder %s733, 0
      %s736 = sadd.s32 %s735, 1
      %s737 = scalar_select %p734, %s735, %s736
      %p740 = pneg %p734
      %p741 = scmp.eq.s32.totalorder %s69, 1
      %p742 = por %p740, %p741
      %p743 = scmp.ne.s32.totalorder %s735, %s738
      %p744 = scmp.eq.s32.totalorder %s69, 0
      %p745 = por %p743, %p744
      %p746 = scmp.ne.s32.totalorder %s735, %s738
      %p747 = scmp.eq.s32.totalorder %s74, 1
      %p748 = por %p746, %p747
      %p749 = scmp.ne.s32.totalorder %s738, %s739
      %p750 = scmp.eq.s32.totalorder %s74, 0
      %p751 = por %p749, %p750
      %p752 = scmp.ne.s32.totalorder %s738, %s739
      %p753 = scmp.eq.s32.totalorder %s75, 1
      %p754 = por %p752, %p753
      %p756 = scmp.ne.s32.totalorder %s739, %s755
      %p757 = scmp.eq.s32.totalorder %s75, 0
      %p758 = por %p756, %p757
      %p759 = scmp.le.s32.totalorder 1, %s69
      %p760 = scmp.lt.s32.totalorder %s69, 3
      %p761 = pnand %p759, %p760
      %p762 = pneg %p761
      // Predicated region
      $region9: #{branched_mobilenet_forward.1} parent=5 // pred_check
        _
      $region10: #{branched_mobilenet_forward.1} parent=5 // pred_check_branch
        %764 = sbr.rel (%p761) target = $region12
      $region11: #{branched_mobilenet_forward.1} parent=5 // pred_region
        %s765 = ssub.s32 %s69, 1
        // Predicated region
        $region13: #{branched_mobilenet_forward.1} parent=11 // pred_check
          %p766 = pneg %p116
        $region14: #{branched_mobilenet_forward.1} parent=11 // pred_check_branch
          %768 = sbr.rel (%p766) target = $region16
        $region15: #{branched_mobilenet_forward.1} parent=11 // pred_region
          _
        $region16: #{branched_mobilenet_forward.1} parent=11 // pred_fallthru
          _
        // Predicated region
        $region17: #{branched_mobilenet_forward.1} parent=11 // pred_check
          %p769 = pneg %p137
        $region18: #{branched_mobilenet_forward.1} parent=11 // pred_check_branch
          %771 = sbr.rel (%p769) target = $region20
        $region19: #{branched_mobilenet_forward.1} parent=11 // pred_region
          _
        $region20: #{branched_mobilenet_forward.1} parent=11 // pred_fallthru
          _
        // Predicated region
        $region21: #{branched_mobilenet_forward.1} parent=11 // pred_check
          %p772 = pneg %p158
        $region22: #{branched_mobilenet_forward.1} parent=11 // pred_check_branch
          %774 = sbr.rel (%p772) target = $region24
        $region23: #{branched_mobilenet_forward.1} parent=11 // pred_region
          _
        $region24: #{branched_mobilenet_forward.1} parent=11 // pred_fallthru
          _
        // Predicated region
        $region25: #{branched_mobilenet_forward.1} parent=11 // pred_check
          %p775 = pneg %p179
        $region26: #{branched_mobilenet_forward.1} parent=11 // pred_check_branch
          %777 = sbr.rel (%p775) target = $region28
        $region27: #{branched_mobilenet_forward.1} parent=11 // pred_region
          _
        $region28: #{branched_mobilenet_forward.1} parent=11 // pred_fallthru
          _
        // Predicated region
        $region29: #{branched_mobilenet_forward.1} parent=11 // pred_check
          %p778 = pneg %p200
        $region30: #{branched_mobilenet_forward.1} parent=11 // pred_check_branch
          %780 = sbr.rel (%p778) target = $region32
        $region31: #{branched_mobilenet_forward.1} parent=11 // pred_region
          _
        $region32: #{branched_mobilenet_forward.1} parent=11 // pred_fallthru
          _
        // Predicated region
        $region33: #{branched_mobilenet_forward.1} parent=11 // pred_check
          %p781 = pneg %p221
        $region34: #{branched_mobilenet_forward.1} parent=11 // pred_check_branch
          %783 = sbr.rel (%p781) target = $region36
        $region35: #{branched_mobilenet_forward.1} parent=11 // pred_region
          _
        $region36: #{branched_mobilenet_forward.1} parent=11 // pred_fallthru
          _
        // Predicated region
        $region37: #{branched_mobilenet_forward.1} parent=11 // pred_check
          %p784 = pneg %p242
        $region38: #{branched_mobilenet_forward.1} parent=11 // pred_check_branch
          %786 = sbr.rel (%p784) target = $region40
        $region39: #{branched_mobilenet_forward.1} parent=11 // pred_region
          _
        $region40: #{branched_mobilenet_forward.1} parent=11 // pred_fallthru
          _
        // Predicated region
        $region41: #{branched_mobilenet_forward.1} parent=11 // pred_check
          %p787 = pneg %p263
        $region42: #{branched_mobilenet_forward.1} parent=11 // pred_check_branch
          %789 = sbr.rel (%p787) target = $region44
        $region43: #{branched_mobilenet_forward.1} parent=11 // pred_region
          _
        $region44: #{branched_mobilenet_forward.1} parent=11 // pred_fallthru
          _
        // Predicated region
        $region45: #{branched_mobilenet_forward.1} parent=11 // pred_check
          %p790 = pneg %p284
        $region46: #{branched_mobilenet_forward.1} parent=11 // pred_check_branch
          %792 = sbr.rel (%p790) target = $region48
        $region47: #{branched_mobilenet_forward.1} parent=11 // pred_region
          _
        $region48: #{branched_mobilenet_forward.1} parent=11 // pred_fallthru
          _
        // Predicated region
        $region49: #{branched_mobilenet_forward.1} parent=11 // pred_check
          %p793 = pneg %p305
        $region50: #{branched_mobilenet_forward.1} parent=11 // pred_check_branch
          %795 = sbr.rel (%p793) target = $region52
        $region51: #{branched_mobilenet_forward.1} parent=11 // pred_region
          _
        $region52: #{branched_mobilenet_forward.1} parent=11 // pred_fallthru
          _
        // Predicated region
        $region53: #{branched_mobilenet_forward.1} parent=11 // pred_check
          %p796 = pneg %p326
        $region54: #{branched_mobilenet_forward.1} parent=11 // pred_check_branch
          %798 = sbr.rel (%p796) target = $region56
        $region55: #{branched_mobilenet_forward.1} parent=11 // pred_region
          _
        $region56: #{branched_mobilenet_forward.1} parent=11 // pred_fallthru
          _
        // Predicated region
        $region57: #{branched_mobilenet_forward.1} parent=11 // pred_check
          %p799 = pneg %p347
        $region58: #{branched_mobilenet_forward.1} parent=11 // pred_check_branch
          %801 = sbr.rel (%p799) target = $region60
        $region59: #{branched_mobilenet_forward.1} parent=11 // pred_region
          _
        $region60: #{branched_mobilenet_forward.1} parent=11 // pred_fallthru
          _
        // Predicated region
        $region61: #{branched_mobilenet_forward.1} parent=11 // pred_check
          %p802 = pneg %p368
        $region62: #{branched_mobilenet_forward.1} parent=11 // pred_check_branch
          %804 = sbr.rel (%p802) target = $region64
        $region63: #{branched_mobilenet_forward.1} parent=11 // pred_region
          _
        $region64: #{branched_mobilenet_forward.1} parent=11 // pred_fallthru
          _
        // Predicated region
        $region65: #{branched_mobilenet_forward.1} parent=11 // pred_check
          %p805 = pneg %p389
        $region66: #{branched_mobilenet_forward.1} parent=11 // pred_check_branch
          %807 = sbr.rel (%p805) target = $region68
        $region67: #{branched_mobilenet_forward.1} parent=11 // pred_region
          _
        $region68: #{branched_mobilenet_forward.1} parent=11 // pred_fallthru
          _
        // Predicated region
        $region69: #{branched_mobilenet_forward.1} parent=11 // pred_check
          %p808 = pneg %p410
        $region70: #{branched_mobilenet_forward.1} parent=11 // pred_check_branch
          %810 = sbr.rel (%p808) target = $region72
        $region71: #{branched_mobilenet_forward.1} parent=11 // pred_region
          _
        $region72: #{branched_mobilenet_forward.1} parent=11 // pred_fallthru
          _
        // Predicated region
        $region73: #{branched_mobilenet_forward.1} parent=11 // pred_check
          %p811 = pneg %p431
        $region74: #{branched_mobilenet_forward.1} parent=11 // pred_check_branch
          %813 = sbr.rel (%p811) target = $region76
        $region75: #{branched_mobilenet_forward.1} parent=11 // pred_region
          _
        $region76: #{branched_mobilenet_forward.1} parent=11 // pred_fallthru
          _
        // Predicated region
        $region77: #{branched_mobilenet_forward.1} parent=11 // pred_check
          %p814 = pneg %p452
        $region78: #{branched_mobilenet_forward.1} parent=11 // pred_check_branch
          %816 = sbr.rel (%p814) target = $region80
        $region79: #{branched_mobilenet_forward.1} parent=11 // pred_region
          _
        $region80: #{branched_mobilenet_forward.1} parent=11 // pred_fallthru
          _
        // Predicated region
        $region81: #{branched_mobilenet_forward.1} parent=11 // pred_check
          %p817 = pneg %p473
        $region82: #{branched_mobilenet_forward.1} parent=11 // pred_check_branch
          %819 = sbr.rel (%p817) target = $region84
        $region83: #{branched_mobilenet_forward.1} parent=11 // pred_region
          _
        $region84: #{branched_mobilenet_forward.1} parent=11 // pred_fallthru
          _
        // Predicated region
        $region85: #{branched_mobilenet_forward.1} parent=11 // pred_check
          %p820 = pneg %p494
        $region86: #{branched_mobilenet_forward.1} parent=11 // pred_check_branch
          %822 = sbr.rel (%p820) target = $region88
        $region87: #{branched_mobilenet_forward.1} parent=11 // pred_region
          _
        $region88: #{branched_mobilenet_forward.1} parent=11 // pred_fallthru
          _
        // Predicated region
        $region89: #{branched_mobilenet_forward.1} parent=11 // pred_check
          %p823 = pneg %p515
        $region90: #{branched_mobilenet_forward.1} parent=11 // pred_check_branch
          %825 = sbr.rel (%p823) target = $region92
        $region91: #{branched_mobilenet_forward.1} parent=11 // pred_region
          _
        $region92: #{branched_mobilenet_forward.1} parent=11 // pred_fallthru
          _
        // Predicated region
        $region93: #{branched_mobilenet_forward.1} parent=11 // pred_check
          %p826 = pneg %p536
        $region94: #{branched_mobilenet_forward.1} parent=11 // pred_check_branch
          %828 = sbr.rel (%p826) target = $region96
        $region95: #{branched_mobilenet_forward.1} parent=11 // pred_region
          _
        $region96: #{branched_mobilenet_forward.1} parent=11 // pred_fallthru
          _
        // Predicated region
        $region97: #{branched_mobilenet_forward.1} parent=11 // pred_check
          %p829 = pneg %p557
        $region98: #{branched_mobilenet_forward.1} parent=11 // pred_check_branch
          %831 = sbr.rel (%p829) target = $region100
        $region99: #{branched_mobilenet_forward.1} parent=11 // pred_region
          _
        $region100: #{branched_mobilenet_forward.1} parent=11 // pred_fallthru
          _
        // Predicated region
        $region101: #{branched_mobilenet_forward.1} parent=11 // pred_check
          %p832 = pneg %p578
        $region102: #{branched_mobilenet_forward.1} parent=11 // pred_check_branch
          %834 = sbr.rel (%p832) target = $region104
        $region103: #{branched_mobilenet_forward.1} parent=11 // pred_region
          _
        $region104: #{branched_mobilenet_forward.1} parent=11 // pred_fallthru
          _
        // Predicated region
        $region105: #{branched_mobilenet_forward.1} parent=11 // pred_check
          %p835 = pneg %p599
        $region106: #{branched_mobilenet_forward.1} parent=11 // pred_check_branch
          %837 = sbr.rel (%p835) target = $region108
        $region107: #{branched_mobilenet_forward.1} parent=11 // pred_region
          _
        $region108: #{branched_mobilenet_forward.1} parent=11 // pred_fallthru
          _
        // Predicated region
        $region109: #{branched_mobilenet_forward.1} parent=11 // pred_check
          %p838 = pneg %p620
        $region110: #{branched_mobilenet_forward.1} parent=11 // pred_check_branch
          %840 = sbr.rel (%p838) target = $region112
        $region111: #{branched_mobilenet_forward.1} parent=11 // pred_region
          _
        $region112: #{branched_mobilenet_forward.1} parent=11 // pred_fallthru
          _
        // Predicated region
        $region113: #{branched_mobilenet_forward.1} parent=11 // pred_check
          %p841 = pneg %p641
        $region114: #{branched_mobilenet_forward.1} parent=11 // pred_check_branch
          %843 = sbr.rel (%p841) target = $region116
        $region115: #{branched_mobilenet_forward.1} parent=11 // pred_region
          _
        $region116: #{branched_mobilenet_forward.1} parent=11 // pred_fallthru
          _
        // Predicated region
        $region117: #{branched_mobilenet_forward.1} parent=11 // pred_check
          %p844 = pneg %p662
        $region118: #{branched_mobilenet_forward.1} parent=11 // pred_check_branch
          %846 = sbr.rel (%p844) target = $region120
        $region119: #{branched_mobilenet_forward.1} parent=11 // pred_region
          _
        $region120: #{branched_mobilenet_forward.1} parent=11 // pred_fallthru
          _
        // Predicated region
        $region121: #{branched_mobilenet_forward.1} parent=11 // pred_check
          %p847 = pneg %p683
        $region122: #{branched_mobilenet_forward.1} parent=11 // pred_check_branch
          %849 = sbr.rel (%p847) target = $region124
        $region123: #{branched_mobilenet_forward.1} parent=11 // pred_region
          _
        $region124: #{branched_mobilenet_forward.1} parent=11 // pred_fallthru
          _
        // Predicated region
        $region125: #{branched_mobilenet_forward.1} parent=11 // pred_check
          %p850 = pneg %p704
        $region126: #{branched_mobilenet_forward.1} parent=11 // pred_check_branch
          %852 = sbr.rel (%p850) target = $region128
        $region127: #{branched_mobilenet_forward.1} parent=11 // pred_region
          _
        $region128: #{branched_mobilenet_forward.1} parent=11 // pred_fallthru
          _
        // Predicated region
        $region129: #{branched_mobilenet_forward.1} parent=11 // pred_check
          %p853 = pneg %p725
        $region130: #{branched_mobilenet_forward.1} parent=11 // pred_check_branch
          %855 = sbr.rel (%p853) target = $region132
        $region131: #{branched_mobilenet_forward.1} parent=11 // pred_region
          _
        $region132: #{branched_mobilenet_forward.1} parent=11 // pred_fallthru
          _
      $region12: #{branched_mobilenet_forward.1} parent=5 // pred_fallthru
        _
      %p856 = scmp.lt.s32.totalorder %s69, 2
      // Predicated region
      $region133: #{branched_mobilenet_forward.1} parent=5 // pred_check
        %p857 = pneg %p856
      $region134: #{branched_mobilenet_forward.1} parent=5 // pred_check_branch
        %859 = sbr.rel (%p857) target = $region136
      $region135: #{branched_mobilenet_forward.1} parent=5 // pred_region
        // Predicated region
        $region137: #{branched_mobilenet_forward.1} parent=135 // pred_check
          %p860 = pneg %p89
        $region138: #{branched_mobilenet_forward.1} parent=135 // pred_check_branch
          %862 = sbr.rel (%p860) target = $region140
        $region139: #{branched_mobilenet_forward.1} parent=135 // pred_region
          %s863 = sand.u32 %s79, 1
          %s864 = sand.u32 %s79, 1
          %s865 = smul.addr %s864, 64
          %s866 = scalar_lea.vmem [#allocation4], %s865
          %s867 = smul.u32 2, %s69
          %s868 = smul.addr %s867, 8
          %s869 = scalar_lea.vmem %s1, %s868
          // Predicated region
          $region141: #{branched_mobilenet_forward.1} parent=139 // pred_check
            _
          $region142: #{branched_mobilenet_forward.1} parent=139 // pred_check_branch
            %871 = sbr.rel (0) target = $region144
          $region143: #{branched_mobilenet_forward.1} parent=139 // pred_region
            // Predicated region
            $region145: #{branched_mobilenet_forward.1} parent=143 // pred_check
              _
            $region146: #{branched_mobilenet_forward.1} parent=143 // pred_check_branch
              %873 = sbr.rel (0) target = $region148
            $region147: #{branched_mobilenet_forward.1} parent=143 // pred_region
              loop: start=0, step=1, limit=1
              $region149: #{branched_mobilenet_forward.1} parent=147 // loop_pre_header
                _
              $region150: #{branched_mobilenet_forward.1} parent=147 // loop_header
                %s875 = sphi 0, %s879
                %p876 = scmp.ge.s32.totalorder %s875, 1
                %s880 = sphi %s869, %s869
                %s881 = sphi %s866, %s866
              $region151: #{branched_mobilenet_forward.1} parent=147 // loop_header_branch
                %878 = sbr.rel (%p876) target = $region155
              $region152: #{branched_mobilenet_forward.1} parent=147 // loop_body
                %v882 = vld [vmem:[%s880] sm:$0xff]
                %883 = vst [vmem:[%s881] sm:$0xff] %v882
                %v884 = vld [vmem:[%s880 + $0x8] sm:$0xff]
                %885 = vst [vmem:[%s881 + $0x8] sm:$0xff] %v884
                %v886 = vld [vmem:[%s880 + $0x20] sm:$0xff]
                %887 = vst [vmem:[%s881 + $0x10] sm:$0xff] %v886
                %v888 = vld [vmem:[%s880 + $0x28] sm:$0xff]
                %889 = vst [vmem:[%s881 + $0x18] sm:$0xff] %v888
                %v890 = vld [vmem:[%s880 + $0x40] sm:$0xff]
                %891 = vst [vmem:[%s881 + $0x20] sm:$0xff] %v890
                %v892 = vld [vmem:[%s880 + $0x48] sm:$0xff]
                %893 = vst [vmem:[%s881 + $0x28] sm:$0xff] %v892
                %v894 = vld [vmem:[%s880 + $0x60] sm:$0xff]
                %895 = vst [vmem:[%s881 + $0x30] sm:$0xff] %v894
                %v896 = vld [vmem:[%s880 + $0x68] sm:$0xff]
                %897 = vst [vmem:[%s881 + $0x38] sm:$0xff] %v896
              $region153: #{branched_mobilenet_forward.1} parent=147 // loop_footer
                %s879 = sadd.s32 1, %s875
              $region154: #{branched_mobilenet_forward.1} parent=147 // loop_footer_branch
                %874 = sbr.rel target = $region150
              $region155: #{branched_mobilenet_forward.1} parent=147 // loop_exit
                _
            $region148: #{branched_mobilenet_forward.1} parent=143 // pred_fallthru
              _
            // Predicated region
            $region156: #{branched_mobilenet_forward.1} parent=143 // pred_check
              _
            $region157: #{branched_mobilenet_forward.1} parent=143 // pred_check_branch
              %899 = sbr.rel target = $region159
            $region158: #{branched_mobilenet_forward.1} parent=143 // pred_region
              _
            $region159: #{branched_mobilenet_forward.1} parent=143 // pred_fallthru
              _
          $region144: #{branched_mobilenet_forward.1} parent=139 // pred_fallthru
            _
          %900 = vnop
        $region140: #{branched_mobilenet_forward.1} parent=135 // pred_fallthru
          _
      $region136: #{branched_mobilenet_forward.1} parent=5 // pred_fallthru
        _
      %p901 = scmp.le.s32.totalorder 1, %s69
      %p902 = scmp.lt.s32.totalorder %s69, 3
      %p903 = pnand %p901, %p902
      %p904 = pneg %p903
      // Predicated region
      $region160: #{branched_mobilenet_forward.1} parent=5 // pred_check
        _
      $region161: #{branched_mobilenet_forward.1} parent=5 // pred_check_branch
        %906 = sbr.rel (%p903) target = $region163
      $region162: #{branched_mobilenet_forward.1} parent=5 // pred_region
        %s907 = ssub.s32 %s69, 1
        %s908 = sand.u32 %s82, 1
        %s909 = sand.u32 %s82, 1
        %s910 = smul.addr %s909, 64
        %s911 = scalar_lea.vmem [#allocation4], %s910
        // Predicated region
        $region164: #{branched_mobilenet_forward.1} parent=162 // pred_check
          %p912 = pneg %p95
        $region165: #{branched_mobilenet_forward.1} parent=162 // pred_check_branch
          %914 = sbr.rel (%p912) target = $region167
        $region166: #{branched_mobilenet_forward.1} parent=162 // pred_region
          _
        $region167: #{branched_mobilenet_forward.1} parent=162 // pred_fallthru
          _
        %s915 = sand.u32 %s82, 1
        %s916 = sand.u32 %s82, 1
        %s917 = smul.addr %s916, 64
        %s918 = scalar_lea.vmem [#allocation4], %s917
        %p919 = pneg %p95
        %p920 = pneg %p92
        %p921 = pneg %p116
        %p922 = pneg %p113
        %p923 = pneg %p137
        %p924 = pneg %p134
        %p925 = pneg %p158
        %p926 = pneg %p155
        %p927 = pneg %p179
        %p928 = pneg %p176
        %p929 = pneg %p200
        %p930 = pneg %p197
        %p931 = pneg %p221
        %p932 = pneg %p218
        %p933 = pneg %p242
        %p934 = pneg %p239
        %p935 = pneg %p263
        %p936 = pneg %p260
        %p937 = pneg %p284
        %p938 = pneg %p281
        %p939 = pneg %p305
        %p940 = pneg %p302
        %p941 = pneg %p326
        %p942 = pneg %p323
        %p943 = pneg %p347
        %p944 = pneg %p344
        %p945 = pneg %p368
        %p946 = pneg %p365
        %p947 = pneg %p389
        %p948 = pneg %p386
        %p949 = pneg %p410
        %p950 = pneg %p407
        %p951 = pneg %p431
        %p952 = pneg %p428
        %p953 = pneg %p452
        %p954 = pneg %p449
        %p955 = pneg %p473
        %p956 = pneg %p470
        %p957 = pneg %p494
        %p958 = pneg %p491
        %p959 = pneg %p515
        %p960 = pneg %p512
        %p961 = pneg %p536
        %p962 = pneg %p533
        %p963 = pneg %p557
        %p964 = pneg %p554
        %p965 = pneg %p578
        %p966 = pneg %p575
        %p967 = pneg %p599
        %p968 = pneg %p596
        %p969 = pneg %p620
        %p970 = pneg %p617
        %p971 = pneg %p641
        %p972 = pneg %p638
        %p973 = pneg %p662
        %p974 = pneg %p659
        %p975 = pneg %p683
        %p976 = pneg %p680
        %p977 = pneg %p704
        %p978 = pneg %p701
        %p979 = pneg %p725
        %p980 = pneg %p722
        %p981 = pneg %p751
        %p982 = pneg %p748
        %p983 = scmp.lt.s32.totalorder %s74, 1
        %s984 = scalar_select %p983, %s74, 1
        %s985 = smul.addr %s984, 3
        %s986 = scalar_lea.vmem %s63, %s985
        %s987 = smul.u32 2, %s74
        %p988 = scmp.lt.s32.totalorder %s74, 1
        %s989 = scalar_select %p988, %s74, 1
        %s990 = smul.addr %s989, 3
        %s991 = scalar_lea.vmem %s63, %s990
        %992 = vst [vmem:[#allocation2] sm:$0xff] 0.0
        %993 = vst [vmem:[#allocation2 + $0x20] sm:$0xff] 0.0
        %994 = vst [vmem:[#allocation2 + $0x40] sm:$0xff] 0.0
        %995 = vst [vmem:[#allocation2 + $0x60] sm:$0xff] 0.0
        %996 = vst [vmem:[#allocation2 + $0x80] sm:$0xff] 0.0
        %997 = vst [vmem:[#allocation2 + $0x18] sm:$0xff] 0.0
        %998 = vst [vmem:[#allocation2 + $0x38] sm:$0xff] 0.0
        %999 = vst [vmem:[#allocation2 + $0x58] sm:$0xff] 0.0
        %1000 = vst [vmem:[#allocation2 + $0x78] sm:$0xff] 0.0
        %1001 = vst [vmem:[#allocation2 + $0x98] sm:$0xff] 0.0
        %v1002 = vld [vmem:[%s7] sm:$0xff]
        %v1003 = vld [vmem:[%s7 + $0x8] sm:$0xff]
        %v1004 = vld [vmem:[%s911] sm:$0xff]
        %v1005 = vld [vmem:[%s911 + $0x8] sm:$0xff]
        %v1006 = vld [vmem:[%s911 + $0x10] sm:$0xff]
        %v1007 = vld [vmem:[%s911 + $0x18] sm:$0xff]
        %v1008 = vld [vmem:[%s911 + $0x20] sm:$0xff]
        %v1009 = vld [vmem:[%s911 + $0x28] sm:$0xff]
        %v1010 = vld [vmem:[%s911 + $0x30] sm:$0x7]
        %v1011 = vld [vmem:[%s911 + $0x38] sm:$0x7]
        %v1012 = vld [vmem:[%s9] sm:$0xff]
        %v1013 = vld [vmem:[%s9 + $0x8] sm:$0xff]
        %1015 = vset.pattern.permute.xlu0 0
        %1016 = vperm.xlu0 %1015, %v1012
        %v1017 = vpop.permute.xlu0 %1016
        %1020 = vset.pattern.permute.xlu0 0
        %1021 = vperm.xlu0 %1020, %v1013
        %v1022 = vpop.permute.xlu0 %1021
        %vm1024 = vcmask 220160
        %v1026 = vsel %vm1024, %v1002, 0
        %v1029 = vsel %vm1024, %v1003, 0
        %vm1031 = vcmask 1042432
        %v1033 = vsel %vm1031, %v1010, 0
        %v1036 = vsel %vm1031, %v1011, 0
        %1038 = vmatpush.msra.mxu0 0.0
        %1039 = vmatpush.msra.mxu0 0.0
        %1040 = vmatpush.msra.mxu0 0.0
        %1041 = vmatpush.msra.mxu0 0.0
        %1042 = vmatpush.msra.mxu0 0.0
        %1043 = vmatpush.msra.mxu0 0.0
        %1044 = vmatpush.msra.mxu0 0.0
        %1045 = vmatpush.msra.mxu0 0.0
        %1046 = vmatpush.msra.mxu0 0.0
        %1047 = vmatpush.msra.mxu0 0.0
        %1048 = vmatpush.msra.mxu0 0.0
        %1049 = vmatpush.msra.mxu0 0.0
        %1050 = vmatpush.msra.mxu0 %v1033
        %1051 = vmatpush.msra.mxu0 %v1008
        %1052 = vmatpush.msra.mxu0 %v1006
        %1053 = vmatpush.msra.mxu0 %v1004
        %1054 = vmatmul.f32.gmra.mxu0 %v1026
        %v1055 = vpop.f32.mrf.mxu0
        %v1056 = vadd.f32 %v1017, %v1055
        %1057 = vmatmul.f32.gmra.mxu0 %v1029
        %v1058 = vpop.f32.mrf.mxu0
        %v1059 = vadd.f32 %v1022, %v1058
        %1060 = vdwg.mxu0
        %1061 = vmatpush.msra.mxu0 0.0
        %1062 = vmatpush.msra.mxu0 0.0
        %1063 = vmatpush.msra.mxu0 0.0
        %1064 = vmatpush.msra.mxu0 0.0
        %1065 = vmatpush.msra.mxu0 0.0
        %1066 = vmatpush.msra.mxu0 0.0
        %1067 = vmatpush.msra.mxu0 0.0
        %1068 = vmatpush.msra.mxu0 0.0
        %1069 = vmatpush.msra.mxu0 0.0
        %1070 = vmatpush.msra.mxu0 0.0
        %1071 = vmatpush.msra.mxu0 0.0
        %1072 = vmatpush.msra.mxu0 0.0
        %1073 = vmatpush.msra.mxu0 %v1036
        %1074 = vmatpush.msra.mxu0 %v1009
        %1075 = vmatpush.msra.mxu0 %v1007
        %1076 = vmatpush.msra.mxu0 %v1005
        %1077 = vmatmul.f32.gmra.mxu0 %v1026
        %v1078 = vpop.f32.mrf.mxu0
        %v1079 = vadd.f32 %v1017, %v1078
        %1080 = vmatmul.f32.gmra.mxu0 %v1029
        %v1081 = vpop.f32.mrf.mxu0
        %v1082 = vadd.f32 %v1022, %v1081
        %1083 = vdwg.mxu0
        %v1084 = vadd.f32 %v1056, 3.0
        %v1085 = vadd.f32 %v1079, 3.0
        %v1086 = vadd.f32 %v1059, 3.0
        %v1087 = vadd.f32 %v1082, 3.0
        %v1088 = vmax.f32 %v1084, 0.0
        %v1089 = vmax.f32 %v1085, 0.0
        %v1090 = vmax.f32 %v1086, 0.0
        %v1091 = vmax.f32 %v1087, 0.0
        %v1092 = vmin.f32 %v1088, 6.0
        %v1093 = vmin.f32 %v1089, 6.0
        %v1094 = vmin.f32 %v1090, 6.0
        %v1095 = vmin.f32 %v1091, 6.0
        %v1096 = vmul.f32 %v1056, %v1092
        %v1097 = vmul.f32 %v1079, %v1093
        %v1098 = vmul.f32 %v1059, %v1094
        %v1099 = vmul.f32 %v1082, %v1095
        %v1100 = vmul.f32 %v1096, 0.16666667
        %v1101 = vmul.f32 %v1097, 0.16666667
        %v1102 = vmul.f32 %v1098, 0.16666667
        %v1103 = vmul.f32 %v1099, 0.16666667
        %1104 = vst [vmem:[#allocation2 + $0x8] sm:$0xff] %v1100
        %1105 = vst [vmem:[#allocation2 + $0x10] sm:$0xff] %v1101
        %1106 = vst [vmem:[#allocation2 + $0x28] sm:$0xff] %v1102
        %1107 = vst [vmem:[#allocation2 + $0x30] sm:$0xff] %v1103
        %v1108 = vld [vmem:[#allocation2] sm:$0xff]
        %v1109 = vld [vmem:[#allocation2 + $0x8] sm:$0xff]
        %v1110 = vld [vmem:[#allocation2 + $0x10] sm:$0xff]
        %v1111 = vld [vmem:[#allocation2 + $0x20] sm:$0xff]
        %v1112 = vld [vmem:[#allocation2 + $0x28] sm:$0xff]
        %v1113 = vld [vmem:[#allocation2 + $0x30] sm:$0xff]
        %v1114 = vld [vmem:[%s11] sm:$0xff]
        %v1115 = vld [vmem:[%s11 + $0x8] sm:$0xff]
        %1117 = vset.pattern.permute.xlu0 0
        %1118 = vperm.xlu0 %1117, %v1114
        %v1119 = vpop.permute.xlu0 %1118
        %1122 = vset.pattern.permute.xlu0 0
        %1123 = vperm.xlu0 %1122, %v1115
        %v1124 = vpop.permute.xlu0 %1123
        %v1126 = vmul.f32 %v1108, %v1119
        %v1127 = vmul.f32 %v1109, %v1119
        %v1128 = vmul.f32 %v1110, %v1119
        %v1129 = vmul.f32 %v1111, %v1124
        %v1130 = vmul.f32 %v1112, %v1124
        %v1131 = vmul.f32 %v1113, %v1124
        %v1132 = vld [vmem:[%s3] ss:$2 sm:$0x3]
        %v1134 = vperm.slane %v1132, 0
        %v1135 = vperm.slane %v1132, 1
        %1136 = vrot.lane.b32.xlu0 %v1134, 111
        %v1137 = vpop.permute.xlu0 %1136
        %1138 = vrot.lane.b32.xlu0 %v1135, 111
        %v1139 = vpop.permute.xlu0 %1138
        %vm1140 = vcmask 908288
        %v1141 = vsel %vm1140, %v1137, %v1139
        %v1145 = vmul.f32 %v1126, %v1137
        %v1146 = vmul.f32 %v1127, %v1141
        %v1147 = vmul.f32 %v1128, %v1139
        %v1148 = vmul.f32 %v1129, %v1137
        %v1149 = vmul.f32 %v1130, %v1141
        %v1150 = vmul.f32 %v1131, %v1139
        %v1151 = vadd.f32 %v1145, 0.0
        %v1152 = vadd.f32 %v1146, 0.0
        %v1153 = vadd.f32 %v1147, 0.0
        %v1154 = vadd.f32 %v1148, 0.0
        %v1155 = vadd.f32 %v1149, 0.0
        %v1156 = vadd.f32 %v1150, 0.0
        %1157 = vset.pattern.permute.xlu0 1
        %1158 = vperm.xlu0 %1157, %v1114
        %v1159 = vpop.permute.xlu0 %1158
        %1161 = vset.pattern.permute.xlu0 1
        %1162 = vperm.xlu0 %1161, %v1115
        %v1163 = vpop.permute.xlu0 %1162
        %v1165 = vmul.f32 %v1108, %v1159
        %v1166 = vmul.f32 %v1109, %v1159
        %v1167 = vmul.f32 %v1110, %v1159
        %v1168 = vmul.f32 %v1111, %v1163
        %v1169 = vmul.f32 %v1112, %v1163
        %v1170 = vmul.f32 %v1113, %v1163
        %1177 = vrot.lane.b32.xlu0 %v1165, 127
        %v1178 = vpop.permute.xlu0 %1177
        %1179 = vrot.lane.b32.xlu0 %v1166, 127
        %v1180 = vpop.permute.xlu0 %1179
        %1181 = vrot.lane.b32.xlu0 %v1167, 127
        %v1182 = vpop.permute.xlu0 %1181
        %1183 = vrot.lane.b32.xlu0 %v1168, 127
        %v1184 = vpop.permute.xlu0 %1183
        %1185 = vrot.lane.b32.xlu0 %v1169, 127
        %v1186 = vpop.permute.xlu0 %1185
        %1187 = vrot.lane.b32.xlu0 %v1170, 127
        %v1188 = vpop.permute.xlu0 %1187
        %vm1189 = vcmask 1039360
        %v1190 = vsel %vm1189, %v1178, %v1180
        %v1191 = vsel %vm1189, %v1180, %v1182
        %v1192 = vsel %vm1189, %v1184, %v1186
        %v1193 = vsel %vm1189, %v1186, %v1188
        %v1200 = vadd.f32 %v1151, %v1190
        %v1201 = vadd.f32 %v1152, %v1191
        %v1202 = vadd.f32 %v1153, %v1182
        %v1203 = vadd.f32 %v1154, %v1192
        %v1204 = vadd.f32 %v1155, %v1193
        %v1205 = vadd.f32 %v1156, %v1188
        %1206 = vset.pattern.permute.xlu0 2
        %1207 = vperm.xlu0 %1206, %v1114
        %v1208 = vpop.permute.xlu0 %1207
        %1210 = vset.pattern.permute.xlu0 2
        %1211 = vperm.xlu0 %1210, %v1115
        %v1212 = vpop.permute.xlu0 %1211
        %v1214 = vmul.f32 %v1108, %v1208
        %v1215 = vmul.f32 %v1109, %v1208
        %v1216 = vmul.f32 %v1110, %v1208
        %v1217 = vmul.f32 %v1111, %v1212
        %v1218 = vmul.f32 %v1112, %v1212
        %v1219 = vmul.f32 %v1113, %v1212
        %s1220 = scalar_lea.vmem %s3, 1
        %v1221 = vld [vmem:[%s1220] ss:$2 sm:$0x3]
        %v1223 = vperm.slane %v1221, 0
        %v1224 = vperm.slane %v1221, 1
        %1225 = vrot.lane.b32.xlu0 %v1223, 113
        %v1226 = vpop.permute.xlu0 %1225
        %1227 = vrot.lane.b32.xlu0 %v1224, 113
        %v1228 = vpop.permute.xlu0 %1227
        %vm1229 = vcmask 924672
        %v1230 = vsel %vm1229, %v1226, %v1228
        %v1234 = vmul.f32 %v1214, %v1226
        %v1235 = vmul.f32 %v1215, %v1230
        %v1236 = vmul.f32 %v1216, %v1228
        %v1237 = vmul.f32 %v1217, %v1226
        %v1238 = vmul.f32 %v1218, %v1230
        %v1239 = vmul.f32 %v1219, %v1228
        %1246 = vrot.lane.b32.xlu0 %v1234, 126
        %v1247 = vpop.permute.xlu0 %1246
        %1248 = vrot.lane.b32.xlu0 %v1235, 126
        %v1249 = vpop.permute.xlu0 %1248
        %1250 = vrot.lane.b32.xlu0 %v1236, 126
        %v1251 = vpop.permute.xlu0 %1250
        %1252 = vrot.lane.b32.xlu0 %v1237, 126
        %v1253 = vpop.permute.xlu0 %1252
        %1254 = vrot.lane.b32.xlu0 %v1238, 126
        %v1255 = vpop.permute.xlu0 %1254
        %1256 = vrot.lane.b32.xlu0 %v1239, 126
        %v1257 = vpop.permute.xlu0 %1256
        %vm1258 = vcmask 1031168
        %v1259 = vsel %vm1258, %v1247, %v1249
        %v1260 = vsel %vm1258, %v1249, %v1251
        %v1261 = vsel %vm1258, %v1253, %v1255
        %v1262 = vsel %vm1258, %v1255, %v1257
        %v1269 = vadd.f32 %v1200, %v1259
        %v1270 = vadd.f32 %v1201, %v1260
        %v1271 = vadd.f32 %v1202, %v1251
        %v1272 = vadd.f32 %v1203, %v1261
        %v1273 = vadd.f32 %v1204, %v1262
        %v1274 = vadd.f32 %v1205, %v1257
        %1275 = vset.pattern.permute.xlu0 3
        %1276 = vperm.xlu0 %1275, %v1114
        %v1277 = vpop.permute.xlu0 %1276
        %1279 = vset.pattern.permute.xlu0 3
        %1280 = vperm.xlu0 %1279, %v1115
        %v1281 = vpop.permute.xlu0 %1280
        %v1283 = vmul.f32 %v1108, %v1277
        %v1284 = vmul.f32 %v1109, %v1277
        %v1285 = vmul.f32 %v1110, %v1277
        %v1286 = vmul.f32 %v1111, %v1281
        %v1287 = vmul.f32 %v1112, %v1281
        %v1288 = vmul.f32 %v1113, %v1281
        %1289 = vrot.lane.b32.xlu0 %v1134, 127
        %v1290 = vpop.permute.xlu0 %1289
        %1291 = vrot.lane.b32.xlu0 %v1135, 127
        %v1292 = vpop.permute.xlu0 %1291
        %v1293 = vsel %vm1189, %v1290, %v1292
        %v1297 = vmul.f32 %v1283, %v1290
        %v1298 = vmul.f32 %v1284, %v1293
        %v1299 = vmul.f32 %v1285, %v1292
        %v1300 = vmul.f32 %v1286, %v1290
        %v1301 = vmul.f32 %v1287, %v1293
        %v1302 = vmul.f32 %v1288, %v1292
        %1309 = vrot.lane.b32.xlu0 %v1297, 112
        %v1310 = vpop.permute.xlu0 %1309
        %1311 = vrot.lane.b32.xlu0 %v1298, 112
        %v1312 = vpop.permute.xlu0 %1311
        %1313 = vrot.lane.b32.xlu0 %v1299, 112
        %v1314 = vpop.permute.xlu0 %1313
        %1315 = vrot.lane.b32.xlu0 %v1300, 112
        %v1316 = vpop.permute.xlu0 %1315
        %1317 = vrot.lane.b32.xlu0 %v1301, 112
        %v1318 = vpop.permute.xlu0 %1317
        %1319 = vrot.lane.b32.xlu0 %v1302, 112
        %v1320 = vpop.permute.xlu0 %1319
        %vm1321 = vcmask 916480
        %v1322 = vsel %vm1321, %v1310, %v1312
        %v1323 = vsel %vm1321, %v1312, %v1314
        %v1324 = vsel %vm1321, %v1316, %v1318
        %v1325 = vsel %vm1321, %v1318, %v1320
        %v1332 = vadd.f32 %v1269, %v1322
        %v1333 = vadd.f32 %v1270, %v1323
        %v1334 = vadd.f32 %v1271, %v1314
        %v1335 = vadd.f32 %v1272, %v1324
        %v1336 = vadd.f32 %v1273, %v1325
        %v1337 = vadd.f32 %v1274, %v1320
        %1338 = vset.pattern.permute.xlu0 4
        %1339 = vperm.xlu0 %1338, %v1114
        %v1340 = vpop.permute.xlu0 %1339
        %1342 = vset.pattern.permute.xlu0 4
        %1343 = vperm.xlu0 %1342, %v1115
        %v1344 = vpop.permute.xlu0 %1343
        %v1346 = vmul.f32 %v1109, %v1340
        %v1347 = vmul.f32 %v1110, %v1340
        %v1348 = vmul.f32 %v1112, %v1344
        %v1349 = vmul.f32 %v1113, %v1344
        %1354 = vrot.lane.b32.xlu0 %v1346, 111
        %v1355 = vpop.permute.xlu0 %1354
        %1356 = vrot.lane.b32.xlu0 %v1347, 111
        %v1357 = vpop.permute.xlu0 %1356
        %1358 = vrot.lane.b32.xlu0 %v1348, 111
        %v1359 = vpop.permute.xlu0 %1358
        %1360 = vrot.lane.b32.xlu0 %v1349, 111
        %v1361 = vpop.permute.xlu0 %1360
        %v1362 = vsel %vm1140, %v1355, %v1357
        %v1363 = vsel %vm1140, %v1359, %v1361
        %v1370 = vadd.f32 %v1332, %v1355
        %v1371 = vadd.f32 %v1333, %v1362
        %v1372 = vadd.f32 %v1334, %v1357
        %v1373 = vadd.f32 %v1335, %v1359
        %v1374 = vadd.f32 %v1336, %v1363
        %v1375 = vadd.f32 %v1337, %v1361
        %v1376 = vld [vmem:[#allocation2 + $0x8] sm:$0xff]
        %v1377 = vld [vmem:[#allocation2 + $0x10] sm:$0xff]
        %v1378 = vld [vmem:[#allocation2 + $0x18] sm:$0xff]
        %v1379 = vld [vmem:[#allocation2 + $0x28] sm:$0xff]
        %v1380 = vld [vmem:[#allocation2 + $0x30] sm:$0xff]
        %v1381 = vld [vmem:[#allocation2 + $0x38] sm:$0xff]
        %1382 = vset.pattern.permute.xlu0 5
        %1383 = vperm.xlu0 %1382, %v1114
        %v1384 = vpop.permute.xlu0 %1383
        %1386 = vset.pattern.permute.xlu0 5
        %1387 = vperm.xlu0 %1386, %v1115
        %v1388 = vpop.permute.xlu0 %1387
        %v1390 = vmul.f32 %v1376, %v1384
        %v1391 = vmul.f32 %v1377, %v1384
        %v1392 = vmul.f32 %v1378, %v1384
        %v1393 = vmul.f32 %v1379, %v1388
        %v1394 = vmul.f32 %v1380, %v1388
        %v1395 = vmul.f32 %v1381, %v1388
        %1396 = vrot.lane.b32.xlu0 %v1223, 1
        %v1397 = vpop.permute.xlu0 %1396
        %1398 = vrot.lane.b32.xlu0 %v1224, 1
        %v1399 = vpop.permute.xlu0 %1398
        %vm1400 = vcmask 7168
        %v1401 = vsel %vm1400, %v1397, %v1399
        %v1405 = vmul.f32 %v1390, %v1397
        %v1406 = vmul.f32 %v1391, %v1401
        %v1407 = vmul.f32 %v1392, %v1399
        %v1408 = vmul.f32 %v1393, %v1397
        %v1409 = vmul.f32 %v1394, %v1401
        %v1410 = vmul.f32 %v1395, %v1399
        %1417 = vrot.lane.b32.xlu0 %v1405, 110
        %v1418 = vpop.permute.xlu0 %1417
        %1419 = vrot.lane.b32.xlu0 %v1406, 110
        %v1420 = vpop.permute.xlu0 %1419
        %1421 = vrot.lane.b32.xlu0 %v1407, 110
        %v1422 = vpop.permute.xlu0 %1421
        %1423 = vrot.lane.b32.xlu0 %v1408, 110
        %v1424 = vpop.permute.xlu0 %1423
        %1425 = vrot.lane.b32.xlu0 %v1409, 110
        %v1426 = vpop.permute.xlu0 %1425
        %1427 = vrot.lane.b32.xlu0 %v1410, 110
        %v1428 = vpop.permute.xlu0 %1427
        %vm1429 = vcmask 900096
        %v1430 = vsel %vm1429, %v1418, %v1420
        %v1431 = vsel %vm1429, %v1420, %v1422
        %v1432 = vsel %vm1429, %v1424, %v1426
        %v1433 = vsel %vm1429, %v1426, %v1428
        %v1440 = vadd.f32 %v1370, %v1418
        %v1441 = vadd.f32 %v1371, %v1430
        %v1442 = vadd.f32 %v1372, %v1431
        %v1443 = vadd.f32 %v1373, %v1424
        %v1444 = vadd.f32 %v1374, %v1432
        %v1445 = vadd.f32 %v1375, %v1433
        %1446 = vset.pattern.permute.xlu0 6
        %1447 = vperm.xlu0 %1446, %v1114
        %v1448 = vpop.permute.xlu0 %1447
        %1450 = vset.pattern.permute.xlu0 6
        %1451 = vperm.xlu0 %1450, %v1115
        %v1452 = vpop.permute.xlu0 %1451
        %v1454 = vmul.f32 %v1376, %v1448
        %v1455 = vmul.f32 %v1377, %v1448
        %v1456 = vmul.f32 %v1378, %v1448
        %v1457 = vmul.f32 %v1379, %v1452
        %v1458 = vmul.f32 %v1380, %v1452
        %v1459 = vmul.f32 %v1381, %v1452
        %1460 = vrot.lane.b32.xlu0 %v1134, 15
        %v1461 = vpop.permute.xlu0 %1460
        %1462 = vrot.lane.b32.xlu0 %v1135, 15
        %v1463 = vpop.permute.xlu0 %1462
        %vm1464 = vcmask 121856
        %v1465 = vsel %vm1464, %v1461, %v1463
        %v1469 = vmul.f32 %v1454, %v1461
        %v1470 = vmul.f32 %v1455, %v1465
        %v1471 = vmul.f32 %v1456, %v1463
        %v1472 = vmul.f32 %v1457, %v1461
        %v1473 = vmul.f32 %v1458, %v1465
        %v1474 = vmul.f32 %v1459, %v1463
        %1481 = vrot.lane.b32.xlu0 %v1469, 96
        %v1482 = vpop.permute.xlu0 %1481
        %1483 = vrot.lane.b32.xlu0 %v1470, 96
        %v1484 = vpop.permute.xlu0 %1483
        %1485 = vrot.lane.b32.xlu0 %v1471, 96
        %v1486 = vpop.permute.xlu0 %1485
        %1487 = vrot.lane.b32.xlu0 %v1472, 96
        %v1488 = vpop.permute.xlu0 %1487
        %1489 = vrot.lane.b32.xlu0 %v1473, 96
        %v1490 = vpop.permute.xlu0 %1489
        %1491 = vrot.lane.b32.xlu0 %v1474, 96
        %v1492 = vpop.permute.xlu0 %1491
        %vm1493 = vcmask 785408
        %v1494 = vsel %vm1493, %v1482, %v1484
        %v1495 = vsel %vm1493, %v1484, %v1486
        %v1496 = vsel %vm1493, %v1488, %v1490
        %v1497 = vsel %vm1493, %v1490, %v1492
        %v1504 = vadd.f32 %v1440, %v1482
        %v1505 = vadd.f32 %v1441, %v1494
        %v1506 = vadd.f32 %v1442, %v1495
        %v1507 = vadd.f32 %v1443, %v1488
        %v1508 = vadd.f32 %v1444, %v1496
        %v1509 = vadd.f32 %v1445, %v1497
        %1510 = vset.pattern.permute.xlu0 7
        %1511 = vperm.xlu0 %1510, %v1114
        %v1512 = vpop.permute.xlu0 %1511
        %1514 = vset.pattern.permute.xlu0 7
        %1515 = vperm.xlu0 %1514, %v1115
        %v1516 = vpop.permute.xlu0 %1515
        %v1518 = vmul.f32 %v1376, %v1512
        %v1519 = vmul.f32 %v1377, %v1512
        %v1520 = vmul.f32 %v1378, %v1512
        %v1521 = vmul.f32 %v1379, %v1516
        %v1522 = vmul.f32 %v1380, %v1516
        %v1523 = vmul.f32 %v1381, %v1516
        %1530 = vrot.lane.b32.xlu0 %v1518, 95
        %v1531 = vpop.permute.xlu0 %1530
        %1532 = vrot.lane.b32.xlu0 %v1519, 95
        %v1533 = vpop.permute.xlu0 %1532
        %1534 = vrot.lane.b32.xlu0 %v1520, 95
        %v1535 = vpop.permute.xlu0 %1534
        %1536 = vrot.lane.b32.xlu0 %v1521, 95
        %v1537 = vpop.permute.xlu0 %1536
        %1538 = vrot.lane.b32.xlu0 %v1522, 95
        %v1539 = vpop.permute.xlu0 %1538
        %1540 = vrot.lane.b32.xlu0 %v1523, 95
        %v1541 = vpop.permute.xlu0 %1540
        %vm1542 = vcmask 777216
        %v1543 = vsel %vm1542, %v1531, %v1533
        %v1544 = vsel %vm1542, %v1533, %v1535
        %v1545 = vsel %vm1542, %v1537, %v1539
        %v1546 = vsel %vm1542, %v1539, %v1541
        %v1553 = vadd.f32 %v1504, %v1531
        %v1554 = vadd.f32 %v1505, %v1543
        %v1555 = vadd.f32 %v1506, %v1544
        %v1556 = vadd.f32 %v1507, %v1537
        %v1557 = vadd.f32 %v1508, %v1545
        %v1558 = vadd.f32 %v1509, %v1546
        %1559 = vset.pattern.permute.xlu0 8
        %1560 = vperm.xlu0 %1559, %v1114
        %v1561 = vpop.permute.xlu0 %1560
        %1563 = vset.pattern.permute.xlu0 8
        %1564 = vperm.xlu0 %1563, %v1115
        %v1565 = vpop.permute.xlu0 %1564
        %v1567 = vmul.f32 %v1376, %v1561
        %v1568 = vmul.f32 %v1377, %v1561
        %v1569 = vmul.f32 %v1378, %v1561
        %v1570 = vmul.f32 %v1379, %v1565
        %v1571 = vmul.f32 %v1380, %v1565
        %v1572 = vmul.f32 %v1381, %v1565
        %1573 = vrot.lane.b32.xlu0 %v1223, 17
        %v1574 = vpop.permute.xlu0 %1573
        %1575 = vrot.lane.b32.xlu0 %v1224, 17
        %v1576 = vpop.permute.xlu0 %1575
        %vm1577 = vcmask 138240
        %v1578 = vsel %vm1577, %v1574, %v1576
        %v1582 = vmul.f32 %v1567, %v1574
        %v1583 = vmul.f32 %v1568, %v1578
        %v1584 = vmul.f32 %v1569, %v1576
        %v1585 = vmul.f32 %v1570, %v1574
        %v1586 = vmul.f32 %v1571, %v1578
        %v1587 = vmul.f32 %v1572, %v1576
        %1594 = vrot.lane.b32.xlu0 %v1582, 94
        %v1595 = vpop.permute.xlu0 %1594
        %1596 = vrot.lane.b32.xlu0 %v1583, 94
        %v1597 = vpop.permute.xlu0 %1596
        %1598 = vrot.lane.b32.xlu0 %v1584, 94
        %v1599 = vpop.permute.xlu0 %1598
        %1600 = vrot.lane.b32.xlu0 %v1585, 94
        %v1601 = vpop.permute.xlu0 %1600
        %1602 = vrot.lane.b32.xlu0 %v1586, 94
        %v1603 = vpop.permute.xlu0 %1602
        %1604 = vrot.lane.b32.xlu0 %v1587, 94
        %v1605 = vpop.permute.xlu0 %1604
        %vm1606 = vcmask 769024
        %v1607 = vsel %vm1606, %v1595, %v1597
        %v1608 = vsel %vm1606, %v1597, %v1599
        %v1609 = vsel %vm1606, %v1601, %v1603
        %v1610 = vsel %vm1606, %v1603, %v1605
        %v1617 = vadd.f32 %v1553, %v1595
        %v1618 = vadd.f32 %v1554, %v1607
        %v1619 = vadd.f32 %v1555, %v1608
        %v1620 = vadd.f32 %v1556, %v1601
        %v1621 = vadd.f32 %v1557, %v1609
        %v1622 = vadd.f32 %v1558, %v1610
        %v1623 = vld [vmem:[%s13] sm:$0xff]
        %v1624 = vld [vmem:[%s13 + $0x8] sm:$0xff]
        %1626 = vset.pattern.permute.xlu0 0
        %1627 = vperm.xlu0 %1626, %v1623
        %v1628 = vpop.permute.xlu0 %1627
        %1631 = vset.pattern.permute.xlu0 0
        %1632 = vperm.xlu0 %1631, %v1624
        %v1633 = vpop.permute.xlu0 %1632
        %v1635 = vadd.f32 %v1617, %v1628
        %v1636 = vadd.f32 %v1618, %v1628
        %v1637 = vadd.f32 %v1619, %v1628
        %v1638 = vadd.f32 %v1620, %v1633
        %v1639 = vadd.f32 %v1621, %v1633
        %v1640 = vadd.f32 %v1622, %v1633
        %v1641 = vmax.f32 %v1635, 0.0
        %v1642 = vmax.f32 %v1636, 0.0
        %v1643 = vmax.f32 %v1637, 0.0
        %v1644 = vmax.f32 %v1638, 0.0
        %v1645 = vmax.f32 %v1639, 0.0
        %v1646 = vmax.f32 %v1640, 0.0
        %v1647 = vld [vmem:[%s15] sm:$0xff]
        %v1648 = vld [vmem:[%s15 + $0x8] sm:$0xff]
        %v1649 = vld [vmem:[%s17] sm:$0xff]
        %v1650 = vld [vmem:[%s17 + $0x8] sm:$0xff]
        %1652 = vset.pattern.permute.xlu0 0
        %1653 = vperm.xlu0 %1652, %v1649
        %v1654 = vpop.permute.xlu0 %1653
        %1657 = vset.pattern.permute.xlu0 0
        %1658 = vperm.xlu0 %1657, %v1650
        %v1659 = vpop.permute.xlu0 %1658
        %1667 = vrot.lane.b32.xlu0 %v1641, 17
        %v1668 = vpop.permute.xlu0 %1667
        %1669 = vrot.lane.b32.xlu0 %v1642, 17
        %v1670 = vpop.permute.xlu0 %1669
        %1671 = vrot.lane.b32.xlu0 %v1643, 17
        %v1672 = vpop.permute.xlu0 %1671
        %1673 = vrot.lane.b32.xlu0 %v1644, 17
        %v1674 = vpop.permute.xlu0 %1673
        %1675 = vrot.lane.b32.xlu0 %v1645, 17
        %v1676 = vpop.permute.xlu0 %1675
        %1677 = vrot.lane.b32.xlu0 %v1646, 17
        %v1678 = vpop.permute.xlu0 %1677
        %v1679 = vsel %vm1577, %v1668, %v1670
        %v1680 = vsel %vm1577, %v1670, %v1672
        %v1681 = vsel %vm1577, %v1674, %v1676
        %v1682 = vsel %vm1577, %v1676, %v1678
        %vm1687 = vcmask 130048
        %v1689 = vsel %vm1687, %v1647, 0
        %v1692 = vsel %vm1687, %v1648, 0
        %1694 = vmatpush.msra.mxu0 0.0
        %1695 = vmatpush.msra.mxu0 0.0
        %1696 = vmatpush.msra.mxu0 0.0
        %1697 = vmatpush.msra.mxu0 0.0
        %1698 = vmatpush.msra.mxu0 0.0
        %1699 = vmatpush.msra.mxu0 0.0
        %1700 = vmatpush.msra.mxu0 0.0
        %1701 = vmatpush.msra.mxu0 0.0
        %1702 = vmatpush.msra.mxu0 0.0
        %1703 = vmatpush.msra.mxu0 0.0
        %1704 = vmatpush.msra.mxu0 0.0
        %1705 = vmatpush.msra.mxu0 0.0
        %1706 = vmatpush.msra.mxu0 0.0
        %1707 = vmatpush.msra.mxu0 0.0
        %1708 = vmatpush.msra.mxu0 %v1681
        %1709 = vmatpush.msra.mxu0 %v1679
        %1710 = vmatmul.f32.gmra.mxu0 %v1689
        %v1711 = vpop.f32.mrf.mxu0
        %v1712 = vadd.f32 %v1654, %v1711
        %1713 = vmatmul.f32.gmra.mxu0 %v1692
        %v1714 = vpop.f32.mrf.mxu0
        %v1715 = vadd.f32 %v1659, %v1714
        %1716 = vdwg.mxu0
        %1717 = vmatpush.msra.mxu0 0.0
        %1718 = vmatpush.msra.mxu0 0.0
        %1719 = vmatpush.msra.mxu0 0.0
        %1720 = vmatpush.msra.mxu0 0.0
        %1721 = vmatpush.msra.mxu0 0.0
        %1722 = vmatpush.msra.mxu0 0.0
        %1723 = vmatpush.msra.mxu0 0.0
        %1724 = vmatpush.msra.mxu0 0.0
        %1725 = vmatpush.msra.mxu0 0.0
        %1726 = vmatpush.msra.mxu0 0.0
        %1727 = vmatpush.msra.mxu0 0.0
        %1728 = vmatpush.msra.mxu0 0.0
        %1729 = vmatpush.msra.mxu0 0.0
        %1730 = vmatpush.msra.mxu0 0.0
        %1731 = vmatpush.msra.mxu0 %v1682
        %1732 = vmatpush.msra.mxu0 %v1680
        %1733 = vmatmul.f32.gmra.mxu0 %v1689
        %v1734 = vpop.f32.mrf.mxu0
        %v1735 = vadd.f32 %v1654, %v1734
        %1736 = vmatmul.f32.gmra.mxu0 %v1692
        %v1737 = vpop.f32.mrf.mxu0
        %v1738 = vadd.f32 %v1659, %v1737
        %1739 = vdwg.mxu0
        %v1740 = vmax.f32 %v1712, 0.0
        %v1741 = vmax.f32 %v1735, 0.0
        %v1742 = vmax.f32 %v1715, 0.0
        %v1743 = vmax.f32 %v1738, 0.0
        %1744 = vst [vmem:[#allocation2 + $0x8] sm:$0xff] %v1740
        %1745 = vst [vmem:[#allocation2 + $0x10] sm:$0xff] %v1741
        %1746 = vst [vmem:[#allocation2 + $0x28] sm:$0xff] %v1742
        %1747 = vst [vmem:[#allocation2 + $0x30] sm:$0xff] %v1743
        %v1748 = vld [vmem:[#allocation2] sm:$0xff]
        %v1749 = vld [vmem:[#allocation2 + $0x8] sm:$0xff]
        %v1750 = vld [vmem:[#allocation2 + $0x10] sm:$0xff]
        %v1751 = vld [vmem:[#allocation2 + $0x20] sm:$0xff]
        %v1752 = vld [vmem:[#allocation2 + $0x28] sm:$0xff]
        %v1753 = vld [vmem:[#allocation2 + $0x30] sm:$0xff]
        %v1754 = vld [vmem:[%s19] sm:$0xff]
        %v1755 = vld [vmem:[%s19 + $0x8] sm:$0xff]
        %1757 = vset.pattern.permute.xlu0 0
        %1758 = vperm.xlu0 %1757, %v1754
        %v1759 = vpop.permute.xlu0 %1758
        %1762 = vset.pattern.permute.xlu0 0
        %1763 = vperm.xlu0 %1762, %v1755
        %v1764 = vpop.permute.xlu0 %1763
        %v1766 = vmul.f32 %v1748, %v1759
        %v1767 = vmul.f32 %v1749, %v1759
        %v1768 = vmul.f32 %v1750, %v1759
        %v1769 = vmul.f32 %v1751, %v1764
        %v1770 = vmul.f32 %v1752, %v1764
        %v1771 = vmul.f32 %v1753, %v1764
        %v1772 = vld [vmem:[%s3] ss:$2 sm:$0x3]
        %v1774 = vperm.slane %v1772, 0
        %v1775 = vperm.slane %v1772, 1
        %1776 = vrot.lane.b32.xlu0 %v1774, 111
        %v1777 = vpop.permute.xlu0 %1776
        %1778 = vrot.lane.b32.xlu0 %v1775, 111
        %v1779 = vpop.permute.xlu0 %1778
        %v1780 = vsel %vm1140, %v1777, %v1779
        %v1784 = vmul.f32 %v1766, %v1777
        %v1785 = vmul.f32 %v1767, %v1780
        %v1786 = vmul.f32 %v1768, %v1779
        %v1787 = vmul.f32 %v1769, %v1777
        %v1788 = vmul.f32 %v1770, %v1780
        %v1789 = vmul.f32 %v1771, %v1779
        %v1790 = vadd.f32 %v1784, 0.0
        %v1791 = vadd.f32 %v1785, 0.0
        %v1792 = vadd.f32 %v1786, 0.0
        %v1793 = vadd.f32 %v1787, 0.0
        %v1794 = vadd.f32 %v1788, 0.0
        %v1795 = vadd.f32 %v1789, 0.0
        %1796 = vset.pattern.permute.xlu0 1
        %1797 = vperm.xlu0 %1796, %v1754
        %v1798 = vpop.permute.xlu0 %1797
        %1800 = vset.pattern.permute.xlu0 1
        %1801 = vperm.xlu0 %1800, %v1755
        %v1802 = vpop.permute.xlu0 %1801
        %v1804 = vmul.f32 %v1748, %v1798
        %v1805 = vmul.f32 %v1749, %v1798
        %v1806 = vmul.f32 %v1750, %v1798
        %v1807 = vmul.f32 %v1751, %v1802
        %v1808 = vmul.f32 %v1752, %v1802
        %v1809 = vmul.f32 %v1753, %v1802
        %1816 = vrot.lane.b32.xlu0 %v1804, 127
        %v1817 = vpop.permute.xlu0 %1816
        %1818 = vrot.lane.b32.xlu0 %v1805, 127
        %v1819 = vpop.permute.xlu0 %1818
        %1820 = vrot.lane.b32.xlu0 %v1806, 127
        %v1821 = vpop.permute.xlu0 %1820
        %1822 = vrot.lane.b32.xlu0 %v1807, 127
        %v1823 = vpop.permute.xlu0 %1822
        %1824 = vrot.lane.b32.xlu0 %v1808, 127
        %v1825 = vpop.permute.xlu0 %1824
        %1826 = vrot.lane.b32.xlu0 %v1809, 127
        %v1827 = vpop.permute.xlu0 %1826
        %v1828 = vsel %vm1189, %v1817, %v1819
        %v1829 = vsel %vm1189, %v1819, %v1821
        %v1830 = vsel %vm1189, %v1823, %v1825
        %v1831 = vsel %vm1189, %v1825, %v1827
        %v1838 = vadd.f32 %v1790, %v1828
        %v1839 = vadd.f32 %v1791, %v1829
        %v1840 = vadd.f32 %v1792, %v1821
        %v1841 = vadd.f32 %v1793, %v1830
        %v1842 = vadd.f32 %v1794, %v1831
        %v1843 = vadd.f32 %v1795, %v1827
        %1844 = vset.pattern.permute.xlu0 2
        %1845 = vperm.xlu0 %1844, %v1754
        %v1846 = vpop.permute.xlu0 %1845
        %1848 = vset.pattern.permute.xlu0 2
        %1849 = vperm.xlu0 %1848, %v1755
        %v1850 = vpop.permute.xlu0 %1849
        %v1852 = vmul.f32 %v1748, %v1846
        %v1853 = vmul.f32 %v1749, %v1846
        %v1854 = vmul.f32 %v1750, %v1846
        %v1855 = vmul.f32 %v1751, %v1850
        %v1856 = vmul.f32 %v1752, %v1850
        %v1857 = vmul.f32 %v1753, %v1850
        %v1858 = vld [vmem:[%s1220] ss:$2 sm:$0x3]
        %v1860 = vperm.slane %v1858, 0
        %v1861 = vperm.slane %v1858, 1
        %1862 = vrot.lane.b32.xlu0 %v1860, 113
        %v1863 = vpop.permute.xlu0 %1862
        %1864 = vrot.lane.b32.xlu0 %v1861, 113
        %v1865 = vpop.permute.xlu0 %1864
        %v1866 = vsel %vm1229, %v1863, %v1865
        %v1870 = vmul.f32 %v1852, %v1863
        %v1871 = vmul.f32 %v1853, %v1866
        %v1872 = vmul.f32 %v1854, %v1865
        %v1873 = vmul.f32 %v1855, %v1863
        %v1874 = vmul.f32 %v1856, %v1866
        %v1875 = vmul.f32 %v1857, %v1865
        %1882 = vrot.lane.b32.xlu0 %v1870, 126
        %v1883 = vpop.permute.xlu0 %1882
        %1884 = vrot.lane.b32.xlu0 %v1871, 126
        %v1885 = vpop.permute.xlu0 %1884
        %1886 = vrot.lane.b32.xlu0 %v1872, 126
        %v1887 = vpop.permute.xlu0 %1886
        %1888 = vrot.lane.b32.xlu0 %v1873, 126
        %v1889 = vpop.permute.xlu0 %1888
        %1890 = vrot.lane.b32.xlu0 %v1874, 126
        %v1891 = vpop.permute.xlu0 %1890
        %1892 = vrot.lane.b32.xlu0 %v1875, 126
        %v1893 = vpop.permute.xlu0 %1892
        %v1894 = vsel %vm1258, %v1883, %v1885
        %v1895 = vsel %vm1258, %v1885, %v1887
        %v1896 = vsel %vm1258, %v1889, %v1891
        %v1897 = vsel %vm1258, %v1891, %v1893
        %v1904 = vadd.f32 %v1838, %v1894
        %v1905 = vadd.f32 %v1839, %v1895
        %v1906 = vadd.f32 %v1840, %v1887
        %v1907 = vadd.f32 %v1841, %v1896
        %v1908 = vadd.f32 %v1842, %v1897
        %v1909 = vadd.f32 %v1843, %v1893
        %1910 = vset.pattern.permute.xlu0 3
        %1911 = vperm.xlu0 %1910, %v1754
        %v1912 = vpop.permute.xlu0 %1911
        %1914 = vset.pattern.permute.xlu0 3
        %1915 = vperm.xlu0 %1914, %v1755
        %v1916 = vpop.permute.xlu0 %1915
        %v1918 = vmul.f32 %v1748, %v1912
        %v1919 = vmul.f32 %v1749, %v1912
        %v1920 = vmul.f32 %v1750, %v1912
        %v1921 = vmul.f32 %v1751, %v1916
        %v1922 = vmul.f32 %v1752, %v1916
        %v1923 = vmul.f32 %v1753, %v1916
        %1924 = vrot.lane.b32.xlu0 %v1774, 127
        %v1925 = vpop.permute.xlu0 %1924
        %1926 = vrot.lane.b32.xlu0 %v1775, 127
        %v1927 = vpop.permute.xlu0 %1926
        %v1928 = vsel %vm1189, %v1925, %v1927
        %v1932 = vmul.f32 %v1918, %v1925
        %v1933 = vmul.f32 %v1919, %v1928
        %v1934 = vmul.f32 %v1920, %v1927
        %v1935 = vmul.f32 %v1921, %v1925
        %v1936 = vmul.f32 %v1922, %v1928
        %v1937 = vmul.f32 %v1923, %v1927
        %1944 = vrot.lane.b32.xlu0 %v1932, 112
        %v1945 = vpop.permute.xlu0 %1944
        %1946 = vrot.lane.b32.xlu0 %v1933, 112
        %v1947 = vpop.permute.xlu0 %1946
        %1948 = vrot.lane.b32.xlu0 %v1934, 112
        %v1949 = vpop.permute.xlu0 %1948
        %1950 = vrot.lane.b32.xlu0 %v1935, 112
        %v1951 = vpop.permute.xlu0 %1950
        %1952 = vrot.lane.b32.xlu0 %v1936, 112
        %v1953 = vpop.permute.xlu0 %1952
        %1954 = vrot.lane.b32.xlu0 %v1937, 112
        %v1955 = vpop.permute.xlu0 %1954
        %v1956 = vsel %vm1321, %v1945, %v1947
        %v1957 = vsel %vm1321, %v1947, %v1949
        %v1958 = vsel %vm1321, %v1951, %v1953
        %v1959 = vsel %vm1321, %v1953, %v1955
        %v1966 = vadd.f32 %v1904, %v1956
        %v1967 = vadd.f32 %v1905, %v1957
        %v1968 = vadd.f32 %v1906, %v1949
        %v1969 = vadd.f32 %v1907, %v1958
        %v1970 = vadd.f32 %v1908, %v1959
        %v1971 = vadd.f32 %v1909, %v1955
        %1972 = vset.pattern.permute.xlu0 4
        %1973 = vperm.xlu0 %1972, %v1754
        %v1974 = vpop.permute.xlu0 %1973
        %1976 = vset.pattern.permute.xlu0 4
        %1977 = vperm.xlu0 %1976, %v1755
        %v1978 = vpop.permute.xlu0 %1977
        %v1980 = vmul.f32 %v1749, %v1974
        %v1981 = vmul.f32 %v1750, %v1974
        %v1982 = vmul.f32 %v1752, %v1978
        %v1983 = vmul.f32 %v1753, %v1978
        %1988 = vrot.lane.b32.xlu0 %v1980, 111
        %v1989 = vpop.permute.xlu0 %1988
        %1990 = vrot.lane.b32.xlu0 %v1981, 111
        %v1991 = vpop.permute.xlu0 %1990
        %1992 = vrot.lane.b32.xlu0 %v1982, 111
        %v1993 = vpop.permute.xlu0 %1992
        %1994 = vrot.lane.b32.xlu0 %v1983, 111
        %v1995 = vpop.permute.xlu0 %1994
        %v1996 = vsel %vm1140, %v1989, %v1991
        %v1997 = vsel %vm1140, %v1993, %v1995
        %v2004 = vadd.f32 %v1966, %v1989
        %v2005 = vadd.f32 %v1967, %v1996
        %v2006 = vadd.f32 %v1968, %v1991
        %v2007 = vadd.f32 %v1969, %v1993
        %v2008 = vadd.f32 %v1970, %v1997
        %v2009 = vadd.f32 %v1971, %v1995
        %v2010 = vld [vmem:[#allocation2 + $0x8] sm:$0xff]
        %v2011 = vld [vmem:[#allocation2 + $0x10] sm:$0xff]
        %v2012 = vld [vmem:[#allocation2 + $0x18] sm:$0xff]
        %v2013 = vld [vmem:[#allocation2 + $0x28] sm:$0xff]
        %v2014 = vld [vmem:[#allocation2 + $0x30] sm:$0xff]
        %v2015 = vld [vmem:[#allocation2 + $0x38] sm:$0xff]
        %2016 = vset.pattern.permute.xlu0 5
        %2017 = vperm.xlu0 %2016, %v1754
        %v2018 = vpop.permute.xlu0 %2017
        %2020 = vset.pattern.permute.xlu0 5
        %2021 = vperm.xlu0 %2020, %v1755
        %v2022 = vpop.permute.xlu0 %2021
        %v2024 = vmul.f32 %v2010, %v2018
        %v2025 = vmul.f32 %v2011, %v2018
        %v2026 = vmul.f32 %v2012, %v2018
        %v2027 = vmul.f32 %v2013, %v2022
        %v2028 = vmul.f32 %v2014, %v2022
        %v2029 = vmul.f32 %v2015, %v2022
        %2030 = vrot.lane.b32.xlu0 %v1860, 1
        %v2031 = vpop.permute.xlu0 %2030
        %2032 = vrot.lane.b32.xlu0 %v1861, 1
        %v2033 = vpop.permute.xlu0 %2032
        %v2034 = vsel %vm1400, %v2031, %v2033
        %v2038 = vmul.f32 %v2024, %v2031
        %v2039 = vmul.f32 %v2025, %v2034
        %v2040 = vmul.f32 %v2026, %v2033
        %v2041 = vmul.f32 %v2027, %v2031
        %v2042 = vmul.f32 %v2028, %v2034
        %v2043 = vmul.f32 %v2029, %v2033
        %2050 = vrot.lane.b32.xlu0 %v2038, 110
        %v2051 = vpop.permute.xlu0 %2050
        %2052 = vrot.lane.b32.xlu0 %v2039, 110
        %v2053 = vpop.permute.xlu0 %2052
        %2054 = vrot.lane.b32.xlu0 %v2040, 110
        %v2055 = vpop.permute.xlu0 %2054
        %2056 = vrot.lane.b32.xlu0 %v2041, 110
        %v2057 = vpop.permute.xlu0 %2056
        %2058 = vrot.lane.b32.xlu0 %v2042, 110
        %v2059 = vpop.permute.xlu0 %2058
        %2060 = vrot.lane.b32.xlu0 %v2043, 110
        %v2061 = vpop.permute.xlu0 %2060
        %v2062 = vsel %vm1429, %v2051, %v2053
        %v2063 = vsel %vm1429, %v2053, %v2055
        %v2064 = vsel %vm1429, %v2057, %v2059
        %v2065 = vsel %vm1429, %v2059, %v2061
        %v2072 = vadd.f32 %v2004, %v2051
        %v2073 = vadd.f32 %v2005, %v2062
        %v2074 = vadd.f32 %v2006, %v2063
        %v2075 = vadd.f32 %v2007, %v2057
        %v2076 = vadd.f32 %v2008, %v2064
        %v2077 = vadd.f32 %v2009, %v2065
        %2078 = vset.pattern.permute.xlu0 6
        %2079 = vperm.xlu0 %2078, %v1754
        %v2080 = vpop.permute.xlu0 %2079
        %2082 = vset.pattern.permute.xlu0 6
        %2083 = vperm.xlu0 %2082, %v1755
        %v2084 = vpop.permute.xlu0 %2083
        %v2086 = vmul.f32 %v2010, %v2080
        %v2087 = vmul.f32 %v2011, %v2080
        %v2088 = vmul.f32 %v2012, %v2080
        %v2089 = vmul.f32 %v2013, %v2084
        %v2090 = vmul.f32 %v2014, %v2084
        %v2091 = vmul.f32 %v2015, %v2084
        %2092 = vrot.lane.b32.xlu0 %v1774, 15
        %v2093 = vpop.permute.xlu0 %2092
        %2094 = vrot.lane.b32.xlu0 %v1775, 15
        %v2095 = vpop.permute.xlu0 %2094
        %v2096 = vsel %vm1464, %v2093, %v2095
        %v2100 = vmul.f32 %v2086, %v2093
        %v2101 = vmul.f32 %v2087, %v2096
        %v2102 = vmul.f32 %v2088, %v2095
        %v2103 = vmul.f32 %v2089, %v2093
        %v2104 = vmul.f32 %v2090, %v2096
        %v2105 = vmul.f32 %v2091, %v2095
        %2112 = vrot.lane.b32.xlu0 %v2100, 96
        %v2113 = vpop.permute.xlu0 %2112
        %2114 = vrot.lane.b32.xlu0 %v2101, 96
        %v2115 = vpop.permute.xlu0 %2114
        %2116 = vrot.lane.b32.xlu0 %v2102, 96
        %v2117 = vpop.permute.xlu0 %2116
        %2118 = vrot.lane.b32.xlu0 %v2103, 96
        %v2119 = vpop.permute.xlu0 %2118
        %2120 = vrot.lane.b32.xlu0 %v2104, 96
        %v2121 = vpop.permute.xlu0 %2120
        %2122 = vrot.lane.b32.xlu0 %v2105, 96
        %v2123 = vpop.permute.xlu0 %2122
        %v2124 = vsel %vm1493, %v2113, %v2115
        %v2125 = vsel %vm1493, %v2115, %v2117
        %v2126 = vsel %vm1493, %v2119, %v2121
        %v2127 = vsel %vm1493, %v2121, %v2123
        %v2134 = vadd.f32 %v2072, %v2113
        %v2135 = vadd.f32 %v2073, %v2124
        %v2136 = vadd.f32 %v2074, %v2125
        %v2137 = vadd.f32 %v2075, %v2119
        %v2138 = vadd.f32 %v2076, %v2126
        %v2139 = vadd.f32 %v2077, %v2127
        %2140 = vset.pattern.permute.xlu0 7
        %2141 = vperm.xlu0 %2140, %v1754
        %v2142 = vpop.permute.xlu0 %2141
        %2144 = vset.pattern.permute.xlu0 7
        %2145 = vperm.xlu0 %2144, %v1755
        %v2146 = vpop.permute.xlu0 %2145
        %v2148 = vmul.f32 %v2010, %v2142
        %v2149 = vmul.f32 %v2011, %v2142
        %v2150 = vmul.f32 %v2012, %v2142
        %v2151 = vmul.f32 %v2013, %v2146
        %v2152 = vmul.f32 %v2014, %v2146
        %v2153 = vmul.f32 %v2015, %v2146
        %2160 = vrot.lane.b32.xlu0 %v2148, 95
        %v2161 = vpop.permute.xlu0 %2160
        %2162 = vrot.lane.b32.xlu0 %v2149, 95
        %v2163 = vpop.permute.xlu0 %2162
        %2164 = vrot.lane.b32.xlu0 %v2150, 95
        %v2165 = vpop.permute.xlu0 %2164
        %2166 = vrot.lane.b32.xlu0 %v2151, 95
        %v2167 = vpop.permute.xlu0 %2166
        %2168 = vrot.lane.b32.xlu0 %v2152, 95
        %v2169 = vpop.permute.xlu0 %2168
        %2170 = vrot.lane.b32.xlu0 %v2153, 95
        %v2171 = vpop.permute.xlu0 %2170
        %v2172 = vsel %vm1542, %v2161, %v2163
        %v2173 = vsel %vm1542, %v2163, %v2165
        %v2174 = vsel %vm1542, %v2167, %v2169
        %v2175 = vsel %vm1542, %v2169, %v2171
        %v2182 = vadd.f32 %v2134, %v2161
        %v2183 = vadd.f32 %v2135, %v2172
        %v2184 = vadd.f32 %v2136, %v2173
        %v2185 = vadd.f32 %v2137, %v2167
        %v2186 = vadd.f32 %v2138, %v2174
        %v2187 = vadd.f32 %v2139, %v2175
        %2188 = vset.pattern.permute.xlu0 8
        %2189 = vperm.xlu0 %2188, %v1754
        %v2190 = vpop.permute.xlu0 %2189
        %2192 = vset.pattern.permute.xlu0 8
        %2193 = vperm.xlu0 %2192, %v1755
        %v2194 = vpop.permute.xlu0 %2193
        %v2196 = vmul.f32 %v2010, %v2190
        %v2197 = vmul.f32 %v2011, %v2190
        %v2198 = vmul.f32 %v2012, %v2190
        %v2199 = vmul.f32 %v2013, %v2194
        %v2200 = vmul.f32 %v2014, %v2194
        %v2201 = vmul.f32 %v2015, %v2194
        %2202 = vrot.lane.b32.xlu0 %v1860, 17
        %v2203 = vpop.permute.xlu0 %2202
        %2204 = vrot.lane.b32.xlu0 %v1861, 17
        %v2205 = vpop.permute.xlu0 %2204
        %v2206 = vsel %vm1577, %v2203, %v2205
        %v2210 = vmul.f32 %v2196, %v2203
        %v2211 = vmul.f32 %v2197, %v2206
        %v2212 = vmul.f32 %v2198, %v2205
        %v2213 = vmul.f32 %v2199, %v2203
        %v2214 = vmul.f32 %v2200, %v2206
        %v2215 = vmul.f32 %v2201, %v2205
        %2222 = vrot.lane.b32.xlu0 %v2210, 94
        %v2223 = vpop.permute.xlu0 %2222
        %2224 = vrot.lane.b32.xlu0 %v2211, 94
        %v2225 = vpop.permute.xlu0 %2224
        %2226 = vrot.lane.b32.xlu0 %v2212, 94
        %v2227 = vpop.permute.xlu0 %2226
        %2228 = vrot.lane.b32.xlu0 %v2213, 94
        %v2229 = vpop.permute.xlu0 %2228
        %2230 = vrot.lane.b32.xlu0 %v2214, 94
        %v2231 = vpop.permute.xlu0 %2230
        %2232 = vrot.lane.b32.xlu0 %v2215, 94
        %v2233 = vpop.permute.xlu0 %2232
        %v2234 = vsel %vm1606, %v2223, %v2225
        %v2235 = vsel %vm1606, %v2225, %v2227
        %v2236 = vsel %vm1606, %v2229, %v2231
        %v2237 = vsel %vm1606, %v2231, %v2233
        %v2244 = vadd.f32 %v2182, %v2223
        %v2245 = vadd.f32 %v2183, %v2234
        %v2246 = vadd.f32 %v2184, %v2235
        %v2247 = vadd.f32 %v2185, %v2229
        %v2248 = vadd.f32 %v2186, %v2236
        %v2249 = vadd.f32 %v2187, %v2237
        %v2250 = vld [vmem:[%s21] sm:$0xff]
        %v2251 = vld [vmem:[%s21 + $0x8] sm:$0xff]
        %2253 = vset.pattern.permute.xlu0 0
        %2254 = vperm.xlu0 %2253, %v2250
        %v2255 = vpop.permute.xlu0 %2254
        %2258 = vset.pattern.permute.xlu0 0
        %2259 = vperm.xlu0 %2258, %v2251
        %v2260 = vpop.permute.xlu0 %2259
        %v2262 = vadd.f32 %v2244, %v2255
        %v2263 = vadd.f32 %v2245, %v2255
        %v2264 = vadd.f32 %v2246, %v2255
        %v2265 = vadd.f32 %v2247, %v2260
        %v2266 = vadd.f32 %v2248, %v2260
        %v2267 = vadd.f32 %v2249, %v2260
        %v2268 = vmax.f32 %v2262, 0.0
        %v2269 = vmax.f32 %v2263, 0.0
        %v2270 = vmax.f32 %v2264, 0.0
        %v2271 = vmax.f32 %v2265, 0.0
        %v2272 = vmax.f32 %v2266, 0.0
        %v2273 = vmax.f32 %v2267, 0.0
        %v2274 = vld [vmem:[%s23] sm:$0xff]
        %v2275 = vld [vmem:[%s23 + $0x8] sm:$0xff]
        %v2276 = vld [vmem:[%s23 + $0x10] sm:$0xff]
        %v2277 = vld [vmem:[%s25] sm:$0xff]
        %v2278 = vld [vmem:[%s25 + $0x8] sm:$0xff]
        %v2279 = vld [vmem:[%s25 + $0x10] sm:$0xff]
        %2281 = vset.pattern.permute.xlu0 0
        %2282 = vperm.xlu0 %2281, %v2277
        %v2283 = vpop.permute.xlu0 %2282
        %2286 = vset.pattern.permute.xlu0 0
        %2287 = vperm.xlu0 %2286, %v2278
        %v2288 = vpop.permute.xlu0 %2287
        %2291 = vset.pattern.permute.xlu0 0
        %2292 = vperm.xlu0 %2291, %v2279
        %v2293 = vpop.permute.xlu0 %2292
        %2301 = vrot.lane.b32.xlu0 %v2268, 17
        %v2302 = vpop.permute.xlu0 %2301
        %2303 = vrot.lane.b32.xlu0 %v2269, 17
        %v2304 = vpop.permute.xlu0 %2303
        %2305 = vrot.lane.b32.xlu0 %v2270, 17
        %v2306 = vpop.permute.xlu0 %2305
        %2307 = vrot.lane.b32.xlu0 %v2271, 17
        %v2308 = vpop.permute.xlu0 %2307
        %2309 = vrot.lane.b32.xlu0 %v2272, 17
        %v2310 = vpop.permute.xlu0 %2309
        %2311 = vrot.lane.b32.xlu0 %v2273, 17
        %v2312 = vpop.permute.xlu0 %2311
        %v2313 = vsel %vm1577, %v2302, %v2304
        %v2314 = vsel %vm1577, %v2304, %v2306
        %v2315 = vsel %vm1577, %v2308, %v2310
        %v2316 = vsel %vm1577, %v2310, %v2312
        %v2322 = vsel %vm1687, %v2274, 0
        %v2325 = vsel %vm1687, %v2275, 0
        %v2328 = vsel %vm1687, %v2276, 0
        %2330 = vmatpush.msra.mxu0 0.0
        %2331 = vmatpush.msra.mxu0 0.0
        %2332 = vmatpush.msra.mxu0 0.0
        %2333 = vmatpush.msra.mxu0 0.0
        %2334 = vmatpush.msra.mxu0 0.0
        %2335 = vmatpush.msra.mxu0 0.0
        %2336 = vmatpush.msra.mxu0 0.0
        %2337 = vmatpush.msra.mxu0 0.0
        %2338 = vmatpush.msra.mxu0 0.0
        %2339 = vmatpush.msra.mxu0 0.0
        %2340 = vmatpush.msra.mxu0 0.0
        %2341 = vmatpush.msra.mxu0 0.0
        %2342 = vmatpush.msra.mxu0 0.0
        %2343 = vmatpush.msra.mxu0 0.0
        %2344 = vmatpush.msra.mxu0 %v2315
        %2345 = vmatpush.msra.mxu0 %v2313
        %2346 = vmatmul.f32.gmra.mxu0 %v2322
        %v2347 = vpop.f32.mrf.mxu0
        %v2348 = vadd.f32 %v2283, %v2347
        %2349 = vmatmul.f32.gmra.mxu0 %v2325
        %v2350 = vpop.f32.mrf.mxu0
        %v2351 = vadd.f32 %v2288, %v2350
        %2352 = vmatmul.f32.gmra.mxu0 %v2328
        %v2353 = vpop.f32.mrf.mxu0
        %v2354 = vadd.f32 %v2293, %v2353
        %2355 = vdwg.mxu0
        %2356 = vmatpush.msra.mxu0 0.0
        %2357 = vmatpush.msra.mxu0 0.0
        %2358 = vmatpush.msra.mxu0 0.0
        %2359 = vmatpush.msra.mxu0 0.0
        %2360 = vmatpush.msra.mxu0 0.0
        %2361 = vmatpush.msra.mxu0 0.0
        %2362 = vmatpush.msra.mxu0 0.0
        %2363 = vmatpush.msra.mxu0 0.0
        %2364 = vmatpush.msra.mxu0 0.0
        %2365 = vmatpush.msra.mxu0 0.0
        %2366 = vmatpush.msra.mxu0 0.0
        %2367 = vmatpush.msra.mxu0 0.0
        %2368 = vmatpush.msra.mxu0 0.0
        %2369 = vmatpush.msra.mxu0 0.0
        %2370 = vmatpush.msra.mxu0 %v2316
        %2371 = vmatpush.msra.mxu0 %v2314
        %2372 = vmatmul.f32.gmra.mxu0 %v2322
        %v2373 = vpop.f32.mrf.mxu0
        %v2374 = vadd.f32 %v2283, %v2373
        %2375 = vmatmul.f32.gmra.mxu0 %v2325
        %v2376 = vpop.f32.mrf.mxu0
        %v2377 = vadd.f32 %v2288, %v2376
        %2378 = vmatmul.f32.gmra.mxu0 %v2328
        %v2379 = vpop.f32.mrf.mxu0
        %v2380 = vadd.f32 %v2293, %v2379
        %2381 = vdwg.mxu0
        %v2382 = vmax.f32 %v2348, 0.0
        %v2383 = vmax.f32 %v2374, 0.0
        %v2384 = vmax.f32 %v2351, 0.0
        %v2385 = vmax.f32 %v2377, 0.0
        %v2386 = vmax.f32 %v2354, 0.0
        %v2387 = vmax.f32 %v2380, 0.0
        %2388 = vst [vmem:[#allocation2 + $0x8] sm:$0xff] %v2382
        %2389 = vst [vmem:[#allocation2 + $0x10] sm:$0xff] %v2383
        %2390 = vst [vmem:[#allocation2 + $0x28] sm:$0xff] %v2384
        %2391 = vst [vmem:[#allocation2 + $0x30] sm:$0xff] %v2385
        %2392 = vst [vmem:[#allocation2 + $0x48] sm:$0xff] %v2386
        %2393 = vst [vmem:[#allocation2 + $0x50] sm:$0xff] %v2387
        %v2394 = vld [vmem:[#allocation2] sm:$0xff]
        %v2395 = vld [vmem:[#allocation2 + $0x8] sm:$0xff]
        %v2396 = vld [vmem:[#allocation2 + $0x10] sm:$0xff]
        %v2397 = vld [vmem:[#allocation2 + $0x20] sm:$0xff]
        %v2398 = vld [vmem:[#allocation2 + $0x28] sm:$0xff]
        %v2399 = vld [vmem:[#allocation2 + $0x30] sm:$0xff]
        %v2400 = vld [vmem:[#allocation2 + $0x40] sm:$0xff]
        %v2401 = vld [vmem:[#allocation2 + $0x48] sm:$0xff]
        %v2402 = vld [vmem:[#allocation2 + $0x50] sm:$0xff]
        %v2403 = vld [vmem:[%s27] sm:$0xff]
        %v2404 = vld [vmem:[%s27 + $0x8] sm:$0xff]
        %v2405 = vld [vmem:[%s27 + $0x10] sm:$0xff]
        %2407 = vset.pattern.permute.xlu0 0
        %2408 = vperm.xlu0 %2407, %v2403
        %v2409 = vpop.permute.xlu0 %2408
        %2412 = vset.pattern.permute.xlu0 0
        %2413 = vperm.xlu0 %2412, %v2404
        %v2414 = vpop.permute.xlu0 %2413
        %2417 = vset.pattern.permute.xlu0 0
        %2418 = vperm.xlu0 %2417, %v2405
        %v2419 = vpop.permute.xlu0 %2418
        %v2421 = vmul.f32 %v2394, %v2409
        %v2422 = vmul.f32 %v2395, %v2409
        %v2423 = vmul.f32 %v2396, %v2409
        %v2424 = vmul.f32 %v2397, %v2414
        %v2425 = vmul.f32 %v2398, %v2414
        %v2426 = vmul.f32 %v2399, %v2414
        %v2427 = vmul.f32 %v2400, %v2419
        %v2428 = vmul.f32 %v2401, %v2419
        %v2429 = vmul.f32 %v2402, %v2419
        %v2430 = vld [vmem:[%s3] ss:$2 sm:$0x3]
        %v2432 = vperm.slane %v2430, 0
        %v2433 = vperm.slane %v2430, 1
        %2434 = vrot.lane.b32.xlu0 %v2432, 111
        %v2435 = vpop.permute.xlu0 %2434
        %2436 = vrot.lane.b32.xlu0 %v2433, 111
        %v2437 = vpop.permute.xlu0 %2436
        %v2438 = vsel %vm1140, %v2435, %v2437
        %v2442 = vmul.f32 %v2421, %v2435
        %v2443 = vmul.f32 %v2422, %v2438
        %v2444 = vmul.f32 %v2423, %v2437
        %v2445 = vmul.f32 %v2424, %v2435
        %v2446 = vmul.f32 %v2425, %v2438
        %v2447 = vmul.f32 %v2426, %v2437
        %v2448 = vmul.f32 %v2427, %v2435
        %v2449 = vmul.f32 %v2428, %v2438
        %v2450 = vmul.f32 %v2429, %v2437
        %v2451 = vadd.f32 %v2442, 0.0
        %v2452 = vadd.f32 %v2443, 0.0
        %v2453 = vadd.f32 %v2444, 0.0
        %v2454 = vadd.f32 %v2445, 0.0
        %v2455 = vadd.f32 %v2446, 0.0
        %v2456 = vadd.f32 %v2447, 0.0
        %v2457 = vadd.f32 %v2448, 0.0
        %v2458 = vadd.f32 %v2449, 0.0
        %v2459 = vadd.f32 %v2450, 0.0
        %2460 = vset.pattern.permute.xlu0 1
        %2461 = vperm.xlu0 %2460, %v2403
        %v2462 = vpop.permute.xlu0 %2461
        %2464 = vset.pattern.permute.xlu0 1
        %2465 = vperm.xlu0 %2464, %v2404
        %v2466 = vpop.permute.xlu0 %2465
        %2468 = vset.pattern.permute.xlu0 1
        %2469 = vperm.xlu0 %2468, %v2405
        %v2470 = vpop.permute.xlu0 %2469
        %v2472 = vmul.f32 %v2394, %v2462
        %v2473 = vmul.f32 %v2395, %v2462
        %v2474 = vmul.f32 %v2396, %v2462
        %v2475 = vmul.f32 %v2397, %v2466
        %v2476 = vmul.f32 %v2398, %v2466
        %v2477 = vmul.f32 %v2399, %v2466
        %v2478 = vmul.f32 %v2400, %v2470
        %v2479 = vmul.f32 %v2401, %v2470
        %v2480 = vmul.f32 %v2402, %v2470
        %2490 = vrot.lane.b32.xlu0 %v2472, 127
        %v2491 = vpop.permute.xlu0 %2490
        %2492 = vrot.lane.b32.xlu0 %v2473, 127
        %v2493 = vpop.permute.xlu0 %2492
        %2494 = vrot.lane.b32.xlu0 %v2474, 127
        %v2495 = vpop.permute.xlu0 %2494
        %2496 = vrot.lane.b32.xlu0 %v2475, 127
        %v2497 = vpop.permute.xlu0 %2496
        %2498 = vrot.lane.b32.xlu0 %v2476, 127
        %v2499 = vpop.permute.xlu0 %2498
        %2500 = vrot.lane.b32.xlu0 %v2477, 127
        %v2501 = vpop.permute.xlu0 %2500
        %2502 = vrot.lane.b32.xlu0 %v2478, 127
        %v2503 = vpop.permute.xlu0 %2502
        %2504 = vrot.lane.b32.xlu0 %v2479, 127
        %v2505 = vpop.permute.xlu0 %2504
        %2506 = vrot.lane.b32.xlu0 %v2480, 127
        %v2507 = vpop.permute.xlu0 %2506
        %v2508 = vsel %vm1189, %v2491, %v2493
        %v2509 = vsel %vm1189, %v2493, %v2495
        %v2510 = vsel %vm1189, %v2497, %v2499
        %v2511 = vsel %vm1189, %v2499, %v2501
        %v2512 = vsel %vm1189, %v2503, %v2505
        %v2513 = vsel %vm1189, %v2505, %v2507
        %v2523 = vadd.f32 %v2451, %v2508
        %v2524 = vadd.f32 %v2452, %v2509
        %v2525 = vadd.f32 %v2453, %v2495
        %v2526 = vadd.f32 %v2454, %v2510
        %v2527 = vadd.f32 %v2455, %v2511
        %v2528 = vadd.f32 %v2456, %v2501
        %v2529 = vadd.f32 %v2457, %v2512
        %v2530 = vadd.f32 %v2458, %v2513
        %v2531 = vadd.f32 %v2459, %v2507
        %2532 = vset.pattern.permute.xlu0 2
        %2533 = vperm.xlu0 %2532, %v2403
        %v2534 = vpop.permute.xlu0 %2533
        %2536 = vset.pattern.permute.xlu0 2
        %2537 = vperm.xlu0 %2536, %v2404
        %v2538 = vpop.permute.xlu0 %2537
        %2540 = vset.pattern.permute.xlu0 2
        %2541 = vperm.xlu0 %2540, %v2405
        %v2542 = vpop.permute.xlu0 %2541
        %v2544 = vmul.f32 %v2394, %v2534
        %v2545 = vmul.f32 %v2395, %v2534
        %v2546 = vmul.f32 %v2396, %v2534
        %v2547 = vmul.f32 %v2397, %v2538
        %v2548 = vmul.f32 %v2398, %v2538
        %v2549 = vmul.f32 %v2399, %v2538
        %v2550 = vmul.f32 %v2400, %v2542
        %v2551 = vmul.f32 %v2401, %v2542
        %v2552 = vmul.f32 %v2402, %v2542
        %v2553 = vld [vmem:[%s1220] ss:$2 sm:$0x3]
        %v2555 = vperm.slane %v2553, 0
        %v2556 = vperm.slane %v2553, 1
        %2557 = vrot.lane.b32.xlu0 %v2555, 113
        %v2558 = vpop.permute.xlu0 %2557
        %2559 = vrot.lane.b32.xlu0 %v2556, 113
        %v2560 = vpop.permute.xlu0 %2559
        %v2561 = vsel %vm1229, %v2558, %v2560
        %v2565 = vmul.f32 %v2544, %v2558
        %v2566 = vmul.f32 %v2545, %v2561
        %v2567 = vmul.f32 %v2546, %v2560
        %v2568 = vmul.f32 %v2547, %v2558
        %v2569 = vmul.f32 %v2548, %v2561
        %v2570 = vmul.f32 %v2549, %v2560
        %v2571 = vmul.f32 %v2550, %v2558
        %v2572 = vmul.f32 %v2551, %v2561
        %v2573 = vmul.f32 %v2552, %v2560
        %2583 = vrot.lane.b32.xlu0 %v2565, 126
        %v2584 = vpop.permute.xlu0 %2583
        %2585 = vrot.lane.b32.xlu0 %v2566, 126
        %v2586 = vpop.permute.xlu0 %2585
        %2587 = vrot.lane.b32.xlu0 %v2567, 126
        %v2588 = vpop.permute.xlu0 %2587
        %2589 = vrot.lane.b32.xlu0 %v2568, 126
        %v2590 = vpop.permute.xlu0 %2589
        %2591 = vrot.lane.b32.xlu0 %v2569, 126
        %v2592 = vpop.permute.xlu0 %2591
        %2593 = vrot.lane.b32.xlu0 %v2570, 126
        %v2594 = vpop.permute.xlu0 %2593
        %2595 = vrot.lane.b32.xlu0 %v2571, 126
        %v2596 = vpop.permute.xlu0 %2595
        %2597 = vrot.lane.b32.xlu0 %v2572, 126
        %v2598 = vpop.permute.xlu0 %2597
        %2599 = vrot.lane.b32.xlu0 %v2573, 126
        %v2600 = vpop.permute.xlu0 %2599
        %v2601 = vsel %vm1258, %v2584, %v2586
        %v2602 = vsel %vm1258, %v2586, %v2588
        %v2603 = vsel %vm1258, %v2590, %v2592
        %v2604 = vsel %vm1258, %v2592, %v2594
        %v2605 = vsel %vm1258, %v2596, %v2598
        %v2606 = vsel %vm1258, %v2598, %v2600
        %v2616 = vadd.f32 %v2523, %v2601
        %v2617 = vadd.f32 %v2524, %v2602
        %v2618 = vadd.f32 %v2525, %v2588
        %v2619 = vadd.f32 %v2526, %v2603
        %v2620 = vadd.f32 %v2527, %v2604
        %v2621 = vadd.f32 %v2528, %v2594
        %v2622 = vadd.f32 %v2529, %v2605
        %v2623 = vadd.f32 %v2530, %v2606
        %v2624 = vadd.f32 %v2531, %v2600
        %2625 = vset.pattern.permute.xlu0 3
        %2626 = vperm.xlu0 %2625, %v2403
        %v2627 = vpop.permute.xlu0 %2626
        %2629 = vset.pattern.permute.xlu0 3
        %2630 = vperm.xlu0 %2629, %v2404
        %v2631 = vpop.permute.xlu0 %2630
        %2633 = vset.pattern.permute.xlu0 3
        %2634 = vperm.xlu0 %2633, %v2405
        %v2635 = vpop.permute.xlu0 %2634
        %v2637 = vmul.f32 %v2394, %v2627
        %v2638 = vmul.f32 %v2395, %v2627
        %v2639 = vmul.f32 %v2396, %v2627
        %v2640 = vmul.f32 %v2397, %v2631
        %v2641 = vmul.f32 %v2398, %v2631
        %v2642 = vmul.f32 %v2399, %v2631
        %v2643 = vmul.f32 %v2400, %v2635
        %v2644 = vmul.f32 %v2401, %v2635
        %v2645 = vmul.f32 %v2402, %v2635
        %2646 = vrot.lane.b32.xlu0 %v2432, 127
        %v2647 = vpop.permute.xlu0 %2646
        %2648 = vrot.lane.b32.xlu0 %v2433, 127
        %v2649 = vpop.permute.xlu0 %2648
        %v2650 = vsel %vm1189, %v2647, %v2649
        %v2654 = vmul.f32 %v2637, %v2647
        %v2655 = vmul.f32 %v2638, %v2650
        %v2656 = vmul.f32 %v2639, %v2649
        %v2657 = vmul.f32 %v2640, %v2647
        %v2658 = vmul.f32 %v2641, %v2650
        %v2659 = vmul.f32 %v2642, %v2649
        %v2660 = vmul.f32 %v2643, %v2647
        %v2661 = vmul.f32 %v2644, %v2650
        %v2662 = vmul.f32 %v2645, %v2649
        %2672 = vrot.lane.b32.xlu0 %v2654, 112
        %v2673 = vpop.permute.xlu0 %2672
        %2674 = vrot.lane.b32.xlu0 %v2655, 112
        %v2675 = vpop.permute.xlu0 %2674
        %2676 = vrot.lane.b32.xlu0 %v2656, 112
        %v2677 = vpop.permute.xlu0 %2676
        %2678 = vrot.lane.b32.xlu0 %v2657, 112
        %v2679 = vpop.permute.xlu0 %2678
        %2680 = vrot.lane.b32.xlu0 %v2658, 112
        %v2681 = vpop.permute.xlu0 %2680
        %2682 = vrot.lane.b32.xlu0 %v2659, 112
        %v2683 = vpop.permute.xlu0 %2682
        %2684 = vrot.lane.b32.xlu0 %v2660, 112
        %v2685 = vpop.permute.xlu0 %2684
        %2686 = vrot.lane.b32.xlu0 %v2661, 112
        %v2687 = vpop.permute.xlu0 %2686
        %2688 = vrot.lane.b32.xlu0 %v2662, 112
        %v2689 = vpop.permute.xlu0 %2688
        %v2690 = vsel %vm1321, %v2673, %v2675
        %v2691 = vsel %vm1321, %v2675, %v2677
        %v2692 = vsel %vm1321, %v2679, %v2681
        %v2693 = vsel %vm1321, %v2681, %v2683
        %v2694 = vsel %vm1321, %v2685, %v2687
        %v2695 = vsel %vm1321, %v2687, %v2689
        %v2705 = vadd.f32 %v2616, %v2690
        %v2706 = vadd.f32 %v2617, %v2691
        %v2707 = vadd.f32 %v2618, %v2677
        %v2708 = vadd.f32 %v2619, %v2692
        %v2709 = vadd.f32 %v2620, %v2693
        %v2710 = vadd.f32 %v2621, %v2683
        %v2711 = vadd.f32 %v2622, %v2694
        %v2712 = vadd.f32 %v2623, %v2695
        %v2713 = vadd.f32 %v2624, %v2689
        %2714 = vset.pattern.permute.xlu0 4
        %2715 = vperm.xlu0 %2714, %v2403
        %v2716 = vpop.permute.xlu0 %2715
        %2718 = vset.pattern.permute.xlu0 4
        %2719 = vperm.xlu0 %2718, %v2404
        %v2720 = vpop.permute.xlu0 %2719
        %2722 = vset.pattern.permute.xlu0 4
        %2723 = vperm.xlu0 %2722, %v2405
        %v2724 = vpop.permute.xlu0 %2723
        %v2726 = vmul.f32 %v2395, %v2716
        %v2727 = vmul.f32 %v2396, %v2716
        %v2728 = vmul.f32 %v2398, %v2720
        %v2729 = vmul.f32 %v2399, %v2720
        %v2730 = vmul.f32 %v2401, %v2724
        %v2731 = vmul.f32 %v2402, %v2724
        %2738 = vrot.lane.b32.xlu0 %v2726, 111
        %v2739 = vpop.permute.xlu0 %2738
        %2740 = vrot.lane.b32.xlu0 %v2727, 111
        %v2741 = vpop.permute.xlu0 %2740
        %2742 = vrot.lane.b32.xlu0 %v2728, 111
        %v2743 = vpop.permute.xlu0 %2742
        %2744 = vrot.lane.b32.xlu0 %v2729, 111
        %v2745 = vpop.permute.xlu0 %2744
        %2746 = vrot.lane.b32.xlu0 %v2730, 111
        %v2747 = vpop.permute.xlu0 %2746
        %2748 = vrot.lane.b32.xlu0 %v2731, 111
        %v2749 = vpop.permute.xlu0 %2748
        %v2750 = vsel %vm1140, %v2739, %v2741
        %v2751 = vsel %vm1140, %v2743, %v2745
        %v2752 = vsel %vm1140, %v2747, %v2749
        %v2762 = vadd.f32 %v2705, %v2739
        %v2763 = vadd.f32 %v2706, %v2750
        %v2764 = vadd.f32 %v2707, %v2741
        %v2765 = vadd.f32 %v2708, %v2743
        %v2766 = vadd.f32 %v2709, %v2751
        %v2767 = vadd.f32 %v2710, %v2745
        %v2768 = vadd.f32 %v2711, %v2747
        %v2769 = vadd.f32 %v2712, %v2752
        %v2770 = vadd.f32 %v2713, %v2749
        %v2771 = vld [vmem:[#allocation2 + $0x8] sm:$0xff]
        %v2772 = vld [vmem:[#allocation2 + $0x10] sm:$0xff]
        %v2773 = vld [vmem:[#allocation2 + $0x18] sm:$0xff]
        %v2774 = vld [vmem:[#allocation2 + $0x28] sm:$0xff]
        %v2775 = vld [vmem:[#allocation2 + $0x30] sm:$0xff]
        %v2776 = vld [vmem:[#allocation2 + $0x38] sm:$0xff]
        %v2777 = vld [vmem:[#allocation2 + $0x48] sm:$0xff]
        %v2778 = vld [vmem:[#allocation2 + $0x50] sm:$0xff]
        %v2779 = vld [vmem:[#allocation2 + $0x58] sm:$0xff]
        %2780 = vset.pattern.permute.xlu0 5
        %2781 = vperm.xlu0 %2780, %v2403
        %v2782 = vpop.permute.xlu0 %2781
        %2784 = vset.pattern.permute.xlu0 5
        %2785 = vperm.xlu0 %2784, %v2404
        %v2786 = vpop.permute.xlu0 %2785
        %2788 = vset.pattern.permute.xlu0 5
        %2789 = vperm.xlu0 %2788, %v2405
        %v2790 = vpop.permute.xlu0 %2789
        %v2792 = vmul.f32 %v2771, %v2782
        %v2793 = vmul.f32 %v2772, %v2782
        %v2794 = vmul.f32 %v2773, %v2782
        %v2795 = vmul.f32 %v2774, %v2786
        %v2796 = vmul.f32 %v2775, %v2786
        %v2797 = vmul.f32 %v2776, %v2786
        %v2798 = vmul.f32 %v2777, %v2790
        %v2799 = vmul.f32 %v2778, %v2790
        %v2800 = vmul.f32 %v2779, %v2790
        %2801 = vrot.lane.b32.xlu0 %v2555, 1
        %v2802 = vpop.permute.xlu0 %2801
        %2803 = vrot.lane.b32.xlu0 %v2556, 1
        %v2804 = vpop.permute.xlu0 %2803
        %v2805 = vsel %vm1400, %v2802, %v2804
        %v2809 = vmul.f32 %v2792, %v2802
        %v2810 = vmul.f32 %v2793, %v2805
        %v2811 = vmul.f32 %v2794, %v2804
        %v2812 = vmul.f32 %v2795, %v2802
        %v2813 = vmul.f32 %v2796, %v2805
        %v2814 = vmul.f32 %v2797, %v2804
        %v2815 = vmul.f32 %v2798, %v2802
        %v2816 = vmul.f32 %v2799, %v2805
        %v2817 = vmul.f32 %v2800, %v2804
        %2827 = vrot.lane.b32.xlu0 %v2809, 110
        %v2828 = vpop.permute.xlu0 %2827
        %2829 = vrot.lane.b32.xlu0 %v2810, 110
        %v2830 = vpop.permute.xlu0 %2829
        %2831 = vrot.lane.b32.xlu0 %v2811, 110
        %v2832 = vpop.permute.xlu0 %2831
        %2833 = vrot.lane.b32.xlu0 %v2812, 110
        %v2834 = vpop.permute.xlu0 %2833
        %2835 = vrot.lane.b32.xlu0 %v2813, 110
        %v2836 = vpop.permute.xlu0 %2835
        %2837 = vrot.lane.b32.xlu0 %v2814, 110
        %v2838 = vpop.permute.xlu0 %2837
        %2839 = vrot.lane.b32.xlu0 %v2815, 110
        %v2840 = vpop.permute.xlu0 %2839
        %2841 = vrot.lane.b32.xlu0 %v2816, 110
        %v2842 = vpop.permute.xlu0 %2841
        %2843 = vrot.lane.b32.xlu0 %v2817, 110
        %v2844 = vpop.permute.xlu0 %2843
        %v2845 = vsel %vm1429, %v2828, %v2830
        %v2846 = vsel %vm1429, %v2830, %v2832
        %v2847 = vsel %vm1429, %v2834, %v2836
        %v2848 = vsel %vm1429, %v2836, %v2838
        %v2849 = vsel %vm1429, %v2840, %v2842
        %v2850 = vsel %vm1429, %v2842, %v2844
        %v2860 = vadd.f32 %v2762, %v2828
        %v2861 = vadd.f32 %v2763, %v2845
        %v2862 = vadd.f32 %v2764, %v2846
        %v2863 = vadd.f32 %v2765, %v2834
        %v2864 = vadd.f32 %v2766, %v2847
        %v2865 = vadd.f32 %v2767, %v2848
        %v2866 = vadd.f32 %v2768, %v2840
        %v2867 = vadd.f32 %v2769, %v2849
        %v2868 = vadd.f32 %v2770, %v2850
        %2869 = vset.pattern.permute.xlu0 6
        %2870 = vperm.xlu0 %2869, %v2403
        %v2871 = vpop.permute.xlu0 %2870
        %2873 = vset.pattern.permute.xlu0 6
        %2874 = vperm.xlu0 %2873, %v2404
        %v2875 = vpop.permute.xlu0 %2874
        %2877 = vset.pattern.permute.xlu0 6
        %2878 = vperm.xlu0 %2877, %v2405
        %v2879 = vpop.permute.xlu0 %2878
        %v2881 = vmul.f32 %v2771, %v2871
        %v2882 = vmul.f32 %v2772, %v2871
        %v2883 = vmul.f32 %v2773, %v2871
        %v2884 = vmul.f32 %v2774, %v2875
        %v2885 = vmul.f32 %v2775, %v2875
        %v2886 = vmul.f32 %v2776, %v2875
        %v2887 = vmul.f32 %v2777, %v2879
        %v2888 = vmul.f32 %v2778, %v2879
        %v2889 = vmul.f32 %v2779, %v2879
        %2890 = vrot.lane.b32.xlu0 %v2432, 15
        %v2891 = vpop.permute.xlu0 %2890
        %2892 = vrot.lane.b32.xlu0 %v2433, 15
        %v2893 = vpop.permute.xlu0 %2892
        %v2894 = vsel %vm1464, %v2891, %v2893
        %v2898 = vmul.f32 %v2881, %v2891
        %v2899 = vmul.f32 %v2882, %v2894
        %v2900 = vmul.f32 %v2883, %v2893
        %v2901 = vmul.f32 %v2884, %v2891
        %v2902 = vmul.f32 %v2885, %v2894
        %v2903 = vmul.f32 %v2886, %v2893
        %v2904 = vmul.f32 %v2887, %v2891
        %v2905 = vmul.f32 %v2888, %v2894
        %v2906 = vmul.f32 %v2889, %v2893
        %2916 = vrot.lane.b32.xlu0 %v2898, 96
        %v2917 = vpop.permute.xlu0 %2916
        %2918 = vrot.lane.b32.xlu0 %v2899, 96
        %v2919 = vpop.permute.xlu0 %2918
        %2920 = vrot.lane.b32.xlu0 %v2900, 96
        %v2921 = vpop.permute.xlu0 %2920
        %2922 = vrot.lane.b32.xlu0 %v2901, 96
        %v2923 = vpop.permute.xlu0 %2922
        %2924 = vrot.lane.b32.xlu0 %v2902, 96
        %v2925 = vpop.permute.xlu0 %2924
        %2926 = vrot.lane.b32.xlu0 %v2903, 96
        %v2927 = vpop.permute.xlu0 %2926
        %2928 = vrot.lane.b32.xlu0 %v2904, 96
        %v2929 = vpop.permute.xlu0 %2928
        %2930 = vrot.lane.b32.xlu0 %v2905, 96
        %v2931 = vpop.permute.xlu0 %2930
        %2932 = vrot.lane.b32.xlu0 %v2906, 96
        %v2933 = vpop.permute.xlu0 %2932
        %v2934 = vsel %vm1493, %v2917, %v2919
        %v2935 = vsel %vm1493, %v2919, %v2921
        %v2936 = vsel %vm1493, %v2923, %v2925
        %v2937 = vsel %vm1493, %v2925, %v2927
        %v2938 = vsel %vm1493, %v2929, %v2931
        %v2939 = vsel %vm1493, %v2931, %v2933
        %v2949 = vadd.f32 %v2860, %v2917
        %v2950 = vadd.f32 %v2861, %v2934
        %v2951 = vadd.f32 %v2862, %v2935
        %v2952 = vadd.f32 %v2863, %v2923
        %v2953 = vadd.f32 %v2864, %v2936
        %v2954 = vadd.f32 %v2865, %v2937
        %v2955 = vadd.f32 %v2866, %v2929
        %v2956 = vadd.f32 %v2867, %v2938
        %v2957 = vadd.f32 %v2868, %v2939
        %2958 = vset.pattern.permute.xlu0 7
        %2959 = vperm.xlu0 %2958, %v2403
        %v2960 = vpop.permute.xlu0 %2959
        %2962 = vset.pattern.permute.xlu0 7
        %2963 = vperm.xlu0 %2962, %v2404
        %v2964 = vpop.permute.xlu0 %2963
        %2966 = vset.pattern.permute.xlu0 7
        %2967 = vperm.xlu0 %2966, %v2405
        %v2968 = vpop.permute.xlu0 %2967
        %v2970 = vmul.f32 %v2771, %v2960
        %v2971 = vmul.f32 %v2772, %v2960
        %v2972 = vmul.f32 %v2773, %v2960
        %v2973 = vmul.f32 %v2774, %v2964
        %v2974 = vmul.f32 %v2775, %v2964
        %v2975 = vmul.f32 %v2776, %v2964
        %v2976 = vmul.f32 %v2777, %v2968
        %v2977 = vmul.f32 %v2778, %v2968
        %v2978 = vmul.f32 %v2779, %v2968
        %2988 = vrot.lane.b32.xlu0 %v2970, 95
        %v2989 = vpop.permute.xlu0 %2988
        %2990 = vrot.lane.b32.xlu0 %v2971, 95
        %v2991 = vpop.permute.xlu0 %2990
        %2992 = vrot.lane.b32.xlu0 %v2972, 95
        %v2993 = vpop.permute.xlu0 %2992
        %2994 = vrot.lane.b32.xlu0 %v2973, 95
        %v2995 = vpop.permute.xlu0 %2994
        %2996 = vrot.lane.b32.xlu0 %v2974, 95
        %v2997 = vpop.permute.xlu0 %2996
        %2998 = vrot.lane.b32.xlu0 %v2975, 95
        %v2999 = vpop.permute.xlu0 %2998
        %3000 = vrot.lane.b32.xlu0 %v2976, 95
        %v3001 = vpop.permute.xlu0 %3000
        %3002 = vrot.lane.b32.xlu0 %v2977, 95
        %v3003 = vpop.permute.xlu0 %3002
        %3004 = vrot.lane.b32.xlu0 %v2978, 95
        %v3005 = vpop.permute.xlu0 %3004
        %v3006 = vsel %vm1542, %v2989, %v2991
        %v3007 = vsel %vm1542, %v2991, %v2993
        %v3008 = vsel %vm1542, %v2995, %v2997
        %v3009 = vsel %vm1542, %v2997, %v2999
        %v3010 = vsel %vm1542, %v3001, %v3003
        %v3011 = vsel %vm1542, %v3003, %v3005
        %v3021 = vadd.f32 %v2949, %v2989
        %v3022 = vadd.f32 %v2950, %v3006
        %v3023 = vadd.f32 %v2951, %v3007
        %v3024 = vadd.f32 %v2952, %v2995
        %v3025 = vadd.f32 %v2953, %v3008
        %v3026 = vadd.f32 %v2954, %v3009
        %v3027 = vadd.f32 %v2955, %v3001
        %v3028 = vadd.f32 %v2956, %v3010
        %v3029 = vadd.f32 %v2957, %v3011
        %3030 = vset.pattern.permute.xlu0 8
        %3031 = vperm.xlu0 %3030, %v2403
        %v3032 = vpop.permute.xlu0 %3031
        %3034 = vset.pattern.permute.xlu0 8
        %3035 = vperm.xlu0 %3034, %v2404
        %v3036 = vpop.permute.xlu0 %3035
        %3038 = vset.pattern.permute.xlu0 8
        %3039 = vperm.xlu0 %3038, %v2405
        %v3040 = vpop.permute.xlu0 %3039
        %v3042 = vmul.f32 %v2771, %v3032
        %v3043 = vmul.f32 %v2772, %v3032
        %v3044 = vmul.f32 %v2773, %v3032
        %v3045 = vmul.f32 %v2774, %v3036
        %v3046 = vmul.f32 %v2775, %v3036
        %v3047 = vmul.f32 %v2776, %v3036
        %v3048 = vmul.f32 %v2777, %v3040
        %v3049 = vmul.f32 %v2778, %v3040
        %v3050 = vmul.f32 %v2779, %v3040
        %3051 = vrot.lane.b32.xlu0 %v2555, 17
        %v3052 = vpop.permute.xlu0 %3051
        %3053 = vrot.lane.b32.xlu0 %v2556, 17
        %v3054 = vpop.permute.xlu0 %3053
        %v3055 = vsel %vm1577, %v3052, %v3054
        %v3059 = vmul.f32 %v3042, %v3052
        %v3060 = vmul.f32 %v3043, %v3055
        %v3061 = vmul.f32 %v3044, %v3054
        %v3062 = vmul.f32 %v3045, %v3052
        %v3063 = vmul.f32 %v3046, %v3055
        %v3064 = vmul.f32 %v3047, %v3054
        %v3065 = vmul.f32 %v3048, %v3052
        %v3066 = vmul.f32 %v3049, %v3055
        %v3067 = vmul.f32 %v3050, %v3054
        %3077 = vrot.lane.b32.xlu0 %v3059, 94
        %v3078 = vpop.permute.xlu0 %3077
        %3079 = vrot.lane.b32.xlu0 %v3060, 94
        %v3080 = vpop.permute.xlu0 %3079
        %3081 = vrot.lane.b32.xlu0 %v3061, 94
        %v3082 = vpop.permute.xlu0 %3081
        %3083 = vrot.lane.b32.xlu0 %v3062, 94
        %v3084 = vpop.permute.xlu0 %3083
        %3085 = vrot.lane.b32.xlu0 %v3063, 94
        %v3086 = vpop.permute.xlu0 %3085
        %3087 = vrot.lane.b32.xlu0 %v3064, 94
        %v3088 = vpop.permute.xlu0 %3087
        %3089 = vrot.lane.b32.xlu0 %v3065, 94
        %v3090 = vpop.permute.xlu0 %3089
        %3091 = vrot.lane.b32.xlu0 %v3066, 94
        %v3092 = vpop.permute.xlu0 %3091
        %3093 = vrot.lane.b32.xlu0 %v3067, 94
        %v3094 = vpop.permute.xlu0 %3093
        %v3095 = vsel %vm1606, %v3078, %v3080
        %v3096 = vsel %vm1606, %v3080, %v3082
        %v3097 = vsel %vm1606, %v3084, %v3086
        %v3098 = vsel %vm1606, %v3086, %v3088
        %v3099 = vsel %vm1606, %v3090, %v3092
        %v3100 = vsel %vm1606, %v3092, %v3094
        %v3110 = vadd.f32 %v3021, %v3078
        %v3111 = vadd.f32 %v3022, %v3095
        %v3112 = vadd.f32 %v3023, %v3096
        %v3113 = vadd.f32 %v3024, %v3084
        %v3114 = vadd.f32 %v3025, %v3097
        %v3115 = vadd.f32 %v3026, %v3098
        %v3116 = vadd.f32 %v3027, %v3090
        %v3117 = vadd.f32 %v3028, %v3099
        %v3118 = vadd.f32 %v3029, %v3100
        %v3119 = vld [vmem:[%s29] sm:$0xff]
        %v3120 = vld [vmem:[%s29 + $0x8] sm:$0xff]
        %v3121 = vld [vmem:[%s29 + $0x10] sm:$0xff]
        %3123 = vset.pattern.permute.xlu0 0
        %3124 = vperm.xlu0 %3123, %v3119
        %v3125 = vpop.permute.xlu0 %3124
        %3128 = vset.pattern.permute.xlu0 0
        %3129 = vperm.xlu0 %3128, %v3120
        %v3130 = vpop.permute.xlu0 %3129
        %3133 = vset.pattern.permute.xlu0 0
        %3134 = vperm.xlu0 %3133, %v3121
        %v3135 = vpop.permute.xlu0 %3134
        %v3137 = vadd.f32 %v3110, %v3125
        %v3138 = vadd.f32 %v3111, %v3125
        %v3139 = vadd.f32 %v3112, %v3125
        %v3140 = vadd.f32 %v3113, %v3130
        %v3141 = vadd.f32 %v3114, %v3130
        %v3142 = vadd.f32 %v3115, %v3130
        %v3143 = vadd.f32 %v3116, %v3135
        %v3144 = vadd.f32 %v3117, %v3135
        %v3145 = vadd.f32 %v3118, %v3135
        %v3146 = vadd.f32 %v3137, 3.0
        %v3147 = vadd.f32 %v3138, 3.0
        %v3148 = vadd.f32 %v3139, 3.0
        %v3149 = vadd.f32 %v3140, 3.0
        %v3150 = vadd.f32 %v3141, 3.0
        %v3151 = vadd.f32 %v3142, 3.0
        %v3152 = vadd.f32 %v3143, 3.0
        %v3153 = vadd.f32 %v3144, 3.0
        %v3154 = vadd.f32 %v3145, 3.0
        %v3155 = vmax.f32 %v3146, 0.0
        %v3156 = vmax.f32 %v3147, 0.0
        %v3157 = vmax.f32 %v3148, 0.0
        %v3158 = vmax.f32 %v3149, 0.0
        %v3159 = vmax.f32 %v3150, 0.0
        %v3160 = vmax.f32 %v3151, 0.0
        %v3161 = vmax.f32 %v3152, 0.0
        %v3162 = vmax.f32 %v3153, 0.0
        %v3163 = vmax.f32 %v3154, 0.0
        %v3164 = vmin.f32 %v3155, 6.0
        %v3165 = vmin.f32 %v3156, 6.0
        %v3166 = vmin.f32 %v3157, 6.0
        %v3167 = vmin.f32 %v3158, 6.0
        %v3168 = vmin.f32 %v3159, 6.0
        %v3169 = vmin.f32 %v3160, 6.0
        %v3170 = vmin.f32 %v3161, 6.0
        %v3171 = vmin.f32 %v3162, 6.0
        %v3172 = vmin.f32 %v3163, 6.0
        %v3173 = vmul.f32 %v3137, %v3164
        %v3174 = vmul.f32 %v3138, %v3165
        %v3175 = vmul.f32 %v3139, %v3166
        %v3176 = vmul.f32 %v3140, %v3167
        %v3177 = vmul.f32 %v3141, %v3168
        %v3178 = vmul.f32 %v3142, %v3169
        %v3179 = vmul.f32 %v3143, %v3170
        %v3180 = vmul.f32 %v3144, %v3171
        %v3181 = vmul.f32 %v3145, %v3172
        %v3182 = vmul.f32 %v3173, 0.16666667
        %v3183 = vmul.f32 %v3174, 0.16666667
        %v3184 = vmul.f32 %v3175, 0.16666667
        %v3185 = vmul.f32 %v3176, 0.16666667
        %v3186 = vmul.f32 %v3177, 0.16666667
        %v3187 = vmul.f32 %v3178, 0.16666667
        %v3188 = vmul.f32 %v3179, 0.16666667
        %v3189 = vmul.f32 %v3180, 0.16666667
        %v3190 = vmul.f32 %v3181, 0.16666667
        %v3191 = vld [vmem:[%s31] sm:$0xff]
        %v3192 = vld [vmem:[%s31 + $0x8] sm:$0xff]
        %v3193 = vld [vmem:[%s31 + $0x10] sm:$0xff]
        %v3194 = vld [vmem:[%s33] sm:$0xff]
        %v3195 = vld [vmem:[%s33 + $0x8] sm:$0xff]
        %v3196 = vld [vmem:[%s33 + $0x10] sm:$0xff]
        %3198 = vset.pattern.permute.xlu0 0
        %3199 = vperm.xlu0 %3198, %v3194
        %v3200 = vpop.permute.xlu0 %3199
        %3203 = vset.pattern.permute.xlu0 0
        %3204 = vperm.xlu0 %3203, %v3195
        %v3205 = vpop.permute.xlu0 %3204
        %3208 = vset.pattern.permute.xlu0 0
        %3209 = vperm.xlu0 %3208, %v3196
        %v3210 = vpop.permute.xlu0 %3209
        %3221 = vrot.lane.b32.xlu0 %v3182, 17
        %v3222 = vpop.permute.xlu0 %3221
        %3223 = vrot.lane.b32.xlu0 %v3183, 17
        %v3224 = vpop.permute.xlu0 %3223
        %3225 = vrot.lane.b32.xlu0 %v3184, 17
        %v3226 = vpop.permute.xlu0 %3225
        %3227 = vrot.lane.b32.xlu0 %v3185, 17
        %v3228 = vpop.permute.xlu0 %3227
        %3229 = vrot.lane.b32.xlu0 %v3186, 17
        %v3230 = vpop.permute.xlu0 %3229
        %3231 = vrot.lane.b32.xlu0 %v3187, 17
        %v3232 = vpop.permute.xlu0 %3231
        %3233 = vrot.lane.b32.xlu0 %v3188, 17
        %v3234 = vpop.permute.xlu0 %3233
        %3235 = vrot.lane.b32.xlu0 %v3189, 17
        %v3236 = vpop.permute.xlu0 %3235
        %3237 = vrot.lane.b32.xlu0 %v3190, 17
        %v3238 = vpop.permute.xlu0 %3237
        %v3239 = vsel %vm1577, %v3222, %v3224
        %v3240 = vsel %vm1577, %v3224, %v3226
        %v3241 = vsel %vm1577, %v3228, %v3230
        %v3242 = vsel %vm1577, %v3230, %v3232
        %v3243 = vsel %vm1577, %v3234, %v3236
        %v3244 = vsel %vm1577, %v3236, %v3238
        %vm3251 = vcmask 195584
        %v3253 = vsel %vm3251, %v3191, 0
        %v3256 = vsel %vm3251, %v3192, 0
        %v3259 = vsel %vm3251, %v3193, 0
        %3261 = vmatpush.msra.mxu0 0.0
        %3262 = vmatpush.msra.mxu0 0.0
        %3263 = vmatpush.msra.mxu0 0.0
        %3264 = vmatpush.msra.mxu0 0.0
        %3265 = vmatpush.msra.mxu0 0.0
        %3266 = vmatpush.msra.mxu0 0.0
        %3267 = vmatpush.msra.mxu0 0.0
        %3268 = vmatpush.msra.mxu0 0.0
        %3269 = vmatpush.msra.mxu0 0.0
        %3270 = vmatpush.msra.mxu0 0.0
        %3271 = vmatpush.msra.mxu0 0.0
        %3272 = vmatpush.msra.mxu0 0.0
        %3273 = vmatpush.msra.mxu0 0.0
        %3274 = vmatpush.msra.mxu0 %v3243
        %3275 = vmatpush.msra.mxu0 %v3241
        %3276 = vmatpush.msra.mxu0 %v3239
        %3277 = vmatmul.f32.gmra.mxu0 %v3253
        %v3278 = vpop.f32.mrf.mxu0
        %v3279 = vadd.f32 %v3200, %v3278
        %3280 = vmatmul.f32.gmra.mxu0 %v3256
        %v3281 = vpop.f32.mrf.mxu0
        %v3282 = vadd.f32 %v3205, %v3281
        %3283 = vmatmul.f32.gmra.mxu0 %v3259
        %v3284 = vpop.f32.mrf.mxu0
        %v3285 = vadd.f32 %v3210, %v3284
        %3286 = vdwg.mxu0
        %3287 = vmatpush.msra.mxu0 0.0
        %3288 = vmatpush.msra.mxu0 0.0
        %3289 = vmatpush.msra.mxu0 0.0
        %3290 = vmatpush.msra.mxu0 0.0
        %3291 = vmatpush.msra.mxu0 0.0
        %3292 = vmatpush.msra.mxu0 0.0
        %3293 = vmatpush.msra.mxu0 0.0
        %3294 = vmatpush.msra.mxu0 0.0
        %3295 = vmatpush.msra.mxu0 0.0
        %3296 = vmatpush.msra.mxu0 0.0
        %3297 = vmatpush.msra.mxu0 0.0
        %3298 = vmatpush.msra.mxu0 0.0
        %3299 = vmatpush.msra.mxu0 0.0
        %3300 = vmatpush.msra.mxu0 %v3244
        %3301 = vmatpush.msra.mxu0 %v3242
        %3302 = vmatpush.msra.mxu0 %v3240
        %3303 = vmatmul.f32.gmra.mxu0 %v3253
        %v3304 = vpop.f32.mrf.mxu0
        %v3305 = vadd.f32 %v3200, %v3304
        %3306 = vmatmul.f32.gmra.mxu0 %v3256
        %v3307 = vpop.f32.mrf.mxu0
        %v3308 = vadd.f32 %v3205, %v3307
        %3309 = vmatmul.f32.gmra.mxu0 %v3259
        %v3310 = vpop.f32.mrf.mxu0
        %v3311 = vadd.f32 %v3210, %v3310
        %3312 = vdwg.mxu0
        %v3313 = vadd.f32 %v3279, 3.0
        %v3314 = vadd.f32 %v3305, 3.0
        %v3315 = vadd.f32 %v3282, 3.0
        %v3316 = vadd.f32 %v3308, 3.0
        %v3317 = vadd.f32 %v3285, 3.0
        %v3318 = vadd.f32 %v3311, 3.0
        %v3319 = vmax.f32 %v3313, 0.0
        %v3320 = vmax.f32 %v3314, 0.0
        %v3321 = vmax.f32 %v3315, 0.0
        %v3322 = vmax.f32 %v3316, 0.0
        %v3323 = vmax.f32 %v3317, 0.0
        %v3324 = vmax.f32 %v3318, 0.0
        %v3325 = vmin.f32 %v3319, 6.0
        %v3326 = vmin.f32 %v3320, 6.0
        %v3327 = vmin.f32 %v3321, 6.0
        %v3328 = vmin.f32 %v3322, 6.0
        %v3329 = vmin.f32 %v3323, 6.0
        %v3330 = vmin.f32 %v3324, 6.0
        %v3331 = vmul.f32 %v3279, %v3325
        %v3332 = vmul.f32 %v3305, %v3326
        %v3333 = vmul.f32 %v3282, %v3327
        %v3334 = vmul.f32 %v3308, %v3328
        %v3335 = vmul.f32 %v3285, %v3329
        %v3336 = vmul.f32 %v3311, %v3330
        %v3337 = vmul.f32 %v3331, 0.16666667
        %v3338 = vmul.f32 %v3332, 0.16666667
        %v3339 = vmul.f32 %v3333, 0.16666667
        %v3340 = vmul.f32 %v3334, 0.16666667
        %v3341 = vmul.f32 %v3335, 0.16666667
        %v3342 = vmul.f32 %v3336, 0.16666667
        %3343 = vst [vmem:[#allocation2 + $0x8] sm:$0xff] %v3337
        %3344 = vst [vmem:[#allocation2 + $0x10] sm:$0xff] %v3338
        %3345 = vst [vmem:[#allocation2 + $0x28] sm:$0xff] %v3339
        %3346 = vst [vmem:[#allocation2 + $0x30] sm:$0xff] %v3340
        %3347 = vst [vmem:[#allocation2 + $0x48] sm:$0xff] %v3341
        %3348 = vst [vmem:[#allocation2 + $0x50] sm:$0xff] %v3342
        %v3349 = vld [vmem:[#allocation2] sm:$0xff]
        %v3350 = vld [vmem:[#allocation2 + $0x8] sm:$0xff]
        %v3351 = vld [vmem:[#allocation2 + $0x10] sm:$0xff]
        %v3352 = vld [vmem:[#allocation2 + $0x20] sm:$0xff]
        %v3353 = vld [vmem:[#allocation2 + $0x28] sm:$0xff]
        %v3354 = vld [vmem:[#allocation2 + $0x30] sm:$0xff]
        %v3355 = vld [vmem:[#allocation2 + $0x40] sm:$0xff]
        %v3356 = vld [vmem:[#allocation2 + $0x48] sm:$0xff]
        %v3357 = vld [vmem:[#allocation2 + $0x50] sm:$0xff]
        %v3358 = vld [vmem:[%s35] sm:$0xff]
        %v3359 = vld [vmem:[%s35 + $0x8] sm:$0xff]
        %v3360 = vld [vmem:[%s35 + $0x10] sm:$0xff]
        %3362 = vset.pattern.permute.xlu0 0
        %3363 = vperm.xlu0 %3362, %v3358
        %v3364 = vpop.permute.xlu0 %3363
        %3367 = vset.pattern.permute.xlu0 0
        %3368 = vperm.xlu0 %3367, %v3359
        %v3369 = vpop.permute.xlu0 %3368
        %3372 = vset.pattern.permute.xlu0 0
        %3373 = vperm.xlu0 %3372, %v3360
        %v3374 = vpop.permute.xlu0 %3373
        %v3376 = vmul.f32 %v3349, %v3364
        %v3377 = vmul.f32 %v3350, %v3364
        %v3378 = vmul.f32 %v3351, %v3364
        %v3379 = vmul.f32 %v3352, %v3369
        %v3380 = vmul.f32 %v3353, %v3369
        %v3381 = vmul.f32 %v3354, %v3369
        %v3382 = vmul.f32 %v3355, %v3374
        %v3383 = vmul.f32 %v3356, %v3374
        %v3384 = vmul.f32 %v3357, %v3374
        %v3385 = vld [vmem:[%s3] ss:$2 sm:$0x3]
        %v3387 = vperm.slane %v3385, 0
        %v3388 = vperm.slane %v3385, 1
        %3389 = vrot.lane.b32.xlu0 %v3387, 111
        %v3390 = vpop.permute.xlu0 %3389
        %3391 = vrot.lane.b32.xlu0 %v3388, 111
        %v3392 = vpop.permute.xlu0 %3391
        %v3393 = vsel %vm1140, %v3390, %v3392
        %v3397 = vmul.f32 %v3376, %v3390
        %v3398 = vmul.f32 %v3377, %v3393
        %v3399 = vmul.f32 %v3378, %v3392
        %v3400 = vmul.f32 %v3379, %v3390
        %v3401 = vmul.f32 %v3380, %v3393
        %v3402 = vmul.f32 %v3381, %v3392
        %v3403 = vmul.f32 %v3382, %v3390
        %v3404 = vmul.f32 %v3383, %v3393
        %v3405 = vmul.f32 %v3384, %v3392
        %v3406 = vadd.f32 %v3397, 0.0
        %v3407 = vadd.f32 %v3398, 0.0
        %v3408 = vadd.f32 %v3399, 0.0
        %v3409 = vadd.f32 %v3400, 0.0
        %v3410 = vadd.f32 %v3401, 0.0
        %v3411 = vadd.f32 %v3402, 0.0
        %v3412 = vadd.f32 %v3403, 0.0
        %v3413 = vadd.f32 %v3404, 0.0
        %v3414 = vadd.f32 %v3405, 0.0
        %3415 = vset.pattern.permute.xlu0 1
        %3416 = vperm.xlu0 %3415, %v3358
        %v3417 = vpop.permute.xlu0 %3416
        %3419 = vset.pattern.permute.xlu0 1
        %3420 = vperm.xlu0 %3419, %v3359
        %v3421 = vpop.permute.xlu0 %3420
        %3423 = vset.pattern.permute.xlu0 1
        %3424 = vperm.xlu0 %3423, %v3360
        %v3425 = vpop.permute.xlu0 %3424
        %v3427 = vmul.f32 %v3349, %v3417
        %v3428 = vmul.f32 %v3350, %v3417
        %v3429 = vmul.f32 %v3351, %v3417
        %v3430 = vmul.f32 %v3352, %v3421
        %v3431 = vmul.f32 %v3353, %v3421
        %v3432 = vmul.f32 %v3354, %v3421
        %v3433 = vmul.f32 %v3355, %v3425
        %v3434 = vmul.f32 %v3356, %v3425
        %v3435 = vmul.f32 %v3357, %v3425
        %3445 = vrot.lane.b32.xlu0 %v3427, 127
        %v3446 = vpop.permute.xlu0 %3445
        %3447 = vrot.lane.b32.xlu0 %v3428, 127
        %v3448 = vpop.permute.xlu0 %3447
        %3449 = vrot.lane.b32.xlu0 %v3429, 127
        %v3450 = vpop.permute.xlu0 %3449
        %3451 = vrot.lane.b32.xlu0 %v3430, 127
        %v3452 = vpop.permute.xlu0 %3451
        %3453 = vrot.lane.b32.xlu0 %v3431, 127
        %v3454 = vpop.permute.xlu0 %3453
        %3455 = vrot.lane.b32.xlu0 %v3432, 127
        %v3456 = vpop.permute.xlu0 %3455
        %3457 = vrot.lane.b32.xlu0 %v3433, 127
        %v3458 = vpop.permute.xlu0 %3457
        %3459 = vrot.lane.b32.xlu0 %v3434, 127
        %v3460 = vpop.permute.xlu0 %3459
        %3461 = vrot.lane.b32.xlu0 %v3435, 127
        %v3462 = vpop.permute.xlu0 %3461
        %v3463 = vsel %vm1189, %v3446, %v3448
        %v3464 = vsel %vm1189, %v3448, %v3450
        %v3465 = vsel %vm1189, %v3452, %v3454
        %v3466 = vsel %vm1189, %v3454, %v3456
        %v3467 = vsel %vm1189, %v3458, %v3460
        %v3468 = vsel %vm1189, %v3460, %v3462
        %v3478 = vadd.f32 %v3406, %v3463
        %v3479 = vadd.f32 %v3407, %v3464
        %v3480 = vadd.f32 %v3408, %v3450
        %v3481 = vadd.f32 %v3409, %v3465
        %v3482 = vadd.f32 %v3410, %v3466
        %v3483 = vadd.f32 %v3411, %v3456
        %v3484 = vadd.f32 %v3412, %v3467
        %v3485 = vadd.f32 %v3413, %v3468
        %v3486 = vadd.f32 %v3414, %v3462
        %3487 = vset.pattern.permute.xlu0 2
        %3488 = vperm.xlu0 %3487, %v3358
        %v3489 = vpop.permute.xlu0 %3488
        %3491 = vset.pattern.permute.xlu0 2
        %3492 = vperm.xlu0 %3491, %v3359
        %v3493 = vpop.permute.xlu0 %3492
        %3495 = vset.pattern.permute.xlu0 2
        %3496 = vperm.xlu0 %3495, %v3360
        %v3497 = vpop.permute.xlu0 %3496
        %v3499 = vmul.f32 %v3349, %v3489
        %v3500 = vmul.f32 %v3350, %v3489
        %v3501 = vmul.f32 %v3351, %v3489
        %v3502 = vmul.f32 %v3352, %v3493
        %v3503 = vmul.f32 %v3353, %v3493
        %v3504 = vmul.f32 %v3354, %v3493
        %v3505 = vmul.f32 %v3355, %v3497
        %v3506 = vmul.f32 %v3356, %v3497
        %v3507 = vmul.f32 %v3357, %v3497
        %v3508 = vld [vmem:[%s1220] ss:$2 sm:$0x3]
        %v3510 = vperm.slane %v3508, 0
        %v3511 = vperm.slane %v3508, 1
        %3512 = vrot.lane.b32.xlu0 %v3510, 113
        %v3513 = vpop.permute.xlu0 %3512
        %3514 = vrot.lane.b32.xlu0 %v3511, 113
        %v3515 = vpop.permute.xlu0 %3514
        %v3516 = vsel %vm1229, %v3513, %v3515
        %v3520 = vmul.f32 %v3499, %v3513
        %v3521 = vmul.f32 %v3500, %v3516
        %v3522 = vmul.f32 %v3501, %v3515
        %v3523 = vmul.f32 %v3502, %v3513
        %v3524 = vmul.f32 %v3503, %v3516
        %v3525 = vmul.f32 %v3504, %v3515
        %v3526 = vmul.f32 %v3505, %v3513
        %v3527 = vmul.f32 %v3506, %v3516
        %v3528 = vmul.f32 %v3507, %v3515
        %3538 = vrot.lane.b32.xlu0 %v3520, 126
        %v3539 = vpop.permute.xlu0 %3538
        %3540 = vrot.lane.b32.xlu0 %v3521, 126
        %v3541 = vpop.permute.xlu0 %3540
        %3542 = vrot.lane.b32.xlu0 %v3522, 126
        %v3543 = vpop.permute.xlu0 %3542
        %3544 = vrot.lane.b32.xlu0 %v3523, 126
        %v3545 = vpop.permute.xlu0 %3544
        %3546 = vrot.lane.b32.xlu0 %v3524, 126
        %v3547 = vpop.permute.xlu0 %3546
        %3548 = vrot.lane.b32.xlu0 %v3525, 126
        %v3549 = vpop.permute.xlu0 %3548
        %3550 = vrot.lane.b32.xlu0 %v3526, 126
        %v3551 = vpop.permute.xlu0 %3550
        %3552 = vrot.lane.b32.xlu0 %v3527, 126
        %v3553 = vpop.permute.xlu0 %3552
        %3554 = vrot.lane.b32.xlu0 %v3528, 126
        %v3555 = vpop.permute.xlu0 %3554
        %v3556 = vsel %vm1258, %v3539, %v3541
        %v3557 = vsel %vm1258, %v3541, %v3543
        %v3558 = vsel %vm1258, %v3545, %v3547
        %v3559 = vsel %vm1258, %v3547, %v3549
        %v3560 = vsel %vm1258, %v3551, %v3553
        %v3561 = vsel %vm1258, %v3553, %v3555
        %v3571 = vadd.f32 %v3478, %v3556
        %v3572 = vadd.f32 %v3479, %v3557
        %v3573 = vadd.f32 %v3480, %v3543
        %v3574 = vadd.f32 %v3481, %v3558
        %v3575 = vadd.f32 %v3482, %v3559
        %v3576 = vadd.f32 %v3483, %v3549
        %v3577 = vadd.f32 %v3484, %v3560
        %v3578 = vadd.f32 %v3485, %v3561
        %v3579 = vadd.f32 %v3486, %v3555
        %3580 = vset.pattern.permute.xlu0 3
        %3581 = vperm.xlu0 %3580, %v3358
        %v3582 = vpop.permute.xlu0 %3581
        %3584 = vset.pattern.permute.xlu0 3
        %3585 = vperm.xlu0 %3584, %v3359
        %v3586 = vpop.permute.xlu0 %3585
        %3588 = vset.pattern.permute.xlu0 3
        %3589 = vperm.xlu0 %3588, %v3360
        %v3590 = vpop.permute.xlu0 %3589
        %v3592 = vmul.f32 %v3349, %v3582
        %v3593 = vmul.f32 %v3350, %v3582
        %v3594 = vmul.f32 %v3351, %v3582
        %v3595 = vmul.f32 %v3352, %v3586
        %v3596 = vmul.f32 %v3353, %v3586
        %v3597 = vmul.f32 %v3354, %v3586
        %v3598 = vmul.f32 %v3355, %v3590
        %v3599 = vmul.f32 %v3356, %v3590
        %v3600 = vmul.f32 %v3357, %v3590
        %3601 = vrot.lane.b32.xlu0 %v3387, 127
        %v3602 = vpop.permute.xlu0 %3601
        %3603 = vrot.lane.b32.xlu0 %v3388, 127
        %v3604 = vpop.permute.xlu0 %3603
        %v3605 = vsel %vm1189, %v3602, %v3604
        %v3609 = vmul.f32 %v3592, %v3602
        %v3610 = vmul.f32 %v3593, %v3605
        %v3611 = vmul.f32 %v3594, %v3604
        %v3612 = vmul.f32 %v3595, %v3602
        %v3613 = vmul.f32 %v3596, %v3605
        %v3614 = vmul.f32 %v3597, %v3604
        %v3615 = vmul.f32 %v3598, %v3602
        %v3616 = vmul.f32 %v3599, %v3605
        %v3617 = vmul.f32 %v3600, %v3604
        %3627 = vrot.lane.b32.xlu0 %v3609, 112
        %v3628 = vpop.permute.xlu0 %3627
        %3629 = vrot.lane.b32.xlu0 %v3610, 112
        %v3630 = vpop.permute.xlu0 %3629
        %3631 = vrot.lane.b32.xlu0 %v3611, 112
        %v3632 = vpop.permute.xlu0 %3631
        %3633 = vrot.lane.b32.xlu0 %v3612, 112
        %v3634 = vpop.permute.xlu0 %3633
        %3635 = vrot.lane.b32.xlu0 %v3613, 112
        %v3636 = vpop.permute.xlu0 %3635
        %3637 = vrot.lane.b32.xlu0 %v3614, 112
        %v3638 = vpop.permute.xlu0 %3637
        %3639 = vrot.lane.b32.xlu0 %v3615, 112
        %v3640 = vpop.permute.xlu0 %3639
        %3641 = vrot.lane.b32.xlu0 %v3616, 112
        %v3642 = vpop.permute.xlu0 %3641
        %3643 = vrot.lane.b32.xlu0 %v3617, 112
        %v3644 = vpop.permute.xlu0 %3643
        %v3645 = vsel %vm1321, %v3628, %v3630
        %v3646 = vsel %vm1321, %v3630, %v3632
        %v3647 = vsel %vm1321, %v3634, %v3636
        %v3648 = vsel %vm1321, %v3636, %v3638
        %v3649 = vsel %vm1321, %v3640, %v3642
        %v3650 = vsel %vm1321, %v3642, %v3644
        %v3660 = vadd.f32 %v3571, %v3645
        %v3661 = vadd.f32 %v3572, %v3646
        %v3662 = vadd.f32 %v3573, %v3632
        %v3663 = vadd.f32 %v3574, %v3647
        %v3664 = vadd.f32 %v3575, %v3648
        %v3665 = vadd.f32 %v3576, %v3638
        %v3666 = vadd.f32 %v3577, %v3649
        %v3667 = vadd.f32 %v3578, %v3650
        %v3668 = vadd.f32 %v3579, %v3644
        %3669 = vset.pattern.permute.xlu0 4
        %3670 = vperm.xlu0 %3669, %v3358
        %v3671 = vpop.permute.xlu0 %3670
        %3673 = vset.pattern.permute.xlu0 4
        %3674 = vperm.xlu0 %3673, %v3359
        %v3675 = vpop.permute.xlu0 %3674
        %3677 = vset.pattern.permute.xlu0 4
        %3678 = vperm.xlu0 %3677, %v3360
        %v3679 = vpop.permute.xlu0 %3678
        %v3681 = vmul.f32 %v3350, %v3671
        %v3682 = vmul.f32 %v3351, %v3671
        %v3683 = vmul.f32 %v3353, %v3675
        %v3684 = vmul.f32 %v3354, %v3675
        %v3685 = vmul.f32 %v3356, %v3679
        %v3686 = vmul.f32 %v3357, %v3679
        %3693 = vrot.lane.b32.xlu0 %v3681, 111
        %v3694 = vpop.permute.xlu0 %3693
        %3695 = vrot.lane.b32.xlu0 %v3682, 111
        %v3696 = vpop.permute.xlu0 %3695
        %3697 = vrot.lane.b32.xlu0 %v3683, 111
        %v3698 = vpop.permute.xlu0 %3697
        %3699 = vrot.lane.b32.xlu0 %v3684, 111
        %v3700 = vpop.permute.xlu0 %3699
        %3701 = vrot.lane.b32.xlu0 %v3685, 111
        %v3702 = vpop.permute.xlu0 %3701
        %3703 = vrot.lane.b32.xlu0 %v3686, 111
        %v3704 = vpop.permute.xlu0 %3703
        %v3705 = vsel %vm1140, %v3694, %v3696
        %v3706 = vsel %vm1140, %v3698, %v3700
        %v3707 = vsel %vm1140, %v3702, %v3704
        %v3717 = vadd.f32 %v3660, %v3694
        %v3718 = vadd.f32 %v3661, %v3705
        %v3719 = vadd.f32 %v3662, %v3696
        %v3720 = vadd.f32 %v3663, %v3698
        %v3721 = vadd.f32 %v3664, %v3706
        %v3722 = vadd.f32 %v3665, %v3700
        %v3723 = vadd.f32 %v3666, %v3702
        %v3724 = vadd.f32 %v3667, %v3707
        %v3725 = vadd.f32 %v3668, %v3704
        %v3726 = vld [vmem:[#allocation2 + $0x8] sm:$0xff]
        %v3727 = vld [vmem:[#allocation2 + $0x10] sm:$0xff]
        %v3728 = vld [vmem:[#allocation2 + $0x18] sm:$0xff]
        %v3729 = vld [vmem:[#allocation2 + $0x28] sm:$0xff]
        %v3730 = vld [vmem:[#allocation2 + $0x30] sm:$0xff]
        %v3731 = vld [vmem:[#allocation2 + $0x38] sm:$0xff]
        %v3732 = vld [vmem:[#allocation2 + $0x48] sm:$0xff]
        %v3733 = vld [vmem:[#allocation2 + $0x50] sm:$0xff]
        %v3734 = vld [vmem:[#allocation2 + $0x58] sm:$0xff]
        %3735 = vset.pattern.permute.xlu0 5
        %3736 = vperm.xlu0 %3735, %v3358
        %v3737 = vpop.permute.xlu0 %3736
        %3739 = vset.pattern.permute.xlu0 5
        %3740 = vperm.xlu0 %3739, %v3359
        %v3741 = vpop.permute.xlu0 %3740
        %3743 = vset.pattern.permute.xlu0 5
        %3744 = vperm.xlu0 %3743, %v3360
        %v3745 = vpop.permute.xlu0 %3744
        %v3747 = vmul.f32 %v3726, %v3737
        %v3748 = vmul.f32 %v3727, %v3737
        %v3749 = vmul.f32 %v3728, %v3737
        %v3750 = vmul.f32 %v3729, %v3741
        %v3751 = vmul.f32 %v3730, %v3741
        %v3752 = vmul.f32 %v3731, %v3741
        %v3753 = vmul.f32 %v3732, %v3745
        %v3754 = vmul.f32 %v3733, %v3745
        %v3755 = vmul.f32 %v3734, %v3745
        %3756 = vrot.lane.b32.xlu0 %v3510, 1
        %v3757 = vpop.permute.xlu0 %3756
        %3758 = vrot.lane.b32.xlu0 %v3511, 1
        %v3759 = vpop.permute.xlu0 %3758
        %v3760 = vsel %vm1400, %v3757, %v3759
        %v3764 = vmul.f32 %v3747, %v3757
        %v3765 = vmul.f32 %v3748, %v3760
        %v3766 = vmul.f32 %v3749, %v3759
        %v3767 = vmul.f32 %v3750, %v3757
        %v3768 = vmul.f32 %v3751, %v3760
        %v3769 = vmul.f32 %v3752, %v3759
        %v3770 = vmul.f32 %v3753, %v3757
        %v3771 = vmul.f32 %v3754, %v3760
        %v3772 = vmul.f32 %v3755, %v3759
        %3782 = vrot.lane.b32.xlu0 %v3764, 110
        %v3783 = vpop.permute.xlu0 %3782
        %3784 = vrot.lane.b32.xlu0 %v3765, 110
        %v3785 = vpop.permute.xlu0 %3784
        %3786 = vrot.lane.b32.xlu0 %v3766, 110
        %v3787 = vpop.permute.xlu0 %3786
        %3788 = vrot.lane.b32.xlu0 %v3767, 110
        %v3789 = vpop.permute.xlu0 %3788
        %3790 = vrot.lane.b32.xlu0 %v3768, 110
        %v3791 = vpop.permute.xlu0 %3790
        %3792 = vrot.lane.b32.xlu0 %v3769, 110
        %v3793 = vpop.permute.xlu0 %3792
        %3794 = vrot.lane.b32.xlu0 %v3770, 110
        %v3795 = vpop.permute.xlu0 %3794
        %3796 = vrot.lane.b32.xlu0 %v3771, 110
        %v3797 = vpop.permute.xlu0 %3796
        %3798 = vrot.lane.b32.xlu0 %v3772, 110
        %v3799 = vpop.permute.xlu0 %3798
        %v3800 = vsel %vm1429, %v3783, %v3785
        %v3801 = vsel %vm1429, %v3785, %v3787
        %v3802 = vsel %vm1429, %v3789, %v3791
        %v3803 = vsel %vm1429, %v3791, %v3793
        %v3804 = vsel %vm1429, %v3795, %v3797
        %v3805 = vsel %vm1429, %v3797, %v3799
        %v3815 = vadd.f32 %v3717, %v3783
        %v3816 = vadd.f32 %v3718, %v3800
        %v3817 = vadd.f32 %v3719, %v3801
        %v3818 = vadd.f32 %v3720, %v3789
        %v3819 = vadd.f32 %v3721, %v3802
        %v3820 = vadd.f32 %v3722, %v3803
        %v3821 = vadd.f32 %v3723, %v3795
        %v3822 = vadd.f32 %v3724, %v3804
        %v3823 = vadd.f32 %v3725, %v3805
        %3824 = vset.pattern.permute.xlu0 6
        %3825 = vperm.xlu0 %3824, %v3358
        %v3826 = vpop.permute.xlu0 %3825
        %3828 = vset.pattern.permute.xlu0 6
        %3829 = vperm.xlu0 %3828, %v3359
        %v3830 = vpop.permute.xlu0 %3829
        %3832 = vset.pattern.permute.xlu0 6
        %3833 = vperm.xlu0 %3832, %v3360
        %v3834 = vpop.permute.xlu0 %3833
        %v3836 = vmul.f32 %v3726, %v3826
        %v3837 = vmul.f32 %v3727, %v3826
        %v3838 = vmul.f32 %v3728, %v3826
        %v3839 = vmul.f32 %v3729, %v3830
        %v3840 = vmul.f32 %v3730, %v3830
        %v3841 = vmul.f32 %v3731, %v3830
        %v3842 = vmul.f32 %v3732, %v3834
        %v3843 = vmul.f32 %v3733, %v3834
        %v3844 = vmul.f32 %v3734, %v3834
        %3845 = vrot.lane.b32.xlu0 %v3387, 15
        %v3846 = vpop.permute.xlu0 %3845
        %3847 = vrot.lane.b32.xlu0 %v3388, 15
        %v3848 = vpop.permute.xlu0 %3847
        %v3849 = vsel %vm1464, %v3846, %v3848
        %v3853 = vmul.f32 %v3836, %v3846
        %v3854 = vmul.f32 %v3837, %v3849
        %v3855 = vmul.f32 %v3838, %v3848
        %v3856 = vmul.f32 %v3839, %v3846
        %v3857 = vmul.f32 %v3840, %v3849
        %v3858 = vmul.f32 %v3841, %v3848
        %v3859 = vmul.f32 %v3842, %v3846
        %v3860 = vmul.f32 %v3843, %v3849
        %v3861 = vmul.f32 %v3844, %v3848
        %3871 = vrot.lane.b32.xlu0 %v3853, 96
        %v3872 = vpop.permute.xlu0 %3871
        %3873 = vrot.lane.b32.xlu0 %v3854, 96
        %v3874 = vpop.permute.xlu0 %3873
        %3875 = vrot.lane.b32.xlu0 %v3855, 96
        %v3876 = vpop.permute.xlu0 %3875
        %3877 = vrot.lane.b32.xlu0 %v3856, 96
        %v3878 = vpop.permute.xlu0 %3877
        %3879 = vrot.lane.b32.xlu0 %v3857, 96
        %v3880 = vpop.permute.xlu0 %3879
        %3881 = vrot.lane.b32.xlu0 %v3858, 96
        %v3882 = vpop.permute.xlu0 %3881
        %3883 = vrot.lane.b32.xlu0 %v3859, 96
        %v3884 = vpop.permute.xlu0 %3883
        %3885 = vrot.lane.b32.xlu0 %v3860, 96
        %v3886 = vpop.permute.xlu0 %3885
        %3887 = vrot.lane.b32.xlu0 %v3861, 96
        %v3888 = vpop.permute.xlu0 %3887
        %v3889 = vsel %vm1493, %v3872, %v3874
        %v3890 = vsel %vm1493, %v3874, %v3876
        %v3891 = vsel %vm1493, %v3878, %v3880
        %v3892 = vsel %vm1493, %v3880, %v3882
        %v3893 = vsel %vm1493, %v3884, %v3886
        %v3894 = vsel %vm1493, %v3886, %v3888
        %v3904 = vadd.f32 %v3815, %v3872
        %v3905 = vadd.f32 %v3816, %v3889
        %v3906 = vadd.f32 %v3817, %v3890
        %v3907 = vadd.f32 %v3818, %v3878
        %v3908 = vadd.f32 %v3819, %v3891
        %v3909 = vadd.f32 %v3820, %v3892
        %v3910 = vadd.f32 %v3821, %v3884
        %v3911 = vadd.f32 %v3822, %v3893
        %v3912 = vadd.f32 %v3823, %v3894
        %3913 = vset.pattern.permute.xlu0 7
        %3914 = vperm.xlu0 %3913, %v3358
        %v3915 = vpop.permute.xlu0 %3914
        %3917 = vset.pattern.permute.xlu0 7
        %3918 = vperm.xlu0 %3917, %v3359
        %v3919 = vpop.permute.xlu0 %3918
        %3921 = vset.pattern.permute.xlu0 7
        %3922 = vperm.xlu0 %3921, %v3360
        %v3923 = vpop.permute.xlu0 %3922
        %v3925 = vmul.f32 %v3726, %v3915
        %v3926 = vmul.f32 %v3727, %v3915
        %v3927 = vmul.f32 %v3728, %v3915
        %v3928 = vmul.f32 %v3729, %v3919
        %v3929 = vmul.f32 %v3730, %v3919
        %v3930 = vmul.f32 %v3731, %v3919
        %v3931 = vmul.f32 %v3732, %v3923
        %v3932 = vmul.f32 %v3733, %v3923
        %v3933 = vmul.f32 %v3734, %v3923
        %3943 = vrot.lane.b32.xlu0 %v3925, 95
        %v3944 = vpop.permute.xlu0 %3943
        %3945 = vrot.lane.b32.xlu0 %v3926, 95
        %v3946 = vpop.permute.xlu0 %3945
        %3947 = vrot.lane.b32.xlu0 %v3927, 95
        %v3948 = vpop.permute.xlu0 %3947
        %3949 = vrot.lane.b32.xlu0 %v3928, 95
        %v3950 = vpop.permute.xlu0 %3949
        %3951 = vrot.lane.b32.xlu0 %v3929, 95
        %v3952 = vpop.permute.xlu0 %3951
        %3953 = vrot.lane.b32.xlu0 %v3930, 95
        %v3954 = vpop.permute.xlu0 %3953
        %3955 = vrot.lane.b32.xlu0 %v3931, 95
        %v3956 = vpop.permute.xlu0 %3955
        %3957 = vrot.lane.b32.xlu0 %v3932, 95
        %v3958 = vpop.permute.xlu0 %3957
        %3959 = vrot.lane.b32.xlu0 %v3933, 95
        %v3960 = vpop.permute.xlu0 %3959
        %v3961 = vsel %vm1542, %v3944, %v3946
        %v3962 = vsel %vm1542, %v3946, %v3948
        %v3963 = vsel %vm1542, %v3950, %v3952
        %v3964 = vsel %vm1542, %v3952, %v3954
        %v3965 = vsel %vm1542, %v3956, %v3958
        %v3966 = vsel %vm1542, %v3958, %v3960
        %v3976 = vadd.f32 %v3904, %v3944
        %v3977 = vadd.f32 %v3905, %v3961
        %v3978 = vadd.f32 %v3906, %v3962
        %v3979 = vadd.f32 %v3907, %v3950
        %v3980 = vadd.f32 %v3908, %v3963
        %v3981 = vadd.f32 %v3909, %v3964
        %v3982 = vadd.f32 %v3910, %v3956
        %v3983 = vadd.f32 %v3911, %v3965
        %v3984 = vadd.f32 %v3912, %v3966
        %3985 = vset.pattern.permute.xlu0 8
        %3986 = vperm.xlu0 %3985, %v3358
        %v3987 = vpop.permute.xlu0 %3986
        %3989 = vset.pattern.permute.xlu0 8
        %3990 = vperm.xlu0 %3989, %v3359
        %v3991 = vpop.permute.xlu0 %3990
        %3993 = vset.pattern.permute.xlu0 8
        %3994 = vperm.xlu0 %3993, %v3360
        %v3995 = vpop.permute.xlu0 %3994
        %v3997 = vmul.f32 %v3726, %v3987
        %v3998 = vmul.f32 %v3727, %v3987
        %v3999 = vmul.f32 %v3728, %v3987
        %v4000 = vmul.f32 %v3729, %v3991
        %v4001 = vmul.f32 %v3730, %v3991
        %v4002 = vmul.f32 %v3731, %v3991
        %v4003 = vmul.f32 %v3732, %v3995
        %v4004 = vmul.f32 %v3733, %v3995
        %v4005 = vmul.f32 %v3734, %v3995
        %4006 = vrot.lane.b32.xlu0 %v3510, 17
        %v4007 = vpop.permute.xlu0 %4006
        %4008 = vrot.lane.b32.xlu0 %v3511, 17
        %v4009 = vpop.permute.xlu0 %4008
        %v4010 = vsel %vm1577, %v4007, %v4009
        %v4014 = vmul.f32 %v3997, %v4007
        %v4015 = vmul.f32 %v3998, %v4010
        %v4016 = vmul.f32 %v3999, %v4009
        %v4017 = vmul.f32 %v4000, %v4007
        %v4018 = vmul.f32 %v4001, %v4010
        %v4019 = vmul.f32 %v4002, %v4009
        %v4020 = vmul.f32 %v4003, %v4007
        %v4021 = vmul.f32 %v4004, %v4010
        %v4022 = vmul.f32 %v4005, %v4009
        %4032 = vrot.lane.b32.xlu0 %v4014, 94
        %v4033 = vpop.permute.xlu0 %4032
        %4034 = vrot.lane.b32.xlu0 %v4015, 94
        %v4035 = vpop.permute.xlu0 %4034
        %4036 = vrot.lane.b32.xlu0 %v4016, 94
        %v4037 = vpop.permute.xlu0 %4036
        %4038 = vrot.lane.b32.xlu0 %v4017, 94
        %v4039 = vpop.permute.xlu0 %4038
        %4040 = vrot.lane.b32.xlu0 %v4018, 94
        %v4041 = vpop.permute.xlu0 %4040
        %4042 = vrot.lane.b32.xlu0 %v4019, 94
        %v4043 = vpop.permute.xlu0 %4042
        %4044 = vrot.lane.b32.xlu0 %v4020, 94
        %v4045 = vpop.permute.xlu0 %4044
        %4046 = vrot.lane.b32.xlu0 %v4021, 94
        %v4047 = vpop.permute.xlu0 %4046
        %4048 = vrot.lane.b32.xlu0 %v4022, 94
        %v4049 = vpop.permute.xlu0 %4048
        %v4050 = vsel %vm1606, %v4033, %v4035
        %v4051 = vsel %vm1606, %v4035, %v4037
        %v4052 = vsel %vm1606, %v4039, %v4041
        %v4053 = vsel %vm1606, %v4041, %v4043
        %v4054 = vsel %vm1606, %v4045, %v4047
        %v4055 = vsel %vm1606, %v4047, %v4049
        %v4065 = vadd.f32 %v3976, %v4033
        %v4066 = vadd.f32 %v3977, %v4050
        %v4067 = vadd.f32 %v3978, %v4051
        %v4068 = vadd.f32 %v3979, %v4039
        %v4069 = vadd.f32 %v3980, %v4052
        %v4070 = vadd.f32 %v3981, %v4053
        %v4071 = vadd.f32 %v3982, %v4045
        %v4072 = vadd.f32 %v3983, %v4054
        %v4073 = vadd.f32 %v3984, %v4055
        %v4074 = vld [vmem:[%s37] sm:$0xff]
        %v4075 = vld [vmem:[%s37 + $0x8] sm:$0xff]
        %v4076 = vld [vmem:[%s37 + $0x10] sm:$0xff]
        %4078 = vset.pattern.permute.xlu0 0
        %4079 = vperm.xlu0 %4078, %v4074
        %v4080 = vpop.permute.xlu0 %4079
        %4083 = vset.pattern.permute.xlu0 0
        %4084 = vperm.xlu0 %4083, %v4075
        %v4085 = vpop.permute.xlu0 %4084
        %4088 = vset.pattern.permute.xlu0 0
        %4089 = vperm.xlu0 %4088, %v4076
        %v4090 = vpop.permute.xlu0 %4089
        %v4092 = vadd.f32 %v4065, %v4080
        %v4093 = vadd.f32 %v4066, %v4080
        %v4094 = vadd.f32 %v4067, %v4080
        %v4095 = vadd.f32 %v4068, %v4085
        %v4096 = vadd.f32 %v4069, %v4085
        %v4097 = vadd.f32 %v4070, %v4085
        %v4098 = vadd.f32 %v4071, %v4090
        %v4099 = vadd.f32 %v4072, %v4090
        %v4100 = vadd.f32 %v4073, %v4090
        %v4101 = vadd.f32 %v4092, 3.0
        %v4102 = vadd.f32 %v4093, 3.0
        %v4103 = vadd.f32 %v4094, 3.0
        %v4104 = vadd.f32 %v4095, 3.0
        %v4105 = vadd.f32 %v4096, 3.0
        %v4106 = vadd.f32 %v4097, 3.0
        %v4107 = vadd.f32 %v4098, 3.0
        %v4108 = vadd.f32 %v4099, 3.0
        %v4109 = vadd.f32 %v4100, 3.0
        %v4110 = vmax.f32 %v4101, 0.0
        %v4111 = vmax.f32 %v4102, 0.0
        %v4112 = vmax.f32 %v4103, 0.0
        %v4113 = vmax.f32 %v4104, 0.0
        %v4114 = vmax.f32 %v4105, 0.0
        %v4115 = vmax.f32 %v4106, 0.0
        %v4116 = vmax.f32 %v4107, 0.0
        %v4117 = vmax.f32 %v4108, 0.0
        %v4118 = vmax.f32 %v4109, 0.0
        %v4119 = vmin.f32 %v4110, 6.0
        %v4120 = vmin.f32 %v4111, 6.0
        %v4121 = vmin.f32 %v4112, 6.0
        %v4122 = vmin.f32 %v4113, 6.0
        %v4123 = vmin.f32 %v4114, 6.0
        %v4124 = vmin.f32 %v4115, 6.0
        %v4125 = vmin.f32 %v4116, 6.0
        %v4126 = vmin.f32 %v4117, 6.0
        %v4127 = vmin.f32 %v4118, 6.0
        %v4128 = vmul.f32 %v4092, %v4119
        %v4129 = vmul.f32 %v4093, %v4120
        %v4130 = vmul.f32 %v4094, %v4121
        %v4131 = vmul.f32 %v4095, %v4122
        %v4132 = vmul.f32 %v4096, %v4123
        %v4133 = vmul.f32 %v4097, %v4124
        %v4134 = vmul.f32 %v4098, %v4125
        %v4135 = vmul.f32 %v4099, %v4126
        %v4136 = vmul.f32 %v4100, %v4127
        %v4137 = vmul.f32 %v4128, 0.16666667
        %v4138 = vmul.f32 %v4129, 0.16666667
        %v4139 = vmul.f32 %v4130, 0.16666667
        %v4140 = vmul.f32 %v4131, 0.16666667
        %v4141 = vmul.f32 %v4132, 0.16666667
        %v4142 = vmul.f32 %v4133, 0.16666667
        %v4143 = vmul.f32 %v4134, 0.16666667
        %v4144 = vmul.f32 %v4135, 0.16666667
        %v4145 = vmul.f32 %v4136, 0.16666667
        %v4146 = vld [vmem:[%s39] sm:$0xff]
        %v4147 = vld [vmem:[%s39 + $0x8] sm:$0xff]
        %v4148 = vld [vmem:[%s39 + $0x10] sm:$0xff]
        %v4149 = vld [vmem:[%s39 + $0x18] sm:$0xff]
        %v4150 = vld [vmem:[%s39 + $0x20] sm:$0xff]
        %v4151 = vld [vmem:[%s41] sm:$0xff]
        %v4152 = vld [vmem:[%s41 + $0x8] sm:$0xff]
        %v4153 = vld [vmem:[%s41 + $0x10] sm:$0xff]
        %v4154 = vld [vmem:[%s41 + $0x18] sm:$0xff]
        %v4155 = vld [vmem:[%s41 + $0x20] sm:$0xff]
        %4157 = vset.pattern.permute.xlu0 0
        %4158 = vperm.xlu0 %4157, %v4151
        %v4159 = vpop.permute.xlu0 %4158
        %4162 = vset.pattern.permute.xlu0 0
        %4163 = vperm.xlu0 %4162, %v4152
        %v4164 = vpop.permute.xlu0 %4163
        %4167 = vset.pattern.permute.xlu0 0
        %4168 = vperm.xlu0 %4167, %v4153
        %v4169 = vpop.permute.xlu0 %4168
        %4172 = vset.pattern.permute.xlu0 0
        %4173 = vperm.xlu0 %4172, %v4154
        %v4174 = vpop.permute.xlu0 %4173
        %4177 = vset.pattern.permute.xlu0 0
        %4178 = vperm.xlu0 %4177, %v4155
        %v4179 = vpop.permute.xlu0 %4178
        %4190 = vrot.lane.b32.xlu0 %v4137, 17
        %v4191 = vpop.permute.xlu0 %4190
        %4192 = vrot.lane.b32.xlu0 %v4138, 17
        %v4193 = vpop.permute.xlu0 %4192
        %4194 = vrot.lane.b32.xlu0 %v4139, 17
        %v4195 = vpop.permute.xlu0 %4194
        %4196 = vrot.lane.b32.xlu0 %v4140, 17
        %v4197 = vpop.permute.xlu0 %4196
        %4198 = vrot.lane.b32.xlu0 %v4141, 17
        %v4199 = vpop.permute.xlu0 %4198
        %4200 = vrot.lane.b32.xlu0 %v4142, 17
        %v4201 = vpop.permute.xlu0 %4200
        %4202 = vrot.lane.b32.xlu0 %v4143, 17
        %v4203 = vpop.permute.xlu0 %4202
        %4204 = vrot.lane.b32.xlu0 %v4144, 17
        %v4205 = vpop.permute.xlu0 %4204
        %4206 = vrot.lane.b32.xlu0 %v4145, 17
        %v4207 = vpop.permute.xlu0 %4206
        %v4208 = vsel %vm1577, %v4191, %v4193
        %v4209 = vsel %vm1577, %v4193, %v4195
        %v4210 = vsel %vm1577, %v4197, %v4199
        %v4211 = vsel %vm1577, %v4199, %v4201
        %v4212 = vsel %vm1577, %v4203, %v4205
        %v4213 = vsel %vm1577, %v4205, %v4207
        %v4221 = vsel %vm3251, %v4146, 0
        %v4224 = vsel %vm3251, %v4147, 0
        %v4227 = vsel %vm3251, %v4148, 0
        %v4230 = vsel %vm3251, %v4149, 0
        %v4233 = vsel %vm3251, %v4150, 0
        %4235 = vmatpush.msra.mxu0 0.0
        %4236 = vmatpush.msra.mxu0 0.0
        %4237 = vmatpush.msra.mxu0 0.0
        %4238 = vmatpush.msra.mxu0 0.0
        %4239 = vmatpush.msra.mxu0 0.0
        %4240 = vmatpush.msra.mxu0 0.0
        %4241 = vmatpush.msra.mxu0 0.0
        %4242 = vmatpush.msra.mxu0 0.0
        %4243 = vmatpush.msra.mxu0 0.0
        %4244 = vmatpush.msra.mxu0 0.0
        %4245 = vmatpush.msra.mxu0 0.0
        %4246 = vmatpush.msra.mxu0 0.0
        %4247 = vmatpush.msra.mxu0 0.0
        %4248 = vmatpush.msra.mxu0 %v4212
        %4249 = vmatpush.msra.mxu0 %v4210
        %4250 = vmatpush.msra.mxu0 %v4208
        %4251 = vmatmul.f32.gmra.mxu0 %v4221
        %v4252 = vpop.f32.mrf.mxu0
        %v4253 = vadd.f32 %v4159, %v4252
        %4254 = vmatmul.f32.gmra.mxu0 %v4224
        %v4255 = vpop.f32.mrf.mxu0
        %v4256 = vadd.f32 %v4164, %v4255
        %4257 = vmatmul.f32.gmra.mxu0 %v4227
        %v4258 = vpop.f32.mrf.mxu0
        %v4259 = vadd.f32 %v4169, %v4258
        %4260 = vmatmul.f32.gmra.mxu0 %v4230
        %v4261 = vpop.f32.mrf.mxu0
        %v4262 = vadd.f32 %v4174, %v4261
        %4263 = vmatmul.f32.gmra.mxu0 %v4233
        %v4264 = vpop.f32.mrf.mxu0
        %v4265 = vadd.f32 %v4179, %v4264
        %4266 = vdwg.mxu0
        %4267 = vmatpush.msra.mxu0 0.0
        %4268 = vmatpush.msra.mxu0 0.0
        %4269 = vmatpush.msra.mxu0 0.0
        %4270 = vmatpush.msra.mxu0 0.0
        %4271 = vmatpush.msra.mxu0 0.0
        %4272 = vmatpush.msra.mxu0 0.0
        %4273 = vmatpush.msra.mxu0 0.0
        %4274 = vmatpush.msra.mxu0 0.0
        %4275 = vmatpush.msra.mxu0 0.0
        %4276 = vmatpush.msra.mxu0 0.0
        %4277 = vmatpush.msra.mxu0 0.0
        %4278 = vmatpush.msra.mxu0 0.0
        %4279 = vmatpush.msra.mxu0 0.0
        %4280 = vmatpush.msra.mxu0 %v4213
        %4281 = vmatpush.msra.mxu0 %v4211
        %4282 = vmatpush.msra.mxu0 %v4209
        %4283 = vmatmul.f32.gmra.mxu0 %v4221
        %v4284 = vpop.f32.mrf.mxu0
        %v4285 = vadd.f32 %v4159, %v4284
        %4286 = vmatmul.f32.gmra.mxu0 %v4224
        %v4287 = vpop.f32.mrf.mxu0
        %v4288 = vadd.f32 %v4164, %v4287
        %4289 = vmatmul.f32.gmra.mxu0 %v4227
        %v4290 = vpop.f32.mrf.mxu0
        %v4291 = vadd.f32 %v4169, %v4290
        %4292 = vmatmul.f32.gmra.mxu0 %v4230
        %v4293 = vpop.f32.mrf.mxu0
        %v4294 = vadd.f32 %v4174, %v4293
        %4295 = vmatmul.f32.gmra.mxu0 %v4233
        %v4296 = vpop.f32.mrf.mxu0
        %v4297 = vadd.f32 %v4179, %v4296
        %4298 = vdwg.mxu0
        %v4299 = vadd.f32 %v4253, 3.0
        %v4300 = vadd.f32 %v4285, 3.0
        %v4301 = vadd.f32 %v4256, 3.0
        %v4302 = vadd.f32 %v4288, 3.0
        %v4303 = vadd.f32 %v4259, 3.0
        %v4304 = vadd.f32 %v4291, 3.0
        %v4305 = vadd.f32 %v4262, 3.0
        %v4306 = vadd.f32 %v4294, 3.0
        %v4307 = vadd.f32 %v4265, 3.0
        %v4308 = vadd.f32 %v4297, 3.0
        %v4309 = vmax.f32 %v4299, 0.0
        %v4310 = vmax.f32 %v4300, 0.0
        %v4311 = vmax.f32 %v4301, 0.0
        %v4312 = vmax.f32 %v4302, 0.0
        %v4313 = vmax.f32 %v4303, 0.0
        %v4314 = vmax.f32 %v4304, 0.0
        %v4315 = vmax.f32 %v4305, 0.0
        %v4316 = vmax.f32 %v4306, 0.0
        %v4317 = vmax.f32 %v4307, 0.0
        %v4318 = vmax.f32 %v4308, 0.0
        %v4319 = vmin.f32 %v4309, 6.0
        %v4320 = vmin.f32 %v4310, 6.0
        %v4321 = vmin.f32 %v4311, 6.0
        %v4322 = vmin.f32 %v4312, 6.0
        %v4323 = vmin.f32 %v4313, 6.0
        %v4324 = vmin.f32 %v4314, 6.0
        %v4325 = vmin.f32 %v4315, 6.0
        %v4326 = vmin.f32 %v4316, 6.0
        %v4327 = vmin.f32 %v4317, 6.0
        %v4328 = vmin.f32 %v4318, 6.0
        %v4329 = vmul.f32 %v4253, %v4319
        %v4330 = vmul.f32 %v4285, %v4320
        %v4331 = vmul.f32 %v4256, %v4321
        %v4332 = vmul.f32 %v4288, %v4322
        %v4333 = vmul.f32 %v4259, %v4323
        %v4334 = vmul.f32 %v4291, %v4324
        %v4335 = vmul.f32 %v4262, %v4325
        %v4336 = vmul.f32 %v4294, %v4326
        %v4337 = vmul.f32 %v4265, %v4327
        %v4338 = vmul.f32 %v4297, %v4328
        %v4339 = vmul.f32 %v4329, 0.16666667
        %v4340 = vmul.f32 %v4330, 0.16666667
        %v4341 = vmul.f32 %v4331, 0.16666667
        %v4342 = vmul.f32 %v4332, 0.16666667
        %v4343 = vmul.f32 %v4333, 0.16666667
        %v4344 = vmul.f32 %v4334, 0.16666667
        %v4345 = vmul.f32 %v4335, 0.16666667
        %v4346 = vmul.f32 %v4336, 0.16666667
        %v4347 = vmul.f32 %v4337, 0.16666667
        %v4348 = vmul.f32 %v4338, 0.16666667
        %4349 = vst [vmem:[#allocation2 + $0x8] sm:$0xff] %v4339
        %4350 = vst [vmem:[#allocation2 + $0x10] sm:$0xff] %v4340
        %4351 = vst [vmem:[#allocation2 + $0x28] sm:$0xff] %v4341
        %4352 = vst [vmem:[#allocation2 + $0x30] sm:$0xff] %v4342
        %4353 = vst [vmem:[#allocation2 + $0x48] sm:$0xff] %v4343
        %4354 = vst [vmem:[#allocation2 + $0x50] sm:$0xff] %v4344
        %4355 = vst [vmem:[#allocation2 + $0x68] sm:$0xff] %v4345
        %4356 = vst [vmem:[#allocation2 + $0x70] sm:$0xff] %v4346
        %4357 = vst [vmem:[#allocation2 + $0x88] sm:$0xff] %v4347
        %4358 = vst [vmem:[#allocation2 + $0x90] sm:$0xff] %v4348
        %v4359 = vld [vmem:[#allocation2] sm:$0xff]
        %v4360 = vld [vmem:[#allocation2 + $0x8] sm:$0xff]
        %v4361 = vld [vmem:[#allocation2 + $0x10] sm:$0xff]
        %v4362 = vld [vmem:[#allocation2 + $0x20] sm:$0xff]
        %v4363 = vld [vmem:[#allocation2 + $0x28] sm:$0xff]
        %v4364 = vld [vmem:[#allocation2 + $0x30] sm:$0xff]
        %v4365 = vld [vmem:[#allocation2 + $0x40] sm:$0xff]
        %v4366 = vld [vmem:[#allocation2 + $0x48] sm:$0xff]
        %v4367 = vld [vmem:[#allocation2 + $0x50] sm:$0xff]
        %v4368 = vld [vmem:[#allocation2 + $0x60] sm:$0xff]
        %v4369 = vld [vmem:[#allocation2 + $0x68] sm:$0xff]
        %v4370 = vld [vmem:[#allocation2 + $0x70] sm:$0xff]
        %v4371 = vld [vmem:[#allocation2 + $0x80] sm:$0xff]
        %v4372 = vld [vmem:[#allocation2 + $0x88] sm:$0xff]
        %v4373 = vld [vmem:[#allocation2 + $0x90] sm:$0xff]
        %v4374 = vld [vmem:[%s43] sm:$0xff]
        %v4375 = vld [vmem:[%s43 + $0x8] sm:$0xff]
        %v4376 = vld [vmem:[%s43 + $0x10] sm:$0xff]
        %v4377 = vld [vmem:[%s43 + $0x18] sm:$0xff]
        %v4378 = vld [vmem:[%s43 + $0x20] sm:$0xff]
        %4380 = vset.pattern.permute.xlu0 0
        %4381 = vperm.xlu0 %4380, %v4374
        %v4382 = vpop.permute.xlu0 %4381
        %4385 = vset.pattern.permute.xlu0 0
        %4386 = vperm.xlu0 %4385, %v4375
        %v4387 = vpop.permute.xlu0 %4386
        %4390 = vset.pattern.permute.xlu0 0
        %4391 = vperm.xlu0 %4390, %v4376
        %v4392 = vpop.permute.xlu0 %4391
        %4395 = vset.pattern.permute.xlu0 0
        %4396 = vperm.xlu0 %4395, %v4377
        %v4397 = vpop.permute.xlu0 %4396
        %4400 = vset.pattern.permute.xlu0 0
        %4401 = vperm.xlu0 %4400, %v4378
        %v4402 = vpop.permute.xlu0 %4401
        %v4404 = vmul.f32 %v4359, %v4382
        %v4405 = vmul.f32 %v4360, %v4382
        %v4406 = vmul.f32 %v4361, %v4382
        %v4407 = vmul.f32 %v4362, %v4387
        %v4408 = vmul.f32 %v4363, %v4387
        %v4409 = vmul.f32 %v4364, %v4387
        %v4410 = vmul.f32 %v4365, %v4392
        %v4411 = vmul.f32 %v4366, %v4392
        %v4412 = vmul.f32 %v4367, %v4392
        %v4413 = vmul.f32 %v4368, %v4397
        %v4414 = vmul.f32 %v4369, %v4397
        %v4415 = vmul.f32 %v4370, %v4397
        %v4416 = vmul.f32 %v4371, %v4402
        %v4417 = vmul.f32 %v4372, %v4402
        %v4418 = vmul.f32 %v4373, %v4402
        %v4419 = vld [vmem:[%s3] ss:$2 sm:$0x3]
        %v4421 = vperm.slane %v4419, 0
        %v4422 = vperm.slane %v4419, 1
        %4423 = vrot.lane.b32.xlu0 %v4421, 111
        %v4424 = vpop.permute.xlu0 %4423
        %4425 = vrot.lane.b32.xlu0 %v4422, 111
        %v4426 = vpop.permute.xlu0 %4425
        %v4427 = vsel %vm1140, %v4424, %v4426
        %v4431 = vmul.f32 %v4404, %v4424
        %v4432 = vmul.f32 %v4405, %v4427
        %v4433 = vmul.f32 %v4406, %v4426
        %v4434 = vmul.f32 %v4407, %v4424
        %v4435 = vmul.f32 %v4408, %v4427
        %v4436 = vmul.f32 %v4409, %v4426
        %v4437 = vmul.f32 %v4410, %v4424
        %v4438 = vmul.f32 %v4411, %v4427
        %v4439 = vmul.f32 %v4412, %v4426
        %v4440 = vmul.f32 %v4413, %v4424
        %v4441 = vmul.f32 %v4414, %v4427
        %v4442 = vmul.f32 %v4415, %v4426
        %v4443 = vmul.f32 %v4416, %v4424
        %v4444 = vmul.f32 %v4417, %v4427
        %v4445 = vmul.f32 %v4418, %v4426
        %v4446 = vadd.f32 %v4431, 0.0
        %v4447 = vadd.f32 %v4432, 0.0
        %v4448 = vadd.f32 %v4433, 0.0
        %v4449 = vadd.f32 %v4434, 0.0
        %v4450 = vadd.f32 %v4435, 0.0
        %v4451 = vadd.f32 %v4436, 0.0
        %v4452 = vadd.f32 %v4437, 0.0
        %v4453 = vadd.f32 %v4438, 0.0
        %v4454 = vadd.f32 %v4439, 0.0
        %v4455 = vadd.f32 %v4440, 0.0
        %v4456 = vadd.f32 %v4441, 0.0
        %v4457 = vadd.f32 %v4442, 0.0
        %v4458 = vadd.f32 %v4443, 0.0
        %v4459 = vadd.f32 %v4444, 0.0
        %v4460 = vadd.f32 %v4445, 0.0
        %4461 = vset.pattern.permute.xlu0 1
        %4462 = vperm.xlu0 %4461, %v4374
        %v4463 = vpop.permute.xlu0 %4462
        %4465 = vset.pattern.permute.xlu0 1
        %4466 = vperm.xlu0 %4465, %v4375
        %v4467 = vpop.permute.xlu0 %4466
        %4469 = vset.pattern.permute.xlu0 1
        %4470 = vperm.xlu0 %4469, %v4376
        %v4471 = vpop.permute.xlu0 %4470
        %4473 = vset.pattern.permute.xlu0 1
        %4474 = vperm.xlu0 %4473, %v4377
        %v4475 = vpop.permute.xlu0 %4474
        %4477 = vset.pattern.permute.xlu0 1
        %4478 = vperm.xlu0 %4477, %v4378
        %v4479 = vpop.permute.xlu0 %4478
        %v4481 = vmul.f32 %v4359, %v4463
        %v4482 = vmul.f32 %v4360, %v4463
        %v4483 = vmul.f32 %v4361, %v4463
        %v4484 = vmul.f32 %v4362, %v4467
        %v4485 = vmul.f32 %v4363, %v4467
        %v4486 = vmul.f32 %v4364, %v4467
        %v4487 = vmul.f32 %v4365, %v4471
        %v4488 = vmul.f32 %v4366, %v4471
        %v4489 = vmul.f32 %v4367, %v4471
        %v4490 = vmul.f32 %v4368, %v4475
        %v4491 = vmul.f32 %v4369, %v4475
        %v4492 = vmul.f32 %v4370, %v4475
        %v4493 = vmul.f32 %v4371, %v4479
        %v4494 = vmul.f32 %v4372, %v4479
        %v4495 = vmul.f32 %v4373, %v4479
        %4511 = vrot.lane.b32.xlu0 %v4481, 127
        %v4512 = vpop.permute.xlu0 %4511
        %4513 = vrot.lane.b32.xlu0 %v4482, 127
        %v4514 = vpop.permute.xlu0 %4513
        %4515 = vrot.lane.b32.xlu0 %v4483, 127
        %v4516 = vpop.permute.xlu0 %4515
        %4517 = vrot.lane.b32.xlu0 %v4484, 127
        %v4518 = vpop.permute.xlu0 %4517
        %4519 = vrot.lane.b32.xlu0 %v4485, 127
        %v4520 = vpop.permute.xlu0 %4519
        %4521 = vrot.lane.b32.xlu0 %v4486, 127
        %v4522 = vpop.permute.xlu0 %4521
        %4523 = vrot.lane.b32.xlu0 %v4487, 127
        %v4524 = vpop.permute.xlu0 %4523
        %4525 = vrot.lane.b32.xlu0 %v4488, 127
        %v4526 = vpop.permute.xlu0 %4525
        %4527 = vrot.lane.b32.xlu0 %v4489, 127
        %v4528 = vpop.permute.xlu0 %4527
        %4529 = vrot.lane.b32.xlu0 %v4490, 127
        %v4530 = vpop.permute.xlu0 %4529
        %4531 = vrot.lane.b32.xlu0 %v4491, 127
        %v4532 = vpop.permute.xlu0 %4531
        %4533 = vrot.lane.b32.xlu0 %v4492, 127
        %v4534 = vpop.permute.xlu0 %4533
        %4535 = vrot.lane.b32.xlu0 %v4493, 127
        %v4536 = vpop.permute.xlu0 %4535
        %4537 = vrot.lane.b32.xlu0 %v4494, 127
        %v4538 = vpop.permute.xlu0 %4537
        %4539 = vrot.lane.b32.xlu0 %v4495, 127
        %v4540 = vpop.permute.xlu0 %4539
        %v4541 = vsel %vm1189, %v4512, %v4514
        %v4542 = vsel %vm1189, %v4514, %v4516
        %v4543 = vsel %vm1189, %v4518, %v4520
        %v4544 = vsel %vm1189, %v4520, %v4522
        %v4545 = vsel %vm1189, %v4524, %v4526
        %v4546 = vsel %vm1189, %v4526, %v4528
        %v4547 = vsel %vm1189, %v4530, %v4532
        %v4548 = vsel %vm1189, %v4532, %v4534
        %v4549 = vsel %vm1189, %v4536, %v4538
        %v4550 = vsel %vm1189, %v4538, %v4540
        %v4566 = vadd.f32 %v4446, %v4541
        %v4567 = vadd.f32 %v4447, %v4542
        %v4568 = vadd.f32 %v4448, %v4516
        %v4569 = vadd.f32 %v4449, %v4543
        %v4570 = vadd.f32 %v4450, %v4544
        %v4571 = vadd.f32 %v4451, %v4522
        %v4572 = vadd.f32 %v4452, %v4545
        %v4573 = vadd.f32 %v4453, %v4546
        %v4574 = vadd.f32 %v4454, %v4528
        %v4575 = vadd.f32 %v4455, %v4547
        %v4576 = vadd.f32 %v4456, %v4548
        %v4577 = vadd.f32 %v4457, %v4534
        %v4578 = vadd.f32 %v4458, %v4549
        %v4579 = vadd.f32 %v4459, %v4550
        %v4580 = vadd.f32 %v4460, %v4540
        %4581 = vset.pattern.permute.xlu0 2
        %4582 = vperm.xlu0 %4581, %v4374
        %v4583 = vpop.permute.xlu0 %4582
        %4585 = vset.pattern.permute.xlu0 2
        %4586 = vperm.xlu0 %4585, %v4375
        %v4587 = vpop.permute.xlu0 %4586
        %4589 = vset.pattern.permute.xlu0 2
        %4590 = vperm.xlu0 %4589, %v4376
        %v4591 = vpop.permute.xlu0 %4590
        %4593 = vset.pattern.permute.xlu0 2
        %4594 = vperm.xlu0 %4593, %v4377
        %v4595 = vpop.permute.xlu0 %4594
        %4597 = vset.pattern.permute.xlu0 2
        %4598 = vperm.xlu0 %4597, %v4378
        %v4599 = vpop.permute.xlu0 %4598
        %v4601 = vmul.f32 %v4359, %v4583
        %v4602 = vmul.f32 %v4360, %v4583
        %v4603 = vmul.f32 %v4361, %v4583
        %v4604 = vmul.f32 %v4362, %v4587
        %v4605 = vmul.f32 %v4363, %v4587
        %v4606 = vmul.f32 %v4364, %v4587
        %v4607 = vmul.f32 %v4365, %v4591
        %v4608 = vmul.f32 %v4366, %v4591
        %v4609 = vmul.f32 %v4367, %v4591
        %v4610 = vmul.f32 %v4368, %v4595
        %v4611 = vmul.f32 %v4369, %v4595
        %v4612 = vmul.f32 %v4370, %v4595
        %v4613 = vmul.f32 %v4371, %v4599
        %v4614 = vmul.f32 %v4372, %v4599
        %v4615 = vmul.f32 %v4373, %v4599
        %v4616 = vld [vmem:[%s1220] ss:$2 sm:$0x3]
        %v4618 = vperm.slane %v4616, 0
        %v4619 = vperm.slane %v4616, 1
        %4620 = vrot.lane.b32.xlu0 %v4618, 113
        %v4621 = vpop.permute.xlu0 %4620
        %4622 = vrot.lane.b32.xlu0 %v4619, 113
        %v4623 = vpop.permute.xlu0 %4622
        %v4624 = vsel %vm1229, %v4621, %v4623
        %v4628 = vmul.f32 %v4601, %v4621
        %v4629 = vmul.f32 %v4602, %v4624
        %v4630 = vmul.f32 %v4603, %v4623
        %v4631 = vmul.f32 %v4604, %v4621
        %v4632 = vmul.f32 %v4605, %v4624
        %v4633 = vmul.f32 %v4606, %v4623
        %v4634 = vmul.f32 %v4607, %v4621
        %v4635 = vmul.f32 %v4608, %v4624
        %v4636 = vmul.f32 %v4609, %v4623
        %v4637 = vmul.f32 %v4610, %v4621
        %v4638 = vmul.f32 %v4611, %v4624
        %v4639 = vmul.f32 %v4612, %v4623
        %v4640 = vmul.f32 %v4613, %v4621
        %v4641 = vmul.f32 %v4614, %v4624
        %v4642 = vmul.f32 %v4615, %v4623
        %4658 = vrot.lane.b32.xlu0 %v4628, 126
        %v4659 = vpop.permute.xlu0 %4658
        %4660 = vrot.lane.b32.xlu0 %v4629, 126
        %v4661 = vpop.permute.xlu0 %4660
        %4662 = vrot.lane.b32.xlu0 %v4630, 126
        %v4663 = vpop.permute.xlu0 %4662
        %4664 = vrot.lane.b32.xlu0 %v4631, 126
        %v4665 = vpop.permute.xlu0 %4664
        %4666 = vrot.lane.b32.xlu0 %v4632, 126
        %v4667 = vpop.permute.xlu0 %4666
        %4668 = vrot.lane.b32.xlu0 %v4633, 126
        %v4669 = vpop.permute.xlu0 %4668
        %4670 = vrot.lane.b32.xlu0 %v4634, 126
        %v4671 = vpop.permute.xlu0 %4670
        %4672 = vrot.lane.b32.xlu0 %v4635, 126
        %v4673 = vpop.permute.xlu0 %4672
        %4674 = vrot.lane.b32.xlu0 %v4636, 126
        %v4675 = vpop.permute.xlu0 %4674
        %4676 = vrot.lane.b32.xlu0 %v4637, 126
        %v4677 = vpop.permute.xlu0 %4676
        %4678 = vrot.lane.b32.xlu0 %v4638, 126
        %v4679 = vpop.permute.xlu0 %4678
        %4680 = vrot.lane.b32.xlu0 %v4639, 126
        %v4681 = vpop.permute.xlu0 %4680
        %4682 = vrot.lane.b32.xlu0 %v4640, 126
        %v4683 = vpop.permute.xlu0 %4682
        %4684 = vrot.lane.b32.xlu0 %v4641, 126
        %v4685 = vpop.permute.xlu0 %4684
        %4686 = vrot.lane.b32.xlu0 %v4642, 126
        %v4687 = vpop.permute.xlu0 %4686
        %v4688 = vsel %vm1258, %v4659, %v4661
        %v4689 = vsel %vm1258, %v4661, %v4663
        %v4690 = vsel %vm1258, %v4665, %v4667
        %v4691 = vsel %vm1258, %v4667, %v4669
        %v4692 = vsel %vm1258, %v4671, %v4673
        %v4693 = vsel %vm1258, %v4673, %v4675
        %v4694 = vsel %vm1258, %v4677, %v4679
        %v4695 = vsel %vm1258, %v4679, %v4681
        %v4696 = vsel %vm1258, %v4683, %v4685
        %v4697 = vsel %vm1258, %v4685, %v4687
        %v4713 = vadd.f32 %v4566, %v4688
        %v4714 = vadd.f32 %v4567, %v4689
        %v4715 = vadd.f32 %v4568, %v4663
        %v4716 = vadd.f32 %v4569, %v4690
        %v4717 = vadd.f32 %v4570, %v4691
        %v4718 = vadd.f32 %v4571, %v4669
        %v4719 = vadd.f32 %v4572, %v4692
        %v4720 = vadd.f32 %v4573, %v4693
        %v4721 = vadd.f32 %v4574, %v4675
        %v4722 = vadd.f32 %v4575, %v4694
        %v4723 = vadd.f32 %v4576, %v4695
        %v4724 = vadd.f32 %v4577, %v4681
        %v4725 = vadd.f32 %v4578, %v4696
        %v4726 = vadd.f32 %v4579, %v4697
        %v4727 = vadd.f32 %v4580, %v4687
        %4728 = vset.pattern.permute.xlu0 3
        %4729 = vperm.xlu0 %4728, %v4374
        %v4730 = vpop.permute.xlu0 %4729
        %4732 = vset.pattern.permute.xlu0 3
        %4733 = vperm.xlu0 %4732, %v4375
        %v4734 = vpop.permute.xlu0 %4733
        %4736 = vset.pattern.permute.xlu0 3
        %4737 = vperm.xlu0 %4736, %v4376
        %v4738 = vpop.permute.xlu0 %4737
        %4740 = vset.pattern.permute.xlu0 3
        %4741 = vperm.xlu0 %4740, %v4377
        %v4742 = vpop.permute.xlu0 %4741
        %4744 = vset.pattern.permute.xlu0 3
        %4745 = vperm.xlu0 %4744, %v4378
        %v4746 = vpop.permute.xlu0 %4745
        %v4748 = vmul.f32 %v4359, %v4730
        %v4749 = vmul.f32 %v4360, %v4730
        %v4750 = vmul.f32 %v4361, %v4730
        %v4751 = vmul.f32 %v4362, %v4734
        %v4752 = vmul.f32 %v4363, %v4734
        %v4753 = vmul.f32 %v4364, %v4734
        %v4754 = vmul.f32 %v4365, %v4738
        %v4755 = vmul.f32 %v4366, %v4738
        %v4756 = vmul.f32 %v4367, %v4738
        %v4757 = vmul.f32 %v4368, %v4742
        %v4758 = vmul.f32 %v4369, %v4742
        %v4759 = vmul.f32 %v4370, %v4742
        %v4760 = vmul.f32 %v4371, %v4746
        %v4761 = vmul.f32 %v4372, %v4746
        %v4762 = vmul.f32 %v4373, %v4746
        %4763 = vrot.lane.b32.xlu0 %v4421, 127
        %v4764 = vpop.permute.xlu0 %4763
        %4765 = vrot.lane.b32.xlu0 %v4422, 127
        %v4766 = vpop.permute.xlu0 %4765
        %v4767 = vsel %vm1189, %v4764, %v4766
        %v4771 = vmul.f32 %v4748, %v4764
        %v4772 = vmul.f32 %v4749, %v4767
        %v4773 = vmul.f32 %v4750, %v4766
        %v4774 = vmul.f32 %v4751, %v4764
        %v4775 = vmul.f32 %v4752, %v4767
        %v4776 = vmul.f32 %v4753, %v4766
        %v4777 = vmul.f32 %v4754, %v4764
        %v4778 = vmul.f32 %v4755, %v4767
        %v4779 = vmul.f32 %v4756, %v4766
        %v4780 = vmul.f32 %v4757, %v4764
        %v4781 = vmul.f32 %v4758, %v4767
        %v4782 = vmul.f32 %v4759, %v4766
        %v4783 = vmul.f32 %v4760, %v4764
        %v4784 = vmul.f32 %v4761, %v4767
        %v4785 = vmul.f32 %v4762, %v4766
        %4801 = vrot.lane.b32.xlu0 %v4771, 112
        %v4802 = vpop.permute.xlu0 %4801
        %4803 = vrot.lane.b32.xlu0 %v4772, 112
        %v4804 = vpop.permute.xlu0 %4803
        %4805 = vrot.lane.b32.xlu0 %v4773, 112
        %v4806 = vpop.permute.xlu0 %4805
        %4807 = vrot.lane.b32.xlu0 %v4774, 112
        %v4808 = vpop.permute.xlu0 %4807
        %4809 = vrot.lane.b32.xlu0 %v4775, 112
        %v4810 = vpop.permute.xlu0 %4809
        %4811 = vrot.lane.b32.xlu0 %v4776, 112
        %v4812 = vpop.permute.xlu0 %4811
        %4813 = vrot.lane.b32.xlu0 %v4777, 112
        %v4814 = vpop.permute.xlu0 %4813
        %4815 = vrot.lane.b32.xlu0 %v4778, 112
        %v4816 = vpop.permute.xlu0 %4815
        %4817 = vrot.lane.b32.xlu0 %v4779, 112
        %v4818 = vpop.permute.xlu0 %4817
        %4819 = vrot.lane.b32.xlu0 %v4780, 112
        %v4820 = vpop.permute.xlu0 %4819
        %4821 = vrot.lane.b32.xlu0 %v4781, 112
        %v4822 = vpop.permute.xlu0 %4821
        %4823 = vrot.lane.b32.xlu0 %v4782, 112
        %v4824 = vpop.permute.xlu0 %4823
        %4825 = vrot.lane.b32.xlu0 %v4783, 112
        %v4826 = vpop.permute.xlu0 %4825
        %4827 = vrot.lane.b32.xlu0 %v4784, 112
        %v4828 = vpop.permute.xlu0 %4827
        %4829 = vrot.lane.b32.xlu0 %v4785, 112
        %v4830 = vpop.permute.xlu0 %4829
        %v4831 = vsel %vm1321, %v4802, %v4804
        %v4832 = vsel %vm1321, %v4804, %v4806
        %v4833 = vsel %vm1321, %v4808, %v4810
        %v4834 = vsel %vm1321, %v4810, %v4812
        %v4835 = vsel %vm1321, %v4814, %v4816
        %v4836 = vsel %vm1321, %v4816, %v4818
        %v4837 = vsel %vm1321, %v4820, %v4822
        %v4838 = vsel %vm1321, %v4822, %v4824
        %v4839 = vsel %vm1321, %v4826, %v4828
        %v4840 = vsel %vm1321, %v4828, %v4830
        %v4856 = vadd.f32 %v4713, %v4831
        %v4857 = vadd.f32 %v4714, %v4832
        %v4858 = vadd.f32 %v4715, %v4806
        %v4859 = vadd.f32 %v4716, %v4833
        %v4860 = vadd.f32 %v4717, %v4834
        %v4861 = vadd.f32 %v4718, %v4812
        %v4862 = vadd.f32 %v4719, %v4835
        %v4863 = vadd.f32 %v4720, %v4836
        %v4864 = vadd.f32 %v4721, %v4818
        %v4865 = vadd.f32 %v4722, %v4837
        %v4866 = vadd.f32 %v4723, %v4838
        %v4867 = vadd.f32 %v4724, %v4824
        %v4868 = vadd.f32 %v4725, %v4839
        %v4869 = vadd.f32 %v4726, %v4840
        %v4870 = vadd.f32 %v4727, %v4830
        %4871 = vset.pattern.permute.xlu0 4
        %4872 = vperm.xlu0 %4871, %v4374
        %v4873 = vpop.permute.xlu0 %4872
        %4875 = vset.pattern.permute.xlu0 4
        %4876 = vperm.xlu0 %4875, %v4375
        %v4877 = vpop.permute.xlu0 %4876
        %4879 = vset.pattern.permute.xlu0 4
        %4880 = vperm.xlu0 %4879, %v4376
        %v4881 = vpop.permute.xlu0 %4880
        %4883 = vset.pattern.permute.xlu0 4
        %4884 = vperm.xlu0 %4883, %v4377
        %v4885 = vpop.permute.xlu0 %4884
        %4887 = vset.pattern.permute.xlu0 4
        %4888 = vperm.xlu0 %4887, %v4378
        %v4889 = vpop.permute.xlu0 %4888
        %v4891 = vmul.f32 %v4360, %v4873
        %v4892 = vmul.f32 %v4361, %v4873
        %v4893 = vmul.f32 %v4363, %v4877
        %v4894 = vmul.f32 %v4364, %v4877
        %v4895 = vmul.f32 %v4366, %v4881
        %v4896 = vmul.f32 %v4367, %v4881
        %v4897 = vmul.f32 %v4369, %v4885
        %v4898 = vmul.f32 %v4370, %v4885
        %v4899 = vmul.f32 %v4372, %v4889
        %v4900 = vmul.f32 %v4373, %v4889
        %4911 = vrot.lane.b32.xlu0 %v4891, 111
        %v4912 = vpop.permute.xlu0 %4911
        %4913 = vrot.lane.b32.xlu0 %v4892, 111
        %v4914 = vpop.permute.xlu0 %4913
        %4915 = vrot.lane.b32.xlu0 %v4893, 111
        %v4916 = vpop.permute.xlu0 %4915
        %4917 = vrot.lane.b32.xlu0 %v4894, 111
        %v4918 = vpop.permute.xlu0 %4917
        %4919 = vrot.lane.b32.xlu0 %v4895, 111
        %v4920 = vpop.permute.xlu0 %4919
        %4921 = vrot.lane.b32.xlu0 %v4896, 111
        %v4922 = vpop.permute.xlu0 %4921
        %4923 = vrot.lane.b32.xlu0 %v4897, 111
        %v4924 = vpop.permute.xlu0 %4923
        %4925 = vrot.lane.b32.xlu0 %v4898, 111
        %v4926 = vpop.permute.xlu0 %4925
        %4927 = vrot.lane.b32.xlu0 %v4899, 111
        %v4928 = vpop.permute.xlu0 %4927
        %4929 = vrot.lane.b32.xlu0 %v4900, 111
        %v4930 = vpop.permute.xlu0 %4929
        %v4931 = vsel %vm1140, %v4912, %v4914
        %v4932 = vsel %vm1140, %v4916, %v4918
        %v4933 = vsel %vm1140, %v4920, %v4922
        %v4934 = vsel %vm1140, %v4924, %v4926
        %v4935 = vsel %vm1140, %v4928, %v4930
        %v4951 = vadd.f32 %v4856, %v4912
        %v4952 = vadd.f32 %v4857, %v4931
        %v4953 = vadd.f32 %v4858, %v4914
        %v4954 = vadd.f32 %v4859, %v4916
        %v4955 = vadd.f32 %v4860, %v4932
        %v4956 = vadd.f32 %v4861, %v4918
        %v4957 = vadd.f32 %v4862, %v4920
        %v4958 = vadd.f32 %v4863, %v4933
        %v4959 = vadd.f32 %v4864, %v4922
        %v4960 = vadd.f32 %v4865, %v4924
        %v4961 = vadd.f32 %v4866, %v4934
        %v4962 = vadd.f32 %v4867, %v4926
        %v4963 = vadd.f32 %v4868, %v4928
        %v4964 = vadd.f32 %v4869, %v4935
        %v4965 = vadd.f32 %v4870, %v4930
        %v4966 = vld [vmem:[#allocation2 + $0x8] sm:$0xff]
        %v4967 = vld [vmem:[#allocation2 + $0x10] sm:$0xff]
        %v4968 = vld [vmem:[#allocation2 + $0x18] sm:$0xff]
        %v4969 = vld [vmem:[#allocation2 + $0x28] sm:$0xff]
        %v4970 = vld [vmem:[#allocation2 + $0x30] sm:$0xff]
        %v4971 = vld [vmem:[#allocation2 + $0x38] sm:$0xff]
        %v4972 = vld [vmem:[#allocation2 + $0x48] sm:$0xff]
        %v4973 = vld [vmem:[#allocation2 + $0x50] sm:$0xff]
        %v4974 = vld [vmem:[#allocation2 + $0x58] sm:$0xff]
        %v4975 = vld [vmem:[#allocation2 + $0x68] sm:$0xff]
        %v4976 = vld [vmem:[#allocation2 + $0x70] sm:$0xff]
        %v4977 = vld [vmem:[#allocation2 + $0x78] sm:$0xff]
        %v4978 = vld [vmem:[#allocation2 + $0x88] sm:$0xff]
        %v4979 = vld [vmem:[#allocation2 + $0x90] sm:$0xff]
        %v4980 = vld [vmem:[#allocation2 + $0x98] sm:$0xff]
        %4981 = vset.pattern.permute.xlu0 5
        %4982 = vperm.xlu0 %4981, %v4374
        %v4983 = vpop.permute.xlu0 %4982
        %4985 = vset.pattern.permute.xlu0 5
        %4986 = vperm.xlu0 %4985, %v4375
        %v4987 = vpop.permute.xlu0 %4986
        %4989 = vset.pattern.permute.xlu0 5
        %4990 = vperm.xlu0 %4989, %v4376
        %v4991 = vpop.permute.xlu0 %4990
        %4993 = vset.pattern.permute.xlu0 5
        %4994 = vperm.xlu0 %4993, %v4377
        %v4995 = vpop.permute.xlu0 %4994
        %4997 = vset.pattern.permute.xlu0 5
        %4998 = vperm.xlu0 %4997, %v4378
        %v4999 = vpop.permute.xlu0 %4998
        %v5001 = vmul.f32 %v4966, %v4983
        %v5002 = vmul.f32 %v4967, %v4983
        %v5003 = vmul.f32 %v4968, %v4983
        %v5004 = vmul.f32 %v4969, %v4987
        %v5005 = vmul.f32 %v4970, %v4987
        %v5006 = vmul.f32 %v4971, %v4987
        %v5007 = vmul.f32 %v4972, %v4991
        %v5008 = vmul.f32 %v4973, %v4991
        %v5009 = vmul.f32 %v4974, %v4991
        %v5010 = vmul.f32 %v4975, %v4995
        %v5011 = vmul.f32 %v4976, %v4995
        %v5012 = vmul.f32 %v4977, %v4995
        %v5013 = vmul.f32 %v4978, %v4999
        %v5014 = vmul.f32 %v4979, %v4999
        %v5015 = vmul.f32 %v4980, %v4999
        %5016 = vrot.lane.b32.xlu0 %v4618, 1
        %v5017 = vpop.permute.xlu0 %5016
        %5018 = vrot.lane.b32.xlu0 %v4619, 1
        %v5019 = vpop.permute.xlu0 %5018
        %v5020 = vsel %vm1400, %v5017, %v5019
        %v5024 = vmul.f32 %v5001, %v5017
        %v5025 = vmul.f32 %v5002, %v5020
        %v5026 = vmul.f32 %v5003, %v5019
        %v5027 = vmul.f32 %v5004, %v5017
        %v5028 = vmul.f32 %v5005, %v5020
        %v5029 = vmul.f32 %v5006, %v5019
        %v5030 = vmul.f32 %v5007, %v5017
        %v5031 = vmul.f32 %v5008, %v5020
        %v5032 = vmul.f32 %v5009, %v5019
        %v5033 = vmul.f32 %v5010, %v5017
        %v5034 = vmul.f32 %v5011, %v5020
        %v5035 = vmul.f32 %v5012, %v5019
        %v5036 = vmul.f32 %v5013, %v5017
        %v5037 = vmul.f32 %v5014, %v5020
        %v5038 = vmul.f32 %v5015, %v5019
        %5054 = vrot.lane.b32.xlu0 %v5024, 110
        %v5055 = vpop.permute.xlu0 %5054
        %5056 = vrot.lane.b32.xlu0 %v5025, 110
        %v5057 = vpop.permute.xlu0 %5056
        %5058 = vrot.lane.b32.xlu0 %v5026, 110
        %v5059 = vpop.permute.xlu0 %5058
        %5060 = vrot.lane.b32.xlu0 %v5027, 110
        %v5061 = vpop.permute.xlu0 %5060
        %5062 = vrot.lane.b32.xlu0 %v5028, 110
        %v5063 = vpop.permute.xlu0 %5062
        %5064 = vrot.lane.b32.xlu0 %v5029, 110
        %v5065 = vpop.permute.xlu0 %5064
        %5066 = vrot.lane.b32.xlu0 %v5030, 110
        %v5067 = vpop.permute.xlu0 %5066
        %5068 = vrot.lane.b32.xlu0 %v5031, 110
        %v5069 = vpop.permute.xlu0 %5068
        %5070 = vrot.lane.b32.xlu0 %v5032, 110
        %v5071 = vpop.permute.xlu0 %5070
        %5072 = vrot.lane.b32.xlu0 %v5033, 110
        %v5073 = vpop.permute.xlu0 %5072
        %5074 = vrot.lane.b32.xlu0 %v5034, 110
        %v5075 = vpop.permute.xlu0 %5074
        %5076 = vrot.lane.b32.xlu0 %v5035, 110
        %v5077 = vpop.permute.xlu0 %5076
        %5078 = vrot.lane.b32.xlu0 %v5036, 110
        %v5079 = vpop.permute.xlu0 %5078
        %5080 = vrot.lane.b32.xlu0 %v5037, 110
        %v5081 = vpop.permute.xlu0 %5080
        %5082 = vrot.lane.b32.xlu0 %v5038, 110
        %v5083 = vpop.permute.xlu0 %5082
        %v5084 = vsel %vm1429, %v5055, %v5057
        %v5085 = vsel %vm1429, %v5057, %v5059
        %v5086 = vsel %vm1429, %v5061, %v5063
        %v5087 = vsel %vm1429, %v5063, %v5065
        %v5088 = vsel %vm1429, %v5067, %v5069
        %v5089 = vsel %vm1429, %v5069, %v5071
        %v5090 = vsel %vm1429, %v5073, %v5075
        %v5091 = vsel %vm1429, %v5075, %v5077
        %v5092 = vsel %vm1429, %v5079, %v5081
        %v5093 = vsel %vm1429, %v5081, %v5083
        %v5109 = vadd.f32 %v4951, %v5055
        %v5110 = vadd.f32 %v4952, %v5084
        %v5111 = vadd.f32 %v4953, %v5085
        %v5112 = vadd.f32 %v4954, %v5061
        %v5113 = vadd.f32 %v4955, %v5086
        %v5114 = vadd.f32 %v4956, %v5087
        %v5115 = vadd.f32 %v4957, %v5067
        %v5116 = vadd.f32 %v4958, %v5088
        %v5117 = vadd.f32 %v4959, %v5089
        %v5118 = vadd.f32 %v4960, %v5073
        %v5119 = vadd.f32 %v4961, %v5090
        %v5120 = vadd.f32 %v4962, %v5091
        %v5121 = vadd.f32 %v4963, %v5079
        %v5122 = vadd.f32 %v4964, %v5092
        %v5123 = vadd.f32 %v4965, %v5093
        %5124 = vset.pattern.permute.xlu0 6
        %5125 = vperm.xlu0 %5124, %v4374
        %v5126 = vpop.permute.xlu0 %5125
        %5128 = vset.pattern.permute.xlu0 6
        %5129 = vperm.xlu0 %5128, %v4375
        %v5130 = vpop.permute.xlu0 %5129
        %5132 = vset.pattern.permute.xlu0 6
        %5133 = vperm.xlu0 %5132, %v4376
        %v5134 = vpop.permute.xlu0 %5133
        %5136 = vset.pattern.permute.xlu0 6
        %5137 = vperm.xlu0 %5136, %v4377
        %v5138 = vpop.permute.xlu0 %5137
        %5140 = vset.pattern.permute.xlu0 6
        %5141 = vperm.xlu0 %5140, %v4378
        %v5142 = vpop.permute.xlu0 %5141
        %v5144 = vmul.f32 %v4966, %v5126
        %v5145 = vmul.f32 %v4967, %v5126
        %v5146 = vmul.f32 %v4968, %v5126
        %v5147 = vmul.f32 %v4969, %v5130
        %v5148 = vmul.f32 %v4970, %v5130
        %v5149 = vmul.f32 %v4971, %v5130
        %v5150 = vmul.f32 %v4972, %v5134
        %v5151 = vmul.f32 %v4973, %v5134
        %v5152 = vmul.f32 %v4974, %v5134
        %v5153 = vmul.f32 %v4975, %v5138
        %v5154 = vmul.f32 %v4976, %v5138
        %v5155 = vmul.f32 %v4977, %v5138
        %v5156 = vmul.f32 %v4978, %v5142
        %v5157 = vmul.f32 %v4979, %v5142
        %v5158 = vmul.f32 %v4980, %v5142
        %5159 = vrot.lane.b32.xlu0 %v4421, 15
        %v5160 = vpop.permute.xlu0 %5159
        %5161 = vrot.lane.b32.xlu0 %v4422, 15
        %v5162 = vpop.permute.xlu0 %5161
        %v5163 = vsel %vm1464, %v5160, %v5162
        %v5167 = vmul.f32 %v5144, %v5160
        %v5168 = vmul.f32 %v5145, %v5163
        %v5169 = vmul.f32 %v5146, %v5162
        %v5170 = vmul.f32 %v5147, %v5160
        %v5171 = vmul.f32 %v5148, %v5163
        %v5172 = vmul.f32 %v5149, %v5162
        %v5173 = vmul.f32 %v5150, %v5160
        %v5174 = vmul.f32 %v5151, %v5163
        %v5175 = vmul.f32 %v5152, %v5162
        %v5176 = vmul.f32 %v5153, %v5160
        %v5177 = vmul.f32 %v5154, %v5163
        %v5178 = vmul.f32 %v5155, %v5162
        %v5179 = vmul.f32 %v5156, %v5160
        %v5180 = vmul.f32 %v5157, %v5163
        %v5181 = vmul.f32 %v5158, %v5162
        %5197 = vrot.lane.b32.xlu0 %v5167, 96
        %v5198 = vpop.permute.xlu0 %5197
        %5199 = vrot.lane.b32.xlu0 %v5168, 96
        %v5200 = vpop.permute.xlu0 %5199
        %5201 = vrot.lane.b32.xlu0 %v5169, 96
        %v5202 = vpop.permute.xlu0 %5201
        %5203 = vrot.lane.b32.xlu0 %v5170, 96
        %v5204 = vpop.permute.xlu0 %5203
        %5205 = vrot.lane.b32.xlu0 %v5171, 96
        %v5206 = vpop.permute.xlu0 %5205
        %5207 = vrot.lane.b32.xlu0 %v5172, 96
        %v5208 = vpop.permute.xlu0 %5207
        %5209 = vrot.lane.b32.xlu0 %v5173, 96
        %v5210 = vpop.permute.xlu0 %5209
        %5211 = vrot.lane.b32.xlu0 %v5174, 96
        %v5212 = vpop.permute.xlu0 %5211
        %5213 = vrot.lane.b32.xlu0 %v5175, 96
        %v5214 = vpop.permute.xlu0 %5213
        %5215 = vrot.lane.b32.xlu0 %v5176, 96
        %v5216 = vpop.permute.xlu0 %5215
        %5217 = vrot.lane.b32.xlu0 %v5177, 96
        %v5218 = vpop.permute.xlu0 %5217
        %5219 = vrot.lane.b32.xlu0 %v5178, 96
        %v5220 = vpop.permute.xlu0 %5219
        %5221 = vrot.lane.b32.xlu0 %v5179, 96
        %v5222 = vpop.permute.xlu0 %5221
        %5223 = vrot.lane.b32.xlu0 %v5180, 96
        %v5224 = vpop.permute.xlu0 %5223
        %5225 = vrot.lane.b32.xlu0 %v5181, 96
        %v5226 = vpop.permute.xlu0 %5225
        %v5227 = vsel %vm1493, %v5198, %v5200
        %v5228 = vsel %vm1493, %v5200, %v5202
        %v5229 = vsel %vm1493, %v5204, %v5206
        %v5230 = vsel %vm1493, %v5206, %v5208
        %v5231 = vsel %vm1493, %v5210, %v5212
        %v5232 = vsel %vm1493, %v5212, %v5214
        %v5233 = vsel %vm1493, %v5216, %v5218
        %v5234 = vsel %vm1493, %v5218, %v5220
        %v5235 = vsel %vm1493, %v5222, %v5224
        %v5236 = vsel %vm1493, %v5224, %v5226
        %v5252 = vadd.f32 %v5109, %v5198
        %v5253 = vadd.f32 %v5110, %v5227
        %v5254 = vadd.f32 %v5111, %v5228
        %v5255 = vadd.f32 %v5112, %v5204
        %v5256 = vadd.f32 %v5113, %v5229
        %v5257 = vadd.f32 %v5114, %v5230
        %v5258 = vadd.f32 %v5115, %v5210
        %v5259 = vadd.f32 %v5116, %v5231
        %v5260 = vadd.f32 %v5117, %v5232
        %v5261 = vadd.f32 %v5118, %v5216
        %v5262 = vadd.f32 %v5119, %v5233
        %v5263 = vadd.f32 %v5120, %v5234
        %v5264 = vadd.f32 %v5121, %v5222
        %v5265 = vadd.f32 %v5122, %v5235
        %v5266 = vadd.f32 %v5123, %v5236
        %5267 = vset.pattern.permute.xlu0 7
        %5268 = vperm.xlu0 %5267, %v4374
        %v5269 = vpop.permute.xlu0 %5268
        %5271 = vset.pattern.permute.xlu0 7
        %5272 = vperm.xlu0 %5271, %v4375
        %v5273 = vpop.permute.xlu0 %5272
        %5275 = vset.pattern.permute.xlu0 7
        %5276 = vperm.xlu0 %5275, %v4376
        %v5277 = vpop.permute.xlu0 %5276
        %5279 = vset.pattern.permute.xlu0 7
        %5280 = vperm.xlu0 %5279, %v4377
        %v5281 = vpop.permute.xlu0 %5280
        %5283 = vset.pattern.permute.xlu0 7
        %5284 = vperm.xlu0 %5283, %v4378
        %v5285 = vpop.permute.xlu0 %5284
        %v5287 = vmul.f32 %v4966, %v5269
        %v5288 = vmul.f32 %v4967, %v5269
        %v5289 = vmul.f32 %v4968, %v5269
        %v5290 = vmul.f32 %v4969, %v5273
        %v5291 = vmul.f32 %v4970, %v5273
        %v5292 = vmul.f32 %v4971, %v5273
        %v5293 = vmul.f32 %v4972, %v5277
        %v5294 = vmul.f32 %v4973, %v5277
        %v5295 = vmul.f32 %v4974, %v5277
        %v5296 = vmul.f32 %v4975, %v5281
        %v5297 = vmul.f32 %v4976, %v5281
        %v5298 = vmul.f32 %v4977, %v5281
        %v5299 = vmul.f32 %v4978, %v5285
        %v5300 = vmul.f32 %v4979, %v5285
        %v5301 = vmul.f32 %v4980, %v5285
        %5317 = vrot.lane.b32.xlu0 %v5287, 95
        %v5318 = vpop.permute.xlu0 %5317
        %5319 = vrot.lane.b32.xlu0 %v5288, 95
        %v5320 = vpop.permute.xlu0 %5319
        %5321 = vrot.lane.b32.xlu0 %v5289, 95
        %v5322 = vpop.permute.xlu0 %5321
        %5323 = vrot.lane.b32.xlu0 %v5290, 95
        %v5324 = vpop.permute.xlu0 %5323
        %5325 = vrot.lane.b32.xlu0 %v5291, 95
        %v5326 = vpop.permute.xlu0 %5325
        %5327 = vrot.lane.b32.xlu0 %v5292, 95
        %v5328 = vpop.permute.xlu0 %5327
        %5329 = vrot.lane.b32.xlu0 %v5293, 95
        %v5330 = vpop.permute.xlu0 %5329
        %5331 = vrot.lane.b32.xlu0 %v5294, 95
        %v5332 = vpop.permute.xlu0 %5331
        %5333 = vrot.lane.b32.xlu0 %v5295, 95
        %v5334 = vpop.permute.xlu0 %5333
        %5335 = vrot.lane.b32.xlu0 %v5296, 95
        %v5336 = vpop.permute.xlu0 %5335
        %5337 = vrot.lane.b32.xlu0 %v5297, 95
        %v5338 = vpop.permute.xlu0 %5337
        %5339 = vrot.lane.b32.xlu0 %v5298, 95
        %v5340 = vpop.permute.xlu0 %5339
        %5341 = vrot.lane.b32.xlu0 %v5299, 95
        %v5342 = vpop.permute.xlu0 %5341
        %5343 = vrot.lane.b32.xlu0 %v5300, 95
        %v5344 = vpop.permute.xlu0 %5343
        %5345 = vrot.lane.b32.xlu0 %v5301, 95
        %v5346 = vpop.permute.xlu0 %5345
        %v5347 = vsel %vm1542, %v5318, %v5320
        %v5348 = vsel %vm1542, %v5320, %v5322
        %v5349 = vsel %vm1542, %v5324, %v5326
        %v5350 = vsel %vm1542, %v5326, %v5328
        %v5351 = vsel %vm1542, %v5330, %v5332
        %v5352 = vsel %vm1542, %v5332, %v5334
        %v5353 = vsel %vm1542, %v5336, %v5338
        %v5354 = vsel %vm1542, %v5338, %v5340
        %v5355 = vsel %vm1542, %v5342, %v5344
        %v5356 = vsel %vm1542, %v5344, %v5346
        %v5372 = vadd.f32 %v5252, %v5318
        %v5373 = vadd.f32 %v5253, %v5347
        %v5374 = vadd.f32 %v5254, %v5348
        %v5375 = vadd.f32 %v5255, %v5324
        %v5376 = vadd.f32 %v5256, %v5349
        %v5377 = vadd.f32 %v5257, %v5350
        %v5378 = vadd.f32 %v5258, %v5330
        %v5379 = vadd.f32 %v5259, %v5351
        %v5380 = vadd.f32 %v5260, %v5352
        %v5381 = vadd.f32 %v5261, %v5336
        %v5382 = vadd.f32 %v5262, %v5353
        %v5383 = vadd.f32 %v5263, %v5354
        %v5384 = vadd.f32 %v5264, %v5342
        %v5385 = vadd.f32 %v5265, %v5355
        %v5386 = vadd.f32 %v5266, %v5356
        %5387 = vset.pattern.permute.xlu0 8
        %5388 = vperm.xlu0 %5387, %v4374
        %v5389 = vpop.permute.xlu0 %5388
        %5391 = vset.pattern.permute.xlu0 8
        %5392 = vperm.xlu0 %5391, %v4375
        %v5393 = vpop.permute.xlu0 %5392
        %5395 = vset.pattern.permute.xlu0 8
        %5396 = vperm.xlu0 %5395, %v4376
        %v5397 = vpop.permute.xlu0 %5396
        %5399 = vset.pattern.permute.xlu0 8
        %5400 = vperm.xlu0 %5399, %v4377
        %v5401 = vpop.permute.xlu0 %5400
        %5403 = vset.pattern.permute.xlu0 8
        %5404 = vperm.xlu0 %5403, %v4378
        %v5405 = vpop.permute.xlu0 %5404
        %v5407 = vmul.f32 %v4966, %v5389
        %v5408 = vmul.f32 %v4967, %v5389
        %v5409 = vmul.f32 %v4968, %v5389
        %v5410 = vmul.f32 %v4969, %v5393
        %v5411 = vmul.f32 %v4970, %v5393
        %v5412 = vmul.f32 %v4971, %v5393
        %v5413 = vmul.f32 %v4972, %v5397
        %v5414 = vmul.f32 %v4973, %v5397
        %v5415 = vmul.f32 %v4974, %v5397
        %v5416 = vmul.f32 %v4975, %v5401
        %v5417 = vmul.f32 %v4976, %v5401
        %v5418 = vmul.f32 %v4977, %v5401
        %v5419 = vmul.f32 %v4978, %v5405
        %v5420 = vmul.f32 %v4979, %v5405
        %v5421 = vmul.f32 %v4980, %v5405
        %5422 = vrot.lane.b32.xlu0 %v4618, 17
        %v5423 = vpop.permute.xlu0 %5422
        %5424 = vrot.lane.b32.xlu0 %v4619, 17
        %v5425 = vpop.permute.xlu0 %5424
        %v5426 = vsel %vm1577, %v5423, %v5425
        %v5430 = vmul.f32 %v5407, %v5423
        %v5431 = vmul.f32 %v5408, %v5426
        %v5432 = vmul.f32 %v5409, %v5425
        %v5433 = vmul.f32 %v5410, %v5423
        %v5434 = vmul.f32 %v5411, %v5426
        %v5435 = vmul.f32 %v5412, %v5425
        %v5436 = vmul.f32 %v5413, %v5423
        %v5437 = vmul.f32 %v5414, %v5426
        %v5438 = vmul.f32 %v5415, %v5425
        %v5439 = vmul.f32 %v5416, %v5423
        %v5440 = vmul.f32 %v5417, %v5426
        %v5441 = vmul.f32 %v5418, %v5425
        %v5442 = vmul.f32 %v5419, %v5423
        %v5443 = vmul.f32 %v5420, %v5426
        %v5444 = vmul.f32 %v5421, %v5425
        %5460 = vrot.lane.b32.xlu0 %v5430, 94
        %v5461 = vpop.permute.xlu0 %5460
        %5462 = vrot.lane.b32.xlu0 %v5431, 94
        %v5463 = vpop.permute.xlu0 %5462
        %5464 = vrot.lane.b32.xlu0 %v5432, 94
        %v5465 = vpop.permute.xlu0 %5464
        %5466 = vrot.lane.b32.xlu0 %v5433, 94
        %v5467 = vpop.permute.xlu0 %5466
        %5468 = vrot.lane.b32.xlu0 %v5434, 94
        %v5469 = vpop.permute.xlu0 %5468
        %5470 = vrot.lane.b32.xlu0 %v5435, 94
        %v5471 = vpop.permute.xlu0 %5470
        %5472 = vrot.lane.b32.xlu0 %v5436, 94
        %v5473 = vpop.permute.xlu0 %5472
        %5474 = vrot.lane.b32.xlu0 %v5437, 94
        %v5475 = vpop.permute.xlu0 %5474
        %5476 = vrot.lane.b32.xlu0 %v5438, 94
        %v5477 = vpop.permute.xlu0 %5476
        %5478 = vrot.lane.b32.xlu0 %v5439, 94
        %v5479 = vpop.permute.xlu0 %5478
        %5480 = vrot.lane.b32.xlu0 %v5440, 94
        %v5481 = vpop.permute.xlu0 %5480
        %5482 = vrot.lane.b32.xlu0 %v5441, 94
        %v5483 = vpop.permute.xlu0 %5482
        %5484 = vrot.lane.b32.xlu0 %v5442, 94
        %v5485 = vpop.permute.xlu0 %5484
        %5486 = vrot.lane.b32.xlu0 %v5443, 94
        %v5487 = vpop.permute.xlu0 %5486
        %5488 = vrot.lane.b32.xlu0 %v5444, 94
        %v5489 = vpop.permute.xlu0 %5488
        %v5490 = vsel %vm1606, %v5461, %v5463
        %v5491 = vsel %vm1606, %v5463, %v5465
        %v5492 = vsel %vm1606, %v5467, %v5469
        %v5493 = vsel %vm1606, %v5469, %v5471
        %v5494 = vsel %vm1606, %v5473, %v5475
        %v5495 = vsel %vm1606, %v5475, %v5477
        %v5496 = vsel %vm1606, %v5479, %v5481
        %v5497 = vsel %vm1606, %v5481, %v5483
        %v5498 = vsel %vm1606, %v5485, %v5487
        %v5499 = vsel %vm1606, %v5487, %v5489
        %v5515 = vadd.f32 %v5372, %v5461
        %v5516 = vadd.f32 %v5373, %v5490
        %v5517 = vadd.f32 %v5374, %v5491
        %v5518 = vadd.f32 %v5375, %v5467
        %v5519 = vadd.f32 %v5376, %v5492
        %v5520 = vadd.f32 %v5377, %v5493
        %v5521 = vadd.f32 %v5378, %v5473
        %v5522 = vadd.f32 %v5379, %v5494
        %v5523 = vadd.f32 %v5380, %v5495
        %v5524 = vadd.f32 %v5381, %v5479
        %v5525 = vadd.f32 %v5382, %v5496
        %v5526 = vadd.f32 %v5383, %v5497
        %v5527 = vadd.f32 %v5384, %v5485
        %v5528 = vadd.f32 %v5385, %v5498
        %v5529 = vadd.f32 %v5386, %v5499
        %v5530 = vld [vmem:[%s45] sm:$0xff]
        %v5531 = vld [vmem:[%s45 + $0x8] sm:$0xff]
        %v5532 = vld [vmem:[%s45 + $0x10] sm:$0xff]
        %v5533 = vld [vmem:[%s45 + $0x18] sm:$0xff]
        %v5534 = vld [vmem:[%s45 + $0x20] sm:$0xff]
        %5536 = vset.pattern.permute.xlu0 0
        %5537 = vperm.xlu0 %5536, %v5530
        %v5538 = vpop.permute.xlu0 %5537
        %5541 = vset.pattern.permute.xlu0 0
        %5542 = vperm.xlu0 %5541, %v5531
        %v5543 = vpop.permute.xlu0 %5542
        %5546 = vset.pattern.permute.xlu0 0
        %5547 = vperm.xlu0 %5546, %v5532
        %v5548 = vpop.permute.xlu0 %5547
        %5551 = vset.pattern.permute.xlu0 0
        %5552 = vperm.xlu0 %5551, %v5533
        %v5553 = vpop.permute.xlu0 %5552
        %5556 = vset.pattern.permute.xlu0 0
        %5557 = vperm.xlu0 %5556, %v5534
        %v5558 = vpop.permute.xlu0 %5557
        %v5560 = vadd.f32 %v5515, %v5538
        %v5561 = vadd.f32 %v5516, %v5538
        %v5562 = vadd.f32 %v5517, %v5538
        %v5563 = vadd.f32 %v5518, %v5543
        %v5564 = vadd.f32 %v5519, %v5543
        %v5565 = vadd.f32 %v5520, %v5543
        %v5566 = vadd.f32 %v5521, %v5548
        %v5567 = vadd.f32 %v5522, %v5548
        %v5568 = vadd.f32 %v5523, %v5548
        %v5569 = vadd.f32 %v5524, %v5553
        %v5570 = vadd.f32 %v5525, %v5553
        %v5571 = vadd.f32 %v5526, %v5553
        %v5572 = vadd.f32 %v5527, %v5558
        %v5573 = vadd.f32 %v5528, %v5558
        %v5574 = vadd.f32 %v5529, %v5558
        %v5575 = vadd.f32 %v5560, 3.0
        %v5576 = vadd.f32 %v5561, 3.0
        %v5577 = vadd.f32 %v5562, 3.0
        %v5578 = vadd.f32 %v5563, 3.0
        %v5579 = vadd.f32 %v5564, 3.0
        %v5580 = vadd.f32 %v5565, 3.0
        %v5581 = vadd.f32 %v5566, 3.0
        %v5582 = vadd.f32 %v5567, 3.0
        %v5583 = vadd.f32 %v5568, 3.0
        %v5584 = vadd.f32 %v5569, 3.0
        %v5585 = vadd.f32 %v5570, 3.0
        %v5586 = vadd.f32 %v5571, 3.0
        %v5587 = vadd.f32 %v5572, 3.0
        %v5588 = vadd.f32 %v5573, 3.0
        %v5589 = vadd.f32 %v5574, 3.0
        %v5590 = vmax.f32 %v5575, 0.0
        %v5591 = vmax.f32 %v5576, 0.0
        %v5592 = vmax.f32 %v5577, 0.0
        %v5593 = vmax.f32 %v5578, 0.0
        %v5594 = vmax.f32 %v5579, 0.0
        %v5595 = vmax.f32 %v5580, 0.0
        %v5596 = vmax.f32 %v5581, 0.0
        %v5597 = vmax.f32 %v5582, 0.0
        %v5598 = vmax.f32 %v5583, 0.0
        %v5599 = vmax.f32 %v5584, 0.0
        %v5600 = vmax.f32 %v5585, 0.0
        %v5601 = vmax.f32 %v5586, 0.0
        %v5602 = vmax.f32 %v5587, 0.0
        %v5603 = vmax.f32 %v5588, 0.0
        %v5604 = vmax.f32 %v5589, 0.0
        %v5605 = vmin.f32 %v5590, 6.0
        %v5606 = vmin.f32 %v5591, 6.0
        %v5607 = vmin.f32 %v5592, 6.0
        %v5608 = vmin.f32 %v5593, 6.0
        %v5609 = vmin.f32 %v5594, 6.0
        %v5610 = vmin.f32 %v5595, 6.0
        %v5611 = vmin.f32 %v5596, 6.0
        %v5612 = vmin.f32 %v5597, 6.0
        %v5613 = vmin.f32 %v5598, 6.0
        %v5614 = vmin.f32 %v5599, 6.0
        %v5615 = vmin.f32 %v5600, 6.0
        %v5616 = vmin.f32 %v5601, 6.0
        %v5617 = vmin.f32 %v5602, 6.0
        %v5618 = vmin.f32 %v5603, 6.0
        %v5619 = vmin.f32 %v5604, 6.0
        %v5620 = vmul.f32 %v5560, %v5605
        %v5621 = vmul.f32 %v5561, %v5606
        %v5622 = vmul.f32 %v5562, %v5607
        %v5623 = vmul.f32 %v5563, %v5608
        %v5624 = vmul.f32 %v5564, %v5609
        %v5625 = vmul.f32 %v5565, %v5610
        %v5626 = vmul.f32 %v5566, %v5611
        %v5627 = vmul.f32 %v5567, %v5612
        %v5628 = vmul.f32 %v5568, %v5613
        %v5629 = vmul.f32 %v5569, %v5614
        %v5630 = vmul.f32 %v5570, %v5615
        %v5631 = vmul.f32 %v5571, %v5616
        %v5632 = vmul.f32 %v5572, %v5617
        %v5633 = vmul.f32 %v5573, %v5618
        %v5634 = vmul.f32 %v5574, %v5619
        %v5635 = vmul.f32 %v5620, 0.16666667
        %v5636 = vmul.f32 %v5621, 0.16666667
        %v5637 = vmul.f32 %v5622, 0.16666667
        %v5638 = vmul.f32 %v5623, 0.16666667
        %v5639 = vmul.f32 %v5624, 0.16666667
        %v5640 = vmul.f32 %v5625, 0.16666667
        %v5641 = vmul.f32 %v5626, 0.16666667
        %v5642 = vmul.f32 %v5627, 0.16666667
        %v5643 = vmul.f32 %v5628, 0.16666667
        %v5644 = vmul.f32 %v5629, 0.16666667
        %v5645 = vmul.f32 %v5630, 0.16666667
        %v5646 = vmul.f32 %v5631, 0.16666667
        %v5647 = vmul.f32 %v5632, 0.16666667
        %v5648 = vmul.f32 %v5633, 0.16666667
        %v5649 = vmul.f32 %v5634, 0.16666667
        %v5650 = vld [vmem:[%s47] sm:$0xff]
        %v5651 = vld [vmem:[%s47 + $0x8] sm:$0xff]
        %v5652 = vld [vmem:[%s47 + $0x10] sm:$0xff]
        %v5653 = vld [vmem:[%s47 + $0x18] sm:$0xff]
        %v5654 = vld [vmem:[%s47 + $0x20] sm:$0xff]
        %v5655 = vld [vmem:[%s47 + $0x28] sm:$0xff]
        %v5656 = vld [vmem:[%s49] sm:$0xff]
        %v5657 = vld [vmem:[%s49 + $0x8] sm:$0xff]
        %v5658 = vld [vmem:[%s49 + $0x10] sm:$0xff]
        %v5659 = vld [vmem:[%s49 + $0x18] sm:$0xff]
        %v5660 = vld [vmem:[%s49 + $0x20] sm:$0xff]
        %v5661 = vld [vmem:[%s49 + $0x28] sm:$0xff]
        %5663 = vset.pattern.permute.xlu0 0
        %5664 = vperm.xlu0 %5663, %v5656
        %v5665 = vpop.permute.xlu0 %5664
        %5668 = vset.pattern.permute.xlu0 0
        %5669 = vperm.xlu0 %5668, %v5657
        %v5670 = vpop.permute.xlu0 %5669
        %5673 = vset.pattern.permute.xlu0 0
        %5674 = vperm.xlu0 %5673, %v5658
        %v5675 = vpop.permute.xlu0 %5674
        %5678 = vset.pattern.permute.xlu0 0
        %5679 = vperm.xlu0 %5678, %v5659
        %v5680 = vpop.permute.xlu0 %5679
        %5683 = vset.pattern.permute.xlu0 0
        %5684 = vperm.xlu0 %5683, %v5660
        %v5685 = vpop.permute.xlu0 %5684
        %5688 = vset.pattern.permute.xlu0 0
        %5689 = vperm.xlu0 %5688, %v5661
        %v5690 = vpop.permute.xlu0 %5689
        %5707 = vrot.lane.b32.xlu0 %v5635, 17
        %v5708 = vpop.permute.xlu0 %5707
        %5709 = vrot.lane.b32.xlu0 %v5636, 17
        %v5710 = vpop.permute.xlu0 %5709
        %5711 = vrot.lane.b32.xlu0 %v5637, 17
        %v5712 = vpop.permute.xlu0 %5711
        %5713 = vrot.lane.b32.xlu0 %v5638, 17
        %v5714 = vpop.permute.xlu0 %5713
        %5715 = vrot.lane.b32.xlu0 %v5639, 17
        %v5716 = vpop.permute.xlu0 %5715
        %5717 = vrot.lane.b32.xlu0 %v5640, 17
        %v5718 = vpop.permute.xlu0 %5717
        %5719 = vrot.lane.b32.xlu0 %v5641, 17
        %v5720 = vpop.permute.xlu0 %5719
        %5721 = vrot.lane.b32.xlu0 %v5642, 17
        %v5722 = vpop.permute.xlu0 %5721
        %5723 = vrot.lane.b32.xlu0 %v5643, 17
        %v5724 = vpop.permute.xlu0 %5723
        %5725 = vrot.lane.b32.xlu0 %v5644, 17
        %v5726 = vpop.permute.xlu0 %5725
        %5727 = vrot.lane.b32.xlu0 %v5645, 17
        %v5728 = vpop.permute.xlu0 %5727
        %5729 = vrot.lane.b32.xlu0 %v5646, 17
        %v5730 = vpop.permute.xlu0 %5729
        %5731 = vrot.lane.b32.xlu0 %v5647, 17
        %v5732 = vpop.permute.xlu0 %5731
        %5733 = vrot.lane.b32.xlu0 %v5648, 17
        %v5734 = vpop.permute.xlu0 %5733
        %5735 = vrot.lane.b32.xlu0 %v5649, 17
        %v5736 = vpop.permute.xlu0 %5735
        %v5737 = vsel %vm1577, %v5708, %v5710
        %v5738 = vsel %vm1577, %v5710, %v5712
        %v5739 = vsel %vm1577, %v5714, %v5716
        %v5740 = vsel %vm1577, %v5716, %v5718
        %v5741 = vsel %vm1577, %v5720, %v5722
        %v5742 = vsel %vm1577, %v5722, %v5724
        %v5743 = vsel %vm1577, %v5726, %v5728
        %v5744 = vsel %vm1577, %v5728, %v5730
        %v5745 = vsel %vm1577, %v5732, %v5734
        %v5746 = vsel %vm1577, %v5734, %v5736
        %vm5757 = vcmask 326656
        %v5759 = vsel %vm5757, %v5650, 0
        %v5762 = vsel %vm5757, %v5651, 0
        %v5765 = vsel %vm5757, %v5652, 0
        %v5768 = vsel %vm5757, %v5653, 0
        %v5771 = vsel %vm5757, %v5654, 0
        %v5774 = vsel %vm5757, %v5655, 0
        %5776 = vmatpush.msra.mxu0 0.0
        %5777 = vmatpush.msra.mxu0 0.0
        %5778 = vmatpush.msra.mxu0 0.0
        %5779 = vmatpush.msra.mxu0 0.0
        %5780 = vmatpush.msra.mxu0 0.0
        %5781 = vmatpush.msra.mxu0 0.0
        %5782 = vmatpush.msra.mxu0 0.0
        %5783 = vmatpush.msra.mxu0 0.0
        %5784 = vmatpush.msra.mxu0 0.0
        %5785 = vmatpush.msra.mxu0 0.0
        %5786 = vmatpush.msra.mxu0 0.0
        %5787 = vmatpush.msra.mxu0 %v5745
        %5788 = vmatpush.msra.mxu0 %v5743
        %5789 = vmatpush.msra.mxu0 %v5741
        %5790 = vmatpush.msra.mxu0 %v5739
        %5791 = vmatpush.msra.mxu0 %v5737
        %5792 = vmatmul.f32.gmra.mxu0 %v5759
        %v5793 = vpop.f32.mrf.mxu0
        %v5794 = vadd.f32 %v5665, %v5793
        %5795 = vmatmul.f32.gmra.mxu0 %v5762
        %v5796 = vpop.f32.mrf.mxu0
        %v5797 = vadd.f32 %v5670, %v5796
        %5798 = vmatmul.f32.gmra.mxu0 %v5765
        %v5799 = vpop.f32.mrf.mxu0
        %v5800 = vadd.f32 %v5675, %v5799
        %5801 = vmatmul.f32.gmra.mxu0 %v5768
        %v5802 = vpop.f32.mrf.mxu0
        %v5803 = vadd.f32 %v5680, %v5802
        %5804 = vmatmul.f32.gmra.mxu0 %v5771
        %v5805 = vpop.f32.mrf.mxu0
        %v5806 = vadd.f32 %v5685, %v5805
        %5807 = vmatmul.f32.gmra.mxu0 %v5774
        %v5808 = vpop.f32.mrf.mxu0
        %v5809 = vadd.f32 %v5690, %v5808
        %5810 = vdwg.mxu0
        %5811 = vmatpush.msra.mxu0 0.0
        %5812 = vmatpush.msra.mxu0 0.0
        %5813 = vmatpush.msra.mxu0 0.0
        %5814 = vmatpush.msra.mxu0 0.0
        %5815 = vmatpush.msra.mxu0 0.0
        %5816 = vmatpush.msra.mxu0 0.0
        %5817 = vmatpush.msra.mxu0 0.0
        %5818 = vmatpush.msra.mxu0 0.0
        %5819 = vmatpush.msra.mxu0 0.0
        %5820 = vmatpush.msra.mxu0 0.0
        %5821 = vmatpush.msra.mxu0 0.0
        %5822 = vmatpush.msra.mxu0 %v5746
        %5823 = vmatpush.msra.mxu0 %v5744
        %5824 = vmatpush.msra.mxu0 %v5742
        %5825 = vmatpush.msra.mxu0 %v5740
        %5826 = vmatpush.msra.mxu0 %v5738
        %5827 = vmatmul.f32.gmra.mxu0 %v5759
        %v5828 = vpop.f32.mrf.mxu0
        %v5829 = vadd.f32 %v5665, %v5828
        %5830 = vmatmul.f32.gmra.mxu0 %v5762
        %v5831 = vpop.f32.mrf.mxu0
        %v5832 = vadd.f32 %v5670, %v5831
        %5833 = vmatmul.f32.gmra.mxu0 %v5765
        %v5834 = vpop.f32.mrf.mxu0
        %v5835 = vadd.f32 %v5675, %v5834
        %5836 = vmatmul.f32.gmra.mxu0 %v5768
        %v5837 = vpop.f32.mrf.mxu0
        %v5838 = vadd.f32 %v5680, %v5837
        %5839 = vmatmul.f32.gmra.mxu0 %v5771
        %v5840 = vpop.f32.mrf.mxu0
        %v5841 = vadd.f32 %v5685, %v5840
        %5842 = vmatmul.f32.gmra.mxu0 %v5774
        %v5843 = vpop.f32.mrf.mxu0
        %v5844 = vadd.f32 %v5690, %v5843
        %5845 = vdwg.mxu0
        %v5846 = vadd.f32 %v5794, 3.0
        %v5847 = vadd.f32 %v5829, 3.0
        %v5848 = vadd.f32 %v5797, 3.0
        %v5849 = vadd.f32 %v5832, 3.0
        %v5850 = vadd.f32 %v5800, 3.0
        %v5851 = vadd.f32 %v5835, 3.0
        %v5852 = vadd.f32 %v5803, 3.0
        %v5853 = vadd.f32 %v5838, 3.0
        %v5854 = vadd.f32 %v5806, 3.0
        %v5855 = vadd.f32 %v5841, 3.0
        %v5856 = vadd.f32 %v5809, 3.0
        %v5857 = vadd.f32 %v5844, 3.0
        %v5858 = vmax.f32 %v5846, 0.0
        %v5859 = vmax.f32 %v5847, 0.0
        %v5860 = vmax.f32 %v5848, 0.0
        %v5861 = vmax.f32 %v5849, 0.0
        %v5862 = vmax.f32 %v5850, 0.0
        %v5863 = vmax.f32 %v5851, 0.0
        %v5864 = vmax.f32 %v5852, 0.0
        %v5865 = vmax.f32 %v5853, 0.0
        %v5866 = vmax.f32 %v5854, 0.0
        %v5867 = vmax.f32 %v5855, 0.0
        %v5868 = vmax.f32 %v5856, 0.0
        %v5869 = vmax.f32 %v5857, 0.0
        %v5870 = vmin.f32 %v5858, 6.0
        %v5871 = vmin.f32 %v5859, 6.0
        %v5872 = vmin.f32 %v5860, 6.0
        %v5873 = vmin.f32 %v5861, 6.0
        %v5874 = vmin.f32 %v5862, 6.0
        %v5875 = vmin.f32 %v5863, 6.0
        %v5876 = vmin.f32 %v5864, 6.0
        %v5877 = vmin.f32 %v5865, 6.0
        %v5878 = vmin.f32 %v5866, 6.0
        %v5879 = vmin.f32 %v5867, 6.0
        %v5880 = vmin.f32 %v5868, 6.0
        %v5881 = vmin.f32 %v5869, 6.0
        %v5882 = vmul.f32 %v5794, %v5870
        %v5883 = vmul.f32 %v5829, %v5871
        %v5884 = vmul.f32 %v5797, %v5872
        %v5885 = vmul.f32 %v5832, %v5873
        %v5886 = vmul.f32 %v5800, %v5874
        %v5887 = vmul.f32 %v5835, %v5875
        %v5888 = vmul.f32 %v5803, %v5876
        %v5889 = vmul.f32 %v5838, %v5877
        %v5890 = vmul.f32 %v5806, %v5878
        %v5891 = vmul.f32 %v5841, %v5879
        %v5892 = vmul.f32 %v5809, %v5880
        %v5893 = vmul.f32 %v5844, %v5881
        %v5894 = vmul.f32 %v5882, 0.16666667
        %v5895 = vmul.f32 %v5883, 0.16666667
        %v5896 = vmul.f32 %v5884, 0.16666667
        %v5897 = vmul.f32 %v5885, 0.16666667
        %v5898 = vmul.f32 %v5886, 0.16666667
        %v5899 = vmul.f32 %v5887, 0.16666667
        %v5900 = vmul.f32 %v5888, 0.16666667
        %v5901 = vmul.f32 %v5889, 0.16666667
        %v5902 = vmul.f32 %v5890, 0.16666667
        %v5903 = vmul.f32 %v5891, 0.16666667
        %v5904 = vmul.f32 %v5892, 0.16666667
        %v5905 = vmul.f32 %v5893, 0.16666667
        %v5906 = vld [vmem:[%s5] sm:$0xff]
        %v5907 = vld [vmem:[%s5 + $0x8] sm:$0xff]
        %v5908 = vld [vmem:[%s5 + $0x10] sm:$0xff]
        %v5909 = vld [vmem:[%s5 + $0x18] sm:$0xff]
        %v5910 = vld [vmem:[%s5 + $0x20] sm:$0xff]
        %v5911 = vld [vmem:[%s5 + $0x28] sm:$0xff]
        %v5912 = vld [vmem:[%s5 + $0x30] sm:$0xff]
        %v5913 = vld [vmem:[%s5 + $0x38] sm:$0xff]
        %v5914 = vld [vmem:[%s5 + $0x40] sm:$0xff]
        %v5915 = vld [vmem:[%s5 + $0x48] sm:$0xff]
        %v5916 = vld [vmem:[%s5 + $0x50] sm:$0xff]
        %v5917 = vld [vmem:[%s5 + $0x58] sm:$0xff]
        %v5918 = vld [vmem:[%s5 + $0x60] sm:$0xff]
        %v5919 = vld [vmem:[%s5 + $0x68] sm:$0xff]
        %v5920 = vld [vmem:[%s5 + $0x70] sm:$0xff]
        %v5921 = vld [vmem:[%s5 + $0x78] sm:$0xff]
        %v5922 = vld [vmem:[%s5 + $0x80] sm:$0xff]
        %v5923 = vld [vmem:[%s5 + $0x88] sm:$0xff]
        %v5924 = vld [vmem:[%s5 + $0x90] sm:$0xff]
        %v5925 = vld [vmem:[%s5 + $0x98] sm:$0xff]
        %v5926 = vld [vmem:[%s5 + $0xa0] sm:$0xff]
        %v5927 = vld [vmem:[%s5 + $0xa8] sm:$0xff]
        %v5928 = vld [vmem:[%s5 + $0xb0] sm:$0xff]
        %v5929 = vld [vmem:[%s5 + $0xb8] sm:$0xff]
        %v5930 = vld [vmem:[%s5 + $0xc0] sm:$0xff]
        %v5931 = vld [vmem:[%s5 + $0xc8] sm:$0xff]
        %v5932 = vld [vmem:[%s5 + $0xd0] sm:$0xff]
        %v5933 = vld [vmem:[%s5 + $0xd8] sm:$0xff]
        %v5934 = vld [vmem:[%s5 + $0xe0] sm:$0xff]
        %v5935 = vld [vmem:[%s5 + $0xe8] sm:$0xff]
        %v5936 = vld [vmem:[%s5 + $0xf0] sm:$0xff]
        %v5937 = vld [vmem:[%s5 + $0xf8] sm:$0xff]
        %5938 = vmatpush.msra.mxu0 %v5921
        %5939 = vmatpush.msra.mxu0 %v5920
        %5940 = vmatpush.msra.mxu0 %v5919
        %5941 = vmatpush.msra.mxu0 %v5918
        %5942 = vmatpush.msra.mxu0 %v5917
        %5943 = vmatpush.msra.mxu0 %v5916
        %5944 = vmatpush.msra.mxu0 %v5915
        %5945 = vmatpush.msra.mxu0 %v5914
        %5946 = vmatpush.msra.mxu0 %v5913
        %5947 = vmatpush.msra.mxu0 %v5912
        %5948 = vmatpush.msra.mxu0 %v5911
        %5949 = vmatpush.msra.mxu0 %v5910
        %5950 = vmatpush.msra.mxu0 %v5909
        %5951 = vmatpush.msra.mxu0 %v5908
        %5952 = vmatpush.msra.mxu0 %v5907
        %5953 = vmatpush.msra.mxu0 %v5906
        %5954 = vmatmul.f32.gmra.mxu0 %v2382
        %v5955 = vpop.f32.mrf.mxu0
        %v5956 = vadd.f32 0.0, %v5955
        %5957 = vmatmul.f32.gmra.mxu0 %v2384
        %v5958 = vpop.f32.mrf.mxu0
        %v5959 = vadd.f32 0.0, %v5958
        %5960 = vmatmul.f32.gmra.mxu0 %v2386
        %v5961 = vpop.f32.mrf.mxu0
        %v5962 = vadd.f32 0.0, %v5961
        %5963 = vdwg.mxu0
        %5964 = vmatpush.msra.mxu0 %v5937
        %5965 = vmatpush.msra.mxu0 %v5936
        %5966 = vmatpush.msra.mxu0 %v5935
        %5967 = vmatpush.msra.mxu0 %v5934
        %5968 = vmatpush.msra.mxu0 %v5933
        %5969 = vmatpush.msra.mxu0 %v5932
        %5970 = vmatpush.msra.mxu0 %v5931
        %5971 = vmatpush.msra.mxu0 %v5930
        %5972 = vmatpush.msra.mxu0 %v5929
        %5973 = vmatpush.msra.mxu0 %v5928
        %5974 = vmatpush.msra.mxu0 %v5927
        %5975 = vmatpush.msra.mxu0 %v5926
        %5976 = vmatpush.msra.mxu0 %v5925
        %5977 = vmatpush.msra.mxu0 %v5924
        %5978 = vmatpush.msra.mxu0 %v5923
        %5979 = vmatpush.msra.mxu0 %v5922
        %5980 = vmatmul.f32.gmra.mxu0 %v2383
        %v5981 = vpop.f32.mrf.mxu0
        %v5982 = vadd.f32 %v5956, %v5981
        %5983 = vmatmul.f32.gmra.mxu0 %v2385
        %v5984 = vpop.f32.mrf.mxu0
        %v5985 = vadd.f32 %v5959, %v5984
        %5986 = vmatmul.f32.gmra.mxu0 %v2387
        %v5987 = vpop.f32.mrf.mxu0
        %v5988 = vadd.f32 %v5962, %v5987
        %5989 = vdwg.mxu0
        %v5990 = vlaneseq
        %vm5991 = vcmp.ge.s32.totalorder %v5990, 0
        %vm5992 = vcmp.lt.s32.totalorder %v5990, 64
        %vm5993 = vmand %vm5991, %vm5992
        %5994 = vst.msk [vmem:[#allocation3] sm:$0x1] %vm5993, %v5982
        %5996 = vst [vmem:[#allocation1] sm:$0xff] %v5982
        %s5997 = scalar_lea.vmem [#allocation1], 1
        %v5998 = vld [vmem:[%s5997] ss:$9 sm:$0xff]
        %5999 = vrot.lane.b32.xlu0 %v5998, 64
        %v6000 = vpop.permute.xlu0 %5999
        %vm6002 = vcmp.ge.s32.totalorder %v5990, 64
        %vm6003 = vcmp.lt.s32.totalorder %v5990, 128
        %vm6004 = vmand %vm6002, %vm6003
        %6005 = vst.msk [vmem:[#allocation3] sm:$0x1] %vm6004, %v6000
        %6006 = vst [vmem:[#allocation1] sm:$0xff] %v5982
        %s6007 = scalar_lea.vmem [#allocation1], 2
        %v6008 = vld [vmem:[%s6007] ss:$9 sm:$0xff]
        %6010 = vst.msk [vmem:[#allocation3 + $0x1] sm:$0x1] %vm5993, %v6008
        %6011 = vst [vmem:[#allocation1] sm:$0xff] %v5982
        %s6012 = scalar_lea.vmem [#allocation1], 3
        %v6013 = vld [vmem:[%s6012] ss:$9 sm:$0xff]
        %6014 = vrot.lane.b32.xlu0 %v6013, 64
        %v6015 = vpop.permute.xlu0 %6014
        %6017 = vst.msk [vmem:[#allocation3 + $0x1] sm:$0x1] %vm6004, %v6015
        %6018 = vst [vmem:[#allocation1] sm:$0xff] %v5982
        %s6019 = scalar_lea.vmem [#allocation1], 4
        %v6020 = vld [vmem:[%s6019] ss:$9 sm:$0xff]
        %6022 = vst.msk [vmem:[#allocation3 + $0x2] sm:$0x1] %vm5993, %v6020
        %6023 = vst [vmem:[#allocation1] sm:$0xff] %v5982
        %s6024 = scalar_lea.vmem [#allocation1], 5
        %v6025 = vld [vmem:[%s6024] ss:$9 sm:$0xff]
        %6026 = vrot.lane.b32.xlu0 %v6025, 64
        %v6027 = vpop.permute.xlu0 %6026
        %6029 = vst.msk [vmem:[#allocation3 + $0x2] sm:$0x1] %vm6004, %v6027
        %6030 = vst [vmem:[#allocation1] sm:$0xff] %v5982
        %s6031 = scalar_lea.vmem [#allocation1], 6
        %v6032 = vld [vmem:[%s6031] ss:$9 sm:$0xff]
        %6034 = vst.msk [vmem:[#allocation3 + $0x3] sm:$0x1] %vm5993, %v6032
        %6035 = vst [vmem:[#allocation1] sm:$0xff] %v5982
        %s6036 = scalar_lea.vmem [#allocation1], 7
        %v6037 = vld [vmem:[%s6036] ss:$9 sm:$0xff]
        %6038 = vrot.lane.b32.xlu0 %v6037, 64
        %v6039 = vpop.permute.xlu0 %6038
        %6041 = vst.msk [vmem:[#allocation3 + $0x3] sm:$0x1] %vm6004, %v6039
        %6042 = vst.msk [vmem:[#allocation3 + $0x4] sm:$0x1] %vm5993, %v5985
        %6044 = vst [vmem:[#allocation1] sm:$0xff] %v5985
        %s6045 = scalar_lea.vmem [#allocation1], 1
        %v6046 = vld [vmem:[%s6045] ss:$9 sm:$0xff]
        %6047 = vrot.lane.b32.xlu0 %v6046, 64
        %v6048 = vpop.permute.xlu0 %6047
        %6050 = vst.msk [vmem:[#allocation3 + $0x4] sm:$0x1] %vm6004, %v6048
        %6051 = vst [vmem:[#allocation1] sm:$0xff] %v5985
        %s6052 = scalar_lea.vmem [#allocation1], 2
        %v6053 = vld [vmem:[%s6052] ss:$9 sm:$0xff]
        %6055 = vst.msk [vmem:[#allocation3 + $0x5] sm:$0x1] %vm5993, %v6053
        %6056 = vst [vmem:[#allocation1] sm:$0xff] %v5985
        %s6057 = scalar_lea.vmem [#allocation1], 3
        %v6058 = vld [vmem:[%s6057] ss:$9 sm:$0xff]
        %6059 = vrot.lane.b32.xlu0 %v6058, 64
        %v6060 = vpop.permute.xlu0 %6059
        %6062 = vst.msk [vmem:[#allocation3 + $0x5] sm:$0x1] %vm6004, %v6060
        %6063 = vst [vmem:[#allocation1] sm:$0xff] %v5985
        %s6064 = scalar_lea.vmem [#allocation1], 4
        %v6065 = vld [vmem:[%s6064] ss:$9 sm:$0xff]
        %6067 = vst.msk [vmem:[#allocation3 + $0x6] sm:$0x1] %vm5993, %v6065
        %6068 = vst [vmem:[#allocation1] sm:$0xff] %v5985
        %s6069 = scalar_lea.vmem [#allocation1], 5
        %v6070 = vld [vmem:[%s6069] ss:$9 sm:$0xff]
        %6071 = vrot.lane.b32.xlu0 %v6070, 64
        %v6072 = vpop.permute.xlu0 %6071
        %6074 = vst.msk [vmem:[#allocation3 + $0x6] sm:$0x1] %vm6004, %v6072
        %6075 = vst [vmem:[#allocation1] sm:$0xff] %v5985
        %s6076 = scalar_lea.vmem [#allocation1], 6
        %v6077 = vld [vmem:[%s6076] ss:$9 sm:$0xff]
        %6079 = vst.msk [vmem:[#allocation3 + $0x7] sm:$0x1] %vm5993, %v6077
        %6080 = vst [vmem:[#allocation1] sm:$0xff] %v5985
        %s6081 = scalar_lea.vmem [#allocation1], 7
        %v6082 = vld [vmem:[%s6081] ss:$9 sm:$0xff]
        %6083 = vrot.lane.b32.xlu0 %v6082, 64
        %v6084 = vpop.permute.xlu0 %6083
        %6086 = vst.msk [vmem:[#allocation3 + $0x7] sm:$0x1] %vm6004, %v6084
        %6087 = vst.msk [vmem:[#allocation3 + $0x8] sm:$0x1] %vm5993, %v5988
        %6089 = vst [vmem:[#allocation1] sm:$0xff] %v5988
        %s6090 = scalar_lea.vmem [#allocation1], 1
        %v6091 = vld [vmem:[%s6090] ss:$9 sm:$0xff]
        %6092 = vrot.lane.b32.xlu0 %v6091, 64
        %v6093 = vpop.permute.xlu0 %6092
        %6095 = vst.msk [vmem:[#allocation3 + $0x8] sm:$0x1] %vm6004, %v6093
        %6096 = vst [vmem:[#allocation1] sm:$0xff] %v5988
        %s6097 = scalar_lea.vmem [#allocation1], 2
        %v6098 = vld [vmem:[%s6097] ss:$9 sm:$0xff]
        %6100 = vst.msk [vmem:[#allocation3 + $0x9] sm:$0x1] %vm5993, %v6098
        %6101 = vst [vmem:[#allocation1] sm:$0xff] %v5988
        %s6102 = scalar_lea.vmem [#allocation1], 3
        %v6103 = vld [vmem:[%s6102] ss:$9 sm:$0xff]
        %6104 = vrot.lane.b32.xlu0 %v6103, 64
        %v6105 = vpop.permute.xlu0 %6104
        %6107 = vst.msk [vmem:[#allocation3 + $0x9] sm:$0x1] %vm6004, %v6105
        %6108 = vst [vmem:[#allocation1] sm:$0xff] %v5988
        %s6109 = scalar_lea.vmem [#allocation1], 4
        %v6110 = vld [vmem:[%s6109] ss:$9 sm:$0xff]
        %6112 = vst.msk [vmem:[#allocation3 + $0xa] sm:$0x1] %vm5993, %v6110
        %6113 = vst [vmem:[#allocation1] sm:$0xff] %v5988
        %s6114 = scalar_lea.vmem [#allocation1], 5
        %v6115 = vld [vmem:[%s6114] ss:$9 sm:$0xff]
        %6116 = vrot.lane.b32.xlu0 %v6115, 64
        %v6117 = vpop.permute.xlu0 %6116
        %6119 = vst.msk [vmem:[#allocation3 + $0xa] sm:$0x1] %vm6004, %v6117
        %6120 = vst [vmem:[#allocation1] sm:$0xff] %v5988
        %s6121 = scalar_lea.vmem [#allocation1], 6
        %v6122 = vld [vmem:[%s6121] ss:$9 sm:$0xff]
        %6124 = vst.msk [vmem:[#allocation3 + $0xb] sm:$0x1] %vm5993, %v6122
        %6125 = vst [vmem:[#allocation1] sm:$0xff] %v5988
        %s6126 = scalar_lea.vmem [#allocation1], 7
        %v6127 = vld [vmem:[%s6126] ss:$9 sm:$0xff]
        %6128 = vrot.lane.b32.xlu0 %v6127, 64
        %v6129 = vpop.permute.xlu0 %6128
        %6131 = vst.msk [vmem:[#allocation3 + $0xb] sm:$0x1] %vm6004, %v6129
        %v6132 = vld [vmem:[#allocation3] sm:$0xff]
        %v6133 = vld [vmem:[#allocation3 + $0x8] sm:$0xf]
        %v6134 = vld [vmem:[%s51] sm:$0xff]
        %v6135 = vld [vmem:[%s51 + $0x8] sm:$0xff]
        %v6136 = vld [vmem:[%s51 + $0x10] sm:$0xff]
        %v6137 = vld [vmem:[%s51 + $0x18] sm:$0xff]
        %v6138 = vld [vmem:[%s51 + $0x20] sm:$0xff]
        %v6139 = vld [vmem:[%s51 + $0x28] sm:$0xff]
        %v6140 = vld [vmem:[%s51 + $0x30] sm:$0xff]
        %v6141 = vld [vmem:[%s51 + $0x38] sm:$0xff]
        %v6142 = vld [vmem:[%s51 + $0x40] sm:$0xff]
        %v6143 = vld [vmem:[%s51 + $0x48] sm:$0xff]
        %v6144 = vld [vmem:[%s51 + $0x50] sm:$0xff]
        %v6145 = vld [vmem:[%s51 + $0x58] sm:$0xff]
        %v6146 = vld [vmem:[%s51 + $0x60] sm:$0xff]
        %v6147 = vld [vmem:[%s51 + $0x68] sm:$0xff]
        %v6148 = vld [vmem:[%s51 + $0x70] sm:$0xff]
        %v6149 = vld [vmem:[%s51 + $0x78] sm:$0xff]
        %v6150 = vld [vmem:[%s51 + $0x80] sm:$0xff]
        %v6151 = vld [vmem:[%s51 + $0x88] sm:$0xff]
        %v6152 = vld [vmem:[%s51 + $0x90] sm:$0xff]
        %v6153 = vld [vmem:[%s51 + $0x98] sm:$0xff]
        %v6154 = vld [vmem:[%s51 + $0xa0] sm:$0xff]
        %v6155 = vld [vmem:[%s51 + $0xa8] sm:$0xff]
        %v6156 = vld [vmem:[%s51 + $0xb0] sm:$0xff]
        %v6157 = vld [vmem:[%s51 + $0xb8] sm:$0xff]
        %v6158 = vld [vmem:[%s51 + $0xc0] sm:$0xff]
        %v6159 = vld [vmem:[%s51 + $0xc8] sm:$0xff]
        %v6160 = vld [vmem:[%s51 + $0xd0] sm:$0xff]
        %v6161 = vld [vmem:[%s51 + $0xd8] sm:$0xff]
        %v6162 = vld [vmem:[%s51 + $0xe0] sm:$0xff]
        %v6163 = vld [vmem:[%s51 + $0xe8] sm:$0xff]
        %v6164 = vld [vmem:[%s51 + $0xf0] sm:$0xff]
        %v6165 = vld [vmem:[%s51 + $0xf8] sm:$0xff]
        %v6166 = vld [vmem:[%s51 + $0x100] sm:$0xff]
        %v6167 = vld [vmem:[%s51 + $0x108] sm:$0xff]
        %v6168 = vld [vmem:[%s51 + $0x110] sm:$0xff]
        %v6169 = vld [vmem:[%s51 + $0x118] sm:$0xff]
        %v6170 = vld [vmem:[%s51 + $0x120] sm:$0xff]
        %v6171 = vld [vmem:[%s51 + $0x128] sm:$0xff]
        %v6172 = vld [vmem:[%s51 + $0x130] sm:$0xff]
        %v6173 = vld [vmem:[%s51 + $0x138] sm:$0xff]
        %v6174 = vld [vmem:[%s51 + $0x140] sm:$0xff]
        %v6175 = vld [vmem:[%s51 + $0x148] sm:$0xff]
        %v6176 = vld [vmem:[%s51 + $0x150] sm:$0xff]
        %v6177 = vld [vmem:[%s51 + $0x158] sm:$0xff]
        %v6178 = vld [vmem:[%s51 + $0x160] sm:$0xff]
        %v6179 = vld [vmem:[%s51 + $0x168] sm:$0xff]
        %v6180 = vld [vmem:[%s51 + $0x170] sm:$0xff]
        %v6181 = vld [vmem:[%s51 + $0x178] sm:$0xff]
        %v6182 = vld [vmem:[%s51 + $0x180] sm:$0xff]
        %v6183 = vld [vmem:[%s51 + $0x188] sm:$0xff]
        %v6184 = vld [vmem:[%s51 + $0x190] sm:$0xff]
        %v6185 = vld [vmem:[%s51 + $0x198] sm:$0xff]
        %v6186 = vld [vmem:[%s51 + $0x1a0] sm:$0xff]
        %v6187 = vld [vmem:[%s51 + $0x1a8] sm:$0xff]
        %v6188 = vld [vmem:[%s51 + $0x1b0] sm:$0xff]
        %v6189 = vld [vmem:[%s51 + $0x1b8] sm:$0xff]
        %v6190 = vld [vmem:[%s51 + $0x1c0] sm:$0xff]
        %v6191 = vld [vmem:[%s51 + $0x1c8] sm:$0xff]
        %v6192 = vld [vmem:[%s51 + $0x1d0] sm:$0xff]
        %v6193 = vld [vmem:[%s51 + $0x1d8] sm:$0xff]
        %v6194 = vld [vmem:[%s51 + $0x1e0] sm:$0xff]
        %v6195 = vld [vmem:[%s51 + $0x1e8] sm:$0xff]
        %v6196 = vld [vmem:[%s51 + $0x1f0] sm:$0xff]
        %v6197 = vld [vmem:[%s51 + $0x1f8] sm:$0xff]
        %v6198 = vld [vmem:[%s51 + $0x200] sm:$0xff]
        %v6199 = vld [vmem:[%s51 + $0x208] sm:$0xff]
        %v6200 = vld [vmem:[%s51 + $0x210] sm:$0xff]
        %v6201 = vld [vmem:[%s51 + $0x218] sm:$0xff]
        %v6202 = vld [vmem:[%s51 + $0x220] sm:$0xff]
        %v6203 = vld [vmem:[%s51 + $0x228] sm:$0xff]
        %v6204 = vld [vmem:[%s51 + $0x230] sm:$0xff]
        %v6205 = vld [vmem:[%s51 + $0x238] sm:$0xff]
        %v6206 = vld [vmem:[%s51 + $0x240] sm:$0xff]
        %v6207 = vld [vmem:[%s51 + $0x248] sm:$0xff]
        %v6208 = vld [vmem:[%s51 + $0x250] sm:$0xff]
        %v6209 = vld [vmem:[%s51 + $0x258] sm:$0xff]
        %v6210 = vld [vmem:[%s51 + $0x260] sm:$0xff]
        %v6211 = vld [vmem:[%s51 + $0x268] sm:$0xff]
        %v6212 = vld [vmem:[%s51 + $0x270] sm:$0xff]
        %v6213 = vld [vmem:[%s51 + $0x278] sm:$0xff]
        %v6214 = vld [vmem:[%s51 + $0x280] sm:$0xff]
        %v6215 = vld [vmem:[%s51 + $0x288] sm:$0xff]
        %v6216 = vld [vmem:[%s51 + $0x290] sm:$0xff]
        %v6217 = vld [vmem:[%s51 + $0x298] sm:$0xff]
        %v6218 = vld [vmem:[%s51 + $0x2a0] sm:$0xff]
        %v6219 = vld [vmem:[%s51 + $0x2a8] sm:$0xff]
        %v6220 = vld [vmem:[%s51 + $0x2b0] sm:$0xff]
        %v6221 = vld [vmem:[%s51 + $0x2b8] sm:$0xff]
        %v6222 = vld [vmem:[%s51 + $0x2c0] sm:$0xff]
        %v6223 = vld [vmem:[%s51 + $0x2c8] sm:$0xff]
        %v6224 = vld [vmem:[%s51 + $0x2d0] sm:$0xff]
        %v6225 = vld [vmem:[%s51 + $0x2d8] sm:$0xff]
        %v6226 = vld [vmem:[%s51 + $0x2e0] sm:$0xff]
        %v6227 = vld [vmem:[%s51 + $0x2e8] sm:$0xff]
        %v6228 = vld [vmem:[%s51 + $0x2f0] sm:$0xff]
        %v6229 = vld [vmem:[%s51 + $0x2f8] sm:$0xff]
        %v6230 = vld [vmem:[%s51 + $0x300] sm:$0xff]
        %v6231 = vld [vmem:[%s51 + $0x308] sm:$0xff]
        %v6232 = vld [vmem:[%s51 + $0x310] sm:$0xff]
        %v6233 = vld [vmem:[%s51 + $0x318] sm:$0xff]
        %v6234 = vld [vmem:[%s51 + $0x320] sm:$0xff]
        %v6235 = vld [vmem:[%s51 + $0x328] sm:$0xff]
        %v6236 = vld [vmem:[%s51 + $0x330] sm:$0xff]
        %v6237 = vld [vmem:[%s51 + $0x338] sm:$0xff]
        %v6238 = vld [vmem:[%s51 + $0x340] sm:$0xff]
        %v6239 = vld [vmem:[%s51 + $0x348] sm:$0xff]
        %v6240 = vld [vmem:[%s51 + $0x350] sm:$0xff]
        %v6241 = vld [vmem:[%s51 + $0x358] sm:$0xff]
        %v6242 = vld [vmem:[%s51 + $0x360] sm:$0xff]
        %v6243 = vld [vmem:[%s51 + $0x368] sm:$0xff]
        %v6244 = vld [vmem:[%s51 + $0x370] sm:$0xff]
        %v6245 = vld [vmem:[%s51 + $0x378] sm:$0xff]
        %v6246 = vld [vmem:[%s51 + $0x380] sm:$0xff]
        %v6247 = vld [vmem:[%s51 + $0x388] sm:$0xff]
        %v6248 = vld [vmem:[%s51 + $0x390] sm:$0xff]
        %v6249 = vld [vmem:[%s51 + $0x398] sm:$0xff]
        %v6250 = vld [vmem:[%s51 + $0x3a0] sm:$0xff]
        %v6251 = vld [vmem:[%s51 + $0x3a8] sm:$0xff]
        %v6252 = vld [vmem:[%s51 + $0x3b0] sm:$0xff]
        %v6253 = vld [vmem:[%s51 + $0x3b8] sm:$0xff]
        %v6254 = vld [vmem:[%s51 + $0x3c0] sm:$0xff]
        %v6255 = vld [vmem:[%s51 + $0x3c8] sm:$0xff]
        %v6256 = vld [vmem:[%s51 + $0x3d0] sm:$0xff]
        %v6257 = vld [vmem:[%s51 + $0x3d8] sm:$0xff]
        %v6258 = vld [vmem:[%s51 + $0x3e0] sm:$0xff]
        %v6259 = vld [vmem:[%s51 + $0x3e8] sm:$0xff]
        %v6260 = vld [vmem:[%s51 + $0x3f0] sm:$0xff]
        %v6261 = vld [vmem:[%s51 + $0x3f8] sm:$0xff]
        %v6262 = vld [vmem:[%s51 + $0x400] sm:$0xff]
        %v6263 = vld [vmem:[%s51 + $0x408] sm:$0xff]
        %v6264 = vld [vmem:[%s51 + $0x410] sm:$0xff]
        %v6265 = vld [vmem:[%s51 + $0x418] sm:$0xff]
        %v6266 = vld [vmem:[%s51 + $0x420] sm:$0xff]
        %v6267 = vld [vmem:[%s51 + $0x428] sm:$0xff]
        %v6268 = vld [vmem:[%s51 + $0x430] sm:$0xff]
        %v6269 = vld [vmem:[%s51 + $0x438] sm:$0xff]
        %v6270 = vld [vmem:[%s51 + $0x440] sm:$0xff]
        %v6271 = vld [vmem:[%s51 + $0x448] sm:$0xff]
        %v6272 = vld [vmem:[%s51 + $0x450] sm:$0xff]
        %v6273 = vld [vmem:[%s51 + $0x458] sm:$0xff]
        %v6274 = vld [vmem:[%s51 + $0x460] sm:$0xff]
        %v6275 = vld [vmem:[%s51 + $0x468] sm:$0xff]
        %v6276 = vld [vmem:[%s51 + $0x470] sm:$0xff]
        %v6277 = vld [vmem:[%s51 + $0x478] sm:$0xff]
        %v6278 = vld [vmem:[%s51 + $0x480] sm:$0xff]
        %v6279 = vld [vmem:[%s51 + $0x488] sm:$0xff]
        %v6280 = vld [vmem:[%s51 + $0x490] sm:$0xff]
        %v6281 = vld [vmem:[%s51 + $0x498] sm:$0xff]
        %v6282 = vld [vmem:[%s51 + $0x4a0] sm:$0xff]
        %v6283 = vld [vmem:[%s51 + $0x4a8] sm:$0xff]
        %v6284 = vld [vmem:[%s51 + $0x4b0] sm:$0xff]
        %v6285 = vld [vmem:[%s51 + $0x4b8] sm:$0xff]
        %v6286 = vld [vmem:[%s51 + $0x4c0] sm:$0xff]
        %v6287 = vld [vmem:[%s51 + $0x4c8] sm:$0xff]
        %v6288 = vld [vmem:[%s51 + $0x4d0] sm:$0xff]
        %v6289 = vld [vmem:[%s51 + $0x4d8] sm:$0xff]
        %v6290 = vld [vmem:[%s51 + $0x4e0] sm:$0xff]
        %v6291 = vld [vmem:[%s51 + $0x4e8] sm:$0xff]
        %v6292 = vld [vmem:[%s51 + $0x4f0] sm:$0xff]
        %v6293 = vld [vmem:[%s51 + $0x4f8] sm:$0xff]
        %v6294 = vld [vmem:[%s51 + $0x500] sm:$0xff]
        %v6295 = vld [vmem:[%s51 + $0x508] sm:$0xff]
        %v6296 = vld [vmem:[%s51 + $0x510] sm:$0xff]
        %v6297 = vld [vmem:[%s51 + $0x518] sm:$0xff]
        %v6298 = vld [vmem:[%s51 + $0x520] sm:$0xff]
        %v6299 = vld [vmem:[%s51 + $0x528] sm:$0xff]
        %v6300 = vld [vmem:[%s51 + $0x530] sm:$0xff]
        %v6301 = vld [vmem:[%s51 + $0x538] sm:$0xff]
        %v6302 = vld [vmem:[%s51 + $0x540] sm:$0xff]
        %v6303 = vld [vmem:[%s51 + $0x548] sm:$0xff]
        %v6304 = vld [vmem:[%s51 + $0x550] sm:$0xff]
        %v6305 = vld [vmem:[%s51 + $0x558] sm:$0xff]
        %v6306 = vld [vmem:[%s51 + $0x560] sm:$0xff]
        %v6307 = vld [vmem:[%s51 + $0x568] sm:$0xff]
        %v6308 = vld [vmem:[%s51 + $0x570] sm:$0xff]
        %v6309 = vld [vmem:[%s51 + $0x578] sm:$0xff]
        %v6310 = vld [vmem:[%s51 + $0x580] sm:$0xff]
        %v6311 = vld [vmem:[%s51 + $0x588] sm:$0xff]
        %v6312 = vld [vmem:[%s51 + $0x590] sm:$0xff]
        %v6313 = vld [vmem:[%s51 + $0x598] sm:$0xff]
        %v6314 = vld [vmem:[%s51 + $0x5a0] sm:$0xff]
        %v6315 = vld [vmem:[%s51 + $0x5a8] sm:$0xff]
        %v6316 = vld [vmem:[%s51 + $0x5b0] sm:$0xff]
        %v6317 = vld [vmem:[%s51 + $0x5b8] sm:$0xff]
        %v6318 = vld [vmem:[%s51 + $0x5c0] sm:$0xff]
        %v6319 = vld [vmem:[%s51 + $0x5c8] sm:$0xff]
        %v6320 = vld [vmem:[%s51 + $0x5d0] sm:$0xff]
        %v6321 = vld [vmem:[%s51 + $0x5d8] sm:$0xff]
        %v6322 = vld [vmem:[%s51 + $0x5e0] sm:$0xff]
        %v6323 = vld [vmem:[%s51 + $0x5e8] sm:$0xff]
        %v6324 = vld [vmem:[%s51 + $0x5f0] sm:$0xff]
        %v6325 = vld [vmem:[%s51 + $0x5f8] sm:$0xff]
        %v6326 = vld [vmem:[%s53] sm:$0x1]
        %v6329 = vperm.slane %v6132, 0
        %v6330 = vperm.slane %v6132, 1
        %v6331 = vperm.slane %v6132, 2
        %v6332 = vperm.slane %v6132, 3
        %v6333 = vperm.slane %v6132, 4
        %v6334 = vperm.slane %v6132, 5
        %v6335 = vperm.slane %v6132, 6
        %v6336 = vperm.slane %v6132, 7
        %v6337 = vperm.slane %v6133, 0
        %v6338 = vperm.slane %v6133, 1
        %v6339 = vperm.slane %v6133, 2
        %v6340 = vperm.slane %v6133, 3
        %6353 = vmatpush.msra.mxu0 %v6149
        %6354 = vmatpush.msra.mxu0 %v6148
        %6355 = vmatpush.msra.mxu0 %v6147
        %6356 = vmatpush.msra.mxu0 %v6146
        %6357 = vmatpush.msra.mxu0 %v6145
        %6358 = vmatpush.msra.mxu0 %v6144
        %6359 = vmatpush.msra.mxu0 %v6143
        %6360 = vmatpush.msra.mxu0 %v6142
        %6361 = vmatpush.msra.mxu0 %v6141
        %6362 = vmatpush.msra.mxu0 %v6140
        %6363 = vmatpush.msra.mxu0 %v6139
        %6364 = vmatpush.msra.mxu0 %v6138
        %6365 = vmatpush.msra.mxu0 %v6137
        %6366 = vmatpush.msra.mxu0 %v6136
        %6367 = vmatpush.msra.mxu0 %v6135
        %6368 = vmatpush.msra.mxu0 %v6134
        %6369 = vmatmul.f32.gmra.mxu0 %v6329
        %v6370 = vpop.f32.mrf.mxu0
        %v6371 = vadd.f32 %v6326, %v6370
        %6372 = vdwg.mxu0
        %6373 = vmatpush.msra.mxu0 %v6165
        %6374 = vmatpush.msra.mxu0 %v6164
        %6375 = vmatpush.msra.mxu0 %v6163
        %6376 = vmatpush.msra.mxu0 %v6162
        %6377 = vmatpush.msra.mxu0 %v6161
        %6378 = vmatpush.msra.mxu0 %v6160
        %6379 = vmatpush.msra.mxu0 %v6159
        %6380 = vmatpush.msra.mxu0 %v6158
        %6381 = vmatpush.msra.mxu0 %v6157
        %6382 = vmatpush.msra.mxu0 %v6156
        %6383 = vmatpush.msra.mxu0 %v6155
        %6384 = vmatpush.msra.mxu0 %v6154
        %6385 = vmatpush.msra.mxu0 %v6153
        %6386 = vmatpush.msra.mxu0 %v6152
        %6387 = vmatpush.msra.mxu0 %v6151
        %6388 = vmatpush.msra.mxu0 %v6150
        %6389 = vmatmul.f32.gmra.mxu0 %v6330
        %v6390 = vpop.f32.mrf.mxu0
        %v6391 = vadd.f32 %v6371, %v6390
        %6392 = vdwg.mxu0
        %6393 = vmatpush.msra.mxu0 %v6181
        %6394 = vmatpush.msra.mxu0 %v6180
        %6395 = vmatpush.msra.mxu0 %v6179
        %6396 = vmatpush.msra.mxu0 %v6178
        %6397 = vmatpush.msra.mxu0 %v6177
        %6398 = vmatpush.msra.mxu0 %v6176
        %6399 = vmatpush.msra.mxu0 %v6175
        %6400 = vmatpush.msra.mxu0 %v6174
        %6401 = vmatpush.msra.mxu0 %v6173
        %6402 = vmatpush.msra.mxu0 %v6172
        %6403 = vmatpush.msra.mxu0 %v6171
        %6404 = vmatpush.msra.mxu0 %v6170
        %6405 = vmatpush.msra.mxu0 %v6169
        %6406 = vmatpush.msra.mxu0 %v6168
        %6407 = vmatpush.msra.mxu0 %v6167
        %6408 = vmatpush.msra.mxu0 %v6166
        %6409 = vmatmul.f32.gmra.mxu0 %v6331
        %v6410 = vpop.f32.mrf.mxu0
        %v6411 = vadd.f32 %v6391, %v6410
        %6412 = vdwg.mxu0
        %6413 = vmatpush.msra.mxu0 %v6197
        %6414 = vmatpush.msra.mxu0 %v6196
        %6415 = vmatpush.msra.mxu0 %v6195
        %6416 = vmatpush.msra.mxu0 %v6194
        %6417 = vmatpush.msra.mxu0 %v6193
        %6418 = vmatpush.msra.mxu0 %v6192
        %6419 = vmatpush.msra.mxu0 %v6191
        %6420 = vmatpush.msra.mxu0 %v6190
        %6421 = vmatpush.msra.mxu0 %v6189
        %6422 = vmatpush.msra.mxu0 %v6188
        %6423 = vmatpush.msra.mxu0 %v6187
        %6424 = vmatpush.msra.mxu0 %v6186
        %6425 = vmatpush.msra.mxu0 %v6185
        %6426 = vmatpush.msra.mxu0 %v6184
        %6427 = vmatpush.msra.mxu0 %v6183
        %6428 = vmatpush.msra.mxu0 %v6182
        %6429 = vmatmul.f32.gmra.mxu0 %v6332
        %v6430 = vpop.f32.mrf.mxu0
        %v6431 = vadd.f32 %v6411, %v6430
        %6432 = vdwg.mxu0
        %6433 = vmatpush.msra.mxu0 %v6213
        %6434 = vmatpush.msra.mxu0 %v6212
        %6435 = vmatpush.msra.mxu0 %v6211
        %6436 = vmatpush.msra.mxu0 %v6210
        %6437 = vmatpush.msra.mxu0 %v6209
        %6438 = vmatpush.msra.mxu0 %v6208
        %6439 = vmatpush.msra.mxu0 %v6207
        %6440 = vmatpush.msra.mxu0 %v6206
        %6441 = vmatpush.msra.mxu0 %v6205
        %6442 = vmatpush.msra.mxu0 %v6204
        %6443 = vmatpush.msra.mxu0 %v6203
        %6444 = vmatpush.msra.mxu0 %v6202
        %6445 = vmatpush.msra.mxu0 %v6201
        %6446 = vmatpush.msra.mxu0 %v6200
        %6447 = vmatpush.msra.mxu0 %v6199
        %6448 = vmatpush.msra.mxu0 %v6198
        %6449 = vmatmul.f32.gmra.mxu0 %v6333
        %v6450 = vpop.f32.mrf.mxu0
        %v6451 = vadd.f32 %v6431, %v6450
        %6452 = vdwg.mxu0
        %6453 = vmatpush.msra.mxu0 %v6229
        %6454 = vmatpush.msra.mxu0 %v6228
        %6455 = vmatpush.msra.mxu0 %v6227
        %6456 = vmatpush.msra.mxu0 %v6226
        %6457 = vmatpush.msra.mxu0 %v6225
        %6458 = vmatpush.msra.mxu0 %v6224
        %6459 = vmatpush.msra.mxu0 %v6223
        %6460 = vmatpush.msra.mxu0 %v6222
        %6461 = vmatpush.msra.mxu0 %v6221
        %6462 = vmatpush.msra.mxu0 %v6220
        %6463 = vmatpush.msra.mxu0 %v6219
        %6464 = vmatpush.msra.mxu0 %v6218
        %6465 = vmatpush.msra.mxu0 %v6217
        %6466 = vmatpush.msra.mxu0 %v6216
        %6467 = vmatpush.msra.mxu0 %v6215
        %6468 = vmatpush.msra.mxu0 %v6214
        %6469 = vmatmul.f32.gmra.mxu0 %v6334
        %v6470 = vpop.f32.mrf.mxu0
        %v6471 = vadd.f32 %v6451, %v6470
        %6472 = vdwg.mxu0
        %6473 = vmatpush.msra.mxu0 %v6245
        %6474 = vmatpush.msra.mxu0 %v6244
        %6475 = vmatpush.msra.mxu0 %v6243
        %6476 = vmatpush.msra.mxu0 %v6242
        %6477 = vmatpush.msra.mxu0 %v6241
        %6478 = vmatpush.msra.mxu0 %v6240
        %6479 = vmatpush.msra.mxu0 %v6239
        %6480 = vmatpush.msra.mxu0 %v6238
        %6481 = vmatpush.msra.mxu0 %v6237
        %6482 = vmatpush.msra.mxu0 %v6236
        %6483 = vmatpush.msra.mxu0 %v6235
        %6484 = vmatpush.msra.mxu0 %v6234
        %6485 = vmatpush.msra.mxu0 %v6233
        %6486 = vmatpush.msra.mxu0 %v6232
        %6487 = vmatpush.msra.mxu0 %v6231
        %6488 = vmatpush.msra.mxu0 %v6230
        %6489 = vmatmul.f32.gmra.mxu0 %v6335
        %v6490 = vpop.f32.mrf.mxu0
        %v6491 = vadd.f32 %v6471, %v6490
        %6492 = vdwg.mxu0
        %6493 = vmatpush.msra.mxu0 %v6261
        %6494 = vmatpush.msra.mxu0 %v6260
        %6495 = vmatpush.msra.mxu0 %v6259
        %6496 = vmatpush.msra.mxu0 %v6258
        %6497 = vmatpush.msra.mxu0 %v6257
        %6498 = vmatpush.msra.mxu0 %v6256
        %6499 = vmatpush.msra.mxu0 %v6255
        %6500 = vmatpush.msra.mxu0 %v6254
        %6501 = vmatpush.msra.mxu0 %v6253
        %6502 = vmatpush.msra.mxu0 %v6252
        %6503 = vmatpush.msra.mxu0 %v6251
        %6504 = vmatpush.msra.mxu0 %v6250
        %6505 = vmatpush.msra.mxu0 %v6249
        %6506 = vmatpush.msra.mxu0 %v6248
        %6507 = vmatpush.msra.mxu0 %v6247
        %6508 = vmatpush.msra.mxu0 %v6246
        %6509 = vmatmul.f32.gmra.mxu0 %v6336
        %v6510 = vpop.f32.mrf.mxu0
        %v6511 = vadd.f32 %v6491, %v6510
        %6512 = vdwg.mxu0
        %6513 = vmatpush.msra.mxu0 %v6277
        %6514 = vmatpush.msra.mxu0 %v6276
        %6515 = vmatpush.msra.mxu0 %v6275
        %6516 = vmatpush.msra.mxu0 %v6274
        %6517 = vmatpush.msra.mxu0 %v6273
        %6518 = vmatpush.msra.mxu0 %v6272
        %6519 = vmatpush.msra.mxu0 %v6271
        %6520 = vmatpush.msra.mxu0 %v6270
        %6521 = vmatpush.msra.mxu0 %v6269
        %6522 = vmatpush.msra.mxu0 %v6268
        %6523 = vmatpush.msra.mxu0 %v6267
        %6524 = vmatpush.msra.mxu0 %v6266
        %6525 = vmatpush.msra.mxu0 %v6265
        %6526 = vmatpush.msra.mxu0 %v6264
        %6527 = vmatpush.msra.mxu0 %v6263
        %6528 = vmatpush.msra.mxu0 %v6262
        %6529 = vmatmul.f32.gmra.mxu0 %v6337
        %v6530 = vpop.f32.mrf.mxu0
        %v6531 = vadd.f32 %v6511, %v6530
        %6532 = vdwg.mxu0
        %6533 = vmatpush.msra.mxu0 %v6293
        %6534 = vmatpush.msra.mxu0 %v6292
        %6535 = vmatpush.msra.mxu0 %v6291
        %6536 = vmatpush.msra.mxu0 %v6290
        %6537 = vmatpush.msra.mxu0 %v6289
        %6538 = vmatpush.msra.mxu0 %v6288
        %6539 = vmatpush.msra.mxu0 %v6287
        %6540 = vmatpush.msra.mxu0 %v6286
        %6541 = vmatpush.msra.mxu0 %v6285
        %6542 = vmatpush.msra.mxu0 %v6284
        %6543 = vmatpush.msra.mxu0 %v6283
        %6544 = vmatpush.msra.mxu0 %v6282
        %6545 = vmatpush.msra.mxu0 %v6281
        %6546 = vmatpush.msra.mxu0 %v6280
        %6547 = vmatpush.msra.mxu0 %v6279
        %6548 = vmatpush.msra.mxu0 %v6278
        %6549 = vmatmul.f32.gmra.mxu0 %v6338
        %v6550 = vpop.f32.mrf.mxu0
        %v6551 = vadd.f32 %v6531, %v6550
        %6552 = vdwg.mxu0
        %6553 = vmatpush.msra.mxu0 %v6309
        %6554 = vmatpush.msra.mxu0 %v6308
        %6555 = vmatpush.msra.mxu0 %v6307
        %6556 = vmatpush.msra.mxu0 %v6306
        %6557 = vmatpush.msra.mxu0 %v6305
        %6558 = vmatpush.msra.mxu0 %v6304
        %6559 = vmatpush.msra.mxu0 %v6303
        %6560 = vmatpush.msra.mxu0 %v6302
        %6561 = vmatpush.msra.mxu0 %v6301
        %6562 = vmatpush.msra.mxu0 %v6300
        %6563 = vmatpush.msra.mxu0 %v6299
        %6564 = vmatpush.msra.mxu0 %v6298
        %6565 = vmatpush.msra.mxu0 %v6297
        %6566 = vmatpush.msra.mxu0 %v6296
        %6567 = vmatpush.msra.mxu0 %v6295
        %6568 = vmatpush.msra.mxu0 %v6294
        %6569 = vmatmul.f32.gmra.mxu0 %v6339
        %v6570 = vpop.f32.mrf.mxu0
        %v6571 = vadd.f32 %v6551, %v6570
        %6572 = vdwg.mxu0
        %6573 = vmatpush.msra.mxu0 %v6325
        %6574 = vmatpush.msra.mxu0 %v6324
        %6575 = vmatpush.msra.mxu0 %v6323
        %6576 = vmatpush.msra.mxu0 %v6322
        %6577 = vmatpush.msra.mxu0 %v6321
        %6578 = vmatpush.msra.mxu0 %v6320
        %6579 = vmatpush.msra.mxu0 %v6319
        %6580 = vmatpush.msra.mxu0 %v6318
        %6581 = vmatpush.msra.mxu0 %v6317
        %6582 = vmatpush.msra.mxu0 %v6316
        %6583 = vmatpush.msra.mxu0 %v6315
        %6584 = vmatpush.msra.mxu0 %v6314
        %6585 = vmatpush.msra.mxu0 %v6313
        %6586 = vmatpush.msra.mxu0 %v6312
        %6587 = vmatpush.msra.mxu0 %v6311
        %6588 = vmatpush.msra.mxu0 %v6310
        %6589 = vmatmul.f32.gmra.mxu0 %v6340
        %v6590 = vpop.f32.mrf.mxu0
        %v6591 = vadd.f32 %v6571, %v6590
        %6592 = vdwg.mxu0
        %vm6593 = vmand %vm5991, %vm6003
        %6594 = vst.msk [vmem:[%s991] sm:$0x1] %vm6593, %v6591
        %v6595 = vld [vmem:[%s5] sm:$0xff]
        %v6596 = vld [vmem:[%s5 + $0x8] sm:$0xff]
        %v6597 = vld [vmem:[%s5 + $0x10] sm:$0xff]
        %v6598 = vld [vmem:[%s5 + $0x18] sm:$0xff]
        %v6599 = vld [vmem:[%s5 + $0x20] sm:$0xff]
        %v6600 = vld [vmem:[%s5 + $0x28] sm:$0xff]
        %v6601 = vld [vmem:[%s5 + $0x30] sm:$0xff]
        %v6602 = vld [vmem:[%s5 + $0x38] sm:$0xff]
        %v6603 = vld [vmem:[%s5 + $0x40] sm:$0xff]
        %v6604 = vld [vmem:[%s5 + $0x48] sm:$0xff]
        %v6605 = vld [vmem:[%s5 + $0x50] sm:$0xff]
        %v6606 = vld [vmem:[%s5 + $0x58] sm:$0xff]
        %v6607 = vld [vmem:[%s5 + $0x60] sm:$0xff]
        %v6608 = vld [vmem:[%s5 + $0x68] sm:$0xff]
        %v6609 = vld [vmem:[%s5 + $0x70] sm:$0xff]
        %v6610 = vld [vmem:[%s5 + $0x78] sm:$0xff]
        %v6611 = vld [vmem:[%s5 + $0x80] sm:$0xff]
        %v6612 = vld [vmem:[%s5 + $0x88] sm:$0xff]
        %v6613 = vld [vmem:[%s5 + $0x90] sm:$0xff]
        %v6614 = vld [vmem:[%s5 + $0x98] sm:$0xff]
        %v6615 = vld [vmem:[%s5 + $0xa0] sm:$0xff]
        %v6616 = vld [vmem:[%s5 + $0xa8] sm:$0xff]
        %v6617 = vld [vmem:[%s5 + $0xb0] sm:$0xff]
        %v6618 = vld [vmem:[%s5 + $0xb8] sm:$0xff]
        %v6619 = vld [vmem:[%s5 + $0xc0] sm:$0xff]
        %v6620 = vld [vmem:[%s5 + $0xc8] sm:$0xff]
        %v6621 = vld [vmem:[%s5 + $0xd0] sm:$0xff]
        %v6622 = vld [vmem:[%s5 + $0xd8] sm:$0xff]
        %v6623 = vld [vmem:[%s5 + $0xe0] sm:$0xff]
        %v6624 = vld [vmem:[%s5 + $0xe8] sm:$0xff]
        %v6625 = vld [vmem:[%s5 + $0xf0] sm:$0xff]
        %v6626 = vld [vmem:[%s5 + $0xf8] sm:$0xff]
        %6627 = vmatpush.msra.mxu0 %v6610
        %6628 = vmatpush.msra.mxu0 %v6609
        %6629 = vmatpush.msra.mxu0 %v6608
        %6630 = vmatpush.msra.mxu0 %v6607
        %6631 = vmatpush.msra.mxu0 %v6606
        %6632 = vmatpush.msra.mxu0 %v6605
        %6633 = vmatpush.msra.mxu0 %v6604
        %6634 = vmatpush.msra.mxu0 %v6603
        %6635 = vmatpush.msra.mxu0 %v6602
        %6636 = vmatpush.msra.mxu0 %v6601
        %6637 = vmatpush.msra.mxu0 %v6600
        %6638 = vmatpush.msra.mxu0 %v6599
        %6639 = vmatpush.msra.mxu0 %v6598
        %6640 = vmatpush.msra.mxu0 %v6597
        %6641 = vmatpush.msra.mxu0 %v6596
        %6642 = vmatpush.msra.mxu0 %v6595
        %6643 = vmatmul.f32.gmra.mxu0 %v4339
        %v6644 = vpop.f32.mrf.mxu0
        %v6645 = vadd.f32 0.0, %v6644
        %6646 = vmatmul.f32.gmra.mxu0 %v4341
        %v6647 = vpop.f32.mrf.mxu0
        %v6648 = vadd.f32 0.0, %v6647
        %6649 = vmatmul.f32.gmra.mxu0 %v4343
        %v6650 = vpop.f32.mrf.mxu0
        %v6651 = vadd.f32 0.0, %v6650
        %6652 = vmatmul.f32.gmra.mxu0 %v4345
        %v6653 = vpop.f32.mrf.mxu0
        %v6654 = vadd.f32 0.0, %v6653
        %6655 = vmatmul.f32.gmra.mxu0 %v4347
        %v6656 = vpop.f32.mrf.mxu0
        %v6657 = vadd.f32 0.0, %v6656
        %6658 = vdwg.mxu0
        %6659 = vmatpush.msra.mxu0 %v6626
        %6660 = vmatpush.msra.mxu0 %v6625
        %6661 = vmatpush.msra.mxu0 %v6624
        %6662 = vmatpush.msra.mxu0 %v6623
        %6663 = vmatpush.msra.mxu0 %v6622
        %6664 = vmatpush.msra.mxu0 %v6621
        %6665 = vmatpush.msra.mxu0 %v6620
        %6666 = vmatpush.msra.mxu0 %v6619
        %6667 = vmatpush.msra.mxu0 %v6618
        %6668 = vmatpush.msra.mxu0 %v6617
        %6669 = vmatpush.msra.mxu0 %v6616
        %6670 = vmatpush.msra.mxu0 %v6615
        %6671 = vmatpush.msra.mxu0 %v6614
        %6672 = vmatpush.msra.mxu0 %v6613
        %6673 = vmatpush.msra.mxu0 %v6612
        %6674 = vmatpush.msra.mxu0 %v6611
        %6675 = vmatmul.f32.gmra.mxu0 %v4340
        %v6676 = vpop.f32.mrf.mxu0
        %v6677 = vadd.f32 %v6645, %v6676
        %6678 = vmatmul.f32.gmra.mxu0 %v4342
        %v6679 = vpop.f32.mrf.mxu0
        %v6680 = vadd.f32 %v6648, %v6679
        %6681 = vmatmul.f32.gmra.mxu0 %v4344
        %v6682 = vpop.f32.mrf.mxu0
        %v6683 = vadd.f32 %v6651, %v6682
        %6684 = vmatmul.f32.gmra.mxu0 %v4346
        %v6685 = vpop.f32.mrf.mxu0
        %v6686 = vadd.f32 %v6654, %v6685
        %6687 = vmatmul.f32.gmra.mxu0 %v4348
        %v6688 = vpop.f32.mrf.mxu0
        %v6689 = vadd.f32 %v6657, %v6688
        %6690 = vdwg.mxu0
        %6691 = vst.msk [vmem:[#allocation3] sm:$0x1] %vm5993, %v6677
        %6693 = vst [vmem:[#allocation1] sm:$0xff] %v6677
        %s6694 = scalar_lea.vmem [#allocation1], 1
        %v6695 = vld [vmem:[%s6694] ss:$9 sm:$0xff]
        %6696 = vrot.lane.b32.xlu0 %v6695, 64
        %v6697 = vpop.permute.xlu0 %6696
        %6699 = vst.msk [vmem:[#allocation3] sm:$0x1] %vm6004, %v6697
        %6700 = vst [vmem:[#allocation1] sm:$0xff] %v6677
        %s6701 = scalar_lea.vmem [#allocation1], 2
        %v6702 = vld [vmem:[%s6701] ss:$9 sm:$0xff]
        %6704 = vst.msk [vmem:[#allocation3 + $0x1] sm:$0x1] %vm5993, %v6702
        %6705 = vst [vmem:[#allocation1] sm:$0xff] %v6677
        %s6706 = scalar_lea.vmem [#allocation1], 3
        %v6707 = vld [vmem:[%s6706] ss:$9 sm:$0xff]
        %6708 = vrot.lane.b32.xlu0 %v6707, 64
        %v6709 = vpop.permute.xlu0 %6708
        %6711 = vst.msk [vmem:[#allocation3 + $0x1] sm:$0x1] %vm6004, %v6709
        %6712 = vst [vmem:[#allocation1] sm:$0xff] %v6677
        %s6713 = scalar_lea.vmem [#allocation1], 4
        %v6714 = vld [vmem:[%s6713] ss:$9 sm:$0xff]
        %6716 = vst.msk [vmem:[#allocation3 + $0x2] sm:$0x1] %vm5993, %v6714
        %6717 = vst [vmem:[#allocation1] sm:$0xff] %v6677
        %s6718 = scalar_lea.vmem [#allocation1], 5
        %v6719 = vld [vmem:[%s6718] ss:$9 sm:$0xff]
        %6720 = vrot.lane.b32.xlu0 %v6719, 64
        %v6721 = vpop.permute.xlu0 %6720
        %6723 = vst.msk [vmem:[#allocation3 + $0x2] sm:$0x1] %vm6004, %v6721
        %6724 = vst [vmem:[#allocation1] sm:$0xff] %v6677
        %s6725 = scalar_lea.vmem [#allocation1], 6
        %v6726 = vld [vmem:[%s6725] ss:$9 sm:$0xff]
        %6728 = vst.msk [vmem:[#allocation3 + $0x3] sm:$0x1] %vm5993, %v6726
        %6729 = vst [vmem:[#allocation1] sm:$0xff] %v6677
        %s6730 = scalar_lea.vmem [#allocation1], 7
        %v6731 = vld [vmem:[%s6730] ss:$9 sm:$0xff]
        %6732 = vrot.lane.b32.xlu0 %v6731, 64
        %v6733 = vpop.permute.xlu0 %6732
        %6735 = vst.msk [vmem:[#allocation3 + $0x3] sm:$0x1] %vm6004, %v6733
        %6736 = vst.msk [vmem:[#allocation3 + $0x4] sm:$0x1] %vm5993, %v6680
        %6738 = vst [vmem:[#allocation1] sm:$0xff] %v6680
        %s6739 = scalar_lea.vmem [#allocation1], 1
        %v6740 = vld [vmem:[%s6739] ss:$9 sm:$0xff]
        %6741 = vrot.lane.b32.xlu0 %v6740, 64
        %v6742 = vpop.permute.xlu0 %6741
        %6744 = vst.msk [vmem:[#allocation3 + $0x4] sm:$0x1] %vm6004, %v6742
        %6745 = vst [vmem:[#allocation1] sm:$0xff] %v6680
        %s6746 = scalar_lea.vmem [#allocation1], 2
        %v6747 = vld [vmem:[%s6746] ss:$9 sm:$0xff]
        %6749 = vst.msk [vmem:[#allocation3 + $0x5] sm:$0x1] %vm5993, %v6747
        %6750 = vst [vmem:[#allocation1] sm:$0xff] %v6680
        %s6751 = scalar_lea.vmem [#allocation1], 3
        %v6752 = vld [vmem:[%s6751] ss:$9 sm:$0xff]
        %6753 = vrot.lane.b32.xlu0 %v6752, 64
        %v6754 = vpop.permute.xlu0 %6753
        %6756 = vst.msk [vmem:[#allocation3 + $0x5] sm:$0x1] %vm6004, %v6754
        %6757 = vst [vmem:[#allocation1] sm:$0xff] %v6680
        %s6758 = scalar_lea.vmem [#allocation1], 4
        %v6759 = vld [vmem:[%s6758] ss:$9 sm:$0xff]
        %6761 = vst.msk [vmem:[#allocation3 + $0x6] sm:$0x1] %vm5993, %v6759
        %6762 = vst [vmem:[#allocation1] sm:$0xff] %v6680
        %s6763 = scalar_lea.vmem [#allocation1], 5
        %v6764 = vld [vmem:[%s6763] ss:$9 sm:$0xff]
        %6765 = vrot.lane.b32.xlu0 %v6764, 64
        %v6766 = vpop.permute.xlu0 %6765
        %6768 = vst.msk [vmem:[#allocation3 + $0x6] sm:$0x1] %vm6004, %v6766
        %6769 = vst [vmem:[#allocation1] sm:$0xff] %v6680
        %s6770 = scalar_lea.vmem [#allocation1], 6
        %v6771 = vld [vmem:[%s6770] ss:$9 sm:$0xff]
        %6773 = vst.msk [vmem:[#allocation3 + $0x7] sm:$0x1] %vm5993, %v6771
        %6774 = vst [vmem:[#allocation1] sm:$0xff] %v6680
        %s6775 = scalar_lea.vmem [#allocation1], 7
        %v6776 = vld [vmem:[%s6775] ss:$9 sm:$0xff]
        %6777 = vrot.lane.b32.xlu0 %v6776, 64
        %v6778 = vpop.permute.xlu0 %6777
        %6780 = vst.msk [vmem:[#allocation3 + $0x7] sm:$0x1] %vm6004, %v6778
        %6781 = vst.msk [vmem:[#allocation3 + $0x8] sm:$0x1] %vm5993, %v6683
        %6783 = vst [vmem:[#allocation1] sm:$0xff] %v6683
        %s6784 = scalar_lea.vmem [#allocation1], 1
        %v6785 = vld [vmem:[%s6784] ss:$9 sm:$0xff]
        %6786 = vrot.lane.b32.xlu0 %v6785, 64
        %v6787 = vpop.permute.xlu0 %6786
        %6789 = vst.msk [vmem:[#allocation3 + $0x8] sm:$0x1] %vm6004, %v6787
        %6790 = vst [vmem:[#allocation1] sm:$0xff] %v6683
        %s6791 = scalar_lea.vmem [#allocation1], 2
        %v6792 = vld [vmem:[%s6791] ss:$9 sm:$0xff]
        %6794 = vst.msk [vmem:[#allocation3 + $0x9] sm:$0x1] %vm5993, %v6792
        %6795 = vst [vmem:[#allocation1] sm:$0xff] %v6683
        %s6796 = scalar_lea.vmem [#allocation1], 3
        %v6797 = vld [vmem:[%s6796] ss:$9 sm:$0xff]
        %6798 = vrot.lane.b32.xlu0 %v6797, 64
        %v6799 = vpop.permute.xlu0 %6798
        %6801 = vst.msk [vmem:[#allocation3 + $0x9] sm:$0x1] %vm6004, %v6799
        %6802 = vst [vmem:[#allocation1] sm:$0xff] %v6683
        %s6803 = scalar_lea.vmem [#allocation1], 4
        %v6804 = vld [vmem:[%s6803] ss:$9 sm:$0xff]
        %6806 = vst.msk [vmem:[#allocation3 + $0xa] sm:$0x1] %vm5993, %v6804
        %6807 = vst [vmem:[#allocation1] sm:$0xff] %v6683
        %s6808 = scalar_lea.vmem [#allocation1], 5
        %v6809 = vld [vmem:[%s6808] ss:$9 sm:$0xff]
        %6810 = vrot.lane.b32.xlu0 %v6809, 64
        %v6811 = vpop.permute.xlu0 %6810
        %6813 = vst.msk [vmem:[#allocation3 + $0xa] sm:$0x1] %vm6004, %v6811
        %6814 = vst [vmem:[#allocation1] sm:$0xff] %v6683
        %s6815 = scalar_lea.vmem [#allocation1], 6
        %v6816 = vld [vmem:[%s6815] ss:$9 sm:$0xff]
        %6818 = vst.msk [vmem:[#allocation3 + $0xb] sm:$0x1] %vm5993, %v6816
        %6819 = vst [vmem:[#allocation1] sm:$0xff] %v6683
        %s6820 = scalar_lea.vmem [#allocation1], 7
        %v6821 = vld [vmem:[%s6820] ss:$9 sm:$0xff]
        %6822 = vrot.lane.b32.xlu0 %v6821, 64
        %v6823 = vpop.permute.xlu0 %6822
        %6825 = vst.msk [vmem:[#allocation3 + $0xb] sm:$0x1] %vm6004, %v6823
        %6826 = vst.msk [vmem:[#allocation3 + $0xc] sm:$0x1] %vm5993, %v6686
        %6828 = vst [vmem:[#allocation1] sm:$0xff] %v6686
        %s6829 = scalar_lea.vmem [#allocation1], 1
        %v6830 = vld [vmem:[%s6829] ss:$9 sm:$0xff]
        %6831 = vrot.lane.b32.xlu0 %v6830, 64
        %v6832 = vpop.permute.xlu0 %6831
        %6834 = vst.msk [vmem:[#allocation3 + $0xc] sm:$0x1] %vm6004, %v6832
        %6835 = vst [vmem:[#allocation1] sm:$0xff] %v6686
        %s6836 = scalar_lea.vmem [#allocation1], 2
        %v6837 = vld [vmem:[%s6836] ss:$9 sm:$0xff]
        %6839 = vst.msk [vmem:[#allocation3 + $0xd] sm:$0x1] %vm5993, %v6837
        %6840 = vst [vmem:[#allocation1] sm:$0xff] %v6686
        %s6841 = scalar_lea.vmem [#allocation1], 3
        %v6842 = vld [vmem:[%s6841] ss:$9 sm:$0xff]
        %6843 = vrot.lane.b32.xlu0 %v6842, 64
        %v6844 = vpop.permute.xlu0 %6843
        %6846 = vst.msk [vmem:[#allocation3 + $0xd] sm:$0x1] %vm6004, %v6844
        %6847 = vst [vmem:[#allocation1] sm:$0xff] %v6686
        %s6848 = scalar_lea.vmem [#allocation1], 4
        %v6849 = vld [vmem:[%s6848] ss:$9 sm:$0xff]
        %6851 = vst.msk [vmem:[#allocation3 + $0xe] sm:$0x1] %vm5993, %v6849
        %6852 = vst [vmem:[#allocation1] sm:$0xff] %v6686
        %s6853 = scalar_lea.vmem [#allocation1], 5
        %v6854 = vld [vmem:[%s6853] ss:$9 sm:$0xff]
        %6855 = vrot.lane.b32.xlu0 %v6854, 64
        %v6856 = vpop.permute.xlu0 %6855
        %6858 = vst.msk [vmem:[#allocation3 + $0xe] sm:$0x1] %vm6004, %v6856
        %6859 = vst [vmem:[#allocation1] sm:$0xff] %v6686
        %s6860 = scalar_lea.vmem [#allocation1], 6
        %v6861 = vld [vmem:[%s6860] ss:$9 sm:$0xff]
        %6863 = vst.msk [vmem:[#allocation3 + $0xf] sm:$0x1] %vm5993, %v6861
        %6864 = vst [vmem:[#allocation1] sm:$0xff] %v6686
        %s6865 = scalar_lea.vmem [#allocation1], 7
        %v6866 = vld [vmem:[%s6865] ss:$9 sm:$0xff]
        %6867 = vrot.lane.b32.xlu0 %v6866, 64
        %v6868 = vpop.permute.xlu0 %6867
        %6870 = vst.msk [vmem:[#allocation3 + $0xf] sm:$0x1] %vm6004, %v6868
        %6871 = vst.msk [vmem:[#allocation3 + $0x10] sm:$0x1] %vm5993, %v6689
        %6873 = vst [vmem:[#allocation1] sm:$0xff] %v6689
        %s6874 = scalar_lea.vmem [#allocation1], 1
        %v6875 = vld [vmem:[%s6874] ss:$9 sm:$0xff]
        %6876 = vrot.lane.b32.xlu0 %v6875, 64
        %v6877 = vpop.permute.xlu0 %6876
        %6879 = vst.msk [vmem:[#allocation3 + $0x10] sm:$0x1] %vm6004, %v6877
        %6880 = vst [vmem:[#allocation1] sm:$0xff] %v6689
        %s6881 = scalar_lea.vmem [#allocation1], 2
        %v6882 = vld [vmem:[%s6881] ss:$9 sm:$0xff]
        %6884 = vst.msk [vmem:[#allocation3 + $0x11] sm:$0x1] %vm5993, %v6882
        %6885 = vst [vmem:[#allocation1] sm:$0xff] %v6689
        %s6886 = scalar_lea.vmem [#allocation1], 3
        %v6887 = vld [vmem:[%s6886] ss:$9 sm:$0xff]
        %6888 = vrot.lane.b32.xlu0 %v6887, 64
        %v6889 = vpop.permute.xlu0 %6888
        %6891 = vst.msk [vmem:[#allocation3 + $0x11] sm:$0x1] %vm6004, %v6889
        %6892 = vst [vmem:[#allocation1] sm:$0xff] %v6689
        %s6893 = scalar_lea.vmem [#allocation1], 4
        %v6894 = vld [vmem:[%s6893] ss:$9 sm:$0xff]
        %6896 = vst.msk [vmem:[#allocation3 + $0x12] sm:$0x1] %vm5993, %v6894
        %6897 = vst [vmem:[#allocation1] sm:$0xff] %v6689
        %s6898 = scalar_lea.vmem [#allocation1], 5
        %v6899 = vld [vmem:[%s6898] ss:$9 sm:$0xff]
        %6900 = vrot.lane.b32.xlu0 %v6899, 64
        %v6901 = vpop.permute.xlu0 %6900
        %6903 = vst.msk [vmem:[#allocation3 + $0x12] sm:$0x1] %vm6004, %v6901
        %6904 = vst [vmem:[#allocation1] sm:$0xff] %v6689
        %s6905 = scalar_lea.vmem [#allocation1], 6
        %v6906 = vld [vmem:[%s6905] ss:$9 sm:$0xff]
        %6908 = vst.msk [vmem:[#allocation3 + $0x13] sm:$0x1] %vm5993, %v6906
        %6909 = vst [vmem:[#allocation1] sm:$0xff] %v6689
        %s6910 = scalar_lea.vmem [#allocation1], 7
        %v6911 = vld [vmem:[%s6910] ss:$9 sm:$0xff]
        %6912 = vrot.lane.b32.xlu0 %v6911, 64
        %v6913 = vpop.permute.xlu0 %6912
        %6915 = vst.msk [vmem:[#allocation3 + $0x13] sm:$0x1] %vm6004, %v6913
        %v6916 = vld [vmem:[#allocation3] sm:$0xff]
        %v6917 = vld [vmem:[#allocation3 + $0x8] sm:$0xff]
        %v6918 = vld [vmem:[#allocation3 + $0x10] sm:$0xf]
        %v6919 = vld [vmem:[%s55] sm:$0xff]
        %v6920 = vld [vmem:[%s55 + $0x8] sm:$0xff]
        %v6921 = vld [vmem:[%s55 + $0x10] sm:$0xff]
        %v6922 = vld [vmem:[%s55 + $0x18] sm:$0xff]
        %v6923 = vld [vmem:[%s55 + $0x20] sm:$0xff]
        %v6924 = vld [vmem:[%s55 + $0x28] sm:$0xff]
        %v6925 = vld [vmem:[%s55 + $0x30] sm:$0xff]
        %v6926 = vld [vmem:[%s55 + $0x38] sm:$0xff]
        %v6927 = vld [vmem:[%s55 + $0x40] sm:$0xff]
        %v6928 = vld [vmem:[%s55 + $0x48] sm:$0xff]
        %v6929 = vld [vmem:[%s55 + $0x50] sm:$0xff]
        %v6930 = vld [vmem:[%s55 + $0x58] sm:$0xff]
        %v6931 = vld [vmem:[%s55 + $0x60] sm:$0xff]
        %v6932 = vld [vmem:[%s55 + $0x68] sm:$0xff]
        %v6933 = vld [vmem:[%s55 + $0x70] sm:$0xff]
        %v6934 = vld [vmem:[%s55 + $0x78] sm:$0xff]
        %v6935 = vld [vmem:[%s55 + $0x80] sm:$0xff]
        %v6936 = vld [vmem:[%s55 + $0x88] sm:$0xff]
        %v6937 = vld [vmem:[%s55 + $0x90] sm:$0xff]
        %v6938 = vld [vmem:[%s55 + $0x98] sm:$0xff]
        %v6939 = vld [vmem:[%s55 + $0xa0] sm:$0xff]
        %v6940 = vld [vmem:[%s55 + $0xa8] sm:$0xff]
        %v6941 = vld [vmem:[%s55 + $0xb0] sm:$0xff]
        %v6942 = vld [vmem:[%s55 + $0xb8] sm:$0xff]
        %v6943 = vld [vmem:[%s55 + $0xc0] sm:$0xff]
        %v6944 = vld [vmem:[%s55 + $0xc8] sm:$0xff]
        %v6945 = vld [vmem:[%s55 + $0xd0] sm:$0xff]
        %v6946 = vld [vmem:[%s55 + $0xd8] sm:$0xff]
        %v6947 = vld [vmem:[%s55 + $0xe0] sm:$0xff]
        %v6948 = vld [vmem:[%s55 + $0xe8] sm:$0xff]
        %v6949 = vld [vmem:[%s55 + $0xf0] sm:$0xff]
        %v6950 = vld [vmem:[%s55 + $0xf8] sm:$0xff]
        %v6951 = vld [vmem:[%s55 + $0x100] sm:$0xff]
        %v6952 = vld [vmem:[%s55 + $0x108] sm:$0xff]
        %v6953 = vld [vmem:[%s55 + $0x110] sm:$0xff]
        %v6954 = vld [vmem:[%s55 + $0x118] sm:$0xff]
        %v6955 = vld [vmem:[%s55 + $0x120] sm:$0xff]
        %v6956 = vld [vmem:[%s55 + $0x128] sm:$0xff]
        %v6957 = vld [vmem:[%s55 + $0x130] sm:$0xff]
        %v6958 = vld [vmem:[%s55 + $0x138] sm:$0xff]
        %v6959 = vld [vmem:[%s55 + $0x140] sm:$0xff]
        %v6960 = vld [vmem:[%s55 + $0x148] sm:$0xff]
        %v6961 = vld [vmem:[%s55 + $0x150] sm:$0xff]
        %v6962 = vld [vmem:[%s55 + $0x158] sm:$0xff]
        %v6963 = vld [vmem:[%s55 + $0x160] sm:$0xff]
        %v6964 = vld [vmem:[%s55 + $0x168] sm:$0xff]
        %v6965 = vld [vmem:[%s55 + $0x170] sm:$0xff]
        %v6966 = vld [vmem:[%s55 + $0x178] sm:$0xff]
        %v6967 = vld [vmem:[%s55 + $0x180] sm:$0xff]
        %v6968 = vld [vmem:[%s55 + $0x188] sm:$0xff]
        %v6969 = vld [vmem:[%s55 + $0x190] sm:$0xff]
        %v6970 = vld [vmem:[%s55 + $0x198] sm:$0xff]
        %v6971 = vld [vmem:[%s55 + $0x1a0] sm:$0xff]
        %v6972 = vld [vmem:[%s55 + $0x1a8] sm:$0xff]
        %v6973 = vld [vmem:[%s55 + $0x1b0] sm:$0xff]
        %v6974 = vld [vmem:[%s55 + $0x1b8] sm:$0xff]
        %v6975 = vld [vmem:[%s55 + $0x1c0] sm:$0xff]
        %v6976 = vld [vmem:[%s55 + $0x1c8] sm:$0xff]
        %v6977 = vld [vmem:[%s55 + $0x1d0] sm:$0xff]
        %v6978 = vld [vmem:[%s55 + $0x1d8] sm:$0xff]
        %v6979 = vld [vmem:[%s55 + $0x1e0] sm:$0xff]
        %v6980 = vld [vmem:[%s55 + $0x1e8] sm:$0xff]
        %v6981 = vld [vmem:[%s55 + $0x1f0] sm:$0xff]
        %v6982 = vld [vmem:[%s55 + $0x1f8] sm:$0xff]
        %v6983 = vld [vmem:[%s55 + $0x200] sm:$0xff]
        %v6984 = vld [vmem:[%s55 + $0x208] sm:$0xff]
        %v6985 = vld [vmem:[%s55 + $0x210] sm:$0xff]
        %v6986 = vld [vmem:[%s55 + $0x218] sm:$0xff]
        %v6987 = vld [vmem:[%s55 + $0x220] sm:$0xff]
        %v6988 = vld [vmem:[%s55 + $0x228] sm:$0xff]
        %v6989 = vld [vmem:[%s55 + $0x230] sm:$0xff]
        %v6990 = vld [vmem:[%s55 + $0x238] sm:$0xff]
        %v6991 = vld [vmem:[%s55 + $0x240] sm:$0xff]
        %v6992 = vld [vmem:[%s55 + $0x248] sm:$0xff]
        %v6993 = vld [vmem:[%s55 + $0x250] sm:$0xff]
        %v6994 = vld [vmem:[%s55 + $0x258] sm:$0xff]
        %v6995 = vld [vmem:[%s55 + $0x260] sm:$0xff]
        %v6996 = vld [vmem:[%s55 + $0x268] sm:$0xff]
        %v6997 = vld [vmem:[%s55 + $0x270] sm:$0xff]
        %v6998 = vld [vmem:[%s55 + $0x278] sm:$0xff]
        %v6999 = vld [vmem:[%s55 + $0x280] sm:$0xff]
        %v7000 = vld [vmem:[%s55 + $0x288] sm:$0xff]
        %v7001 = vld [vmem:[%s55 + $0x290] sm:$0xff]
        %v7002 = vld [vmem:[%s55 + $0x298] sm:$0xff]
        %v7003 = vld [vmem:[%s55 + $0x2a0] sm:$0xff]
        %v7004 = vld [vmem:[%s55 + $0x2a8] sm:$0xff]
        %v7005 = vld [vmem:[%s55 + $0x2b0] sm:$0xff]
        %v7006 = vld [vmem:[%s55 + $0x2b8] sm:$0xff]
        %v7007 = vld [vmem:[%s55 + $0x2c0] sm:$0xff]
        %v7008 = vld [vmem:[%s55 + $0x2c8] sm:$0xff]
        %v7009 = vld [vmem:[%s55 + $0x2d0] sm:$0xff]
        %v7010 = vld [vmem:[%s55 + $0x2d8] sm:$0xff]
        %v7011 = vld [vmem:[%s55 + $0x2e0] sm:$0xff]
        %v7012 = vld [vmem:[%s55 + $0x2e8] sm:$0xff]
        %v7013 = vld [vmem:[%s55 + $0x2f0] sm:$0xff]
        %v7014 = vld [vmem:[%s55 + $0x2f8] sm:$0xff]
        %v7015 = vld [vmem:[%s55 + $0x300] sm:$0xff]
        %v7016 = vld [vmem:[%s55 + $0x308] sm:$0xff]
        %v7017 = vld [vmem:[%s55 + $0x310] sm:$0xff]
        %v7018 = vld [vmem:[%s55 + $0x318] sm:$0xff]
        %v7019 = vld [vmem:[%s55 + $0x320] sm:$0xff]
        %v7020 = vld [vmem:[%s55 + $0x328] sm:$0xff]
        %v7021 = vld [vmem:[%s55 + $0x330] sm:$0xff]
        %v7022 = vld [vmem:[%s55 + $0x338] sm:$0xff]
        %v7023 = vld [vmem:[%s55 + $0x340] sm:$0xff]
        %v7024 = vld [vmem:[%s55 + $0x348] sm:$0xff]
        %v7025 = vld [vmem:[%s55 + $0x350] sm:$0xff]
        %v7026 = vld [vmem:[%s55 + $0x358] sm:$0xff]
        %v7027 = vld [vmem:[%s55 + $0x360] sm:$0xff]
        %v7028 = vld [vmem:[%s55 + $0x368] sm:$0xff]
        %v7029 = vld [vmem:[%s55 + $0x370] sm:$0xff]
        %v7030 = vld [vmem:[%s55 + $0x378] sm:$0xff]
        %v7031 = vld [vmem:[%s55 + $0x380] sm:$0xff]
        %v7032 = vld [vmem:[%s55 + $0x388] sm:$0xff]
        %v7033 = vld [vmem:[%s55 + $0x390] sm:$0xff]
        %v7034 = vld [vmem:[%s55 + $0x398] sm:$0xff]
        %v7035 = vld [vmem:[%s55 + $0x3a0] sm:$0xff]
        %v7036 = vld [vmem:[%s55 + $0x3a8] sm:$0xff]
        %v7037 = vld [vmem:[%s55 + $0x3b0] sm:$0xff]
        %v7038 = vld [vmem:[%s55 + $0x3b8] sm:$0xff]
        %v7039 = vld [vmem:[%s55 + $0x3c0] sm:$0xff]
        %v7040 = vld [vmem:[%s55 + $0x3c8] sm:$0xff]
        %v7041 = vld [vmem:[%s55 + $0x3d0] sm:$0xff]
        %v7042 = vld [vmem:[%s55 + $0x3d8] sm:$0xff]
        %v7043 = vld [vmem:[%s55 + $0x3e0] sm:$0xff]
        %v7044 = vld [vmem:[%s55 + $0x3e8] sm:$0xff]
        %v7045 = vld [vmem:[%s55 + $0x3f0] sm:$0xff]
        %v7046 = vld [vmem:[%s55 + $0x3f8] sm:$0xff]
        %v7047 = vld [vmem:[%s55 + $0x400] sm:$0xff]
        %v7048 = vld [vmem:[%s55 + $0x408] sm:$0xff]
        %v7049 = vld [vmem:[%s55 + $0x410] sm:$0xff]
        %v7050 = vld [vmem:[%s55 + $0x418] sm:$0xff]
        %v7051 = vld [vmem:[%s55 + $0x420] sm:$0xff]
        %v7052 = vld [vmem:[%s55 + $0x428] sm:$0xff]
        %v7053 = vld [vmem:[%s55 + $0x430] sm:$0xff]
        %v7054 = vld [vmem:[%s55 + $0x438] sm:$0xff]
        %v7055 = vld [vmem:[%s55 + $0x440] sm:$0xff]
        %v7056 = vld [vmem:[%s55 + $0x448] sm:$0xff]
        %v7057 = vld [vmem:[%s55 + $0x450] sm:$0xff]
        %v7058 = vld [vmem:[%s55 + $0x458] sm:$0xff]
        %v7059 = vld [vmem:[%s55 + $0x460] sm:$0xff]
        %v7060 = vld [vmem:[%s55 + $0x468] sm:$0xff]
        %v7061 = vld [vmem:[%s55 + $0x470] sm:$0xff]
        %v7062 = vld [vmem:[%s55 + $0x478] sm:$0xff]
        %v7063 = vld [vmem:[%s55 + $0x480] sm:$0xff]
        %v7064 = vld [vmem:[%s55 + $0x488] sm:$0xff]
        %v7065 = vld [vmem:[%s55 + $0x490] sm:$0xff]
        %v7066 = vld [vmem:[%s55 + $0x498] sm:$0xff]
        %v7067 = vld [vmem:[%s55 + $0x4a0] sm:$0xff]
        %v7068 = vld [vmem:[%s55 + $0x4a8] sm:$0xff]
        %v7069 = vld [vmem:[%s55 + $0x4b0] sm:$0xff]
        %v7070 = vld [vmem:[%s55 + $0x4b8] sm:$0xff]
        %v7071 = vld [vmem:[%s55 + $0x4c0] sm:$0xff]
        %v7072 = vld [vmem:[%s55 + $0x4c8] sm:$0xff]
        %v7073 = vld [vmem:[%s55 + $0x4d0] sm:$0xff]
        %v7074 = vld [vmem:[%s55 + $0x4d8] sm:$0xff]
        %v7075 = vld [vmem:[%s55 + $0x4e0] sm:$0xff]
        %v7076 = vld [vmem:[%s55 + $0x4e8] sm:$0xff]
        %v7077 = vld [vmem:[%s55 + $0x4f0] sm:$0xff]
        %v7078 = vld [vmem:[%s55 + $0x4f8] sm:$0xff]
        %v7079 = vld [vmem:[%s55 + $0x500] sm:$0xff]
        %v7080 = vld [vmem:[%s55 + $0x508] sm:$0xff]
        %v7081 = vld [vmem:[%s55 + $0x510] sm:$0xff]
        %v7082 = vld [vmem:[%s55 + $0x518] sm:$0xff]
        %v7083 = vld [vmem:[%s55 + $0x520] sm:$0xff]
        %v7084 = vld [vmem:[%s55 + $0x528] sm:$0xff]
        %v7085 = vld [vmem:[%s55 + $0x530] sm:$0xff]
        %v7086 = vld [vmem:[%s55 + $0x538] sm:$0xff]
        %v7087 = vld [vmem:[%s55 + $0x540] sm:$0xff]
        %v7088 = vld [vmem:[%s55 + $0x548] sm:$0xff]
        %v7089 = vld [vmem:[%s55 + $0x550] sm:$0xff]
        %v7090 = vld [vmem:[%s55 + $0x558] sm:$0xff]
        %v7091 = vld [vmem:[%s55 + $0x560] sm:$0xff]
        %v7092 = vld [vmem:[%s55 + $0x568] sm:$0xff]
        %v7093 = vld [vmem:[%s55 + $0x570] sm:$0xff]
        %v7094 = vld [vmem:[%s55 + $0x578] sm:$0xff]
        %v7095 = vld [vmem:[%s55 + $0x580] sm:$0xff]
        %v7096 = vld [vmem:[%s55 + $0x588] sm:$0xff]
        %v7097 = vld [vmem:[%s55 + $0x590] sm:$0xff]
        %v7098 = vld [vmem:[%s55 + $0x598] sm:$0xff]
        %v7099 = vld [vmem:[%s55 + $0x5a0] sm:$0xff]
        %v7100 = vld [vmem:[%s55 + $0x5a8] sm:$0xff]
        %v7101 = vld [vmem:[%s55 + $0x5b0] sm:$0xff]
        %v7102 = vld [vmem:[%s55 + $0x5b8] sm:$0xff]
        %v7103 = vld [vmem:[%s55 + $0x5c0] sm:$0xff]
        %v7104 = vld [vmem:[%s55 + $0x5c8] sm:$0xff]
        %v7105 = vld [vmem:[%s55 + $0x5d0] sm:$0xff]
        %v7106 = vld [vmem:[%s55 + $0x5d8] sm:$0xff]
        %v7107 = vld [vmem:[%s55 + $0x5e0] sm:$0xff]
        %v7108 = vld [vmem:[%s55 + $0x5e8] sm:$0xff]
        %v7109 = vld [vmem:[%s55 + $0x5f0] sm:$0xff]
        %v7110 = vld [vmem:[%s55 + $0x5f8] sm:$0xff]
        %v7111 = vld [vmem:[%s55 + $0x600] sm:$0xff]
        %v7112 = vld [vmem:[%s55 + $0x608] sm:$0xff]
        %v7113 = vld [vmem:[%s55 + $0x610] sm:$0xff]
        %v7114 = vld [vmem:[%s55 + $0x618] sm:$0xff]
        %v7115 = vld [vmem:[%s55 + $0x620] sm:$0xff]
        %v7116 = vld [vmem:[%s55 + $0x628] sm:$0xff]
        %v7117 = vld [vmem:[%s55 + $0x630] sm:$0xff]
        %v7118 = vld [vmem:[%s55 + $0x638] sm:$0xff]
        %v7119 = vld [vmem:[%s55 + $0x640] sm:$0xff]
        %v7120 = vld [vmem:[%s55 + $0x648] sm:$0xff]
        %v7121 = vld [vmem:[%s55 + $0x650] sm:$0xff]
        %v7122 = vld [vmem:[%s55 + $0x658] sm:$0xff]
        %v7123 = vld [vmem:[%s55 + $0x660] sm:$0xff]
        %v7124 = vld [vmem:[%s55 + $0x668] sm:$0xff]
        %v7125 = vld [vmem:[%s55 + $0x670] sm:$0xff]
        %v7126 = vld [vmem:[%s55 + $0x678] sm:$0xff]
        %v7127 = vld [vmem:[%s55 + $0x680] sm:$0xff]
        %v7128 = vld [vmem:[%s55 + $0x688] sm:$0xff]
        %v7129 = vld [vmem:[%s55 + $0x690] sm:$0xff]
        %v7130 = vld [vmem:[%s55 + $0x698] sm:$0xff]
        %v7131 = vld [vmem:[%s55 + $0x6a0] sm:$0xff]
        %v7132 = vld [vmem:[%s55 + $0x6a8] sm:$0xff]
        %v7133 = vld [vmem:[%s55 + $0x6b0] sm:$0xff]
        %v7134 = vld [vmem:[%s55 + $0x6b8] sm:$0xff]
        %v7135 = vld [vmem:[%s55 + $0x6c0] sm:$0xff]
        %v7136 = vld [vmem:[%s55 + $0x6c8] sm:$0xff]
        %v7137 = vld [vmem:[%s55 + $0x6d0] sm:$0xff]
        %v7138 = vld [vmem:[%s55 + $0x6d8] sm:$0xff]
        %v7139 = vld [vmem:[%s55 + $0x6e0] sm:$0xff]
        %v7140 = vld [vmem:[%s55 + $0x6e8] sm:$0xff]
        %v7141 = vld [vmem:[%s55 + $0x6f0] sm:$0xff]
        %v7142 = vld [vmem:[%s55 + $0x6f8] sm:$0xff]
        %v7143 = vld [vmem:[%s55 + $0x700] sm:$0xff]
        %v7144 = vld [vmem:[%s55 + $0x708] sm:$0xff]
        %v7145 = vld [vmem:[%s55 + $0x710] sm:$0xff]
        %v7146 = vld [vmem:[%s55 + $0x718] sm:$0xff]
        %v7147 = vld [vmem:[%s55 + $0x720] sm:$0xff]
        %v7148 = vld [vmem:[%s55 + $0x728] sm:$0xff]
        %v7149 = vld [vmem:[%s55 + $0x730] sm:$0xff]
        %v7150 = vld [vmem:[%s55 + $0x738] sm:$0xff]
        %v7151 = vld [vmem:[%s55 + $0x740] sm:$0xff]
        %v7152 = vld [vmem:[%s55 + $0x748] sm:$0xff]
        %v7153 = vld [vmem:[%s55 + $0x750] sm:$0xff]
        %v7154 = vld [vmem:[%s55 + $0x758] sm:$0xff]
        %v7155 = vld [vmem:[%s55 + $0x760] sm:$0xff]
        %v7156 = vld [vmem:[%s55 + $0x768] sm:$0xff]
        %v7157 = vld [vmem:[%s55 + $0x770] sm:$0xff]
        %v7158 = vld [vmem:[%s55 + $0x778] sm:$0xff]
        %v7159 = vld [vmem:[%s55 + $0x780] sm:$0xff]
        %v7160 = vld [vmem:[%s55 + $0x788] sm:$0xff]
        %v7161 = vld [vmem:[%s55 + $0x790] sm:$0xff]
        %v7162 = vld [vmem:[%s55 + $0x798] sm:$0xff]
        %v7163 = vld [vmem:[%s55 + $0x7a0] sm:$0xff]
        %v7164 = vld [vmem:[%s55 + $0x7a8] sm:$0xff]
        %v7165 = vld [vmem:[%s55 + $0x7b0] sm:$0xff]
        %v7166 = vld [vmem:[%s55 + $0x7b8] sm:$0xff]
        %v7167 = vld [vmem:[%s55 + $0x7c0] sm:$0xff]
        %v7168 = vld [vmem:[%s55 + $0x7c8] sm:$0xff]
        %v7169 = vld [vmem:[%s55 + $0x7d0] sm:$0xff]
        %v7170 = vld [vmem:[%s55 + $0x7d8] sm:$0xff]
        %v7171 = vld [vmem:[%s55 + $0x7e0] sm:$0xff]
        %v7172 = vld [vmem:[%s55 + $0x7e8] sm:$0xff]
        %v7173 = vld [vmem:[%s55 + $0x7f0] sm:$0xff]
        %v7174 = vld [vmem:[%s55 + $0x7f8] sm:$0xff]
        %v7175 = vld [vmem:[%s55 + $0x800] sm:$0xff]
        %v7176 = vld [vmem:[%s55 + $0x808] sm:$0xff]
        %v7177 = vld [vmem:[%s55 + $0x810] sm:$0xff]
        %v7178 = vld [vmem:[%s55 + $0x818] sm:$0xff]
        %v7179 = vld [vmem:[%s55 + $0x820] sm:$0xff]
        %v7180 = vld [vmem:[%s55 + $0x828] sm:$0xff]
        %v7181 = vld [vmem:[%s55 + $0x830] sm:$0xff]
        %v7182 = vld [vmem:[%s55 + $0x838] sm:$0xff]
        %v7183 = vld [vmem:[%s55 + $0x840] sm:$0xff]
        %v7184 = vld [vmem:[%s55 + $0x848] sm:$0xff]
        %v7185 = vld [vmem:[%s55 + $0x850] sm:$0xff]
        %v7186 = vld [vmem:[%s55 + $0x858] sm:$0xff]
        %v7187 = vld [vmem:[%s55 + $0x860] sm:$0xff]
        %v7188 = vld [vmem:[%s55 + $0x868] sm:$0xff]
        %v7189 = vld [vmem:[%s55 + $0x870] sm:$0xff]
        %v7190 = vld [vmem:[%s55 + $0x878] sm:$0xff]
        %v7191 = vld [vmem:[%s55 + $0x880] sm:$0xff]
        %v7192 = vld [vmem:[%s55 + $0x888] sm:$0xff]
        %v7193 = vld [vmem:[%s55 + $0x890] sm:$0xff]
        %v7194 = vld [vmem:[%s55 + $0x898] sm:$0xff]
        %v7195 = vld [vmem:[%s55 + $0x8a0] sm:$0xff]
        %v7196 = vld [vmem:[%s55 + $0x8a8] sm:$0xff]
        %v7197 = vld [vmem:[%s55 + $0x8b0] sm:$0xff]
        %v7198 = vld [vmem:[%s55 + $0x8b8] sm:$0xff]
        %v7199 = vld [vmem:[%s55 + $0x8c0] sm:$0xff]
        %v7200 = vld [vmem:[%s55 + $0x8c8] sm:$0xff]
        %v7201 = vld [vmem:[%s55 + $0x8d0] sm:$0xff]
        %v7202 = vld [vmem:[%s55 + $0x8d8] sm:$0xff]
        %v7203 = vld [vmem:[%s55 + $0x8e0] sm:$0xff]
        %v7204 = vld [vmem:[%s55 + $0x8e8] sm:$0xff]
        %v7205 = vld [vmem:[%s55 + $0x8f0] sm:$0xff]
        %v7206 = vld [vmem:[%s55 + $0x8f8] sm:$0xff]
        %v7207 = vld [vmem:[%s55 + $0x900] sm:$0xff]
        %v7208 = vld [vmem:[%s55 + $0x908] sm:$0xff]
        %v7209 = vld [vmem:[%s55 + $0x910] sm:$0xff]
        %v7210 = vld [vmem:[%s55 + $0x918] sm:$0xff]
        %v7211 = vld [vmem:[%s55 + $0x920] sm:$0xff]
        %v7212 = vld [vmem:[%s55 + $0x928] sm:$0xff]
        %v7213 = vld [vmem:[%s55 + $0x930] sm:$0xff]
        %v7214 = vld [vmem:[%s55 + $0x938] sm:$0xff]
        %v7215 = vld [vmem:[%s55 + $0x940] sm:$0xff]
        %v7216 = vld [vmem:[%s55 + $0x948] sm:$0xff]
        %v7217 = vld [vmem:[%s55 + $0x950] sm:$0xff]
        %v7218 = vld [vmem:[%s55 + $0x958] sm:$0xff]
        %v7219 = vld [vmem:[%s55 + $0x960] sm:$0xff]
        %v7220 = vld [vmem:[%s55 + $0x968] sm:$0xff]
        %v7221 = vld [vmem:[%s55 + $0x970] sm:$0xff]
        %v7222 = vld [vmem:[%s55 + $0x978] sm:$0xff]
        %v7223 = vld [vmem:[%s55 + $0x980] sm:$0xff]
        %v7224 = vld [vmem:[%s55 + $0x988] sm:$0xff]
        %v7225 = vld [vmem:[%s55 + $0x990] sm:$0xff]
        %v7226 = vld [vmem:[%s55 + $0x998] sm:$0xff]
        %v7227 = vld [vmem:[%s55 + $0x9a0] sm:$0xff]
        %v7228 = vld [vmem:[%s55 + $0x9a8] sm:$0xff]
        %v7229 = vld [vmem:[%s55 + $0x9b0] sm:$0xff]
        %v7230 = vld [vmem:[%s55 + $0x9b8] sm:$0xff]
        %v7231 = vld [vmem:[%s55 + $0x9c0] sm:$0xff]
        %v7232 = vld [vmem:[%s55 + $0x9c8] sm:$0xff]
        %v7233 = vld [vmem:[%s55 + $0x9d0] sm:$0xff]
        %v7234 = vld [vmem:[%s55 + $0x9d8] sm:$0xff]
        %v7235 = vld [vmem:[%s55 + $0x9e0] sm:$0xff]
        %v7236 = vld [vmem:[%s55 + $0x9e8] sm:$0xff]
        %v7237 = vld [vmem:[%s55 + $0x9f0] sm:$0xff]
        %v7238 = vld [vmem:[%s55 + $0x9f8] sm:$0xff]
        %v7239 = vld [vmem:[%s57] sm:$0x1]
        %v7243 = vperm.slane %v6916, 0
        %v7244 = vperm.slane %v6916, 1
        %v7245 = vperm.slane %v6916, 2
        %v7246 = vperm.slane %v6916, 3
        %v7247 = vperm.slane %v6916, 4
        %v7248 = vperm.slane %v6916, 5
        %v7249 = vperm.slane %v6916, 6
        %v7250 = vperm.slane %v6916, 7
        %v7251 = vperm.slane %v6917, 0
        %v7252 = vperm.slane %v6917, 1
        %v7253 = vperm.slane %v6917, 2
        %v7254 = vperm.slane %v6917, 3
        %v7255 = vperm.slane %v6917, 4
        %v7256 = vperm.slane %v6917, 5
        %v7257 = vperm.slane %v6917, 6
        %v7258 = vperm.slane %v6917, 7
        %v7259 = vperm.slane %v6918, 0
        %v7260 = vperm.slane %v6918, 1
        %v7261 = vperm.slane %v6918, 2
        %v7262 = vperm.slane %v6918, 3
        %7283 = vmatpush.msra.mxu0 %v6934
        %7284 = vmatpush.msra.mxu0 %v6933
        %7285 = vmatpush.msra.mxu0 %v6932
        %7286 = vmatpush.msra.mxu0 %v6931
        %7287 = vmatpush.msra.mxu0 %v6930
        %7288 = vmatpush.msra.mxu0 %v6929
        %7289 = vmatpush.msra.mxu0 %v6928
        %7290 = vmatpush.msra.mxu0 %v6927
        %7291 = vmatpush.msra.mxu0 %v6926
        %7292 = vmatpush.msra.mxu0 %v6925
        %7293 = vmatpush.msra.mxu0 %v6924
        %7294 = vmatpush.msra.mxu0 %v6923
        %7295 = vmatpush.msra.mxu0 %v6922
        %7296 = vmatpush.msra.mxu0 %v6921
        %7297 = vmatpush.msra.mxu0 %v6920
        %7298 = vmatpush.msra.mxu0 %v6919
        %7299 = vmatmul.f32.gmra.mxu0 %v7243
        %v7300 = vpop.f32.mrf.mxu0
        %v7301 = vadd.f32 %v7239, %v7300
        %7302 = vdwg.mxu0
        %7303 = vmatpush.msra.mxu0 %v6950
        %7304 = vmatpush.msra.mxu0 %v6949
        %7305 = vmatpush.msra.mxu0 %v6948
        %7306 = vmatpush.msra.mxu0 %v6947
        %7307 = vmatpush.msra.mxu0 %v6946
        %7308 = vmatpush.msra.mxu0 %v6945
        %7309 = vmatpush.msra.mxu0 %v6944
        %7310 = vmatpush.msra.mxu0 %v6943
        %7311 = vmatpush.msra.mxu0 %v6942
        %7312 = vmatpush.msra.mxu0 %v6941
        %7313 = vmatpush.msra.mxu0 %v6940
        %7314 = vmatpush.msra.mxu0 %v6939
        %7315 = vmatpush.msra.mxu0 %v6938
        %7316 = vmatpush.msra.mxu0 %v6937
        %7317 = vmatpush.msra.mxu0 %v6936
        %7318 = vmatpush.msra.mxu0 %v6935
        %7319 = vmatmul.f32.gmra.mxu0 %v7244
        %v7320 = vpop.f32.mrf.mxu0
        %v7321 = vadd.f32 %v7301, %v7320
        %7322 = vdwg.mxu0
        %7323 = vmatpush.msra.mxu0 %v6966
        %7324 = vmatpush.msra.mxu0 %v6965
        %7325 = vmatpush.msra.mxu0 %v6964
        %7326 = vmatpush.msra.mxu0 %v6963
        %7327 = vmatpush.msra.mxu0 %v6962
        %7328 = vmatpush.msra.mxu0 %v6961
        %7329 = vmatpush.msra.mxu0 %v6960
        %7330 = vmatpush.msra.mxu0 %v6959
        %7331 = vmatpush.msra.mxu0 %v6958
        %7332 = vmatpush.msra.mxu0 %v6957
        %7333 = vmatpush.msra.mxu0 %v6956
        %7334 = vmatpush.msra.mxu0 %v6955
        %7335 = vmatpush.msra.mxu0 %v6954
        %7336 = vmatpush.msra.mxu0 %v6953
        %7337 = vmatpush.msra.mxu0 %v6952
        %7338 = vmatpush.msra.mxu0 %v6951
        %7339 = vmatmul.f32.gmra.mxu0 %v7245
        %v7340 = vpop.f32.mrf.mxu0
        %v7341 = vadd.f32 %v7321, %v7340
        %7342 = vdwg.mxu0
        %7343 = vmatpush.msra.mxu0 %v6982
        %7344 = vmatpush.msra.mxu0 %v6981
        %7345 = vmatpush.msra.mxu0 %v6980
        %7346 = vmatpush.msra.mxu0 %v6979
        %7347 = vmatpush.msra.mxu0 %v6978
        %7348 = vmatpush.msra.mxu0 %v6977
        %7349 = vmatpush.msra.mxu0 %v6976
        %7350 = vmatpush.msra.mxu0 %v6975
        %7351 = vmatpush.msra.mxu0 %v6974
        %7352 = vmatpush.msra.mxu0 %v6973
        %7353 = vmatpush.msra.mxu0 %v6972
        %7354 = vmatpush.msra.mxu0 %v6971
        %7355 = vmatpush.msra.mxu0 %v6970
        %7356 = vmatpush.msra.mxu0 %v6969
        %7357 = vmatpush.msra.mxu0 %v6968
        %7358 = vmatpush.msra.mxu0 %v6967
        %7359 = vmatmul.f32.gmra.mxu0 %v7246
        %v7360 = vpop.f32.mrf.mxu0
        %v7361 = vadd.f32 %v7341, %v7360
        %7362 = vdwg.mxu0
        %7363 = vmatpush.msra.mxu0 %v6998
        %7364 = vmatpush.msra.mxu0 %v6997
        %7365 = vmatpush.msra.mxu0 %v6996
        %7366 = vmatpush.msra.mxu0 %v6995
        %7367 = vmatpush.msra.mxu0 %v6994
        %7368 = vmatpush.msra.mxu0 %v6993
        %7369 = vmatpush.msra.mxu0 %v6992
        %7370 = vmatpush.msra.mxu0 %v6991
        %7371 = vmatpush.msra.mxu0 %v6990
        %7372 = vmatpush.msra.mxu0 %v6989
        %7373 = vmatpush.msra.mxu0 %v6988
        %7374 = vmatpush.msra.mxu0 %v6987
        %7375 = vmatpush.msra.mxu0 %v6986
        %7376 = vmatpush.msra.mxu0 %v6985
        %7377 = vmatpush.msra.mxu0 %v6984
        %7378 = vmatpush.msra.mxu0 %v6983
        %7379 = vmatmul.f32.gmra.mxu0 %v7247
        %v7380 = vpop.f32.mrf.mxu0
        %v7381 = vadd.f32 %v7361, %v7380
        %7382 = vdwg.mxu0
        %7383 = vmatpush.msra.mxu0 %v7014
        %7384 = vmatpush.msra.mxu0 %v7013
        %7385 = vmatpush.msra.mxu0 %v7012
        %7386 = vmatpush.msra.mxu0 %v7011
        %7387 = vmatpush.msra.mxu0 %v7010
        %7388 = vmatpush.msra.mxu0 %v7009
        %7389 = vmatpush.msra.mxu0 %v7008
        %7390 = vmatpush.msra.mxu0 %v7007
        %7391 = vmatpush.msra.mxu0 %v7006
        %7392 = vmatpush.msra.mxu0 %v7005
        %7393 = vmatpush.msra.mxu0 %v7004
        %7394 = vmatpush.msra.mxu0 %v7003
        %7395 = vmatpush.msra.mxu0 %v7002
        %7396 = vmatpush.msra.mxu0 %v7001
        %7397 = vmatpush.msra.mxu0 %v7000
        %7398 = vmatpush.msra.mxu0 %v6999
        %7399 = vmatmul.f32.gmra.mxu0 %v7248
        %v7400 = vpop.f32.mrf.mxu0
        %v7401 = vadd.f32 %v7381, %v7400
        %7402 = vdwg.mxu0
        %7403 = vmatpush.msra.mxu0 %v7030
        %7404 = vmatpush.msra.mxu0 %v7029
        %7405 = vmatpush.msra.mxu0 %v7028
        %7406 = vmatpush.msra.mxu0 %v7027
        %7407 = vmatpush.msra.mxu0 %v7026
        %7408 = vmatpush.msra.mxu0 %v7025
        %7409 = vmatpush.msra.mxu0 %v7024
        %7410 = vmatpush.msra.mxu0 %v7023
        %7411 = vmatpush.msra.mxu0 %v7022
        %7412 = vmatpush.msra.mxu0 %v7021
        %7413 = vmatpush.msra.mxu0 %v7020
        %7414 = vmatpush.msra.mxu0 %v7019
        %7415 = vmatpush.msra.mxu0 %v7018
        %7416 = vmatpush.msra.mxu0 %v7017
        %7417 = vmatpush.msra.mxu0 %v7016
        %7418 = vmatpush.msra.mxu0 %v7015
        %7419 = vmatmul.f32.gmra.mxu0 %v7249
        %v7420 = vpop.f32.mrf.mxu0
        %v7421 = vadd.f32 %v7401, %v7420
        %7422 = vdwg.mxu0
        %7423 = vmatpush.msra.mxu0 %v7046
        %7424 = vmatpush.msra.mxu0 %v7045
        %7425 = vmatpush.msra.mxu0 %v7044
        %7426 = vmatpush.msra.mxu0 %v7043
        %7427 = vmatpush.msra.mxu0 %v7042
        %7428 = vmatpush.msra.mxu0 %v7041
        %7429 = vmatpush.msra.mxu0 %v7040
        %7430 = vmatpush.msra.mxu0 %v7039
        %7431 = vmatpush.msra.mxu0 %v7038
        %7432 = vmatpush.msra.mxu0 %v7037
        %7433 = vmatpush.msra.mxu0 %v7036
        %7434 = vmatpush.msra.mxu0 %v7035
        %7435 = vmatpush.msra.mxu0 %v7034
        %7436 = vmatpush.msra.mxu0 %v7033
        %7437 = vmatpush.msra.mxu0 %v7032
        %7438 = vmatpush.msra.mxu0 %v7031
        %7439 = vmatmul.f32.gmra.mxu0 %v7250
        %v7440 = vpop.f32.mrf.mxu0
        %v7441 = vadd.f32 %v7421, %v7440
        %7442 = vdwg.mxu0
        %7443 = vmatpush.msra.mxu0 %v7062
        %7444 = vmatpush.msra.mxu0 %v7061
        %7445 = vmatpush.msra.mxu0 %v7060
        %7446 = vmatpush.msra.mxu0 %v7059
        %7447 = vmatpush.msra.mxu0 %v7058
        %7448 = vmatpush.msra.mxu0 %v7057
        %7449 = vmatpush.msra.mxu0 %v7056
        %7450 = vmatpush.msra.mxu0 %v7055
        %7451 = vmatpush.msra.mxu0 %v7054
        %7452 = vmatpush.msra.mxu0 %v7053
        %7453 = vmatpush.msra.mxu0 %v7052
        %7454 = vmatpush.msra.mxu0 %v7051
        %7455 = vmatpush.msra.mxu0 %v7050
        %7456 = vmatpush.msra.mxu0 %v7049
        %7457 = vmatpush.msra.mxu0 %v7048
        %7458 = vmatpush.msra.mxu0 %v7047
        %7459 = vmatmul.f32.gmra.mxu0 %v7251
        %v7460 = vpop.f32.mrf.mxu0
        %v7461 = vadd.f32 %v7441, %v7460
        %7462 = vdwg.mxu0
        %7463 = vmatpush.msra.mxu0 %v7078
        %7464 = vmatpush.msra.mxu0 %v7077
        %7465 = vmatpush.msra.mxu0 %v7076
        %7466 = vmatpush.msra.mxu0 %v7075
        %7467 = vmatpush.msra.mxu0 %v7074
        %7468 = vmatpush.msra.mxu0 %v7073
        %7469 = vmatpush.msra.mxu0 %v7072
        %7470 = vmatpush.msra.mxu0 %v7071
        %7471 = vmatpush.msra.mxu0 %v7070
        %7472 = vmatpush.msra.mxu0 %v7069
        %7473 = vmatpush.msra.mxu0 %v7068
        %7474 = vmatpush.msra.mxu0 %v7067
        %7475 = vmatpush.msra.mxu0 %v7066
        %7476 = vmatpush.msra.mxu0 %v7065
        %7477 = vmatpush.msra.mxu0 %v7064
        %7478 = vmatpush.msra.mxu0 %v7063
        %7479 = vmatmul.f32.gmra.mxu0 %v7252
        %v7480 = vpop.f32.mrf.mxu0
        %v7481 = vadd.f32 %v7461, %v7480
        %7482 = vdwg.mxu0
        %7483 = vmatpush.msra.mxu0 %v7094
        %7484 = vmatpush.msra.mxu0 %v7093
        %7485 = vmatpush.msra.mxu0 %v7092
        %7486 = vmatpush.msra.mxu0 %v7091
        %7487 = vmatpush.msra.mxu0 %v7090
        %7488 = vmatpush.msra.mxu0 %v7089
        %7489 = vmatpush.msra.mxu0 %v7088
        %7490 = vmatpush.msra.mxu0 %v7087
        %7491 = vmatpush.msra.mxu0 %v7086
        %7492 = vmatpush.msra.mxu0 %v7085
        %7493 = vmatpush.msra.mxu0 %v7084
        %7494 = vmatpush.msra.mxu0 %v7083
        %7495 = vmatpush.msra.mxu0 %v7082
        %7496 = vmatpush.msra.mxu0 %v7081
        %7497 = vmatpush.msra.mxu0 %v7080
        %7498 = vmatpush.msra.mxu0 %v7079
        %7499 = vmatmul.f32.gmra.mxu0 %v7253
        %v7500 = vpop.f32.mrf.mxu0
        %v7501 = vadd.f32 %v7481, %v7500
        %7502 = vdwg.mxu0
        %7503 = vmatpush.msra.mxu0 %v7110
        %7504 = vmatpush.msra.mxu0 %v7109
        %7505 = vmatpush.msra.mxu0 %v7108
        %7506 = vmatpush.msra.mxu0 %v7107
        %7507 = vmatpush.msra.mxu0 %v7106
        %7508 = vmatpush.msra.mxu0 %v7105
        %7509 = vmatpush.msra.mxu0 %v7104
        %7510 = vmatpush.msra.mxu0 %v7103
        %7511 = vmatpush.msra.mxu0 %v7102
        %7512 = vmatpush.msra.mxu0 %v7101
        %7513 = vmatpush.msra.mxu0 %v7100
        %7514 = vmatpush.msra.mxu0 %v7099
        %7515 = vmatpush.msra.mxu0 %v7098
        %7516 = vmatpush.msra.mxu0 %v7097
        %7517 = vmatpush.msra.mxu0 %v7096
        %7518 = vmatpush.msra.mxu0 %v7095
        %7519 = vmatmul.f32.gmra.mxu0 %v7254
        %v7520 = vpop.f32.mrf.mxu0
        %v7521 = vadd.f32 %v7501, %v7520
        %7522 = vdwg.mxu0
        %7523 = vmatpush.msra.mxu0 %v7126
        %7524 = vmatpush.msra.mxu0 %v7125
        %7525 = vmatpush.msra.mxu0 %v7124
        %7526 = vmatpush.msra.mxu0 %v7123
        %7527 = vmatpush.msra.mxu0 %v7122
        %7528 = vmatpush.msra.mxu0 %v7121
        %7529 = vmatpush.msra.mxu0 %v7120
        %7530 = vmatpush.msra.mxu0 %v7119
        %7531 = vmatpush.msra.mxu0 %v7118
        %7532 = vmatpush.msra.mxu0 %v7117
        %7533 = vmatpush.msra.mxu0 %v7116
        %7534 = vmatpush.msra.mxu0 %v7115
        %7535 = vmatpush.msra.mxu0 %v7114
        %7536 = vmatpush.msra.mxu0 %v7113
        %7537 = vmatpush.msra.mxu0 %v7112
        %7538 = vmatpush.msra.mxu0 %v7111
        %7539 = vmatmul.f32.gmra.mxu0 %v7255
        %v7540 = vpop.f32.mrf.mxu0
        %v7541 = vadd.f32 %v7521, %v7540
        %7542 = vdwg.mxu0
        %7543 = vmatpush.msra.mxu0 %v7142
        %7544 = vmatpush.msra.mxu0 %v7141
        %7545 = vmatpush.msra.mxu0 %v7140
        %7546 = vmatpush.msra.mxu0 %v7139
        %7547 = vmatpush.msra.mxu0 %v7138
        %7548 = vmatpush.msra.mxu0 %v7137
        %7549 = vmatpush.msra.mxu0 %v7136
        %7550 = vmatpush.msra.mxu0 %v7135
        %7551 = vmatpush.msra.mxu0 %v7134
        %7552 = vmatpush.msra.mxu0 %v7133
        %7553 = vmatpush.msra.mxu0 %v7132
        %7554 = vmatpush.msra.mxu0 %v7131
        %7555 = vmatpush.msra.mxu0 %v7130
        %7556 = vmatpush.msra.mxu0 %v7129
        %7557 = vmatpush.msra.mxu0 %v7128
        %7558 = vmatpush.msra.mxu0 %v7127
        %7559 = vmatmul.f32.gmra.mxu0 %v7256
        %v7560 = vpop.f32.mrf.mxu0
        %v7561 = vadd.f32 %v7541, %v7560
        %7562 = vdwg.mxu0
        %7563 = vmatpush.msra.mxu0 %v7158
        %7564 = vmatpush.msra.mxu0 %v7157
        %7565 = vmatpush.msra.mxu0 %v7156
        %7566 = vmatpush.msra.mxu0 %v7155
        %7567 = vmatpush.msra.mxu0 %v7154
        %7568 = vmatpush.msra.mxu0 %v7153
        %7569 = vmatpush.msra.mxu0 %v7152
        %7570 = vmatpush.msra.mxu0 %v7151
        %7571 = vmatpush.msra.mxu0 %v7150
        %7572 = vmatpush.msra.mxu0 %v7149
        %7573 = vmatpush.msra.mxu0 %v7148
        %7574 = vmatpush.msra.mxu0 %v7147
        %7575 = vmatpush.msra.mxu0 %v7146
        %7576 = vmatpush.msra.mxu0 %v7145
        %7577 = vmatpush.msra.mxu0 %v7144
        %7578 = vmatpush.msra.mxu0 %v7143
        %7579 = vmatmul.f32.gmra.mxu0 %v7257
        %v7580 = vpop.f32.mrf.mxu0
        %v7581 = vadd.f32 %v7561, %v7580
        %7582 = vdwg.mxu0
        %7583 = vmatpush.msra.mxu0 %v7174
        %7584 = vmatpush.msra.mxu0 %v7173
        %7585 = vmatpush.msra.mxu0 %v7172
        %7586 = vmatpush.msra.mxu0 %v7171
        %7587 = vmatpush.msra.mxu0 %v7170
        %7588 = vmatpush.msra.mxu0 %v7169
        %7589 = vmatpush.msra.mxu0 %v7168
        %7590 = vmatpush.msra.mxu0 %v7167
        %7591 = vmatpush.msra.mxu0 %v7166
        %7592 = vmatpush.msra.mxu0 %v7165
        %7593 = vmatpush.msra.mxu0 %v7164
        %7594 = vmatpush.msra.mxu0 %v7163
        %7595 = vmatpush.msra.mxu0 %v7162
        %7596 = vmatpush.msra.mxu0 %v7161
        %7597 = vmatpush.msra.mxu0 %v7160
        %7598 = vmatpush.msra.mxu0 %v7159
        %7599 = vmatmul.f32.gmra.mxu0 %v7258
        %v7600 = vpop.f32.mrf.mxu0
        %v7601 = vadd.f32 %v7581, %v7600
        %7602 = vdwg.mxu0
        %7603 = vmatpush.msra.mxu0 %v7190
        %7604 = vmatpush.msra.mxu0 %v7189
        %7605 = vmatpush.msra.mxu0 %v7188
        %7606 = vmatpush.msra.mxu0 %v7187
        %7607 = vmatpush.msra.mxu0 %v7186
        %7608 = vmatpush.msra.mxu0 %v7185
        %7609 = vmatpush.msra.mxu0 %v7184
        %7610 = vmatpush.msra.mxu0 %v7183
        %7611 = vmatpush.msra.mxu0 %v7182
        %7612 = vmatpush.msra.mxu0 %v7181
        %7613 = vmatpush.msra.mxu0 %v7180
        %7614 = vmatpush.msra.mxu0 %v7179
        %7615 = vmatpush.msra.mxu0 %v7178
        %7616 = vmatpush.msra.mxu0 %v7177
        %7617 = vmatpush.msra.mxu0 %v7176
        %7618 = vmatpush.msra.mxu0 %v7175
        %7619 = vmatmul.f32.gmra.mxu0 %v7259
        %v7620 = vpop.f32.mrf.mxu0
        %v7621 = vadd.f32 %v7601, %v7620
        %7622 = vdwg.mxu0
        %7623 = vmatpush.msra.mxu0 %v7206
        %7624 = vmatpush.msra.mxu0 %v7205
        %7625 = vmatpush.msra.mxu0 %v7204
        %7626 = vmatpush.msra.mxu0 %v7203
        %7627 = vmatpush.msra.mxu0 %v7202
        %7628 = vmatpush.msra.mxu0 %v7201
        %7629 = vmatpush.msra.mxu0 %v7200
        %7630 = vmatpush.msra.mxu0 %v7199
        %7631 = vmatpush.msra.mxu0 %v7198
        %7632 = vmatpush.msra.mxu0 %v7197
        %7633 = vmatpush.msra.mxu0 %v7196
        %7634 = vmatpush.msra.mxu0 %v7195
        %7635 = vmatpush.msra.mxu0 %v7194
        %7636 = vmatpush.msra.mxu0 %v7193
        %7637 = vmatpush.msra.mxu0 %v7192
        %7638 = vmatpush.msra.mxu0 %v7191
        %7639 = vmatmul.f32.gmra.mxu0 %v7260
        %v7640 = vpop.f32.mrf.mxu0
        %v7641 = vadd.f32 %v7621, %v7640
        %7642 = vdwg.mxu0
        %7643 = vmatpush.msra.mxu0 %v7222
        %7644 = vmatpush.msra.mxu0 %v7221
        %7645 = vmatpush.msra.mxu0 %v7220
        %7646 = vmatpush.msra.mxu0 %v7219
        %7647 = vmatpush.msra.mxu0 %v7218
        %7648 = vmatpush.msra.mxu0 %v7217
        %7649 = vmatpush.msra.mxu0 %v7216
        %7650 = vmatpush.msra.mxu0 %v7215
        %7651 = vmatpush.msra.mxu0 %v7214
        %7652 = vmatpush.msra.mxu0 %v7213
        %7653 = vmatpush.msra.mxu0 %v7212
        %7654 = vmatpush.msra.mxu0 %v7211
        %7655 = vmatpush.msra.mxu0 %v7210
        %7656 = vmatpush.msra.mxu0 %v7209
        %7657 = vmatpush.msra.mxu0 %v7208
        %7658 = vmatpush.msra.mxu0 %v7207
        %7659 = vmatmul.f32.gmra.mxu0 %v7261
        %v7660 = vpop.f32.mrf.mxu0
        %v7661 = vadd.f32 %v7641, %v7660
        %7662 = vdwg.mxu0
        %7663 = vmatpush.msra.mxu0 %v7238
        %7664 = vmatpush.msra.mxu0 %v7237
        %7665 = vmatpush.msra.mxu0 %v7236
        %7666 = vmatpush.msra.mxu0 %v7235
        %7667 = vmatpush.msra.mxu0 %v7234
        %7668 = vmatpush.msra.mxu0 %v7233
        %7669 = vmatpush.msra.mxu0 %v7232
        %7670 = vmatpush.msra.mxu0 %v7231
        %7671 = vmatpush.msra.mxu0 %v7230
        %7672 = vmatpush.msra.mxu0 %v7229
        %7673 = vmatpush.msra.mxu0 %v7228
        %7674 = vmatpush.msra.mxu0 %v7227
        %7675 = vmatpush.msra.mxu0 %v7226
        %7676 = vmatpush.msra.mxu0 %v7225
        %7677 = vmatpush.msra.mxu0 %v7224
        %7678 = vmatpush.msra.mxu0 %v7223
        %7679 = vmatmul.f32.gmra.mxu0 %v7262
        %v7680 = vpop.f32.mrf.mxu0
        %v7681 = vadd.f32 %v7661, %v7680
        %7682 = vdwg.mxu0
        %7683 = vst.msk [vmem:[%s991 + $0x1] sm:$0x1] %vm6593, %v7681
        %v7684 = vld [vmem:[%s5] sm:$0xff]
        %v7685 = vld [vmem:[%s5 + $0x8] sm:$0xff]
        %v7686 = vld [vmem:[%s5 + $0x10] sm:$0xff]
        %v7687 = vld [vmem:[%s5 + $0x18] sm:$0xff]
        %v7688 = vld [vmem:[%s5 + $0x20] sm:$0xff]
        %v7689 = vld [vmem:[%s5 + $0x28] sm:$0xff]
        %v7690 = vld [vmem:[%s5 + $0x30] sm:$0xff]
        %v7691 = vld [vmem:[%s5 + $0x38] sm:$0xff]
        %v7692 = vld [vmem:[%s5 + $0x40] sm:$0xff]
        %v7693 = vld [vmem:[%s5 + $0x48] sm:$0xff]
        %v7694 = vld [vmem:[%s5 + $0x50] sm:$0xff]
        %v7695 = vld [vmem:[%s5 + $0x58] sm:$0xff]
        %v7696 = vld [vmem:[%s5 + $0x60] sm:$0xff]
        %v7697 = vld [vmem:[%s5 + $0x68] sm:$0xff]
        %v7698 = vld [vmem:[%s5 + $0x70] sm:$0xff]
        %v7699 = vld [vmem:[%s5 + $0x78] sm:$0xff]
        %v7700 = vld [vmem:[%s5 + $0x80] sm:$0xff]
        %v7701 = vld [vmem:[%s5 + $0x88] sm:$0xff]
        %v7702 = vld [vmem:[%s5 + $0x90] sm:$0xff]
        %v7703 = vld [vmem:[%s5 + $0x98] sm:$0xff]
        %v7704 = vld [vmem:[%s5 + $0xa0] sm:$0xff]
        %v7705 = vld [vmem:[%s5 + $0xa8] sm:$0xff]
        %v7706 = vld [vmem:[%s5 + $0xb0] sm:$0xff]
        %v7707 = vld [vmem:[%s5 + $0xb8] sm:$0xff]
        %v7708 = vld [vmem:[%s5 + $0xc0] sm:$0xff]
        %v7709 = vld [vmem:[%s5 + $0xc8] sm:$0xff]
        %v7710 = vld [vmem:[%s5 + $0xd0] sm:$0xff]
        %v7711 = vld [vmem:[%s5 + $0xd8] sm:$0xff]
        %v7712 = vld [vmem:[%s5 + $0xe0] sm:$0xff]
        %v7713 = vld [vmem:[%s5 + $0xe8] sm:$0xff]
        %v7714 = vld [vmem:[%s5 + $0xf0] sm:$0xff]
        %v7715 = vld [vmem:[%s5 + $0xf8] sm:$0xff]
        %7716 = vmatpush.msra.mxu0 %v7699
        %7717 = vmatpush.msra.mxu0 %v7698
        %7718 = vmatpush.msra.mxu0 %v7697
        %7719 = vmatpush.msra.mxu0 %v7696
        %7720 = vmatpush.msra.mxu0 %v7695
        %7721 = vmatpush.msra.mxu0 %v7694
        %7722 = vmatpush.msra.mxu0 %v7693
        %7723 = vmatpush.msra.mxu0 %v7692
        %7724 = vmatpush.msra.mxu0 %v7691
        %7725 = vmatpush.msra.mxu0 %v7690
        %7726 = vmatpush.msra.mxu0 %v7689
        %7727 = vmatpush.msra.mxu0 %v7688
        %7728 = vmatpush.msra.mxu0 %v7687
        %7729 = vmatpush.msra.mxu0 %v7686
        %7730 = vmatpush.msra.mxu0 %v7685
        %7731 = vmatpush.msra.mxu0 %v7684
        %7732 = vmatmul.f32.gmra.mxu0 %v5894
        %v7733 = vpop.f32.mrf.mxu0
        %v7734 = vadd.f32 0.0, %v7733
        %7735 = vmatmul.f32.gmra.mxu0 %v5896
        %v7736 = vpop.f32.mrf.mxu0
        %v7737 = vadd.f32 0.0, %v7736
        %7738 = vmatmul.f32.gmra.mxu0 %v5898
        %v7739 = vpop.f32.mrf.mxu0
        %v7740 = vadd.f32 0.0, %v7739
        %7741 = vmatmul.f32.gmra.mxu0 %v5900
        %v7742 = vpop.f32.mrf.mxu0
        %v7743 = vadd.f32 0.0, %v7742
        %7744 = vmatmul.f32.gmra.mxu0 %v5902
        %v7745 = vpop.f32.mrf.mxu0
        %v7746 = vadd.f32 0.0, %v7745
        %7747 = vmatmul.f32.gmra.mxu0 %v5904
        %v7748 = vpop.f32.mrf.mxu0
        %v7749 = vadd.f32 0.0, %v7748
        %7750 = vdwg.mxu0
        %7751 = vmatpush.msra.mxu0 %v7715
        %7752 = vmatpush.msra.mxu0 %v7714
        %7753 = vmatpush.msra.mxu0 %v7713
        %7754 = vmatpush.msra.mxu0 %v7712
        %7755 = vmatpush.msra.mxu0 %v7711
        %7756 = vmatpush.msra.mxu0 %v7710
        %7757 = vmatpush.msra.mxu0 %v7709
        %7758 = vmatpush.msra.mxu0 %v7708
        %7759 = vmatpush.msra.mxu0 %v7707
        %7760 = vmatpush.msra.mxu0 %v7706
        %7761 = vmatpush.msra.mxu0 %v7705
        %7762 = vmatpush.msra.mxu0 %v7704
        %7763 = vmatpush.msra.mxu0 %v7703
        %7764 = vmatpush.msra.mxu0 %v7702
        %7765 = vmatpush.msra.mxu0 %v7701
        %7766 = vmatpush.msra.mxu0 %v7700
        %7767 = vmatmul.f32.gmra.mxu0 %v5895
        %v7768 = vpop.f32.mrf.mxu0
        %v7769 = vadd.f32 %v7734, %v7768
        %7770 = vmatmul.f32.gmra.mxu0 %v5897
        %v7771 = vpop.f32.mrf.mxu0
        %v7772 = vadd.f32 %v7737, %v7771
        %7773 = vmatmul.f32.gmra.mxu0 %v5899
        %v7774 = vpop.f32.mrf.mxu0
        %v7775 = vadd.f32 %v7740, %v7774
        %7776 = vmatmul.f32.gmra.mxu0 %v5901
        %v7777 = vpop.f32.mrf.mxu0
        %v7778 = vadd.f32 %v7743, %v7777
        %7779 = vmatmul.f32.gmra.mxu0 %v5903
        %v7780 = vpop.f32.mrf.mxu0
        %v7781 = vadd.f32 %v7746, %v7780
        %7782 = vmatmul.f32.gmra.mxu0 %v5905
        %v7783 = vpop.f32.mrf.mxu0
        %v7784 = vadd.f32 %v7749, %v7783
        %7785 = vdwg.mxu0
        %7786 = vst.msk [vmem:[#allocation3] sm:$0x1] %vm5993, %v7769
        %7788 = vst [vmem:[#allocation1] sm:$0xff] %v7769
        %s7789 = scalar_lea.vmem [#allocation1], 1
        %v7790 = vld [vmem:[%s7789] ss:$9 sm:$0xff]
        %7791 = vrot.lane.b32.xlu0 %v7790, 64
        %v7792 = vpop.permute.xlu0 %7791
        %7794 = vst.msk [vmem:[#allocation3] sm:$0x1] %vm6004, %v7792
        %7795 = vst [vmem:[#allocation1] sm:$0xff] %v7769
        %s7796 = scalar_lea.vmem [#allocation1], 2
        %v7797 = vld [vmem:[%s7796] ss:$9 sm:$0xff]
        %7799 = vst.msk [vmem:[#allocation3 + $0x1] sm:$0x1] %vm5993, %v7797
        %7800 = vst [vmem:[#allocation1] sm:$0xff] %v7769
        %s7801 = scalar_lea.vmem [#allocation1], 3
        %v7802 = vld [vmem:[%s7801] ss:$9 sm:$0xff]
        %7803 = vrot.lane.b32.xlu0 %v7802, 64
        %v7804 = vpop.permute.xlu0 %7803
        %7806 = vst.msk [vmem:[#allocation3 + $0x1] sm:$0x1] %vm6004, %v7804
        %7807 = vst [vmem:[#allocation1] sm:$0xff] %v7769
        %s7808 = scalar_lea.vmem [#allocation1], 4
        %v7809 = vld [vmem:[%s7808] ss:$9 sm:$0xff]
        %7811 = vst.msk [vmem:[#allocation3 + $0x2] sm:$0x1] %vm5993, %v7809
        %7812 = vst [vmem:[#allocation1] sm:$0xff] %v7769
        %s7813 = scalar_lea.vmem [#allocation1], 5
        %v7814 = vld [vmem:[%s7813] ss:$9 sm:$0xff]
        %7815 = vrot.lane.b32.xlu0 %v7814, 64
        %v7816 = vpop.permute.xlu0 %7815
        %7818 = vst.msk [vmem:[#allocation3 + $0x2] sm:$0x1] %vm6004, %v7816
        %7819 = vst [vmem:[#allocation1] sm:$0xff] %v7769
        %s7820 = scalar_lea.vmem [#allocation1], 6
        %v7821 = vld [vmem:[%s7820] ss:$9 sm:$0xff]
        %7823 = vst.msk [vmem:[#allocation3 + $0x3] sm:$0x1] %vm5993, %v7821
        %7824 = vst [vmem:[#allocation1] sm:$0xff] %v7769
        %s7825 = scalar_lea.vmem [#allocation1], 7
        %v7826 = vld [vmem:[%s7825] ss:$9 sm:$0xff]
        %7827 = vrot.lane.b32.xlu0 %v7826, 64
        %v7828 = vpop.permute.xlu0 %7827
        %7830 = vst.msk [vmem:[#allocation3 + $0x3] sm:$0x1] %vm6004, %v7828
        %7831 = vst.msk [vmem:[#allocation3 + $0x4] sm:$0x1] %vm5993, %v7772
        %7833 = vst [vmem:[#allocation1] sm:$0xff] %v7772
        %s7834 = scalar_lea.vmem [#allocation1], 1
        %v7835 = vld [vmem:[%s7834] ss:$9 sm:$0xff]
        %7836 = vrot.lane.b32.xlu0 %v7835, 64
        %v7837 = vpop.permute.xlu0 %7836
        %7839 = vst.msk [vmem:[#allocation3 + $0x4] sm:$0x1] %vm6004, %v7837
        %7840 = vst [vmem:[#allocation1] sm:$0xff] %v7772
        %s7841 = scalar_lea.vmem [#allocation1], 2
        %v7842 = vld [vmem:[%s7841] ss:$9 sm:$0xff]
        %7844 = vst.msk [vmem:[#allocation3 + $0x5] sm:$0x1] %vm5993, %v7842
        %7845 = vst [vmem:[#allocation1] sm:$0xff] %v7772
        %s7846 = scalar_lea.vmem [#allocation1], 3
        %v7847 = vld [vmem:[%s7846] ss:$9 sm:$0xff]
        %7848 = vrot.lane.b32.xlu0 %v7847, 64
        %v7849 = vpop.permute.xlu0 %7848
        %7851 = vst.msk [vmem:[#allocation3 + $0x5] sm:$0x1] %vm6004, %v7849
        %7852 = vst [vmem:[#allocation1] sm:$0xff] %v7772
        %s7853 = scalar_lea.vmem [#allocation1], 4
        %v7854 = vld [vmem:[%s7853] ss:$9 sm:$0xff]
        %7856 = vst.msk [vmem:[#allocation3 + $0x6] sm:$0x1] %vm5993, %v7854
        %7857 = vst [vmem:[#allocation1] sm:$0xff] %v7772
        %s7858 = scalar_lea.vmem [#allocation1], 5
        %v7859 = vld [vmem:[%s7858] ss:$9 sm:$0xff]
        %7860 = vrot.lane.b32.xlu0 %v7859, 64
        %v7861 = vpop.permute.xlu0 %7860
        %7863 = vst.msk [vmem:[#allocation3 + $0x6] sm:$0x1] %vm6004, %v7861
        %7864 = vst [vmem:[#allocation1] sm:$0xff] %v7772
        %s7865 = scalar_lea.vmem [#allocation1], 6
        %v7866 = vld [vmem:[%s7865] ss:$9 sm:$0xff]
        %7868 = vst.msk [vmem:[#allocation3 + $0x7] sm:$0x1] %vm5993, %v7866
        %7869 = vst [vmem:[#allocation1] sm:$0xff] %v7772
        %s7870 = scalar_lea.vmem [#allocation1], 7
        %v7871 = vld [vmem:[%s7870] ss:$9 sm:$0xff]
        %7872 = vrot.lane.b32.xlu0 %v7871, 64
        %v7873 = vpop.permute.xlu0 %7872
        %7875 = vst.msk [vmem:[#allocation3 + $0x7] sm:$0x1] %vm6004, %v7873
        %7876 = vst.msk [vmem:[#allocation3 + $0x8] sm:$0x1] %vm5993, %v7775
        %7878 = vst [vmem:[#allocation1] sm:$0xff] %v7775
        %s7879 = scalar_lea.vmem [#allocation1], 1
        %v7880 = vld [vmem:[%s7879] ss:$9 sm:$0xff]
        %7881 = vrot.lane.b32.xlu0 %v7880, 64
        %v7882 = vpop.permute.xlu0 %7881
        %7884 = vst.msk [vmem:[#allocation3 + $0x8] sm:$0x1] %vm6004, %v7882
        %7885 = vst [vmem:[#allocation1] sm:$0xff] %v7775
        %s7886 = scalar_lea.vmem [#allocation1], 2
        %v7887 = vld [vmem:[%s7886] ss:$9 sm:$0xff]
        %7889 = vst.msk [vmem:[#allocation3 + $0x9] sm:$0x1] %vm5993, %v7887
        %7890 = vst [vmem:[#allocation1] sm:$0xff] %v7775
        %s7891 = scalar_lea.vmem [#allocation1], 3
        %v7892 = vld [vmem:[%s7891] ss:$9 sm:$0xff]
        %7893 = vrot.lane.b32.xlu0 %v7892, 64
        %v7894 = vpop.permute.xlu0 %7893
        %7896 = vst.msk [vmem:[#allocation3 + $0x9] sm:$0x1] %vm6004, %v7894
        %7897 = vst [vmem:[#allocation1] sm:$0xff] %v7775
        %s7898 = scalar_lea.vmem [#allocation1], 4
        %v7899 = vld [vmem:[%s7898] ss:$9 sm:$0xff]
        %7901 = vst.msk [vmem:[#allocation3 + $0xa] sm:$0x1] %vm5993, %v7899
        %7902 = vst [vmem:[#allocation1] sm:$0xff] %v7775
        %s7903 = scalar_lea.vmem [#allocation1], 5
        %v7904 = vld [vmem:[%s7903] ss:$9 sm:$0xff]
        %7905 = vrot.lane.b32.xlu0 %v7904, 64
        %v7906 = vpop.permute.xlu0 %7905
        %7908 = vst.msk [vmem:[#allocation3 + $0xa] sm:$0x1] %vm6004, %v7906
        %7909 = vst [vmem:[#allocation1] sm:$0xff] %v7775
        %s7910 = scalar_lea.vmem [#allocation1], 6
        %v7911 = vld [vmem:[%s7910] ss:$9 sm:$0xff]
        %7913 = vst.msk [vmem:[#allocation3 + $0xb] sm:$0x1] %vm5993, %v7911
        %7914 = vst [vmem:[#allocation1] sm:$0xff] %v7775
        %s7915 = scalar_lea.vmem [#allocation1], 7
        %v7916 = vld [vmem:[%s7915] ss:$9 sm:$0xff]
        %7917 = vrot.lane.b32.xlu0 %v7916, 64
        %v7918 = vpop.permute.xlu0 %7917
        %7920 = vst.msk [vmem:[#allocation3 + $0xb] sm:$0x1] %vm6004, %v7918
        %7921 = vst.msk [vmem:[#allocation3 + $0xc] sm:$0x1] %vm5993, %v7778
        %7923 = vst [vmem:[#allocation1] sm:$0xff] %v7778
        %s7924 = scalar_lea.vmem [#allocation1], 1
        %v7925 = vld [vmem:[%s7924] ss:$9 sm:$0xff]
        %7926 = vrot.lane.b32.xlu0 %v7925, 64
        %v7927 = vpop.permute.xlu0 %7926
        %7929 = vst.msk [vmem:[#allocation3 + $0xc] sm:$0x1] %vm6004, %v7927
        %7930 = vst [vmem:[#allocation1] sm:$0xff] %v7778
        %s7931 = scalar_lea.vmem [#allocation1], 2
        %v7932 = vld [vmem:[%s7931] ss:$9 sm:$0xff]
        %7934 = vst.msk [vmem:[#allocation3 + $0xd] sm:$0x1] %vm5993, %v7932
        %7935 = vst [vmem:[#allocation1] sm:$0xff] %v7778
        %s7936 = scalar_lea.vmem [#allocation1], 3
        %v7937 = vld [vmem:[%s7936] ss:$9 sm:$0xff]
        %7938 = vrot.lane.b32.xlu0 %v7937, 64
        %v7939 = vpop.permute.xlu0 %7938
        %7941 = vst.msk [vmem:[#allocation3 + $0xd] sm:$0x1] %vm6004, %v7939
        %7942 = vst [vmem:[#allocation1] sm:$0xff] %v7778
        %s7943 = scalar_lea.vmem [#allocation1], 4
        %v7944 = vld [vmem:[%s7943] ss:$9 sm:$0xff]
        %7946 = vst.msk [vmem:[#allocation3 + $0xe] sm:$0x1] %vm5993, %v7944
        %7947 = vst [vmem:[#allocation1] sm:$0xff] %v7778
        %s7948 = scalar_lea.vmem [#allocation1], 5
        %v7949 = vld [vmem:[%s7948] ss:$9 sm:$0xff]
        %7950 = vrot.lane.b32.xlu0 %v7949, 64
        %v7951 = vpop.permute.xlu0 %7950
        %7953 = vst.msk [vmem:[#allocation3 + $0xe] sm:$0x1] %vm6004, %v7951
        %7954 = vst [vmem:[#allocation1] sm:$0xff] %v7778
        %s7955 = scalar_lea.vmem [#allocation1], 6
        %v7956 = vld [vmem:[%s7955] ss:$9 sm:$0xff]
        %7958 = vst.msk [vmem:[#allocation3 + $0xf] sm:$0x1] %vm5993, %v7956
        %7959 = vst [vmem:[#allocation1] sm:$0xff] %v7778
        %s7960 = scalar_lea.vmem [#allocation1], 7
        %v7961 = vld [vmem:[%s7960] ss:$9 sm:$0xff]
        %7962 = vrot.lane.b32.xlu0 %v7961, 64
        %v7963 = vpop.permute.xlu0 %7962
        %7965 = vst.msk [vmem:[#allocation3 + $0xf] sm:$0x1] %vm6004, %v7963
        %7966 = vst.msk [vmem:[#allocation3 + $0x10] sm:$0x1] %vm5993, %v7781
        %7968 = vst [vmem:[#allocation1] sm:$0xff] %v7781
        %s7969 = scalar_lea.vmem [#allocation1], 1
        %v7970 = vld [vmem:[%s7969] ss:$9 sm:$0xff]
        %7971 = vrot.lane.b32.xlu0 %v7970, 64
        %v7972 = vpop.permute.xlu0 %7971
        %7974 = vst.msk [vmem:[#allocation3 + $0x10] sm:$0x1] %vm6004, %v7972
        %7975 = vst [vmem:[#allocation1] sm:$0xff] %v7781
        %s7976 = scalar_lea.vmem [#allocation1], 2
        %v7977 = vld [vmem:[%s7976] ss:$9 sm:$0xff]
        %7979 = vst.msk [vmem:[#allocation3 + $0x11] sm:$0x1] %vm5993, %v7977
        %7980 = vst [vmem:[#allocation1] sm:$0xff] %v7781
        %s7981 = scalar_lea.vmem [#allocation1], 3
        %v7982 = vld [vmem:[%s7981] ss:$9 sm:$0xff]
        %7983 = vrot.lane.b32.xlu0 %v7982, 64
        %v7984 = vpop.permute.xlu0 %7983
        %7986 = vst.msk [vmem:[#allocation3 + $0x11] sm:$0x1] %vm6004, %v7984
        %7987 = vst [vmem:[#allocation1] sm:$0xff] %v7781
        %s7988 = scalar_lea.vmem [#allocation1], 4
        %v7989 = vld [vmem:[%s7988] ss:$9 sm:$0xff]
        %7991 = vst.msk [vmem:[#allocation3 + $0x12] sm:$0x1] %vm5993, %v7989
        %7992 = vst [vmem:[#allocation1] sm:$0xff] %v7781
        %s7993 = scalar_lea.vmem [#allocation1], 5
        %v7994 = vld [vmem:[%s7993] ss:$9 sm:$0xff]
        %7995 = vrot.lane.b32.xlu0 %v7994, 64
        %v7996 = vpop.permute.xlu0 %7995
        %7998 = vst.msk [vmem:[#allocation3 + $0x12] sm:$0x1] %vm6004, %v7996
        %7999 = vst [vmem:[#allocation1] sm:$0xff] %v7781
        %s8000 = scalar_lea.vmem [#allocation1], 6
        %v8001 = vld [vmem:[%s8000] ss:$9 sm:$0xff]
        %8003 = vst.msk [vmem:[#allocation3 + $0x13] sm:$0x1] %vm5993, %v8001
        %8004 = vst [vmem:[#allocation1] sm:$0xff] %v7781
        %s8005 = scalar_lea.vmem [#allocation1], 7
        %v8006 = vld [vmem:[%s8005] ss:$9 sm:$0xff]
        %8007 = vrot.lane.b32.xlu0 %v8006, 64
        %v8008 = vpop.permute.xlu0 %8007
        %8010 = vst.msk [vmem:[#allocation3 + $0x13] sm:$0x1] %vm6004, %v8008
        %8011 = vst.msk [vmem:[#allocation3 + $0x14] sm:$0x1] %vm5993, %v7784
        %8013 = vst [vmem:[#allocation1] sm:$0xff] %v7784
        %s8014 = scalar_lea.vmem [#allocation1], 1
        %v8015 = vld [vmem:[%s8014] ss:$9 sm:$0xff]
        %8016 = vrot.lane.b32.xlu0 %v8015, 64
        %v8017 = vpop.permute.xlu0 %8016
        %8019 = vst.msk [vmem:[#allocation3 + $0x14] sm:$0x1] %vm6004, %v8017
        %8020 = vst [vmem:[#allocation1] sm:$0xff] %v7784
        %s8021 = scalar_lea.vmem [#allocation1], 2
        %v8022 = vld [vmem:[%s8021] ss:$9 sm:$0xff]
        %8024 = vst.msk [vmem:[#allocation3 + $0x15] sm:$0x1] %vm5993, %v8022
        %8025 = vst [vmem:[#allocation1] sm:$0xff] %v7784
        %s8026 = scalar_lea.vmem [#allocation1], 3
        %v8027 = vld [vmem:[%s8026] ss:$9 sm:$0xff]
        %8028 = vrot.lane.b32.xlu0 %v8027, 64
        %v8029 = vpop.permute.xlu0 %8028
        %8031 = vst.msk [vmem:[#allocation3 + $0x15] sm:$0x1] %vm6004, %v8029
        %8032 = vst [vmem:[#allocation1] sm:$0xff] %v7784
        %s8033 = scalar_lea.vmem [#allocation1], 4
        %v8034 = vld [vmem:[%s8033] ss:$9 sm:$0xff]
        %8036 = vst.msk [vmem:[#allocation3 + $0x16] sm:$0x1] %vm5993, %v8034
        %8037 = vst [vmem:[#allocation1] sm:$0xff] %v7784
        %s8038 = scalar_lea.vmem [#allocation1], 5
        %v8039 = vld [vmem:[%s8038] ss:$9 sm:$0xff]
        %8040 = vrot.lane.b32.xlu0 %v8039, 64
        %v8041 = vpop.permute.xlu0 %8040
        %8043 = vst.msk [vmem:[#allocation3 + $0x16] sm:$0x1] %vm6004, %v8041
        %8044 = vst [vmem:[#allocation1] sm:$0xff] %v7784
        %s8045 = scalar_lea.vmem [#allocation1], 6
        %v8046 = vld [vmem:[%s8045] ss:$9 sm:$0xff]
        %8048 = vst.msk [vmem:[#allocation3 + $0x17] sm:$0x1] %vm5993, %v8046
        %8049 = vst [vmem:[#allocation1] sm:$0xff] %v7784
        %s8050 = scalar_lea.vmem [#allocation1], 7
        %v8051 = vld [vmem:[%s8050] ss:$9 sm:$0xff]
        %8052 = vrot.lane.b32.xlu0 %v8051, 64
        %v8053 = vpop.permute.xlu0 %8052
        %8055 = vst.msk [vmem:[#allocation3 + $0x17] sm:$0x1] %vm6004, %v8053
        %v8056 = vld [vmem:[#allocation3] sm:$0xff]
        %v8057 = vld [vmem:[#allocation3 + $0x8] sm:$0xff]
        %v8058 = vld [vmem:[#allocation3 + $0x10] sm:$0xff]
        %v8059 = vld [vmem:[%s59] sm:$0xff]
        %v8060 = vld [vmem:[%s59 + $0x8] sm:$0xff]
        %v8061 = vld [vmem:[%s59 + $0x10] sm:$0xff]
        %v8062 = vld [vmem:[%s59 + $0x18] sm:$0xff]
        %v8063 = vld [vmem:[%s59 + $0x20] sm:$0xff]
        %v8064 = vld [vmem:[%s59 + $0x28] sm:$0xff]
        %v8065 = vld [vmem:[%s59 + $0x30] sm:$0xff]
        %v8066 = vld [vmem:[%s59 + $0x38] sm:$0xff]
        %v8067 = vld [vmem:[%s59 + $0x40] sm:$0xff]
        %v8068 = vld [vmem:[%s59 + $0x48] sm:$0xff]
        %v8069 = vld [vmem:[%s59 + $0x50] sm:$0xff]
        %v8070 = vld [vmem:[%s59 + $0x58] sm:$0xff]
        %v8071 = vld [vmem:[%s59 + $0x60] sm:$0xff]
        %v8072 = vld [vmem:[%s59 + $0x68] sm:$0xff]
        %v8073 = vld [vmem:[%s59 + $0x70] sm:$0xff]
        %v8074 = vld [vmem:[%s59 + $0x78] sm:$0xff]
        %v8075 = vld [vmem:[%s59 + $0x80] sm:$0xff]
        %v8076 = vld [vmem:[%s59 + $0x88] sm:$0xff]
        %v8077 = vld [vmem:[%s59 + $0x90] sm:$0xff]
        %v8078 = vld [vmem:[%s59 + $0x98] sm:$0xff]
        %v8079 = vld [vmem:[%s59 + $0xa0] sm:$0xff]
        %v8080 = vld [vmem:[%s59 + $0xa8] sm:$0xff]
        %v8081 = vld [vmem:[%s59 + $0xb0] sm:$0xff]
        %v8082 = vld [vmem:[%s59 + $0xb8] sm:$0xff]
        %v8083 = vld [vmem:[%s59 + $0xc0] sm:$0xff]
        %v8084 = vld [vmem:[%s59 + $0xc8] sm:$0xff]
        %v8085 = vld [vmem:[%s59 + $0xd0] sm:$0xff]
        %v8086 = vld [vmem:[%s59 + $0xd8] sm:$0xff]
        %v8087 = vld [vmem:[%s59 + $0xe0] sm:$0xff]
        %v8088 = vld [vmem:[%s59 + $0xe8] sm:$0xff]
        %v8089 = vld [vmem:[%s59 + $0xf0] sm:$0xff]
        %v8090 = vld [vmem:[%s59 + $0xf8] sm:$0xff]
        %v8091 = vld [vmem:[%s59 + $0x100] sm:$0xff]
        %v8092 = vld [vmem:[%s59 + $0x108] sm:$0xff]
        %v8093 = vld [vmem:[%s59 + $0x110] sm:$0xff]
        %v8094 = vld [vmem:[%s59 + $0x118] sm:$0xff]
        %v8095 = vld [vmem:[%s59 + $0x120] sm:$0xff]
        %v8096 = vld [vmem:[%s59 + $0x128] sm:$0xff]
        %v8097 = vld [vmem:[%s59 + $0x130] sm:$0xff]
        %v8098 = vld [vmem:[%s59 + $0x138] sm:$0xff]
        %v8099 = vld [vmem:[%s59 + $0x140] sm:$0xff]
        %v8100 = vld [vmem:[%s59 + $0x148] sm:$0xff]
        %v8101 = vld [vmem:[%s59 + $0x150] sm:$0xff]
        %v8102 = vld [vmem:[%s59 + $0x158] sm:$0xff]
        %v8103 = vld [vmem:[%s59 + $0x160] sm:$0xff]
        %v8104 = vld [vmem:[%s59 + $0x168] sm:$0xff]
        %v8105 = vld [vmem:[%s59 + $0x170] sm:$0xff]
        %v8106 = vld [vmem:[%s59 + $0x178] sm:$0xff]
        %v8107 = vld [vmem:[%s59 + $0x180] sm:$0xff]
        %v8108 = vld [vmem:[%s59 + $0x188] sm:$0xff]
        %v8109 = vld [vmem:[%s59 + $0x190] sm:$0xff]
        %v8110 = vld [vmem:[%s59 + $0x198] sm:$0xff]
        %v8111 = vld [vmem:[%s59 + $0x1a0] sm:$0xff]
        %v8112 = vld [vmem:[%s59 + $0x1a8] sm:$0xff]
        %v8113 = vld [vmem:[%s59 + $0x1b0] sm:$0xff]
        %v8114 = vld [vmem:[%s59 + $0x1b8] sm:$0xff]
        %v8115 = vld [vmem:[%s59 + $0x1c0] sm:$0xff]
        %v8116 = vld [vmem:[%s59 + $0x1c8] sm:$0xff]
        %v8117 = vld [vmem:[%s59 + $0x1d0] sm:$0xff]
        %v8118 = vld [vmem:[%s59 + $0x1d8] sm:$0xff]
        %v8119 = vld [vmem:[%s59 + $0x1e0] sm:$0xff]
        %v8120 = vld [vmem:[%s59 + $0x1e8] sm:$0xff]
        %v8121 = vld [vmem:[%s59 + $0x1f0] sm:$0xff]
        %v8122 = vld [vmem:[%s59 + $0x1f8] sm:$0xff]
        %v8123 = vld [vmem:[%s59 + $0x200] sm:$0xff]
        %v8124 = vld [vmem:[%s59 + $0x208] sm:$0xff]
        %v8125 = vld [vmem:[%s59 + $0x210] sm:$0xff]
        %v8126 = vld [vmem:[%s59 + $0x218] sm:$0xff]
        %v8127 = vld [vmem:[%s59 + $0x220] sm:$0xff]
        %v8128 = vld [vmem:[%s59 + $0x228] sm:$0xff]
        %v8129 = vld [vmem:[%s59 + $0x230] sm:$0xff]
        %v8130 = vld [vmem:[%s59 + $0x238] sm:$0xff]
        %v8131 = vld [vmem:[%s59 + $0x240] sm:$0xff]
        %v8132 = vld [vmem:[%s59 + $0x248] sm:$0xff]
        %v8133 = vld [vmem:[%s59 + $0x250] sm:$0xff]
        %v8134 = vld [vmem:[%s59 + $0x258] sm:$0xff]
        %v8135 = vld [vmem:[%s59 + $0x260] sm:$0xff]
        %v8136 = vld [vmem:[%s59 + $0x268] sm:$0xff]
        %v8137 = vld [vmem:[%s59 + $0x270] sm:$0xff]
        %v8138 = vld [vmem:[%s59 + $0x278] sm:$0xff]
        %v8139 = vld [vmem:[%s59 + $0x280] sm:$0xff]
        %v8140 = vld [vmem:[%s59 + $0x288] sm:$0xff]
        %v8141 = vld [vmem:[%s59 + $0x290] sm:$0xff]
        %v8142 = vld [vmem:[%s59 + $0x298] sm:$0xff]
        %v8143 = vld [vmem:[%s59 + $0x2a0] sm:$0xff]
        %v8144 = vld [vmem:[%s59 + $0x2a8] sm:$0xff]
        %v8145 = vld [vmem:[%s59 + $0x2b0] sm:$0xff]
        %v8146 = vld [vmem:[%s59 + $0x2b8] sm:$0xff]
        %v8147 = vld [vmem:[%s59 + $0x2c0] sm:$0xff]
        %v8148 = vld [vmem:[%s59 + $0x2c8] sm:$0xff]
        %v8149 = vld [vmem:[%s59 + $0x2d0] sm:$0xff]
        %v8150 = vld [vmem:[%s59 + $0x2d8] sm:$0xff]
        %v8151 = vld [vmem:[%s59 + $0x2e0] sm:$0xff]
        %v8152 = vld [vmem:[%s59 + $0x2e8] sm:$0xff]
        %v8153 = vld [vmem:[%s59 + $0x2f0] sm:$0xff]
        %v8154 = vld [vmem:[%s59 + $0x2f8] sm:$0xff]
        %v8155 = vld [vmem:[%s59 + $0x300] sm:$0xff]
        %v8156 = vld [vmem:[%s59 + $0x308] sm:$0xff]
        %v8157 = vld [vmem:[%s59 + $0x310] sm:$0xff]
        %v8158 = vld [vmem:[%s59 + $0x318] sm:$0xff]
        %v8159 = vld [vmem:[%s59 + $0x320] sm:$0xff]
        %v8160 = vld [vmem:[%s59 + $0x328] sm:$0xff]
        %v8161 = vld [vmem:[%s59 + $0x330] sm:$0xff]
        %v8162 = vld [vmem:[%s59 + $0x338] sm:$0xff]
        %v8163 = vld [vmem:[%s59 + $0x340] sm:$0xff]
        %v8164 = vld [vmem:[%s59 + $0x348] sm:$0xff]
        %v8165 = vld [vmem:[%s59 + $0x350] sm:$0xff]
        %v8166 = vld [vmem:[%s59 + $0x358] sm:$0xff]
        %v8167 = vld [vmem:[%s59 + $0x360] sm:$0xff]
        %v8168 = vld [vmem:[%s59 + $0x368] sm:$0xff]
        %v8169 = vld [vmem:[%s59 + $0x370] sm:$0xff]
        %v8170 = vld [vmem:[%s59 + $0x378] sm:$0xff]
        %v8171 = vld [vmem:[%s59 + $0x380] sm:$0xff]
        %v8172 = vld [vmem:[%s59 + $0x388] sm:$0xff]
        %v8173 = vld [vmem:[%s59 + $0x390] sm:$0xff]
        %v8174 = vld [vmem:[%s59 + $0x398] sm:$0xff]
        %v8175 = vld [vmem:[%s59 + $0x3a0] sm:$0xff]
        %v8176 = vld [vmem:[%s59 + $0x3a8] sm:$0xff]
        %v8177 = vld [vmem:[%s59 + $0x3b0] sm:$0xff]
        %v8178 = vld [vmem:[%s59 + $0x3b8] sm:$0xff]
        %v8179 = vld [vmem:[%s59 + $0x3c0] sm:$0xff]
        %v8180 = vld [vmem:[%s59 + $0x3c8] sm:$0xff]
        %v8181 = vld [vmem:[%s59 + $0x3d0] sm:$0xff]
        %v8182 = vld [vmem:[%s59 + $0x3d8] sm:$0xff]
        %v8183 = vld [vmem:[%s59 + $0x3e0] sm:$0xff]
        %v8184 = vld [vmem:[%s59 + $0x3e8] sm:$0xff]
        %v8185 = vld [vmem:[%s59 + $0x3f0] sm:$0xff]
        %v8186 = vld [vmem:[%s59 + $0x3f8] sm:$0xff]
        %v8187 = vld [vmem:[%s59 + $0x400] sm:$0xff]
        %v8188 = vld [vmem:[%s59 + $0x408] sm:$0xff]
        %v8189 = vld [vmem:[%s59 + $0x410] sm:$0xff]
        %v8190 = vld [vmem:[%s59 + $0x418] sm:$0xff]
        %v8191 = vld [vmem:[%s59 + $0x420] sm:$0xff]
        %v8192 = vld [vmem:[%s59 + $0x428] sm:$0xff]
        %v8193 = vld [vmem:[%s59 + $0x430] sm:$0xff]
        %v8194 = vld [vmem:[%s59 + $0x438] sm:$0xff]
        %v8195 = vld [vmem:[%s59 + $0x440] sm:$0xff]
        %v8196 = vld [vmem:[%s59 + $0x448] sm:$0xff]
        %v8197 = vld [vmem:[%s59 + $0x450] sm:$0xff]
        %v8198 = vld [vmem:[%s59 + $0x458] sm:$0xff]
        %v8199 = vld [vmem:[%s59 + $0x460] sm:$0xff]
        %v8200 = vld [vmem:[%s59 + $0x468] sm:$0xff]
        %v8201 = vld [vmem:[%s59 + $0x470] sm:$0xff]
        %v8202 = vld [vmem:[%s59 + $0x478] sm:$0xff]
        %v8203 = vld [vmem:[%s59 + $0x480] sm:$0xff]
        %v8204 = vld [vmem:[%s59 + $0x488] sm:$0xff]
        %v8205 = vld [vmem:[%s59 + $0x490] sm:$0xff]
        %v8206 = vld [vmem:[%s59 + $0x498] sm:$0xff]
        %v8207 = vld [vmem:[%s59 + $0x4a0] sm:$0xff]
        %v8208 = vld [vmem:[%s59 + $0x4a8] sm:$0xff]
        %v8209 = vld [vmem:[%s59 + $0x4b0] sm:$0xff]
        %v8210 = vld [vmem:[%s59 + $0x4b8] sm:$0xff]
        %v8211 = vld [vmem:[%s59 + $0x4c0] sm:$0xff]
        %v8212 = vld [vmem:[%s59 + $0x4c8] sm:$0xff]
        %v8213 = vld [vmem:[%s59 + $0x4d0] sm:$0xff]
        %v8214 = vld [vmem:[%s59 + $0x4d8] sm:$0xff]
        %v8215 = vld [vmem:[%s59 + $0x4e0] sm:$0xff]
        %v8216 = vld [vmem:[%s59 + $0x4e8] sm:$0xff]
        %v8217 = vld [vmem:[%s59 + $0x4f0] sm:$0xff]
        %v8218 = vld [vmem:[%s59 + $0x4f8] sm:$0xff]
        %v8219 = vld [vmem:[%s59 + $0x500] sm:$0xff]
        %v8220 = vld [vmem:[%s59 + $0x508] sm:$0xff]
        %v8221 = vld [vmem:[%s59 + $0x510] sm:$0xff]
        %v8222 = vld [vmem:[%s59 + $0x518] sm:$0xff]
        %v8223 = vld [vmem:[%s59 + $0x520] sm:$0xff]
        %v8224 = vld [vmem:[%s59 + $0x528] sm:$0xff]
        %v8225 = vld [vmem:[%s59 + $0x530] sm:$0xff]
        %v8226 = vld [vmem:[%s59 + $0x538] sm:$0xff]
        %v8227 = vld [vmem:[%s59 + $0x540] sm:$0xff]
        %v8228 = vld [vmem:[%s59 + $0x548] sm:$0xff]
        %v8229 = vld [vmem:[%s59 + $0x550] sm:$0xff]
        %v8230 = vld [vmem:[%s59 + $0x558] sm:$0xff]
        %v8231 = vld [vmem:[%s59 + $0x560] sm:$0xff]
        %v8232 = vld [vmem:[%s59 + $0x568] sm:$0xff]
        %v8233 = vld [vmem:[%s59 + $0x570] sm:$0xff]
        %v8234 = vld [vmem:[%s59 + $0x578] sm:$0xff]
        %v8235 = vld [vmem:[%s59 + $0x580] sm:$0xff]
        %v8236 = vld [vmem:[%s59 + $0x588] sm:$0xff]
        %v8237 = vld [vmem:[%s59 + $0x590] sm:$0xff]
        %v8238 = vld [vmem:[%s59 + $0x598] sm:$0xff]
        %v8239 = vld [vmem:[%s59 + $0x5a0] sm:$0xff]
        %v8240 = vld [vmem:[%s59 + $0x5a8] sm:$0xff]
        %v8241 = vld [vmem:[%s59 + $0x5b0] sm:$0xff]
        %v8242 = vld [vmem:[%s59 + $0x5b8] sm:$0xff]
        %v8243 = vld [vmem:[%s59 + $0x5c0] sm:$0xff]
        %v8244 = vld [vmem:[%s59 + $0x5c8] sm:$0xff]
        %v8245 = vld [vmem:[%s59 + $0x5d0] sm:$0xff]
        %v8246 = vld [vmem:[%s59 + $0x5d8] sm:$0xff]
        %v8247 = vld [vmem:[%s59 + $0x5e0] sm:$0xff]
        %v8248 = vld [vmem:[%s59 + $0x5e8] sm:$0xff]
        %v8249 = vld [vmem:[%s59 + $0x5f0] sm:$0xff]
        %v8250 = vld [vmem:[%s59 + $0x5f8] sm:$0xff]
        %v8251 = vld [vmem:[%s59 + $0x600] sm:$0xff]
        %v8252 = vld [vmem:[%s59 + $0x608] sm:$0xff]
        %v8253 = vld [vmem:[%s59 + $0x610] sm:$0xff]
        %v8254 = vld [vmem:[%s59 + $0x618] sm:$0xff]
        %v8255 = vld [vmem:[%s59 + $0x620] sm:$0xff]
        %v8256 = vld [vmem:[%s59 + $0x628] sm:$0xff]
        %v8257 = vld [vmem:[%s59 + $0x630] sm:$0xff]
        %v8258 = vld [vmem:[%s59 + $0x638] sm:$0xff]
        %v8259 = vld [vmem:[%s59 + $0x640] sm:$0xff]
        %v8260 = vld [vmem:[%s59 + $0x648] sm:$0xff]
        %v8261 = vld [vmem:[%s59 + $0x650] sm:$0xff]
        %v8262 = vld [vmem:[%s59 + $0x658] sm:$0xff]
        %v8263 = vld [vmem:[%s59 + $0x660] sm:$0xff]
        %v8264 = vld [vmem:[%s59 + $0x668] sm:$0xff]
        %v8265 = vld [vmem:[%s59 + $0x670] sm:$0xff]
        %v8266 = vld [vmem:[%s59 + $0x678] sm:$0xff]
        %v8267 = vld [vmem:[%s59 + $0x680] sm:$0xff]
        %v8268 = vld [vmem:[%s59 + $0x688] sm:$0xff]
        %v8269 = vld [vmem:[%s59 + $0x690] sm:$0xff]
        %v8270 = vld [vmem:[%s59 + $0x698] sm:$0xff]
        %v8271 = vld [vmem:[%s59 + $0x6a0] sm:$0xff]
        %v8272 = vld [vmem:[%s59 + $0x6a8] sm:$0xff]
        %v8273 = vld [vmem:[%s59 + $0x6b0] sm:$0xff]
        %v8274 = vld [vmem:[%s59 + $0x6b8] sm:$0xff]
        %v8275 = vld [vmem:[%s59 + $0x6c0] sm:$0xff]
        %v8276 = vld [vmem:[%s59 + $0x6c8] sm:$0xff]
        %v8277 = vld [vmem:[%s59 + $0x6d0] sm:$0xff]
        %v8278 = vld [vmem:[%s59 + $0x6d8] sm:$0xff]
        %v8279 = vld [vmem:[%s59 + $0x6e0] sm:$0xff]
        %v8280 = vld [vmem:[%s59 + $0x6e8] sm:$0xff]
        %v8281 = vld [vmem:[%s59 + $0x6f0] sm:$0xff]
        %v8282 = vld [vmem:[%s59 + $0x6f8] sm:$0xff]
        %v8283 = vld [vmem:[%s59 + $0x700] sm:$0xff]
        %v8284 = vld [vmem:[%s59 + $0x708] sm:$0xff]
        %v8285 = vld [vmem:[%s59 + $0x710] sm:$0xff]
        %v8286 = vld [vmem:[%s59 + $0x718] sm:$0xff]
        %v8287 = vld [vmem:[%s59 + $0x720] sm:$0xff]
        %v8288 = vld [vmem:[%s59 + $0x728] sm:$0xff]
        %v8289 = vld [vmem:[%s59 + $0x730] sm:$0xff]
        %v8290 = vld [vmem:[%s59 + $0x738] sm:$0xff]
        %v8291 = vld [vmem:[%s59 + $0x740] sm:$0xff]
        %v8292 = vld [vmem:[%s59 + $0x748] sm:$0xff]
        %v8293 = vld [vmem:[%s59 + $0x750] sm:$0xff]
        %v8294 = vld [vmem:[%s59 + $0x758] sm:$0xff]
        %v8295 = vld [vmem:[%s59 + $0x760] sm:$0xff]
        %v8296 = vld [vmem:[%s59 + $0x768] sm:$0xff]
        %v8297 = vld [vmem:[%s59 + $0x770] sm:$0xff]
        %v8298 = vld [vmem:[%s59 + $0x778] sm:$0xff]
        %v8299 = vld [vmem:[%s59 + $0x780] sm:$0xff]
        %v8300 = vld [vmem:[%s59 + $0x788] sm:$0xff]
        %v8301 = vld [vmem:[%s59 + $0x790] sm:$0xff]
        %v8302 = vld [vmem:[%s59 + $0x798] sm:$0xff]
        %v8303 = vld [vmem:[%s59 + $0x7a0] sm:$0xff]
        %v8304 = vld [vmem:[%s59 + $0x7a8] sm:$0xff]
        %v8305 = vld [vmem:[%s59 + $0x7b0] sm:$0xff]
        %v8306 = vld [vmem:[%s59 + $0x7b8] sm:$0xff]
        %v8307 = vld [vmem:[%s59 + $0x7c0] sm:$0xff]
        %v8308 = vld [vmem:[%s59 + $0x7c8] sm:$0xff]
        %v8309 = vld [vmem:[%s59 + $0x7d0] sm:$0xff]
        %v8310 = vld [vmem:[%s59 + $0x7d8] sm:$0xff]
        %v8311 = vld [vmem:[%s59 + $0x7e0] sm:$0xff]
        %v8312 = vld [vmem:[%s59 + $0x7e8] sm:$0xff]
        %v8313 = vld [vmem:[%s59 + $0x7f0] sm:$0xff]
        %v8314 = vld [vmem:[%s59 + $0x7f8] sm:$0xff]
        %v8315 = vld [vmem:[%s59 + $0x800] sm:$0xff]
        %v8316 = vld [vmem:[%s59 + $0x808] sm:$0xff]
        %v8317 = vld [vmem:[%s59 + $0x810] sm:$0xff]
        %v8318 = vld [vmem:[%s59 + $0x818] sm:$0xff]
        %v8319 = vld [vmem:[%s59 + $0x820] sm:$0xff]
        %v8320 = vld [vmem:[%s59 + $0x828] sm:$0xff]
        %v8321 = vld [vmem:[%s59 + $0x830] sm:$0xff]
        %v8322 = vld [vmem:[%s59 + $0x838] sm:$0xff]
        %v8323 = vld [vmem:[%s59 + $0x840] sm:$0xff]
        %v8324 = vld [vmem:[%s59 + $0x848] sm:$0xff]
        %v8325 = vld [vmem:[%s59 + $0x850] sm:$0xff]
        %v8326 = vld [vmem:[%s59 + $0x858] sm:$0xff]
        %v8327 = vld [vmem:[%s59 + $0x860] sm:$0xff]
        %v8328 = vld [vmem:[%s59 + $0x868] sm:$0xff]
        %v8329 = vld [vmem:[%s59 + $0x870] sm:$0xff]
        %v8330 = vld [vmem:[%s59 + $0x878] sm:$0xff]
        %v8331 = vld [vmem:[%s59 + $0x880] sm:$0xff]
        %v8332 = vld [vmem:[%s59 + $0x888] sm:$0xff]
        %v8333 = vld [vmem:[%s59 + $0x890] sm:$0xff]
        %v8334 = vld [vmem:[%s59 + $0x898] sm:$0xff]
        %v8335 = vld [vmem:[%s59 + $0x8a0] sm:$0xff]
        %v8336 = vld [vmem:[%s59 + $0x8a8] sm:$0xff]
        %v8337 = vld [vmem:[%s59 + $0x8b0] sm:$0xff]
        %v8338 = vld [vmem:[%s59 + $0x8b8] sm:$0xff]
        %v8339 = vld [vmem:[%s59 + $0x8c0] sm:$0xff]
        %v8340 = vld [vmem:[%s59 + $0x8c8] sm:$0xff]
        %v8341 = vld [vmem:[%s59 + $0x8d0] sm:$0xff]
        %v8342 = vld [vmem:[%s59 + $0x8d8] sm:$0xff]
        %v8343 = vld [vmem:[%s59 + $0x8e0] sm:$0xff]
        %v8344 = vld [vmem:[%s59 + $0x8e8] sm:$0xff]
        %v8345 = vld [vmem:[%s59 + $0x8f0] sm:$0xff]
        %v8346 = vld [vmem:[%s59 + $0x8f8] sm:$0xff]
        %v8347 = vld [vmem:[%s59 + $0x900] sm:$0xff]
        %v8348 = vld [vmem:[%s59 + $0x908] sm:$0xff]
        %v8349 = vld [vmem:[%s59 + $0x910] sm:$0xff]
        %v8350 = vld [vmem:[%s59 + $0x918] sm:$0xff]
        %v8351 = vld [vmem:[%s59 + $0x920] sm:$0xff]
        %v8352 = vld [vmem:[%s59 + $0x928] sm:$0xff]
        %v8353 = vld [vmem:[%s59 + $0x930] sm:$0xff]
        %v8354 = vld [vmem:[%s59 + $0x938] sm:$0xff]
        %v8355 = vld [vmem:[%s59 + $0x940] sm:$0xff]
        %v8356 = vld [vmem:[%s59 + $0x948] sm:$0xff]
        %v8357 = vld [vmem:[%s59 + $0x950] sm:$0xff]
        %v8358 = vld [vmem:[%s59 + $0x958] sm:$0xff]
        %v8359 = vld [vmem:[%s59 + $0x960] sm:$0xff]
        %v8360 = vld [vmem:[%s59 + $0x968] sm:$0xff]
        %v8361 = vld [vmem:[%s59 + $0x970] sm:$0xff]
        %v8362 = vld [vmem:[%s59 + $0x978] sm:$0xff]
        %v8363 = vld [vmem:[%s59 + $0x980] sm:$0xff]
        %v8364 = vld [vmem:[%s59 + $0x988] sm:$0xff]
        %v8365 = vld [vmem:[%s59 + $0x990] sm:$0xff]
        %v8366 = vld [vmem:[%s59 + $0x998] sm:$0xff]
        %v8367 = vld [vmem:[%s59 + $0x9a0] sm:$0xff]
        %v8368 = vld [vmem:[%s59 + $0x9a8] sm:$0xff]
        %v8369 = vld [vmem:[%s59 + $0x9b0] sm:$0xff]
        %v8370 = vld [vmem:[%s59 + $0x9b8] sm:$0xff]
        %v8371 = vld [vmem:[%s59 + $0x9c0] sm:$0xff]
        %v8372 = vld [vmem:[%s59 + $0x9c8] sm:$0xff]
        %v8373 = vld [vmem:[%s59 + $0x9d0] sm:$0xff]
        %v8374 = vld [vmem:[%s59 + $0x9d8] sm:$0xff]
        %v8375 = vld [vmem:[%s59 + $0x9e0] sm:$0xff]
        %v8376 = vld [vmem:[%s59 + $0x9e8] sm:$0xff]
        %v8377 = vld [vmem:[%s59 + $0x9f0] sm:$0xff]
        %v8378 = vld [vmem:[%s59 + $0x9f8] sm:$0xff]
        %v8379 = vld [vmem:[%s59 + $0xa00] sm:$0xff]
        %v8380 = vld [vmem:[%s59 + $0xa08] sm:$0xff]
        %v8381 = vld [vmem:[%s59 + $0xa10] sm:$0xff]
        %v8382 = vld [vmem:[%s59 + $0xa18] sm:$0xff]
        %v8383 = vld [vmem:[%s59 + $0xa20] sm:$0xff]
        %v8384 = vld [vmem:[%s59 + $0xa28] sm:$0xff]
        %v8385 = vld [vmem:[%s59 + $0xa30] sm:$0xff]
        %v8386 = vld [vmem:[%s59 + $0xa38] sm:$0xff]
        %v8387 = vld [vmem:[%s59 + $0xa40] sm:$0xff]
        %v8388 = vld [vmem:[%s59 + $0xa48] sm:$0xff]
        %v8389 = vld [vmem:[%s59 + $0xa50] sm:$0xff]
        %v8390 = vld [vmem:[%s59 + $0xa58] sm:$0xff]
        %v8391 = vld [vmem:[%s59 + $0xa60] sm:$0xff]
        %v8392 = vld [vmem:[%s59 + $0xa68] sm:$0xff]
        %v8393 = vld [vmem:[%s59 + $0xa70] sm:$0xff]
        %v8394 = vld [vmem:[%s59 + $0xa78] sm:$0xff]
        %v8395 = vld [vmem:[%s59 + $0xa80] sm:$0xff]
        %v8396 = vld [vmem:[%s59 + $0xa88] sm:$0xff]
        %v8397 = vld [vmem:[%s59 + $0xa90] sm:$0xff]
        %v8398 = vld [vmem:[%s59 + $0xa98] sm:$0xff]
        %v8399 = vld [vmem:[%s59 + $0xaa0] sm:$0xff]
        %v8400 = vld [vmem:[%s59 + $0xaa8] sm:$0xff]
        %v8401 = vld [vmem:[%s59 + $0xab0] sm:$0xff]
        %v8402 = vld [vmem:[%s59 + $0xab8] sm:$0xff]
        %v8403 = vld [vmem:[%s59 + $0xac0] sm:$0xff]
        %v8404 = vld [vmem:[%s59 + $0xac8] sm:$0xff]
        %v8405 = vld [vmem:[%s59 + $0xad0] sm:$0xff]
        %v8406 = vld [vmem:[%s59 + $0xad8] sm:$0xff]
        %v8407 = vld [vmem:[%s59 + $0xae0] sm:$0xff]
        %v8408 = vld [vmem:[%s59 + $0xae8] sm:$0xff]
        %v8409 = vld [vmem:[%s59 + $0xaf0] sm:$0xff]
        %v8410 = vld [vmem:[%s59 + $0xaf8] sm:$0xff]
        %v8411 = vld [vmem:[%s59 + $0xb00] sm:$0xff]
        %v8412 = vld [vmem:[%s59 + $0xb08] sm:$0xff]
        %v8413 = vld [vmem:[%s59 + $0xb10] sm:$0xff]
        %v8414 = vld [vmem:[%s59 + $0xb18] sm:$0xff]
        %v8415 = vld [vmem:[%s59 + $0xb20] sm:$0xff]
        %v8416 = vld [vmem:[%s59 + $0xb28] sm:$0xff]
        %v8417 = vld [vmem:[%s59 + $0xb30] sm:$0xff]
        %v8418 = vld [vmem:[%s59 + $0xb38] sm:$0xff]
        %v8419 = vld [vmem:[%s59 + $0xb40] sm:$0xff]
        %v8420 = vld [vmem:[%s59 + $0xb48] sm:$0xff]
        %v8421 = vld [vmem:[%s59 + $0xb50] sm:$0xff]
        %v8422 = vld [vmem:[%s59 + $0xb58] sm:$0xff]
        %v8423 = vld [vmem:[%s59 + $0xb60] sm:$0xff]
        %v8424 = vld [vmem:[%s59 + $0xb68] sm:$0xff]
        %v8425 = vld [vmem:[%s59 + $0xb70] sm:$0xff]
        %v8426 = vld [vmem:[%s59 + $0xb78] sm:$0xff]
        %v8427 = vld [vmem:[%s59 + $0xb80] sm:$0xff]
        %v8428 = vld [vmem:[%s59 + $0xb88] sm:$0xff]
        %v8429 = vld [vmem:[%s59 + $0xb90] sm:$0xff]
        %v8430 = vld [vmem:[%s59 + $0xb98] sm:$0xff]
        %v8431 = vld [vmem:[%s59 + $0xba0] sm:$0xff]
        %v8432 = vld [vmem:[%s59 + $0xba8] sm:$0xff]
        %v8433 = vld [vmem:[%s59 + $0xbb0] sm:$0xff]
        %v8434 = vld [vmem:[%s59 + $0xbb8] sm:$0xff]
        %v8435 = vld [vmem:[%s59 + $0xbc0] sm:$0xff]
        %v8436 = vld [vmem:[%s59 + $0xbc8] sm:$0xff]
        %v8437 = vld [vmem:[%s59 + $0xbd0] sm:$0xff]
        %v8438 = vld [vmem:[%s59 + $0xbd8] sm:$0xff]
        %v8439 = vld [vmem:[%s59 + $0xbe0] sm:$0xff]
        %v8440 = vld [vmem:[%s59 + $0xbe8] sm:$0xff]
        %v8441 = vld [vmem:[%s59 + $0xbf0] sm:$0xff]
        %v8442 = vld [vmem:[%s59 + $0xbf8] sm:$0xff]
        %v8443 = vld [vmem:[%s61] sm:$0x1]
        %v8447 = vperm.slane %v8056, 0
        %v8448 = vperm.slane %v8056, 1
        %v8449 = vperm.slane %v8056, 2
        %v8450 = vperm.slane %v8056, 3
        %v8451 = vperm.slane %v8056, 4
        %v8452 = vperm.slane %v8056, 5
        %v8453 = vperm.slane %v8056, 6
        %v8454 = vperm.slane %v8056, 7
        %v8455 = vperm.slane %v8057, 0
        %v8456 = vperm.slane %v8057, 1
        %v8457 = vperm.slane %v8057, 2
        %v8458 = vperm.slane %v8057, 3
        %v8459 = vperm.slane %v8057, 4
        %v8460 = vperm.slane %v8057, 5
        %v8461 = vperm.slane %v8057, 6
        %v8462 = vperm.slane %v8057, 7
        %v8463 = vperm.slane %v8058, 0
        %v8464 = vperm.slane %v8058, 1
        %v8465 = vperm.slane %v8058, 2
        %v8466 = vperm.slane %v8058, 3
        %v8467 = vperm.slane %v8058, 4
        %v8468 = vperm.slane %v8058, 5
        %v8469 = vperm.slane %v8058, 6
        %v8470 = vperm.slane %v8058, 7
        %8495 = vmatpush.msra.mxu0 %v8074
        %8496 = vmatpush.msra.mxu0 %v8073
        %8497 = vmatpush.msra.mxu0 %v8072
        %8498 = vmatpush.msra.mxu0 %v8071
        %8499 = vmatpush.msra.mxu0 %v8070
        %8500 = vmatpush.msra.mxu0 %v8069
        %8501 = vmatpush.msra.mxu0 %v8068
        %8502 = vmatpush.msra.mxu0 %v8067
        %8503 = vmatpush.msra.mxu0 %v8066
        %8504 = vmatpush.msra.mxu0 %v8065
        %8505 = vmatpush.msra.mxu0 %v8064
        %8506 = vmatpush.msra.mxu0 %v8063
        %8507 = vmatpush.msra.mxu0 %v8062
        %8508 = vmatpush.msra.mxu0 %v8061
        %8509 = vmatpush.msra.mxu0 %v8060
        %8510 = vmatpush.msra.mxu0 %v8059
        %8511 = vmatmul.f32.gmra.mxu0 %v8447
        %v8512 = vpop.f32.mrf.mxu0
        %v8513 = vadd.f32 %v8443, %v8512
        %8514 = vdwg.mxu0
        %8515 = vmatpush.msra.mxu0 %v8090
        %8516 = vmatpush.msra.mxu0 %v8089
        %8517 = vmatpush.msra.mxu0 %v8088
        %8518 = vmatpush.msra.mxu0 %v8087
        %8519 = vmatpush.msra.mxu0 %v8086
        %8520 = vmatpush.msra.mxu0 %v8085
        %8521 = vmatpush.msra.mxu0 %v8084
        %8522 = vmatpush.msra.mxu0 %v8083
        %8523 = vmatpush.msra.mxu0 %v8082
        %8524 = vmatpush.msra.mxu0 %v8081
        %8525 = vmatpush.msra.mxu0 %v8080
        %8526 = vmatpush.msra.mxu0 %v8079
        %8527 = vmatpush.msra.mxu0 %v8078
        %8528 = vmatpush.msra.mxu0 %v8077
        %8529 = vmatpush.msra.mxu0 %v8076
        %8530 = vmatpush.msra.mxu0 %v8075
        %8531 = vmatmul.f32.gmra.mxu0 %v8448
        %v8532 = vpop.f32.mrf.mxu0
        %v8533 = vadd.f32 %v8513, %v8532
        %8534 = vdwg.mxu0
        %8535 = vmatpush.msra.mxu0 %v8106
        %8536 = vmatpush.msra.mxu0 %v8105
        %8537 = vmatpush.msra.mxu0 %v8104
        %8538 = vmatpush.msra.mxu0 %v8103
        %8539 = vmatpush.msra.mxu0 %v8102
        %8540 = vmatpush.msra.mxu0 %v8101
        %8541 = vmatpush.msra.mxu0 %v8100
        %8542 = vmatpush.msra.mxu0 %v8099
        %8543 = vmatpush.msra.mxu0 %v8098
        %8544 = vmatpush.msra.mxu0 %v8097
        %8545 = vmatpush.msra.mxu0 %v8096
        %8546 = vmatpush.msra.mxu0 %v8095
        %8547 = vmatpush.msra.mxu0 %v8094
        %8548 = vmatpush.msra.mxu0 %v8093
        %8549 = vmatpush.msra.mxu0 %v8092
        %8550 = vmatpush.msra.mxu0 %v8091
        %8551 = vmatmul.f32.gmra.mxu0 %v8449
        %v8552 = vpop.f32.mrf.mxu0
        %v8553 = vadd.f32 %v8533, %v8552
        %8554 = vdwg.mxu0
        %8555 = vmatpush.msra.mxu0 %v8122
        %8556 = vmatpush.msra.mxu0 %v8121
        %8557 = vmatpush.msra.mxu0 %v8120
        %8558 = vmatpush.msra.mxu0 %v8119
        %8559 = vmatpush.msra.mxu0 %v8118
        %8560 = vmatpush.msra.mxu0 %v8117
        %8561 = vmatpush.msra.mxu0 %v8116
        %8562 = vmatpush.msra.mxu0 %v8115
        %8563 = vmatpush.msra.mxu0 %v8114
        %8564 = vmatpush.msra.mxu0 %v8113
        %8565 = vmatpush.msra.mxu0 %v8112
        %8566 = vmatpush.msra.mxu0 %v8111
        %8567 = vmatpush.msra.mxu0 %v8110
        %8568 = vmatpush.msra.mxu0 %v8109
        %8569 = vmatpush.msra.mxu0 %v8108
        %8570 = vmatpush.msra.mxu0 %v8107
        %8571 = vmatmul.f32.gmra.mxu0 %v8450
        %v8572 = vpop.f32.mrf.mxu0
        %v8573 = vadd.f32 %v8553, %v8572
        %8574 = vdwg.mxu0
        %8575 = vmatpush.msra.mxu0 %v8138
        %8576 = vmatpush.msra.mxu0 %v8137
        %8577 = vmatpush.msra.mxu0 %v8136
        %8578 = vmatpush.msra.mxu0 %v8135
        %8579 = vmatpush.msra.mxu0 %v8134
        %8580 = vmatpush.msra.mxu0 %v8133
        %8581 = vmatpush.msra.mxu0 %v8132
        %8582 = vmatpush.msra.mxu0 %v8131
        %8583 = vmatpush.msra.mxu0 %v8130
        %8584 = vmatpush.msra.mxu0 %v8129
        %8585 = vmatpush.msra.mxu0 %v8128
        %8586 = vmatpush.msra.mxu0 %v8127
        %8587 = vmatpush.msra.mxu0 %v8126
        %8588 = vmatpush.msra.mxu0 %v8125
        %8589 = vmatpush.msra.mxu0 %v8124
        %8590 = vmatpush.msra.mxu0 %v8123
        %8591 = vmatmul.f32.gmra.mxu0 %v8451
        %v8592 = vpop.f32.mrf.mxu0
        %v8593 = vadd.f32 %v8573, %v8592
        %8594 = vdwg.mxu0
        %8595 = vmatpush.msra.mxu0 %v8154
        %8596 = vmatpush.msra.mxu0 %v8153
        %8597 = vmatpush.msra.mxu0 %v8152
        %8598 = vmatpush.msra.mxu0 %v8151
        %8599 = vmatpush.msra.mxu0 %v8150
        %8600 = vmatpush.msra.mxu0 %v8149
        %8601 = vmatpush.msra.mxu0 %v8148
        %8602 = vmatpush.msra.mxu0 %v8147
        %8603 = vmatpush.msra.mxu0 %v8146
        %8604 = vmatpush.msra.mxu0 %v8145
        %8605 = vmatpush.msra.mxu0 %v8144
        %8606 = vmatpush.msra.mxu0 %v8143
        %8607 = vmatpush.msra.mxu0 %v8142
        %8608 = vmatpush.msra.mxu0 %v8141
        %8609 = vmatpush.msra.mxu0 %v8140
        %8610 = vmatpush.msra.mxu0 %v8139
        %8611 = vmatmul.f32.gmra.mxu0 %v8452
        %v8612 = vpop.f32.mrf.mxu0
        %v8613 = vadd.f32 %v8593, %v8612
        %8614 = vdwg.mxu0
        %8615 = vmatpush.msra.mxu0 %v8170
        %8616 = vmatpush.msra.mxu0 %v8169
        %8617 = vmatpush.msra.mxu0 %v8168
        %8618 = vmatpush.msra.mxu0 %v8167
        %8619 = vmatpush.msra.mxu0 %v8166
        %8620 = vmatpush.msra.mxu0 %v8165
        %8621 = vmatpush.msra.mxu0 %v8164
        %8622 = vmatpush.msra.mxu0 %v8163
        %8623 = vmatpush.msra.mxu0 %v8162
        %8624 = vmatpush.msra.mxu0 %v8161
        %8625 = vmatpush.msra.mxu0 %v8160
        %8626 = vmatpush.msra.mxu0 %v8159
        %8627 = vmatpush.msra.mxu0 %v8158
        %8628 = vmatpush.msra.mxu0 %v8157
        %8629 = vmatpush.msra.mxu0 %v8156
        %8630 = vmatpush.msra.mxu0 %v8155
        %8631 = vmatmul.f32.gmra.mxu0 %v8453
        %v8632 = vpop.f32.mrf.mxu0
        %v8633 = vadd.f32 %v8613, %v8632
        %8634 = vdwg.mxu0
        %8635 = vmatpush.msra.mxu0 %v8186
        %8636 = vmatpush.msra.mxu0 %v8185
        %8637 = vmatpush.msra.mxu0 %v8184
        %8638 = vmatpush.msra.mxu0 %v8183
        %8639 = vmatpush.msra.mxu0 %v8182
        %8640 = vmatpush.msra.mxu0 %v8181
        %8641 = vmatpush.msra.mxu0 %v8180
        %8642 = vmatpush.msra.mxu0 %v8179
        %8643 = vmatpush.msra.mxu0 %v8178
        %8644 = vmatpush.msra.mxu0 %v8177
        %8645 = vmatpush.msra.mxu0 %v8176
        %8646 = vmatpush.msra.mxu0 %v8175
        %8647 = vmatpush.msra.mxu0 %v8174
        %8648 = vmatpush.msra.mxu0 %v8173
        %8649 = vmatpush.msra.mxu0 %v8172
        %8650 = vmatpush.msra.mxu0 %v8171
        %8651 = vmatmul.f32.gmra.mxu0 %v8454
        %v8652 = vpop.f32.mrf.mxu0
        %v8653 = vadd.f32 %v8633, %v8652
        %8654 = vdwg.mxu0
        %8655 = vmatpush.msra.mxu0 %v8202
        %8656 = vmatpush.msra.mxu0 %v8201
        %8657 = vmatpush.msra.mxu0 %v8200
        %8658 = vmatpush.msra.mxu0 %v8199
        %8659 = vmatpush.msra.mxu0 %v8198
        %8660 = vmatpush.msra.mxu0 %v8197
        %8661 = vmatpush.msra.mxu0 %v8196
        %8662 = vmatpush.msra.mxu0 %v8195
        %8663 = vmatpush.msra.mxu0 %v8194
        %8664 = vmatpush.msra.mxu0 %v8193
        %8665 = vmatpush.msra.mxu0 %v8192
        %8666 = vmatpush.msra.mxu0 %v8191
        %8667 = vmatpush.msra.mxu0 %v8190
        %8668 = vmatpush.msra.mxu0 %v8189
        %8669 = vmatpush.msra.mxu0 %v8188
        %8670 = vmatpush.msra.mxu0 %v8187
        %8671 = vmatmul.f32.gmra.mxu0 %v8455
        %v8672 = vpop.f32.mrf.mxu0
        %v8673 = vadd.f32 %v8653, %v8672
        %8674 = vdwg.mxu0
        %8675 = vmatpush.msra.mxu0 %v8218
        %8676 = vmatpush.msra.mxu0 %v8217
        %8677 = vmatpush.msra.mxu0 %v8216
        %8678 = vmatpush.msra.mxu0 %v8215
        %8679 = vmatpush.msra.mxu0 %v8214
        %8680 = vmatpush.msra.mxu0 %v8213
        %8681 = vmatpush.msra.mxu0 %v8212
        %8682 = vmatpush.msra.mxu0 %v8211
        %8683 = vmatpush.msra.mxu0 %v8210
        %8684 = vmatpush.msra.mxu0 %v8209
        %8685 = vmatpush.msra.mxu0 %v8208
        %8686 = vmatpush.msra.mxu0 %v8207
        %8687 = vmatpush.msra.mxu0 %v8206
        %8688 = vmatpush.msra.mxu0 %v8205
        %8689 = vmatpush.msra.mxu0 %v8204
        %8690 = vmatpush.msra.mxu0 %v8203
        %8691 = vmatmul.f32.gmra.mxu0 %v8456
        %v8692 = vpop.f32.mrf.mxu0
        %v8693 = vadd.f32 %v8673, %v8692
        %8694 = vdwg.mxu0
        %8695 = vmatpush.msra.mxu0 %v8234
        %8696 = vmatpush.msra.mxu0 %v8233
        %8697 = vmatpush.msra.mxu0 %v8232
        %8698 = vmatpush.msra.mxu0 %v8231
        %8699 = vmatpush.msra.mxu0 %v8230
        %8700 = vmatpush.msra.mxu0 %v8229
        %8701 = vmatpush.msra.mxu0 %v8228
        %8702 = vmatpush.msra.mxu0 %v8227
        %8703 = vmatpush.msra.mxu0 %v8226
        %8704 = vmatpush.msra.mxu0 %v8225
        %8705 = vmatpush.msra.mxu0 %v8224
        %8706 = vmatpush.msra.mxu0 %v8223
        %8707 = vmatpush.msra.mxu0 %v8222
        %8708 = vmatpush.msra.mxu0 %v8221
        %8709 = vmatpush.msra.mxu0 %v8220
        %8710 = vmatpush.msra.mxu0 %v8219
        %8711 = vmatmul.f32.gmra.mxu0 %v8457
        %v8712 = vpop.f32.mrf.mxu0
        %v8713 = vadd.f32 %v8693, %v8712
        %8714 = vdwg.mxu0
        %8715 = vmatpush.msra.mxu0 %v8250
        %8716 = vmatpush.msra.mxu0 %v8249
        %8717 = vmatpush.msra.mxu0 %v8248
        %8718 = vmatpush.msra.mxu0 %v8247
        %8719 = vmatpush.msra.mxu0 %v8246
        %8720 = vmatpush.msra.mxu0 %v8245
        %8721 = vmatpush.msra.mxu0 %v8244
        %8722 = vmatpush.msra.mxu0 %v8243
        %8723 = vmatpush.msra.mxu0 %v8242
        %8724 = vmatpush.msra.mxu0 %v8241
        %8725 = vmatpush.msra.mxu0 %v8240
        %8726 = vmatpush.msra.mxu0 %v8239
        %8727 = vmatpush.msra.mxu0 %v8238
        %8728 = vmatpush.msra.mxu0 %v8237
        %8729 = vmatpush.msra.mxu0 %v8236
        %8730 = vmatpush.msra.mxu0 %v8235
        %8731 = vmatmul.f32.gmra.mxu0 %v8458
        %v8732 = vpop.f32.mrf.mxu0
        %v8733 = vadd.f32 %v8713, %v8732
        %8734 = vdwg.mxu0
        %8735 = vmatpush.msra.mxu0 %v8266
        %8736 = vmatpush.msra.mxu0 %v8265
        %8737 = vmatpush.msra.mxu0 %v8264
        %8738 = vmatpush.msra.mxu0 %v8263
        %8739 = vmatpush.msra.mxu0 %v8262
        %8740 = vmatpush.msra.mxu0 %v8261
        %8741 = vmatpush.msra.mxu0 %v8260
        %8742 = vmatpush.msra.mxu0 %v8259
        %8743 = vmatpush.msra.mxu0 %v8258
        %8744 = vmatpush.msra.mxu0 %v8257
        %8745 = vmatpush.msra.mxu0 %v8256
        %8746 = vmatpush.msra.mxu0 %v8255
        %8747 = vmatpush.msra.mxu0 %v8254
        %8748 = vmatpush.msra.mxu0 %v8253
        %8749 = vmatpush.msra.mxu0 %v8252
        %8750 = vmatpush.msra.mxu0 %v8251
        %8751 = vmatmul.f32.gmra.mxu0 %v8459
        %v8752 = vpop.f32.mrf.mxu0
        %v8753 = vadd.f32 %v8733, %v8752
        %8754 = vdwg.mxu0
        %8755 = vmatpush.msra.mxu0 %v8282
        %8756 = vmatpush.msra.mxu0 %v8281
        %8757 = vmatpush.msra.mxu0 %v8280
        %8758 = vmatpush.msra.mxu0 %v8279
        %8759 = vmatpush.msra.mxu0 %v8278
        %8760 = vmatpush.msra.mxu0 %v8277
        %8761 = vmatpush.msra.mxu0 %v8276
        %8762 = vmatpush.msra.mxu0 %v8275
        %8763 = vmatpush.msra.mxu0 %v8274
        %8764 = vmatpush.msra.mxu0 %v8273
        %8765 = vmatpush.msra.mxu0 %v8272
        %8766 = vmatpush.msra.mxu0 %v8271
        %8767 = vmatpush.msra.mxu0 %v8270
        %8768 = vmatpush.msra.mxu0 %v8269
        %8769 = vmatpush.msra.mxu0 %v8268
        %8770 = vmatpush.msra.mxu0 %v8267
        %8771 = vmatmul.f32.gmra.mxu0 %v8460
        %v8772 = vpop.f32.mrf.mxu0
        %v8773 = vadd.f32 %v8753, %v8772
        %8774 = vdwg.mxu0
        %8775 = vmatpush.msra.mxu0 %v8298
        %8776 = vmatpush.msra.mxu0 %v8297
        %8777 = vmatpush.msra.mxu0 %v8296
        %8778 = vmatpush.msra.mxu0 %v8295
        %8779 = vmatpush.msra.mxu0 %v8294
        %8780 = vmatpush.msra.mxu0 %v8293
        %8781 = vmatpush.msra.mxu0 %v8292
        %8782 = vmatpush.msra.mxu0 %v8291
        %8783 = vmatpush.msra.mxu0 %v8290
        %8784 = vmatpush.msra.mxu0 %v8289
        %8785 = vmatpush.msra.mxu0 %v8288
        %8786 = vmatpush.msra.mxu0 %v8287
        %8787 = vmatpush.msra.mxu0 %v8286
        %8788 = vmatpush.msra.mxu0 %v8285
        %8789 = vmatpush.msra.mxu0 %v8284
        %8790 = vmatpush.msra.mxu0 %v8283
        %8791 = vmatmul.f32.gmra.mxu0 %v8461
        %v8792 = vpop.f32.mrf.mxu0
        %v8793 = vadd.f32 %v8773, %v8792
        %8794 = vdwg.mxu0
        %8795 = vmatpush.msra.mxu0 %v8314
        %8796 = vmatpush.msra.mxu0 %v8313
        %8797 = vmatpush.msra.mxu0 %v8312
        %8798 = vmatpush.msra.mxu0 %v8311
        %8799 = vmatpush.msra.mxu0 %v8310
        %8800 = vmatpush.msra.mxu0 %v8309
        %8801 = vmatpush.msra.mxu0 %v8308
        %8802 = vmatpush.msra.mxu0 %v8307
        %8803 = vmatpush.msra.mxu0 %v8306
        %8804 = vmatpush.msra.mxu0 %v8305
        %8805 = vmatpush.msra.mxu0 %v8304
        %8806 = vmatpush.msra.mxu0 %v8303
        %8807 = vmatpush.msra.mxu0 %v8302
        %8808 = vmatpush.msra.mxu0 %v8301
        %8809 = vmatpush.msra.mxu0 %v8300
        %8810 = vmatpush.msra.mxu0 %v8299
        %8811 = vmatmul.f32.gmra.mxu0 %v8462
        %v8812 = vpop.f32.mrf.mxu0
        %v8813 = vadd.f32 %v8793, %v8812
        %8814 = vdwg.mxu0
        %8815 = vmatpush.msra.mxu0 %v8330
        %8816 = vmatpush.msra.mxu0 %v8329
        %8817 = vmatpush.msra.mxu0 %v8328
        %8818 = vmatpush.msra.mxu0 %v8327
        %8819 = vmatpush.msra.mxu0 %v8326
        %8820 = vmatpush.msra.mxu0 %v8325
        %8821 = vmatpush.msra.mxu0 %v8324
        %8822 = vmatpush.msra.mxu0 %v8323
        %8823 = vmatpush.msra.mxu0 %v8322
        %8824 = vmatpush.msra.mxu0 %v8321
        %8825 = vmatpush.msra.mxu0 %v8320
        %8826 = vmatpush.msra.mxu0 %v8319
        %8827 = vmatpush.msra.mxu0 %v8318
        %8828 = vmatpush.msra.mxu0 %v8317
        %8829 = vmatpush.msra.mxu0 %v8316
        %8830 = vmatpush.msra.mxu0 %v8315
        %8831 = vmatmul.f32.gmra.mxu0 %v8463
        %v8832 = vpop.f32.mrf.mxu0
        %v8833 = vadd.f32 %v8813, %v8832
        %8834 = vdwg.mxu0
        %8835 = vmatpush.msra.mxu0 %v8346
        %8836 = vmatpush.msra.mxu0 %v8345
        %8837 = vmatpush.msra.mxu0 %v8344
        %8838 = vmatpush.msra.mxu0 %v8343
        %8839 = vmatpush.msra.mxu0 %v8342
        %8840 = vmatpush.msra.mxu0 %v8341
        %8841 = vmatpush.msra.mxu0 %v8340
        %8842 = vmatpush.msra.mxu0 %v8339
        %8843 = vmatpush.msra.mxu0 %v8338
        %8844 = vmatpush.msra.mxu0 %v8337
        %8845 = vmatpush.msra.mxu0 %v8336
        %8846 = vmatpush.msra.mxu0 %v8335
        %8847 = vmatpush.msra.mxu0 %v8334
        %8848 = vmatpush.msra.mxu0 %v8333
        %8849 = vmatpush.msra.mxu0 %v8332
        %8850 = vmatpush.msra.mxu0 %v8331
        %8851 = vmatmul.f32.gmra.mxu0 %v8464
        %v8852 = vpop.f32.mrf.mxu0
        %v8853 = vadd.f32 %v8833, %v8852
        %8854 = vdwg.mxu0
        %8855 = vmatpush.msra.mxu0 %v8362
        %8856 = vmatpush.msra.mxu0 %v8361
        %8857 = vmatpush.msra.mxu0 %v8360
        %8858 = vmatpush.msra.mxu0 %v8359
        %8859 = vmatpush.msra.mxu0 %v8358
        %8860 = vmatpush.msra.mxu0 %v8357
        %8861 = vmatpush.msra.mxu0 %v8356
        %8862 = vmatpush.msra.mxu0 %v8355
        %8863 = vmatpush.msra.mxu0 %v8354
        %8864 = vmatpush.msra.mxu0 %v8353
        %8865 = vmatpush.msra.mxu0 %v8352
        %8866 = vmatpush.msra.mxu0 %v8351
        %8867 = vmatpush.msra.mxu0 %v8350
        %8868 = vmatpush.msra.mxu0 %v8349
        %8869 = vmatpush.msra.mxu0 %v8348
        %8870 = vmatpush.msra.mxu0 %v8347
        %8871 = vmatmul.f32.gmra.mxu0 %v8465
        %v8872 = vpop.f32.mrf.mxu0
        %v8873 = vadd.f32 %v8853, %v8872
        %8874 = vdwg.mxu0
        %8875 = vmatpush.msra.mxu0 %v8378
        %8876 = vmatpush.msra.mxu0 %v8377
        %8877 = vmatpush.msra.mxu0 %v8376
        %8878 = vmatpush.msra.mxu0 %v8375
        %8879 = vmatpush.msra.mxu0 %v8374
        %8880 = vmatpush.msra.mxu0 %v8373
        %8881 = vmatpush.msra.mxu0 %v8372
        %8882 = vmatpush.msra.mxu0 %v8371
        %8883 = vmatpush.msra.mxu0 %v8370
        %8884 = vmatpush.msra.mxu0 %v8369
        %8885 = vmatpush.msra.mxu0 %v8368
        %8886 = vmatpush.msra.mxu0 %v8367
        %8887 = vmatpush.msra.mxu0 %v8366
        %8888 = vmatpush.msra.mxu0 %v8365
        %8889 = vmatpush.msra.mxu0 %v8364
        %8890 = vmatpush.msra.mxu0 %v8363
        %8891 = vmatmul.f32.gmra.mxu0 %v8466
        %v8892 = vpop.f32.mrf.mxu0
        %v8893 = vadd.f32 %v8873, %v8892
        %8894 = vdwg.mxu0
        %8895 = vmatpush.msra.mxu0 %v8394
        %8896 = vmatpush.msra.mxu0 %v8393
        %8897 = vmatpush.msra.mxu0 %v8392
        %8898 = vmatpush.msra.mxu0 %v8391
        %8899 = vmatpush.msra.mxu0 %v8390
        %8900 = vmatpush.msra.mxu0 %v8389
        %8901 = vmatpush.msra.mxu0 %v8388
        %8902 = vmatpush.msra.mxu0 %v8387
        %8903 = vmatpush.msra.mxu0 %v8386
        %8904 = vmatpush.msra.mxu0 %v8385
        %8905 = vmatpush.msra.mxu0 %v8384
        %8906 = vmatpush.msra.mxu0 %v8383
        %8907 = vmatpush.msra.mxu0 %v8382
        %8908 = vmatpush.msra.mxu0 %v8381
        %8909 = vmatpush.msra.mxu0 %v8380
        %8910 = vmatpush.msra.mxu0 %v8379
        %8911 = vmatmul.f32.gmra.mxu0 %v8467
        %v8912 = vpop.f32.mrf.mxu0
        %v8913 = vadd.f32 %v8893, %v8912
        %8914 = vdwg.mxu0
        %8915 = vmatpush.msra.mxu0 %v8410
        %8916 = vmatpush.msra.mxu0 %v8409
        %8917 = vmatpush.msra.mxu0 %v8408
        %8918 = vmatpush.msra.mxu0 %v8407
        %8919 = vmatpush.msra.mxu0 %v8406
        %8920 = vmatpush.msra.mxu0 %v8405
        %8921 = vmatpush.msra.mxu0 %v8404
        %8922 = vmatpush.msra.mxu0 %v8403
        %8923 = vmatpush.msra.mxu0 %v8402
        %8924 = vmatpush.msra.mxu0 %v8401
        %8925 = vmatpush.msra.mxu0 %v8400
        %8926 = vmatpush.msra.mxu0 %v8399
        %8927 = vmatpush.msra.mxu0 %v8398
        %8928 = vmatpush.msra.mxu0 %v8397
        %8929 = vmatpush.msra.mxu0 %v8396
        %8930 = vmatpush.msra.mxu0 %v8395
        %8931 = vmatmul.f32.gmra.mxu0 %v8468
        %v8932 = vpop.f32.mrf.mxu0
        %v8933 = vadd.f32 %v8913, %v8932
        %8934 = vdwg.mxu0
        %8935 = vmatpush.msra.mxu0 %v8426
        %8936 = vmatpush.msra.mxu0 %v8425
        %8937 = vmatpush.msra.mxu0 %v8424
        %8938 = vmatpush.msra.mxu0 %v8423
        %8939 = vmatpush.msra.mxu0 %v8422
        %8940 = vmatpush.msra.mxu0 %v8421
        %8941 = vmatpush.msra.mxu0 %v8420
        %8942 = vmatpush.msra.mxu0 %v8419
        %8943 = vmatpush.msra.mxu0 %v8418
        %8944 = vmatpush.msra.mxu0 %v8417
        %8945 = vmatpush.msra.mxu0 %v8416
        %8946 = vmatpush.msra.mxu0 %v8415
        %8947 = vmatpush.msra.mxu0 %v8414
        %8948 = vmatpush.msra.mxu0 %v8413
        %8949 = vmatpush.msra.mxu0 %v8412
        %8950 = vmatpush.msra.mxu0 %v8411
        %8951 = vmatmul.f32.gmra.mxu0 %v8469
        %v8952 = vpop.f32.mrf.mxu0
        %v8953 = vadd.f32 %v8933, %v8952
        %8954 = vdwg.mxu0
        %8955 = vmatpush.msra.mxu0 %v8442
        %8956 = vmatpush.msra.mxu0 %v8441
        %8957 = vmatpush.msra.mxu0 %v8440
        %8958 = vmatpush.msra.mxu0 %v8439
        %8959 = vmatpush.msra.mxu0 %v8438
        %8960 = vmatpush.msra.mxu0 %v8437
        %8961 = vmatpush.msra.mxu0 %v8436
        %8962 = vmatpush.msra.mxu0 %v8435
        %8963 = vmatpush.msra.mxu0 %v8434
        %8964 = vmatpush.msra.mxu0 %v8433
        %8965 = vmatpush.msra.mxu0 %v8432
        %8966 = vmatpush.msra.mxu0 %v8431
        %8967 = vmatpush.msra.mxu0 %v8430
        %8968 = vmatpush.msra.mxu0 %v8429
        %8969 = vmatpush.msra.mxu0 %v8428
        %8970 = vmatpush.msra.mxu0 %v8427
        %8971 = vmatmul.f32.gmra.mxu0 %v8470
        %v8972 = vpop.f32.mrf.mxu0
        %v8973 = vadd.f32 %v8953, %v8972
        %8974 = vdwg.mxu0
        %8975 = vst.msk [vmem:[%s991 + $0x2] sm:$0x1] %vm6593, %v8973
        %p8976 = scmp.lt.s32.totalorder %s74, 1
        %s8977 = scalar_select %p8976, %s74, 1
        %s8978 = smul.addr %s8977, 3
        %s8979 = scalar_lea.vmem %s63, %s8978
        // Predicated region
        $region168: #{branched_mobilenet_forward.1} parent=162 // pred_check
          %p8980 = pneg %p748
        $region169: #{branched_mobilenet_forward.1} parent=162 // pred_check_branch
          %8982 = sbr.rel (%p8980) target = $region171
        $region170: #{branched_mobilenet_forward.1} parent=162 // pred_region
          _
        $region171: #{branched_mobilenet_forward.1} parent=162 // pred_fallthru
          _
      $region163: #{branched_mobilenet_forward.1} parent=5 // pred_fallthru
        _
      %p8983 = scmp.le.s32.totalorder 2, %s69
      // Predicated region
      $region172: #{branched_mobilenet_forward.1} parent=5 // pred_check
        %p8984 = pneg %p8983
      $region173: #{branched_mobilenet_forward.1} parent=5 // pred_check_branch
        %8986 = sbr.rel (%p8984) target = $region175
      $region174: #{branched_mobilenet_forward.1} parent=5 // pred_region
        %s8987 = ssub.s32 %s69, 2
        // Predicated region
        $region176: #{branched_mobilenet_forward.1} parent=174 // pred_check
          %p8988 = pneg %p754
        $region177: #{branched_mobilenet_forward.1} parent=174 // pred_check_branch
          %8990 = sbr.rel (%p8988) target = $region179
        $region178: #{branched_mobilenet_forward.1} parent=174 // pred_region
          %p8991 = scmp.lt.s32.totalorder %s75, 1
          %s8992 = scalar_select %p8991, %s75, 1
          %s8993 = smul.addr %s8992, 3
          %s8994 = scalar_lea.vmem %s63, %s8993
        $region179: #{branched_mobilenet_forward.1} parent=174 // pred_fallthru
          _
      $region175: #{branched_mobilenet_forward.1} parent=5 // pred_fallthru
        _
    $region6: #{branched_mobilenet_forward.1} parent=1 // loop_footer
      %s73 = sadd.s32 1, %s69
    $region7: #{branched_mobilenet_forward.1} parent=1 // loop_footer_branch
      %68 = sbr.rel target = $region3
    $region8: #{branched_mobilenet_forward.1} parent=1 // loop_exit
      _

</llo_original>
